<compile_context>
chip_gen: v5e
topology: v5e:2x2
jax: 0.10.0
libtpu: 0.0.40
codegen_flags: <defaults>
</compile_context>

<pallas_src>
import functools

import jax
import jax.numpy as jnp
from jax.experimental import pallas as pl
from jax.experimental.pallas import tpu as pltpu

LANE = 128
BN_EPS = 1e-5
MARGIN = 8   # zero margin (in columns) inside the scratch; keeps the data
             # store sublane-aligned for the f32 scratch layout.


def _round_up(x, m):
    return (x + m - 1) // m * m


# ---------------------------------------------------------------------------
# Kernel 1: [optional fused input BN+ReLU] + 3x3 conv (9-tap GEMM)
#           + per-tile BatchNorm partial statistics.
# ---------------------------------------------------------------------------
def _conv3x3_stats_kernel(xm_ref, xt_ref, xb_ref, w_ref, sc_ref, sh_ref,
                          y_ref, st_ref, xpad_ref, *, apply_input_act):
    # xm_ref  : (1, th, W, Cin)          main rows of the (unpadded) input tile
    # xt_ref  : (1, 1,  W, Cin)          row just above the tile (clamped)
    # xb_ref  : (1, 1,  W, Cin)          row just below the tile (clamped)
    # w_ref   : (9, Cin, Coutp)   bf16   conv taps, k = dy*3 + dx
    # sc_ref  : (1, Cin)          f32    input-side BN scale (layer fusion)
    # sh_ref  : (1, Cin)          f32    input-side BN shift
    # y_ref   : (1, th, W, Coutp)        raw (pre-BN) conv output
    # st_ref  : (1, 1, 2, Coutp)  f32    per-tile [sum, sum_sq] over th*W rows
    # xpad_ref: (th+2, W+2*MARGIN, Cin) f32 scratch holding the padded tile
    th, w_out, coutp = y_ref.shape[1], y_ref.shape[2], y_ref.shape[3]
    cin = xm_ref.shape[3]
    j = pl.program_id(1)
    last = pl.num_programs(1) - 1

    sc = sc_ref[0]
    sh = sh_ref[0]

    def prep(rows):
        rows = rows.astype(jnp.float32)
        if apply_input_act:
            # Fused BatchNorm + ReLU of the previous layer (interior only; the
            # halo rows outside the image are masked to zero below and the
            # border columns stay zero in the scratch).
            rows = jnp.maximum(rows * sc + sh, 0.0)
        return rows

    zero_row = jnp.zeros((1, w_out, cin), jnp.float32)

    # Rebuild the zero spatial border in VMEM: image columns live in
    # [MARGIN, MARGIN + W); everything else stays zero.  Halo rows that fall
    # outside the image (first / last row tile) are masked to zero.
    xpad_ref[...] = jnp.zeros(xpad_ref.shape, jnp.float32)
    xpad_ref[1:th + 1, MARGIN:MARGIN + w_out, :] = prep(xm_ref[0])
    xpad_ref[0:1, MARGIN:MARGIN + w_out, :] = jnp.where(
        j > 0, prep(xt_ref[0]), zero_row)
    xpad_ref[th + 1:th + 2, MARGIN:MARGIN + w_out, :] = jnp.where(
        j < last, prep(xb_ref[0]), zero_row)

    x = xpad_ref[...].astype(jnp.bfloat16)          # (th+2, W+2*MARGIN, Cin)

    # 9-tap conv as GEMMs: bf16 operands, f32 accumulation on the MXU.
    acc = jnp.zeros((th * w_out, coutp), jnp.float32)
    for k in range(9):
        dy, dx = divmod(k, 3)
        col0 = MARGIN - 1 + dx
        win = x[dy:dy + th, col0:col0 + w_out, :].reshape(th * w_out, cin)
        acc = acc + jnp.dot(win, w_ref[k], preferred_element_type=jnp.float32)

    y_ref[0] = acc.reshape(th, w_out, coutp).astype(y_ref.dtype)
    st_ref[0, 0] = jnp.concatenate(
        [jnp.sum(acc, axis=0, keepdims=True),
         jnp.sum(acc * acc, axis=0, keepdims=True)], axis=0)


# ---------------------------------------------------------------------------
# Kernel 2: tiled, lane-dense normalize + affine + ReLU (final BN of layer 2).
# ---------------------------------------------------------------------------
def _bn_relu_kernel(y_ref, sc_ref, sh_ref, o_ref):
    y = y_ref[...].astype(jnp.float32)
    o_ref[...] = jnp.maximum(y * sc_ref[...] + sh_ref[...], 0.0)


# ---------------------------------------------------------------------------
# pallas_call wrappers
# ---------------------------------------------------------------------------
def _conv3x3_stats(x, w, scale_in, shift_in, *, tile_h, apply_input_act,
                   out_dtype):
    n, h, w_img, cin = x.shape
    t_tiles = h // tile_h
    coutp = w.shape[-1]

    kernel = functools.partial(_conv3x3_stats_kernel,
                               apply_input_act=apply_input_act)

    def top_map(i, j):
        return (i, jnp.maximum(j * tile_h - 1, 0), 0, 0)

    def bot_map(i, j):
        return (i, jnp.minimum((j + 1) * tile_h, h - 1), 0, 0)

    flops = 2 * n * h * w_img * 9 * cin * coutp
    bytes_accessed = int(
        x.size * x.dtype.itemsize + w.size * w.dtype.itemsize +
        n * h * w_img * coutp * jnp.dtype(out_dtype).itemsize +
        n * t_tiles * 2 * coutp * 4)

    return pl.pallas_call(
        kernel,
        out_shape=(
            jax.ShapeDtypeStruct((n, h, w_img, coutp), out_dtype),
            jax.ShapeDtypeStruct((n, t_tiles, 2, coutp), jnp.float32),
        ),
        grid=(n, t_tiles),
        in_specs=[
            pl.BlockSpec((1, tile_h, w_img, cin), lambda i, j: (i, j, 0, 0)),
            pl.BlockSpec((1, 1, w_img, cin), top_map),
            pl.BlockSpec((1, 1, w_img, cin), bot_map),
            pl.BlockSpec((9, cin, coutp), lambda i, j: (0, 0, 0)),
            pl.BlockSpec((1, cin), lambda i, j: (0, 0)),
            pl.BlockSpec((1, cin), lambda i, j: (0, 0)),
        ],
        out_specs=(
            pl.BlockSpec((1, tile_h, w_img, coutp), lambda i, j: (i, j, 0, 0)),
            pl.BlockSpec((1, 1, 2, coutp), lambda i, j: (i, j, 0, 0)),
        ),
        scratch_shapes=[
            pltpu.VMEM((tile_h + 2, w_img + 2 * MARGIN, cin), jnp.float32)],
        compiler_params=pltpu.CompilerParams(
            dimension_semantics=("parallel", "parallel"),
            vmem_limit_bytes=32 * 1024 * 1024,   # safe on v5e/v6e/v7x
        ),
        cost_estimate=pl.CostEstimate(flops=flops, transcendentals=0,
                                      bytes_accessed=bytes_accessed),
    )(x, x, x, w, scale_in, shift_in)


def _bn_relu(y2d, scale, shift, *, tile_rows):
    m, c = y2d.shape
    return pl.pallas_call(
        _bn_relu_kernel,
        out_shape=jax.ShapeDtypeStruct((m, c), jnp.float32),
        grid=(m // tile_rows,),
        in_specs=[
            pl.BlockSpec((tile_rows, c), lambda i: (i, 0)),
            pl.BlockSpec((1, c), lambda i: (0, 0)),
            pl.BlockSpec((1, c), lambda i: (0, 0)),
        ],
        out_specs=pl.BlockSpec((tile_rows, c), lambda i: (i, 0)),
        compiler_params=pltpu.CompilerParams(
            dimension_semantics=("parallel",)),
    )(y2d, scale, shift)


# ---------------------------------------------------------------------------
# Glue helpers (layout plumbing only)
# ---------------------------------------------------------------------------
def _pick_tile_h(h, w_img, cin, coutp, budget_bytes=4 * 1024 * 1024):
    """Largest divisor of H whose per-tile buffers stay within budget."""
    best = 1
    for th in range(1, h + 1):
        if h % th:
            continue
        out_tile = th * w_img * coutp * 4                       # f32 accum/out
        pad_tile = (th + 2) * (w_img + 2 * MARGIN) * cin * 4    # f32 scratch
        if out_tile <= budget_bytes and pad_tile <= budget_bytes:
            best = th
    return best


def _pick_tile_rows(m):
    for tr in (1024, 512, 256, 128, 64, 32, 16, 8):
        if m % tr == 0:
            return tr
    return m


def _prep_weight(w_oihw, coutp, cin_pad=None):
    """torch (Cout, Cin, 3, 3) -> (9, Cin_pad, Cout_pad) bf16, k = dy*3 + dx."""
    cout, cin = w_oihw.shape[0], w_oihw.shape[1]
    w = jnp.transpose(w_oihw, (2, 3, 1, 0)).reshape(9, cin, cout)
    if cin_pad is not None and cin_pad > cin:
        w = jnp.pad(w, ((0, 0), (0, cin_pad - cin), (0, 0)))
    if coutp > cout:
        w = jnp.pad(w, ((0, 0), (0, 0), (0, coutp - cout)))
    return w.astype(jnp.bfloat16)


def _pad_channels(v, n, fill):
    c = v.shape[0]
    if n > c:
        v = jnp.concatenate([v, jnp.full((n - c,), fill, v.dtype)])
    return v.astype(jnp.float32)


def _bn_scale_shift(stats, gamma_p, beta_p, count, eps=BN_EPS):
    """Fold batch-stat BN into y*scale + shift (f32)."""
    sums = jnp.sum(stats, axis=(0, 1))                 # (2, Coutp)
    mean = sums[0] / count
    var = jnp.maximum(sums[1] / count - mean * mean, 0.0)   # guard precision
    inv = jax.lax.rsqrt(var + eps)
    scale = gamma_p * inv
    shift = beta_p - mean * scale
    return scale.reshape(1, -1), shift.reshape(1, -1)


# ---------------------------------------------------------------------------
# DoubleConv forward (NCHW in, NCHW out — matches the PyTorch module,
# training-mode BatchNorm semantics like a fresh nn.Module forward)
# ---------------------------------------------------------------------------
def double_conv_forward(x_nchw, params):
    n, cin, h, w_img = x_nchw.shape
    cout = params["w1"].shape[0]
    coutp = _round_up(cout, LANE)
    count = n * h * w_img

    x = jnp.transpose(x_nchw, (0, 2, 3, 1)).astype(jnp.float32)   # NHWC f32

    w1 = _prep_weight(params["w1"], coutp)                        # (9,Cin,Coutp)
    w2 = _prep_weight(params["w2"], coutp, cin_pad=coutp)         # (9,Coutp,Coutp)
    g1 = _pad_channels(params["gamma1"], coutp, 1.0)
    b1 = _pad_channels(params["beta1"], coutp, 0.0)
    g2 = _pad_channels(params["gamma2"], coutp, 1.0)
    b2 = _pad_channels(params["beta2"], coutp, 0.0)
    # NOTE: conv biases (params["b1"], params["b2"]) are intentionally unused:
    # a per-channel constant cancels exactly in the batch-stat BatchNorm.

    # ---------------- layer 1: conv3x3 + BN partial stats ----------------
    th1 = _pick_tile_h(h, w_img, cin, coutp)
    dummy = jnp.zeros((1, cin), jnp.float32)
    y1_raw, st1 = _conv3x3_stats(
        x, w1, dummy, dummy,
        tile_h=th1, apply_input_act=False, out_dtype=jnp.bfloat16)
    scale1, shift1 = _bn_scale_shift(st1, g1, b1, count)

    # ------- layer 2: fused BN1+ReLU (input path) + conv3x3 + stats -------
    th2 = _pick_tile_h(h, w_img, coutp, coutp)
    y2_raw, st2 = _conv3x3_stats(
        y1_raw, w2, scale1, shift1,
        tile_h=th2, apply_input_act=True, out_dtype=jnp.float32)
    scale2, shift2 = _bn_scale_shift(st2, g2, b2, count)

    # ---------------- final BN2 + ReLU (tiled, lane-dense) ----------------
    y2d = y2_raw.reshape(count, coutp)
    out = _bn_relu(y2d, scale2, shift2, tile_rows=_pick_tile_rows(count))
    out = out.reshape(n, h, w_img, coutp)[..., :cout]
    return jnp.transpose(out, (0, 3, 1, 2))               # back to NCHW


# ---------------------------------------------------------------------------
# Deterministic parameter init (shapes follow nn.Conv2d / nn.BatchNorm2d)
# ---------------------------------------------------------------------------
def init_params(key, in_channels, out_channels):
    k1, k2, k3, k4 = jax.random.split(key, 4)
    fan1 = in_channels * 9
    fan2 = out_channels * 9
    bound1 = 1.0 / jnp.sqrt(fan1)
    bound2 = 1.0 / jnp.sqrt(fan2)
    return {
        "w1": jax.random.uniform(k1, (out_channels, in_channels, 3, 3),
                                 jnp.float32, -bound1, bound1),
        "b1": jax.random.uniform(k2, (out_channels,), jnp.float32,
                                 -bound1, bound1),
        "gamma1": jnp.ones((out_channels,), jnp.float32),
        "beta1": jnp.zeros((out_channels,), jnp.float32),
        "w2": jax.random.uniform(k3, (out_channels, out_channels, 3, 3),
                                 jnp.float32, -bound2, bound2),
        "b2": jax.random.uniform(k4, (out_channels,), jnp.float32,
                                 -bound2, bound2),
        "gamma2": jnp.ones((out_channels,), jnp.float32),
        "beta2": jnp.zeros((out_channels,), jnp.float32),
    }


if __name__ == "__main__":
    key = jax.random.PRNGKey(0)
    kx, kp = jax.random.split(key)

    in_channels, out_channels = 4, 8
    n, h, w = 2, 16, 16

    x = jax.random.normal(kx, (n, in_channels, h, w), jnp.float32)   # NCHW
    params = init_params(kp, in_channels, out_channels)

    out = jax.jit(double_conv_forward)(x, params)
    out = jax.block_until_ready(out)

    assert out.shape == (n, out_channels, h, w), out.shape
    assert bool(jnp.all(jnp.isfinite(out)))
    assert float(jnp.min(out)) >= 0.0   # ReLU output
    print("KERNEL_OK")
</pallas_src>

<mosaic_0001>
module attributes {stable_mosaic.version = 11 : i64} {
  func.func @_conv3x3_stats_kernel(%arg0: i32, %arg1: i32, %arg2: memref<1x16x16x4xf32, #tpu.memory_space<vmem>>, %arg3: memref<1x1x16x4xf32, #tpu.memory_space<vmem>>, %arg4: memref<1x1x16x4xf32, #tpu.memory_space<vmem>>, %arg5: memref<9x4x128xbf16, #tpu.memory_space<vmem>>, %arg6: memref<1x4xf32, #tpu.memory_space<vmem>>, %arg7: memref<1x4xf32, #tpu.memory_space<vmem>>, %arg8: memref<1x16x16x128xbf16, #tpu.memory_space<vmem>>, %arg9: memref<1x1x2x128xf32, #tpu.memory_space<vmem>>, %arg10: memref<18x32x4xf32, #tpu.memory_space<vmem>>) attributes {dimension_semantics = [#tpu.dimension_semantics<parallel>, #tpu.dimension_semantics<parallel>], iteration_bounds = array<i64: 2, 1>, scalar_prefetch = 0 : i64, scratch_operands = 1 : i64, tpu.core_type = #tpu.core_type<tc>, window_params = [{transform_indices = @transform_0, window_bounds = array<i64: 1, 16, 16, 4>}, {transform_indices = @transform_1, window_bounds = array<i64: 1, 1, 16, 4>}, {transform_indices = @transform_2, window_bounds = array<i64: 1, 1, 16, 4>}, {pipeline_mode = #tpu.pipeline_mode<synchronous>, transform_indices = @transform_3, window_bounds = array<i64: 9, 4, 128>}, {pipeline_mode = #tpu.pipeline_mode<synchronous>, transform_indices = @transform_4, window_bounds = array<i64: 1, 4>}, {pipeline_mode = #tpu.pipeline_mode<synchronous>, transform_indices = @transform_5, window_bounds = array<i64: 1, 4>}, {transform_indices = @transform_6, window_bounds = array<i64: 1, 16, 16, 128>}, {transform_indices = @transform_7, window_bounds = array<i64: 1, 1, 2, 128>}]} {
    %cst = arith.constant 0.000000e+00 : f32
    %0 = vector.broadcast %cst : f32 to vector<1x16x4xf32>
    %cst_0 = arith.constant 0.000000e+00 : f32
    %1 = vector.broadcast %cst_0 : f32 to vector<18x32x4xf32>
    %c0 = arith.constant 0 : index
    %c0_1 = arith.constant 0 : index
    %c0_2 = arith.constant 0 : index
    %2 = vector.load %arg10[%c0, %c0_1, %c0_2] : memref<18x32x4xf32, #tpu.memory_space<vmem>>, vector<18x32x4xf32>
    tpu.vector_store %arg10[%c0, %c0_1, %c0_2], %1 {strides = array<i32>} : memref<18x32x4xf32, #tpu.memory_space<vmem>>, vector<18x32x4xf32>,
    %c0_3 = arith.constant 0 : index
    %c0_4 = arith.constant 0 : index
    %c0_5 = arith.constant 0 : index
    %c0_6 = arith.constant 0 : index
    %3 = vector.load %arg2[%c0_3, %c0_4, %c0_5, %c0_6] : memref<1x16x16x4xf32, #tpu.memory_space<vmem>>, vector<1x16x16x4xf32>
    %4 = vector.shape_cast %3 : vector<1x16x16x4xf32> to vector<16x16x4xf32>
    %c1 = arith.constant 1 : index
    %c8 = arith.constant 8 : index
    %c0_7 = arith.constant 0 : index
    %5 = vector.load %arg10[%c1, %c8, %c0_7] : memref<18x32x4xf32, #tpu.memory_space<vmem>>, vector<16x16x4xf32>
    tpu.vector_store %arg10[%c1, %c8, %c0_7], %4 {strides = array<i32>} : memref<18x32x4xf32, #tpu.memory_space<vmem>>, vector<16x16x4xf32>,
    %c0_i32 = arith.constant 0 : i32
    %6 = arith.cmpi sgt, %arg1, %c0_i32 : i32
    %c0_8 = arith.constant 0 : index
    %c0_9 = arith.constant 0 : index
    %c0_10 = arith.constant 0 : index
    %c0_11 = arith.constant 0 : index
    %7 = vector.load %arg3[%c0_8, %c0_9, %c0_10, %c0_11] : memref<1x1x16x4xf32, #tpu.memory_space<vmem>>, vector<1x1x16x4xf32>
    %8 = vector.shape_cast %7 : vector<1x1x16x4xf32> to vector<1x16x4xf32>
    %9 = arith.select %6, %8, %0 : vector<1x16x4xf32>
    %c0_12 = arith.constant 0 : index
    %c8_13 = arith.constant 8 : index
    %c0_14 = arith.constant 0 : index
    %10 = vector.load %arg10[%c0_12, %c8_13, %c0_14] : memref<18x32x4xf32, #tpu.memory_space<vmem>>, vector<1x16x4xf32>
    tpu.vector_store %arg10[%c0_12, %c8_13, %c0_14], %9 {strides = array<i32>} : memref<18x32x4xf32, #tpu.memory_space<vmem>>, vector<1x16x4xf32>,
    %c0_i32_15 = arith.constant 0 : i32
    %11 = arith.cmpi slt, %arg1, %c0_i32_15 : i32
    %c0_16 = arith.constant 0 : index
    %c0_17 = arith.constant 0 : index
    %c0_18 = arith.constant 0 : index
    %c0_19 = arith.constant 0 : index
    %12 = vector.load %arg4[%c0_16, %c0_17, %c0_18, %c0_19] : memref<1x1x16x4xf32, #tpu.memory_space<vmem>>, vector<1x1x16x4xf32>
    %13 = vector.shape_cast %12 : vector<1x1x16x4xf32> to vector<1x16x4xf32>
    %14 = arith.select %11, %13, %0 : vector<1x16x4xf32>
    %c17 = arith.constant 17 : index
    %c8_20 = arith.constant 8 : index
    %c0_21 = arith.constant 0 : index
    %15 = vector.load %arg10[%c17, %c8_20, %c0_21] : memref<18x32x4xf32, #tpu.memory_space<vmem>>, vector<1x16x4xf32>
    tpu.vector_store %arg10[%c17, %c8_20, %c0_21], %14 {strides = array<i32>} : memref<18x32x4xf32, #tpu.memory_space<vmem>>, vector<1x16x4xf32>,
    %c0_22 = arith.constant 0 : index
    %c0_23 = arith.constant 0 : index
    %c0_24 = arith.constant 0 : index
    %16 = vector.load %arg10[%c0_22, %c0_23, %c0_24] : memref<18x32x4xf32, #tpu.memory_space<vmem>>, vector<18x32x4xf32>
    %17 = arith.truncf %16 : vector<18x32x4xf32> to vector<18x32x4xbf16>
    %cst_25 = arith.constant 0.000000e+00 : f32
    %18 = vector.broadcast %cst_25 : f32 to vector<256x128xf32>
    %19 = vector.extract_strided_slice %17 {offsets = [0, 7, 0], sizes = [16, 16, 4], strides = [1, 1, 1]} : vector<18x32x4xbf16> to vector<16x16x4xbf16>
    %20 = vector.shape_cast %19 : vector<16x16x4xbf16> to vector<256x4xbf16>
    %c0_26 = arith.constant 0 : index
    %c0_27 = arith.constant 0 : index
    %c0_28 = arith.constant 0 : index
    %21 = vector.load %arg5[%c0_26, %c0_27, %c0_28] : memref<9x4x128xbf16, #tpu.memory_space<vmem>>, vector<1x4x128xbf16>
    %22 = vector.shape_cast %21 : vector<1x4x128xbf16> to vector<4x128xbf16>
    %cst_29 = arith.constant dense<0.000000e+00> : vector<256x128xf32>
    %23 = tpu.matmul %20, %22, %cst_29 {dimension_numbers = #tpu.dot_dimension_numbers<[1], [0], [0], [1], [0, 0, 1, 1], [], []>} : vector<256x4xbf16>, vector<4x128xbf16>, vector<256x128xf32> -> vector<256x128xf32>
    %24 = arith.addf %18, %23 : vector<256x128xf32>
    %25 = vector.extract_strided_slice %17 {offsets = [0, 8, 0], sizes = [16, 16, 4], strides = [1, 1, 1]} : vector<18x32x4xbf16> to vector<16x16x4xbf16>
    %26 = vector.shape_cast %25 : vector<16x16x4xbf16> to vector<256x4xbf16>
    %c1_30 = arith.constant 1 : index
    %c0_31 = arith.constant 0 : index
    %c0_32 = arith.constant 0 : index
    %27 = vector.load %arg5[%c1_30, %c0_31, %c0_32] : memref<9x4x128xbf16, #tpu.memory_space<vmem>>, vector<1x4x128xbf16>
    %28 = vector.shape_cast %27 : vector<1x4x128xbf16> to vector<4x128xbf16>
    %cst_33 = arith.constant dense<0.000000e+00> : vector<256x128xf32>
    %29 = tpu.matmul %26, %28, %cst_33 {dimension_numbers = #tpu.dot_dimension_numbers<[1], [0], [0], [1], [0, 0, 1, 1], [], []>} : vector<256x4xbf16>, vector<4x128xbf16>, vector<256x128xf32> -> vector<256x128xf32>
    %30 = arith.addf %24, %29 : vector<256x128xf32>
    %31 = vector.extract_strided_slice %17 {offsets = [0, 9, 0], sizes = [16, 16, 4], strides = [1, 1, 1]} : vector<18x32x4xbf16> to vector<16x16x4xbf16>
    %32 = vector.shape_cast %31 : vector<16x16x4xbf16> to vector<256x4xbf16>
    %c2 = arith.constant 2 : index
    %c0_34 = arith.constant 0 : index
    %c0_35 = arith.constant 0 : index
    %33 = vector.load %arg5[%c2, %c0_34, %c0_35] : memref<9x4x128xbf16, #tpu.memory_space<vmem>>, vector<1x4x128xbf16>
    %34 = vector.shape_cast %33 : vector<1x4x128xbf16> to vector<4x128xbf16>
    %cst_36 = arith.constant dense<0.000000e+00> : vector<256x128xf32>
    %35 = tpu.matmul %32, %34, %cst_36 {dimension_numbers = #tpu.dot_dimension_numbers<[1], [0], [0], [1], [0, 0, 1, 1], [], []>} : vector<256x4xbf16>, vector<4x128xbf16>, vector<256x128xf32> -> vector<256x128xf32>
    %36 = arith.addf %30, %35 : vector<256x128xf32>
    %37 = vector.extract_strided_slice %17 {offsets = [1, 7, 0], sizes = [16, 16, 4], strides = [1, 1, 1]} : vector<18x32x4xbf16> to vector<16x16x4xbf16>
    %38 = vector.shape_cast %37 : vector<16x16x4xbf16> to vector<256x4xbf16>
    %c3 = arith.constant 3 : index
    %c0_37 = arith.constant 0 : index
    %c0_38 = arith.constant 0 : index
    %39 = vector.load %arg5[%c3, %c0_37, %c0_38] : memref<9x4x128xbf16, #tpu.memory_space<vmem>>, vector<1x4x128xbf16>
    %40 = vector.shape_cast %39 : vector<1x4x128xbf16> to vector<4x128xbf16>
    %cst_39 = arith.constant dense<0.000000e+00> : vector<256x128xf32>
    %41 = tpu.matmul %38, %40, %cst_39 {dimension_numbers = #tpu.dot_dimension_numbers<[1], [0], [0], [1], [0, 0, 1, 1], [], []>} : vector<256x4xbf16>, vector<4x128xbf16>, vector<256x128xf32> -> vector<256x128xf32>
    %42 = arith.addf %36, %41 : vector<256x128xf32>
    %43 = vector.extract_strided_slice %17 {offsets = [1, 8, 0], sizes = [16, 16, 4], strides = [1, 1, 1]} : vector<18x32x4xbf16> to vector<16x16x4xbf16>
    %44 = vector.shape_cast %43 : vector<16x16x4xbf16> to vector<256x4xbf16>
    %c4 = arith.constant 4 : index
    %c0_40 = arith.constant 0 : index
    %c0_41 = arith.constant 0 : index
    %45 = vector.load %arg5[%c4, %c0_40, %c0_41] : memref<9x4x128xbf16, #tpu.memory_space<vmem>>, vector<1x4x128xbf16>
    %46 = vector.shape_cast %45 : vector<1x4x128xbf16> to vector<4x128xbf16>
    %cst_42 = arith.constant dense<0.000000e+00> : vector<256x128xf32>
    %47 = tpu.matmul %44, %46, %cst_42 {dimension_numbers = #tpu.dot_dimension_numbers<[1], [0], [0], [1], [0, 0, 1, 1], [], []>} : vector<256x4xbf16>, vector<4x128xbf16>, vector<256x128xf32> -> vector<256x128xf32>
    %48 = arith.addf %42, %47 : vector<256x128xf32>
    %49 = vector.extract_strided_slice %17 {offsets = [1, 9, 0], sizes = [16, 16, 4], strides = [1, 1, 1]} : vector<18x32x4xbf16> to vector<16x16x4xbf16>
    %50 = vector.shape_cast %49 : vector<16x16x4xbf16> to vector<256x4xbf16>
    %c5 = arith.constant 5 : index
    %c0_43 = arith.constant 0 : index
    %c0_44 = arith.constant 0 : index
    %51 = vector.load %arg5[%c5, %c0_43, %c0_44] : memref<9x4x128xbf16, #tpu.memory_space<vmem>>, vector<1x4x128xbf16>
    %52 = vector.shape_cast %51 : vector<1x4x128xbf16> to vector<4x128xbf16>
    %cst_45 = arith.constant dense<0.000000e+00> : vector<256x128xf32>
    %53 = tpu.matmul %50, %52, %cst_45 {dimension_numbers = #tpu.dot_dimension_numbers<[1], [0], [0], [1], [0, 0, 1, 1], [], []>} : vector<256x4xbf16>, vector<4x128xbf16>, vector<256x128xf32> -> vector<256x128xf32>
    %54 = arith.addf %48, %53 : vector<256x128xf32>
    %55 = vector.extract_strided_slice %17 {offsets = [2, 7, 0], sizes = [16, 16, 4], strides = [1, 1, 1]} : vector<18x32x4xbf16> to vector<16x16x4xbf16>
    %56 = vector.shape_cast %55 : vector<16x16x4xbf16> to vector<256x4xbf16>
    %c6 = arith.constant 6 : index
    %c0_46 = arith.constant 0 : index
    %c0_47 = arith.constant 0 : index
    %57 = vector.load %arg5[%c6, %c0_46, %c0_47] : memref<9x4x128xbf16, #tpu.memory_space<vmem>>, vector<1x4x128xbf16>
    %58 = vector.shape_cast %57 : vector<1x4x128xbf16> to vector<4x128xbf16>
    %cst_48 = arith.constant dense<0.000000e+00> : vector<256x128xf32>
    %59 = tpu.matmul %56, %58, %cst_48 {dimension_numbers = #tpu.dot_dimension_numbers<[1], [0], [0], [1], [0, 0, 1, 1], [], []>} : vector<256x4xbf16>, vector<4x128xbf16>, vector<256x128xf32> -> vector<256x128xf32>
    %60 = arith.addf %54, %59 : vector<256x128xf32>
    %61 = vector.extract_strided_slice %17 {offsets = [2, 8, 0], sizes = [16, 16, 4], strides = [1, 1, 1]} : vector<18x32x4xbf16> to vector<16x16x4xbf16>
    %62 = vector.shape_cast %61 : vector<16x16x4xbf16> to vector<256x4xbf16>
    %c7 = arith.constant 7 : index
    %c0_49 = arith.constant 0 : index
    %c0_50 = arith.constant 0 : index
    %63 = vector.load %arg5[%c7, %c0_49, %c0_50] : memref<9x4x128xbf16, #tpu.memory_space<vmem>>, vector<1x4x128xbf16>
    %64 = vector.shape_cast %63 : vector<1x4x128xbf16> to vector<4x128xbf16>
    %cst_51 = arith.constant dense<0.000000e+00> : vector<256x128xf32>
    %65 = tpu.matmul %62, %64, %cst_51 {dimension_numbers = #tpu.dot_dimension_numbers<[1], [0], [0], [1], [0, 0, 1, 1], [], []>} : vector<256x4xbf16>, vector<4x128xbf16>, vector<256x128xf32> -> vector<256x128xf32>
    %66 = arith.addf %60, %65 : vector<256x128xf32>
    %67 = vector.extract_strided_slice %17 {offsets = [2, 9, 0], sizes = [16, 16, 4], strides = [1, 1, 1]} : vector<18x32x4xbf16> to vector<16x16x4xbf16>
    %68 = vector.shape_cast %67 : vector<16x16x4xbf16> to vector<256x4xbf16>
    %c8_52 = arith.constant 8 : index
    %c0_53 = arith.constant 0 : index
    %c0_54 = arith.constant 0 : index
    %69 = vector.load %arg5[%c8_52, %c0_53, %c0_54] : memref<9x4x128xbf16, #tpu.memory_space<vmem>>, vector<1x4x128xbf16>
    %70 = vector.shape_cast %69 : vector<1x4x128xbf16> to vector<4x128xbf16>
    %cst_55 = arith.constant dense<0.000000e+00> : vector<256x128xf32>
    %71 = tpu.matmul %68, %70, %cst_55 {dimension_numbers = #tpu.dot_dimension_numbers<[1], [0], [0], [1], [0, 0, 1, 1], [], []>} : vector<256x4xbf16>, vector<4x128xbf16>, vector<256x128xf32> -> vector<256x128xf32>
    %72 = arith.addf %66, %71 : vector<256x128xf32>
    %73 = vector.shape_cast %72 : vector<256x128xf32> to vector<16x16x128xf32>
    %74 = arith.truncf %73 : vector<16x16x128xf32> to vector<16x16x128xbf16>
    %c0_56 = arith.constant 0 : index
    %c0_57 = arith.constant 0 : index
    %c0_58 = arith.constant 0 : index
    %c0_59 = arith.constant 0 : index
    %75 = vector.load %arg8[%c0_56, %c0_57, %c0_58, %c0_59] : memref<1x16x16x128xbf16, #tpu.memory_space<vmem>>, vector<1x16x16x128xbf16>
    %76 = vector.shape_cast %75 : vector<1x16x16x128xbf16> to vector<16x16x128xbf16>
    %77 = vector.shape_cast %74 : vector<16x16x128xbf16> to vector<1x16x16x128xbf16>
    tpu.vector_store %arg8[%c0_56, %c0_57, %c0_58, %c0_59], %77 {strides = array<i32>} : memref<1x16x16x128xbf16, #tpu.memory_space<vmem>>, vector<1x16x16x128xbf16>,
    %cst_60 = arith.constant dense<0.000000e+00> : vector<128xf32>
    %78 = vector.multi_reduction <add>, %72, %cst_60 [0] : vector<256x128xf32> to vector<128xf32>
    %79 = vector.shape_cast %78 : vector<128xf32> to vector<1x128xf32>
    %80 = arith.mulf %72, %72 : vector<256x128xf32>
    %cst_61 = arith.constant dense<0.000000e+00> : vector<128xf32>
    %81 = vector.multi_reduction <add>, %80, %cst_61 [0] : vector<256x128xf32> to vector<128xf32>
    %82 = vector.shape_cast %81 : vector<128xf32> to vector<1x128xf32>
    %83 = tpu.concatenate %79, %82 in 0 : vector<1x128xf32>, vector<1x128xf32> -> vector<2x128xf32>
    %c0_62 = arith.constant 0 : index
    %c0_63 = arith.constant 0 : index
    %c0_64 = arith.constant 0 : index
    %c0_65 = arith.constant 0 : index
    %84 = vector.load %arg9[%c0_62, %c0_63, %c0_64, %c0_65] : memref<1x1x2x128xf32, #tpu.memory_space<vmem>>, vector<1x1x2x128xf32>
    %85 = vector.shape_cast %84 : vector<1x1x2x128xf32> to vector<2x128xf32>
    %86 = vector.shape_cast %83 : vector<2x128xf32> to vector<1x1x2x128xf32>
    tpu.vector_store %arg9[%c0_62, %c0_63, %c0_64, %c0_65], %86 {strides = array<i32>} : memref<1x1x2x128xf32, #tpu.memory_space<vmem>>, vector<1x1x2x128xf32>,
    return
  }
  func.func @transform_0(%arg0: i32, %arg1: i32) -> (i32, i32, i32, i32) {
    %c0_i32 = arith.constant 0 : i32
    %c0_i32_0 = arith.constant 0 : i32
    %c0_i32_1 = arith.constant 0 : i32
    return %arg0, %arg1, %c0_i32, %c0_i32_0 : i32, i32, i32, i32
  }
  func.func @transform_1(%arg0: i32, %arg1: i32) -> (i32, i32, i32, i32) {
    %c16_i32 = arith.constant 16 : i32
    %0 = arith.muli %arg1, %c16_i32 : i32
    %c1_i32 = arith.constant 1 : i32
    %1 = arith.subi %0, %c1_i32 : i32
    %c0_i32 = arith.constant 0 : i32
    %2 = arith.maxsi %1, %c0_i32 : i32
    %c0_i32_0 = arith.constant 0 : i32
    %c0_i32_1 = arith.constant 0 : i32
    %c0_i32_2 = arith.constant 0 : i32
    return %arg0, %2, %c0_i32_0, %c0_i32_1 : i32, i32, i32, i32
  }
  func.func @transform_2(%arg0: i32, %arg1: i32) -> (i32, i32, i32, i32) {
    %c1_i32 = arith.constant 1 : i32
    %0 = arith.addi %arg1, %c1_i32 : i32
    %c16_i32 = arith.constant 16 : i32
    %1 = arith.muli %0, %c16_i32 : i32
    %c15_i32 = arith.constant 15 : i32
    %2 = arith.minsi %1, %c15_i32 : i32
    %c0_i32 = arith.constant 0 : i32
    %c0_i32_0 = arith.constant 0 : i32
    %c0_i32_1 = arith.constant 0 : i32
    return %arg0, %2, %c0_i32, %c0_i32_0 : i32, i32, i32, i32
  }
  func.func @transform_3(%arg0: i32, %arg1: i32) -> (i32, i32, i32) {
    %c0_i32 = arith.constant 0 : i32
    %c0_i32_0 = arith.constant 0 : i32
    %c0_i32_1 = arith.constant 0 : i32
    %c0_i32_2 = arith.constant 0 : i32
    return %c0_i32, %c0_i32_0, %c0_i32_1 : i32, i32, i32
  }
  func.func @transform_4(%arg0: i32, %arg1: i32) -> (i32, i32) {
    %c0_i32 = arith.constant 0 : i32
    %c0_i32_0 = arith.constant 0 : i32
    %c0_i32_1 = arith.constant 0 : i32
    return %c0_i32, %c0_i32_0 : i32, i32
  }
  func.func @transform_5(%arg0: i32, %arg1: i32) -> (i32, i32) {
    %c0_i32 = arith.constant 0 : i32
    %c0_i32_0 = arith.constant 0 : i32
    %c0_i32_1 = arith.constant 0 : i32
    return %c0_i32, %c0_i32_0 : i32, i32
  }
  func.func @transform_6(%arg0: i32, %arg1: i32) -> (i32, i32, i32, i32) {
    %c0_i32 = arith.constant 0 : i32
    %c0_i32_0 = arith.constant 0 : i32
    %c0_i32_1 = arith.constant 0 : i32
    return %arg0, %arg1, %c0_i32, %c0_i32_0 : i32, i32, i32, i32
  }
  func.func @transform_7(%arg0: i32, %arg1: i32) -> (i32, i32, i32, i32) {
    %c0_i32 = arith.constant 0 : i32
    %c0_i32_0 = arith.constant 0 : i32
    %c0_i32_1 = arith.constant 0 : i32
    return %arg0, %arg1, %c0_i32, %c0_i32_0 : i32, i32, i32, i32
  }
}

module attributes {stable_mosaic.version = 11 : i64} {
  func.func @_conv3x3_stats_kernel(%arg0: i32, %arg1: i32, %arg2: memref<1x16x16x128xbf16, #tpu.memory_space<vmem>>, %arg3: memref<1x1x16x128xbf16, #tpu.memory_space<vmem>>, %arg4: memref<1x1x16x128xbf16, #tpu.memory_space<vmem>>, %arg5: memref<9x128x128xbf16, #tpu.memory_space<vmem>>, %arg6: memref<1x128xf32, #tpu.memory_space<vmem>>, %arg7: memref<1x128xf32, #tpu.memory_space<vmem>>, %arg8: memref<1x16x16x128xf32, #tpu.memory_space<vmem>>, %arg9: memref<1x1x2x128xf32, #tpu.memory_space<vmem>>, %arg10: memref<18x32x128xf32, #tpu.memory_space<vmem>>) attributes {dimension_semantics = [#tpu.dimension_semantics<parallel>, #tpu.dimension_semantics<parallel>], iteration_bounds = array<i64: 2, 1>, scalar_prefetch = 0 : i64, scratch_operands = 1 : i64, tpu.core_type = #tpu.core_type<tc>, window_params = [{transform_indices = @transform_0, window_bounds = array<i64: 1, 16, 16, 128>}, {transform_indices = @transform_1, window_bounds = array<i64: 1, 1, 16, 128>}, {transform_indices = @transform_2, window_bounds = array<i64: 1, 1, 16, 128>}, {pipeline_mode = #tpu.pipeline_mode<synchronous>, transform_indices = @transform_3, window_bounds = array<i64: 9, 128, 128>}, {pipeline_mode = #tpu.pipeline_mode<synchronous>, transform_indices = @transform_4, window_bounds = array<i64: 1, 128>}, {pipeline_mode = #tpu.pipeline_mode<synchronous>, transform_indices = @transform_5, window_bounds = array<i64: 1, 128>}, {transform_indices = @transform_6, window_bounds = array<i64: 1, 16, 16, 128>}, {transform_indices = @transform_7, window_bounds = array<i64: 1, 1, 2, 128>}]} {
    %c0 = arith.constant 0 : index
    %c0_0 = arith.constant 0 : index
    %0 = vector.load %arg6[%c0, %c0_0] : memref<1x128xf32, #tpu.memory_space<vmem>>, vector<1x128xf32>
    %1 = vector.shape_cast %0 : vector<1x128xf32> to vector<128xf32>
    %c0_1 = arith.constant 0 : index
    %c0_2 = arith.constant 0 : index
    %2 = vector.load %arg7[%c0_1, %c0_2] : memref<1x128xf32, #tpu.memory_space<vmem>>, vector<1x128xf32>
    %3 = vector.shape_cast %2 : vector<1x128xf32> to vector<128xf32>
    %cst = arith.constant 0.000000e+00 : f32
    %4 = vector.broadcast %cst : f32 to vector<1x16x128xf32>
    %cst_3 = arith.constant 0.000000e+00 : f32
    %5 = vector.broadcast %cst_3 : f32 to vector<18x32x128xf32>
    %c0_4 = arith.constant 0 : index
    %c0_5 = arith.constant 0 : index
    %c0_6 = arith.constant 0 : index
    %6 = vector.load %arg10[%c0_4, %c0_5, %c0_6] : memref<18x32x128xf32, #tpu.memory_space<vmem>>, vector<18x32x128xf32>
    tpu.vector_store %arg10[%c0_4, %c0_5, %c0_6], %5 {strides = array<i32>} : memref<18x32x128xf32, #tpu.memory_space<vmem>>, vector<18x32x128xf32>,
    %c0_7 = arith.constant 0 : index
    %c0_8 = arith.constant 0 : index
    %c0_9 = arith.constant 0 : index
    %c0_10 = arith.constant 0 : index
    %7 = vector.load %arg2[%c0_7, %c0_8, %c0_9, %c0_10] : memref<1x16x16x128xbf16, #tpu.memory_space<vmem>>, vector<1x16x16x128xbf16>
    %8 = vector.shape_cast %7 : vector<1x16x16x128xbf16> to vector<16x16x128xbf16>
    %9 = arith.extf %8 : vector<16x16x128xbf16> to vector<16x16x128xf32>
    %10 = vector.shape_cast %1 : vector<128xf32> to vector<1x1x128xf32>
    %11 = vector.broadcast %10 : vector<1x1x128xf32> to vector<16x16x128xf32>
    %12 = arith.mulf %9, %11 : vector<16x16x128xf32>
    %13 = vector.shape_cast %3 : vector<128xf32> to vector<1x1x128xf32>
    %14 = vector.broadcast %13 : vector<1x1x128xf32> to vector<16x16x128xf32>
    %15 = arith.addf %12, %14 : vector<16x16x128xf32>
    %cst_11 = arith.constant 0.000000e+00 : f32
    %16 = vector.broadcast %cst_11 : f32 to vector<16x16x128xf32>
    %17 = arith.maximumf %15, %16 : vector<16x16x128xf32>
    %c1 = arith.constant 1 : index
    %c8 = arith.constant 8 : index
    %c0_12 = arith.constant 0 : index
    %18 = vector.load %arg10[%c1, %c8, %c0_12] : memref<18x32x128xf32, #tpu.memory_space<vmem>>, vector<16x16x128xf32>
    tpu.vector_store %arg10[%c1, %c8, %c0_12], %17 {strides = array<i32>} : memref<18x32x128xf32, #tpu.memory_space<vmem>>, vector<16x16x128xf32>,
    %c0_i32 = arith.constant 0 : i32
    %19 = arith.cmpi sgt, %arg1, %c0_i32 : i32
    %c0_13 = arith.constant 0 : index
    %c0_14 = arith.constant 0 : index
    %c0_15 = arith.constant 0 : index
    %c0_16 = arith.constant 0 : index
    %20 = vector.load %arg3[%c0_13, %c0_14, %c0_15, %c0_16] : memref<1x1x16x128xbf16, #tpu.memory_space<vmem>>, vector<1x1x16x128xbf16>
    %21 = vector.shape_cast %20 : vector<1x1x16x128xbf16> to vector<1x16x128xbf16>
    %22 = arith.extf %21 : vector<1x16x128xbf16> to vector<1x16x128xf32>
    %23 = vector.shape_cast %1 : vector<128xf32> to vector<1x1x128xf32>
    %24 = vector.broadcast %23 : vector<1x1x128xf32> to vector<1x16x128xf32>
    %25 = arith.mulf %22, %24 : vector<1x16x128xf32>
    %26 = vector.shape_cast %3 : vector<128xf32> to vector<1x1x128xf32>
    %27 = vector.broadcast %26 : vector<1x1x128xf32> to vector<1x16x128xf32>
    %28 = arith.addf %25, %27 : vector<1x16x128xf32>
    %cst_17 = arith.constant 0.000000e+00 : f32
    %29 = vector.broadcast %cst_17 : f32 to vector<1x16x128xf32>
    %30 = arith.maximumf %28, %29 : vector<1x16x128xf32>
    %31 = arith.select %19, %30, %4 : vector<1x16x128xf32>
    %c0_18 = arith.constant 0 : index
    %c8_19 = arith.constant 8 : index
    %c0_20 = arith.constant 0 : index
    %32 = vector.load %arg10[%c0_18, %c8_19, %c0_20] : memref<18x32x128xf32, #tpu.memory_space<vmem>>, vector<1x16x128xf32>
    tpu.vector_store %arg10[%c0_18, %c8_19, %c0_20], %31 {strides = array<i32>} : memref<18x32x128xf32, #tpu.memory_space<vmem>>, vector<1x16x128xf32>,
    %c0_i32_21 = arith.constant 0 : i32
    %33 = arith.cmpi slt, %arg1, %c0_i32_21 : i32
    %c0_22 = arith.constant 0 : index
    %c0_23 = arith.constant 0 : index
    %c0_24 = arith.constant 0 : index
    %c0_25 = arith.constant 0 : index
    %34 = vector.load %arg4[%c0_22, %c0_23, %c0_24, %c0_25] : memref<1x1x16x128xbf16, #tpu.memory_space<vmem>>, vector<1x1x16x128xbf16>
    %35 = vector.shape_cast %34 : vector<1x1x16x128xbf16> to vector<1x16x128xbf16>
    %36 = arith.extf %35 : vector<1x16x128xbf16> to vector<1x16x128xf32>
    %37 = vector.shape_cast %1 : vector<128xf32> to vector<1x1x128xf32>
    %38 = vector.broadcast %37 : vector<1x1x128xf32> to vector<1x16x128xf32>
    %39 = arith.mulf %36, %38 : vector<1x16x128xf32>
    %40 = vector.shape_cast %3 : vector<128xf32> to vector<1x1x128xf32>
    %41 = vector.broadcast %40 : vector<1x1x128xf32> to vector<1x16x128xf32>
    %42 = arith.addf %39, %41 : vector<1x16x128xf32>
    %cst_26 = arith.constant 0.000000e+00 : f32
    %43 = vector.broadcast %cst_26 : f32 to vector<1x16x128xf32>
    %44 = arith.maximumf %42, %43 : vector<1x16x128xf32>
    %45 = arith.select %33, %44, %4 : vector<1x16x128xf32>
    %c17 = arith.constant 17 : index
    %c8_27 = arith.constant 8 : index
    %c0_28 = arith.constant 0 : index
    %46 = vector.load %arg10[%c17, %c8_27, %c0_28] : memref<18x32x128xf32, #tpu.memory_space<vmem>>, vector<1x16x128xf32>
    tpu.vector_store %arg10[%c17, %c8_27, %c0_28], %45 {strides = array<i32>} : memref<18x32x128xf32, #tpu.memory_space<vmem>>, vector<1x16x128xf32>,
    %c0_29 = arith.constant 0 : index
    %c0_30 = arith.constant 0 : index
    %c0_31 = arith.constant 0 : index
    %47 = vector.load %arg10[%c0_29, %c0_30, %c0_31] : memref<18x32x128xf32, #tpu.memory_space<vmem>>, vector<18x32x128xf32>
    %48 = arith.truncf %47 : vector<18x32x128xf32> to vector<18x32x128xbf16>
    %cst_32 = arith.constant 0.000000e+00 : f32
    %49 = vector.broadcast %cst_32 : f32 to vector<256x128xf32>
    %50 = vector.extract_strided_slice %48 {offsets = [0, 7, 0], sizes = [16, 16, 128], strides = [1, 1, 1]} : vector<18x32x128xbf16> to vector<16x16x128xbf16>
    %51 = vector.shape_cast %50 : vector<16x16x128xbf16> to vector<256x128xbf16>
    %c0_33 = arith.constant 0 : index
    %c0_34 = arith.constant 0 : index
    %c0_35 = arith.constant 0 : index
    %52 = vector.load %arg5[%c0_33, %c0_34, %c0_35] : memref<9x128x128xbf16, #tpu.memory_space<vmem>>, vector<1x128x128xbf16>
    %53 = vector.shape_cast %52 : vector<1x128x128xbf16> to vector<128x128xbf16>
    %cst_36 = arith.constant dense<0.000000e+00> : vector<256x128xf32>
    %54 = tpu.matmul %51, %53, %cst_36 {dimension_numbers = #tpu.dot_dimension_numbers<[1], [0], [0], [1], [0, 0, 1, 1], [], []>} : vector<256x128xbf16>, vector<128x128xbf16>, vector<256x128xf32> -> vector<256x128xf32>
    %55 = arith.addf %49, %54 : vector<256x128xf32>
    %56 = vector.extract_strided_slice %48 {offsets = [0, 8, 0], sizes = [16, 16, 128], strides = [1, 1, 1]} : vector<18x32x128xbf16> to vector<16x16x128xbf16>
    %57 = vector.shape_cast %56 : vector<16x16x128xbf16> to vector<256x128xbf16>
    %c1_37 = arith.constant 1 : index
    %c0_38 = arith.constant 0 : index
    %c0_39 = arith.constant 0 : index
    %58 = vector.load %arg5[%c1_37, %c0_38, %c0_39] : memref<9x128x128xbf16, #tpu.memory_space<vmem>>, vector<1x128x128xbf16>
    %59 = vector.shape_cast %58 : vector<1x128x128xbf16> to vector<128x128xbf16>
    %cst_40 = arith.constant dense<0.000000e+00> : vector<256x128xf32>
    %60 = tpu.matmul %57, %59, %cst_40 {dimension_numbers = #tpu.dot_dimension_numbers<[1], [0], [0], [1], [0, 0, 1, 1], [], []>} : vector<256x128xbf16>, vector<128x128xbf16>, vector<256x128xf32> -> vector<256x128xf32>
    %61 = arith.addf %55, %60 : vector<256x128xf32>
    %62 = vector.extract_strided_slice %48 {offsets = [0, 9, 0], sizes = [16, 16, 128], strides = [1, 1, 1]} : vector<18x32x128xbf16> to vector<16x16x128xbf16>
    %63 = vector.shape_cast %62 : vector<16x16x128xbf16> to vector<256x128xbf16>
    %c2 = arith.constant 2 : index
    %c0_41 = arith.constant 0 : index
    %c0_42 = arith.constant 0 : index
    %64 = vector.load %arg5[%c2, %c0_41, %c0_42] : memref<9x128x128xbf16, #tpu.memory_space<vmem>>, vector<1x128x128xbf16>
    %65 = vector.shape_cast %64 : vector<1x128x128xbf16> to vector<128x128xbf16>
    %cst_43 = arith.constant dense<0.000000e+00> : vector<256x128xf32>
    %66 = tpu.matmul %63, %65, %cst_43 {dimension_numbers = #tpu.dot_dimension_numbers<[1], [0], [0], [1], [0, 0, 1, 1], [], []>} : vector<256x128xbf16>, vector<128x128xbf16>, vector<256x128xf32> -> vector<256x128xf32>
    %67 = arith.addf %61, %66 : vector<256x128xf32>
    %68 = vector.extract_strided_slice %48 {offsets = [1, 7, 0], sizes = [16, 16, 128], strides = [1, 1, 1]} : vector<18x32x128xbf16> to vector<16x16x128xbf16>
    %69 = vector.shape_cast %68 : vector<16x16x128xbf16> to vector<256x128xbf16>
    %c3 = arith.constant 3 : index
    %c0_44 = arith.constant 0 : index
    %c0_45 = arith.constant 0 : index
    %70 = vector.load %arg5[%c3, %c0_44, %c0_45] : memref<9x128x128xbf16, #tpu.memory_space<vmem>>, vector<1x128x128xbf16>
    %71 = vector.shape_cast %70 : vector<1x128x128xbf16> to vector<128x128xbf16>
    %cst_46 = arith.constant dense<0.000000e+00> : vector<256x128xf32>
    %72 = tpu.matmul %69, %71, %cst_46 {dimension_numbers = #tpu.dot_dimension_numbers<[1], [0], [0], [1], [0, 0, 1, 1], [], []>} : vector<256x128xbf16>, vector<128x128xbf16>, vector<256x128xf32> -> vector<256x128xf32>
    %73 = arith.addf %67, %72 : vector<256x128xf32>
    %74 = vector.extract_strided_slice %48 {offsets = [1, 8, 0], sizes = [16, 16, 128], strides = [1, 1, 1]} : vector<18x32x128xbf16> to vector<16x16x128xbf16>
    %75 = vector.shape_cast %74 : vector<16x16x128xbf16> to vector<256x128xbf16>
    %c4 = arith.constant 4 : index
    %c0_47 = arith.constant 0 : index
    %c0_48 = arith.constant 0 : index
    %76 = vector.load %arg5[%c4, %c0_47, %c0_48] : memref<9x128x128xbf16, #tpu.memory_space<vmem>>, vector<1x128x128xbf16>
    %77 = vector.shape_cast %76 : vector<1x128x128xbf16> to vector<128x128xbf16>
    %cst_49 = arith.constant dense<0.000000e+00> : vector<256x128xf32>
    %78 = tpu.matmul %75, %77, %cst_49 {dimension_numbers = #tpu.dot_dimension_numbers<[1], [0], [0], [1], [0, 0, 1, 1], [], []>} : vector<256x128xbf16>, vector<128x128xbf16>, vector<256x128xf32> -> vector<256x128xf32>
    %79 = arith.addf %73, %78 : vector<256x128xf32>
    %80 = vector.extract_strided_slice %48 {offsets = [1, 9, 0], sizes = [16, 16, 128], strides = [1, 1, 1]} : vector<18x32x128xbf16> to vector<16x16x128xbf16>
    %81 = vector.shape_cast %80 : vector<16x16x128xbf16> to vector<256x128xbf16>
    %c5 = arith.constant 5 : index
    %c0_50 = arith.constant 0 : index
    %c0_51 = arith.constant 0 : index
    %82 = vector.load %arg5[%c5, %c0_50, %c0_51] : memref<9x128x128xbf16, #tpu.memory_space<vmem>>, vector<1x128x128xbf16>
    %83 = vector.shape_cast %82 : vector<1x128x128xbf16> to vector<128x128xbf16>
    %cst_52 = arith.constant dense<0.000000e+00> : vector<256x128xf32>
    %84 = tpu.matmul %81, %83, %cst_52 {dimension_numbers = #tpu.dot_dimension_numbers<[1], [0], [0], [1], [0, 0, 1, 1], [], []>} : vector<256x128xbf16>, vector<128x128xbf16>, vector<256x128xf32> -> vector<256x128xf32>
    %85 = arith.addf %79, %84 : vector<256x128xf32>
    %86 = vector.extract_strided_slice %48 {offsets = [2, 7, 0], sizes = [16, 16, 128], strides = [1, 1, 1]} : vector<18x32x128xbf16> to vector<16x16x128xbf16>
    %87 = vector.shape_cast %86 : vector<16x16x128xbf16> to vector<256x128xbf16>
    %c6 = arith.constant 6 : index
    %c0_53 = arith.constant 0 : index
    %c0_54 = arith.constant 0 : index
    %88 = vector.load %arg5[%c6, %c0_53, %c0_54] : memref<9x128x128xbf16, #tpu.memory_space<vmem>>, vector<1x128x128xbf16>
    %89 = vector.shape_cast %88 : vector<1x128x128xbf16> to vector<128x128xbf16>
    %cst_55 = arith.constant dense<0.000000e+00> : vector<256x128xf32>
    %90 = tpu.matmul %87, %89, %cst_55 {dimension_numbers = #tpu.dot_dimension_numbers<[1], [0], [0], [1], [0, 0, 1, 1], [], []>} : vector<256x128xbf16>, vector<128x128xbf16>, vector<256x128xf32> -> vector<256x128xf32>
    %91 = arith.addf %85, %90 : vector<256x128xf32>
    %92 = vector.extract_strided_slice %48 {offsets = [2, 8, 0], sizes = [16, 16, 128], strides = [1, 1, 1]} : vector<18x32x128xbf16> to vector<16x16x128xbf16>
    %93 = vector.shape_cast %92 : vector<16x16x128xbf16> to vector<256x128xbf16>
    %c7 = arith.constant 7 : index
    %c0_56 = arith.constant 0 : index
    %c0_57 = arith.constant 0 : index
    %94 = vector.load %arg5[%c7, %c0_56, %c0_57] : memref<9x128x128xbf16, #tpu.memory_space<vmem>>, vector<1x128x128xbf16>
    %95 = vector.shape_cast %94 : vector<1x128x128xbf16> to vector<128x128xbf16>
    %cst_58 = arith.constant dense<0.000000e+00> : vector<256x128xf32>
    %96 = tpu.matmul %93, %95, %cst_58 {dimension_numbers = #tpu.dot_dimension_numbers<[1], [0], [0], [1], [0, 0, 1, 1], [], []>} : vector<256x128xbf16>, vector<128x128xbf16>, vector<256x128xf32> -> vector<256x128xf32>
    %97 = arith.addf %91, %96 : vector<256x128xf32>
    %98 = vector.extract_strided_slice %48 {offsets = [2, 9, 0], sizes = [16, 16, 128], strides = [1, 1, 1]} : vector<18x32x128xbf16> to vector<16x16x128xbf16>
    %99 = vector.shape_cast %98 : vector<16x16x128xbf16> to vector<256x128xbf16>
    %c8_59 = arith.constant 8 : index
    %c0_60 = arith.constant 0 : index
    %c0_61 = arith.constant 0 : index
    %100 = vector.load %arg5[%c8_59, %c0_60, %c0_61] : memref<9x128x128xbf16, #tpu.memory_space<vmem>>, vector<1x128x128xbf16>
    %101 = vector.shape_cast %100 : vector<1x128x128xbf16> to vector<128x128xbf16>
    %cst_62 = arith.constant dense<0.000000e+00> : vector<256x128xf32>
    %102 = tpu.matmul %99, %101, %cst_62 {dimension_numbers = #tpu.dot_dimension_numbers<[1], [0], [0], [1], [0, 0, 1, 1], [], []>} : vector<256x128xbf16>, vector<128x128xbf16>, vector<256x128xf32> -> vector<256x128xf32>
    %103 = arith.addf %97, %102 : vector<256x128xf32>
    %104 = vector.shape_cast %103 : vector<256x128xf32> to vector<16x16x128xf32>
    %c0_63 = arith.constant 0 : index
    %c0_64 = arith.constant 0 : index
    %c0_65 = arith.constant 0 : index
    %c0_66 = arith.constant 0 : index
    %105 = vector.load %arg8[%c0_63, %c0_64, %c0_65, %c0_66] : memref<1x16x16x128xf32, #tpu.memory_space<vmem>>, vector<1x16x16x128xf32>
    %106 = vector.shape_cast %105 : vector<1x16x16x128xf32> to vector<16x16x128xf32>
    %107 = vector.shape_cast %104 : vector<16x16x128xf32> to vector<1x16x16x128xf32>
    tpu.vector_store %arg8[%c0_63, %c0_64, %c0_65, %c0_66], %107 {strides = array<i32>} : memref<1x16x16x128xf32, #tpu.memory_space<vmem>>, vector<1x16x16x128xf32>,
    %cst_67 = arith.constant dense<0.000000e+00> : vector<128xf32>
    %108 = vector.multi_reduction <add>, %103, %cst_67 [0] : vector<256x128xf32> to vector<128xf32>
    %109 = vector.shape_cast %108 : vector<128xf32> to vector<1x128xf32>
    %110 = arith.mulf %103, %103 : vector<256x128xf32>
    %cst_68 = arith.constant dense<0.000000e+00> : vector<128xf32>
    %111 = vector.multi_reduction <add>, %110, %cst_68 [0] : vector<256x128xf32> to vector<128xf32>
    %112 = vector.shape_cast %111 : vector<128xf32> to vector<1x128xf32>
    %113 = tpu.concatenate %109, %112 in 0 : vector<1x128xf32>, vector<1x128xf32> -> vector<2x128xf32>
    %c0_69 = arith.constant 0 : index
    %c0_70 = arith.constant 0 : index
    %c0_71 = arith.constant 0 : index
    %c0_72 = arith.constant 0 : index
    %114 = vector.load %arg9[%c0_69, %c0_70, %c0_71, %c0_72] : memref<1x1x2x128xf32, #tpu.memory_space<vmem>>, vector<1x1x2x128xf32>
    %115 = vector.shape_cast %114 : vector<1x1x2x128xf32> to vector<2x128xf32>
    %116 = vector.shape_cast %113 : vector<2x128xf32> to vector<1x1x2x128xf32>
    tpu.vector_store %arg9[%c0_69, %c0_70, %c0_71, %c0_72], %116 {strides = array<i32>} : memref<1x1x2x128xf32, #tpu.memory_space<vmem>>, vector<1x1x2x128xf32>,
    return
  }
  func.func @transform_0(%arg0: i32, %arg1: i32) -> (i32, i32, i32, i32) {
    %c0_i32 = arith.constant 0 : i32
    %c0_i32_0 = arith.constant 0 : i32
    %c0_i32_1 = arith.constant 0 : i32
    return %arg0, %arg1, %c0_i32, %c0_i32_0 : i32, i32, i32, i32
  }
  func.func @transform_1(%arg0: i32, %arg1: i32) -> (i32, i32, i32, i32) {
    %c16_i32 = arith.constant 16 : i32
    %0 = arith.muli %arg1, %c16_i32 : i32
    %c1_i32 = arith.constant 1 : i32
    %1 = arith.subi %0, %c1_i32 : i32
    %c0_i32 = arith.constant 0 : i32
    %2 = arith.maxsi %1, %c0_i32 : i32
    %c0_i32_0 = arith.constant 0 : i32
    %c0_i32_1 = arith.constant 0 : i32
    %c0_i32_2 = arith.constant 0 : i32
    return %arg0, %2, %c0_i32_0, %c0_i32_1 : i32, i32, i32, i32
  }
  func.func @transform_2(%arg0: i32, %arg1: i32) -> (i32, i32, i32, i32) {
    %c1_i32 = arith.constant 1 : i32
    %0 = arith.addi %arg1, %c1_i32 : i32
    %c16_i32 = arith.constant 16 : i32
    %1 = arith.muli %0, %c16_i32 : i32
    %c15_i32 = arith.constant 15 : i32
    %2 = arith.minsi %1, %c15_i32 : i32
    %c0_i32 = arith.constant 0 : i32
    %c0_i32_0 = arith.constant 0 : i32
    %c0_i32_1 = arith.constant 0 : i32
    return %arg0, %2, %c0_i32, %c0_i32_0 : i32, i32, i32, i32
  }
  func.func @transform_3(%arg0: i32, %arg1: i32) -> (i32, i32, i32) {
    %c0_i32 = arith.constant 0 : i32
    %c0_i32_0 = arith.constant 0 : i32
    %c0_i32_1 = arith.constant 0 : i32
    %c0_i32_2 = arith.constant 0 : i32
    return %c0_i32, %c0_i32_0, %c0_i32_1 : i32, i32, i32
  }
  func.func @transform_4(%arg0: i32, %arg1: i32) -> (i32, i32) {
    %c0_i32 = arith.constant 0 : i32
    %c0_i32_0 = arith.constant 0 : i32
    %c0_i32_1 = arith.constant 0 : i32
    return %c0_i32, %c0_i32_0 : i32, i32
  }
  func.func @transform_5(%arg0: i32, %arg1: i32) -> (i32, i32) {
    %c0_i32 = arith.constant 0 : i32
    %c0_i32_0 = arith.constant 0 : i32
    %c0_i32_1 = arith.constant 0 : i32
    return %c0_i32, %c0_i32_0 : i32, i32
  }
  func.func @transform_6(%arg0: i32, %arg1: i32) -> (i32, i32, i32, i32) {
    %c0_i32 = arith.constant 0 : i32
    %c0_i32_0 = arith.constant 0 : i32
    %c0_i32_1 = arith.constant 0 : i32
    return %arg0, %arg1, %c0_i32, %c0_i32_0 : i32, i32, i32, i32
  }
  func.func @transform_7(%arg0: i32, %arg1: i32) -> (i32, i32, i32, i32) {
    %c0_i32 = arith.constant 0 : i32
    %c0_i32_0 = arith.constant 0 : i32
    %c0_i32_1 = arith.constant 0 : i32
    return %arg0, %arg1, %c0_i32, %c0_i32_0 : i32, i32, i32, i32
  }
}

module attributes {stable_mosaic.version = 11 : i64} {
  func.func @_bn_relu_kernel(%arg0: i32, %arg1: memref<512x128xf32, #tpu.memory_space<vmem>>, %arg2: memref<1x128xf32, #tpu.memory_space<vmem>>, %arg3: memref<1x128xf32, #tpu.memory_space<vmem>>, %arg4: memref<512x128xf32, #tpu.memory_space<vmem>>) attributes {dimension_semantics = [#tpu.dimension_semantics<parallel>], iteration_bounds = array<i64: 1>, scalar_prefetch = 0 : i64, scratch_operands = 0 : i64, tpu.core_type = #tpu.core_type<tc>, window_params = [{transform_indices = @transform_0, window_bounds = array<i64: 512, 128>}, {pipeline_mode = #tpu.pipeline_mode<synchronous>, transform_indices = @transform_1, window_bounds = array<i64: 1, 128>}, {pipeline_mode = #tpu.pipeline_mode<synchronous>, transform_indices = @transform_2, window_bounds = array<i64: 1, 128>}, {transform_indices = @transform_3, window_bounds = array<i64: 512, 128>}]} {
    %c0 = arith.constant 0 : index
    %c0_0 = arith.constant 0 : index
    %0 = vector.load %arg1[%c0, %c0_0] : memref<512x128xf32, #tpu.memory_space<vmem>>, vector<512x128xf32>
    %c0_1 = arith.constant 0 : index
    %c0_2 = arith.constant 0 : index
    %1 = vector.load %arg2[%c0_1, %c0_2] : memref<1x128xf32, #tpu.memory_space<vmem>>, vector<1x128xf32>
    %2 = vector.broadcast %1 : vector<1x128xf32> to vector<512x128xf32>
    %3 = arith.mulf %0, %2 : vector<512x128xf32>
    %c0_3 = arith.constant 0 : index
    %c0_4 = arith.constant 0 : index
    %4 = vector.load %arg3[%c0_3, %c0_4] : memref<1x128xf32, #tpu.memory_space<vmem>>, vector<1x128xf32>
    %5 = vector.broadcast %4 : vector<1x128xf32> to vector<512x128xf32>
    %6 = arith.addf %3, %5 : vector<512x128xf32>
    %cst = arith.constant 0.000000e+00 : f32
    %7 = vector.broadcast %cst : f32 to vector<512x128xf32>
    %8 = arith.maximumf %6, %7 : vector<512x128xf32>
    %c0_5 = arith.constant 0 : index
    %c0_6 = arith.constant 0 : index
    %9 = vector.load %arg4[%c0_5, %c0_6] : memref<512x128xf32, #tpu.memory_space<vmem>>, vector<512x128xf32>
    tpu.vector_store %arg4[%c0_5, %c0_6], %8 {strides = array<i32>} : memref<512x128xf32, #tpu.memory_space<vmem>>, vector<512x128xf32>,
    return
  }
  func.func @transform_0(%arg0: i32) -> (i32, i32) {
    %c0_i32 = arith.constant 0 : i32
    %c0_i32_0 = arith.constant 0 : i32
    return %arg0, %c0_i32 : i32, i32
  }
  func.func @transform_1(%arg0: i32) -> (i32, i32) {
    %c0_i32 = arith.constant 0 : i32
    %c0_i32_0 = arith.constant 0 : i32
    %c0_i32_1 = arith.constant 0 : i32
    return %c0_i32, %c0_i32_0 : i32, i32
  }
  func.func @transform_2(%arg0: i32) -> (i32, i32) {
    %c0_i32 = arith.constant 0 : i32
    %c0_i32_0 = arith.constant 0 : i32
    %c0_i32_1 = arith.constant 0 : i32
    return %c0_i32, %c0_i32_0 : i32, i32
  }
  func.func @transform_3(%arg0: i32) -> (i32, i32) {
    %c0_i32 = arith.constant 0 : i32
    %c0_i32_0 = arith.constant 0 : i32
    return %arg0, %c0_i32 : i32, i32
  }
}

</mosaic_0001>

<llo_original>
// kernel: double_conv_forward.5
$region0: #{double_conv_forward.5}
  #allocation0 [shape = 'u32[]', space=smem, size = 0x4, offset = 0x4, fixed_abs, tag = 'smem constant byte address 0x4 - core index']
  #allocation1 [shape = 'u32[72,128]{1,0:T(1,128)}', space=vmem, size = 0x9000, scoped, tag = 'internal scratch']
  %s0 = inlined_call_operand.vmem [shape: f32[512,128], index: 0, kind: input, shape index: {}]
  %s1 = inlined_call_operand.vmem [shape: f32[1,128], index: 1, kind: input, shape index: {}]
  %s2 = inlined_call_operand.vmem [shape: f32[1,128], index: 2, kind: input, shape index: {}]
  %s3 = inlined_call_operand.vmem [shape: f32[512,128], index: 3, kind: output, shape index: {}]
  %s4 = sld [smem:[#allocation0]]
  $region22: #{double_conv_forward.5} parent=0
    _
  %s6 = ssub.s32 1, %s4
  %s7 = scalar_select 0, %s6, %s4
  // Predicated region
  $region2: #{double_conv_forward.5} parent=0 // pred_check
    _
  $region3: #{double_conv_forward.5} parent=0 // pred_check_branch
    %9 = sbr.rel (0) target = $region5
  $region4: #{double_conv_forward.5} parent=0 // pred_region
    _
  $region5: #{double_conv_forward.5} parent=0 // pred_fallthru
    _
  // Predicated region
  $region6: #{double_conv_forward.5} parent=0 // pred_check
    _
  $region7: #{double_conv_forward.5} parent=0 // pred_check_branch
    %11 = sbr.rel (0) target = $region9
  $region8: #{double_conv_forward.5} parent=0 // pred_region
    _
  $region9: #{double_conv_forward.5} parent=0 // pred_fallthru
    _
  // Predicated region
  $region10: #{double_conv_forward.5} parent=0 // pred_check
    _
  $region11: #{double_conv_forward.5} parent=0 // pred_check_branch
    %13 = sbr.rel (0) target = $region13
  $region12: #{double_conv_forward.5} parent=0 // pred_region
    _
  $region13: #{double_conv_forward.5} parent=0 // pred_fallthru
    _
  %v14 = vld [vmem:[%s0] sm:$0xff]
  %v15 = vld [vmem:[%s0 + $0x8] sm:$0xff]
  %v16 = vld [vmem:[%s0 + $0x10] sm:$0xff]
  %v17 = vld [vmem:[%s0 + $0x18] sm:$0xff]
  %v18 = vld [vmem:[%s0 + $0x20] sm:$0xff]
  %v19 = vld [vmem:[%s0 + $0x28] sm:$0xff]
  %v20 = vld [vmem:[%s0 + $0x30] sm:$0xff]
  %v21 = vld [vmem:[%s0 + $0x38] sm:$0xff]
  %v22 = vld [vmem:[%s0 + $0x40] sm:$0xff]
  %v23 = vld [vmem:[%s0 + $0x48] sm:$0xff]
  %v24 = vld [vmem:[%s0 + $0x50] sm:$0xff]
  %v25 = vld [vmem:[%s0 + $0x58] sm:$0xff]
  %v26 = vld [vmem:[%s0 + $0x60] sm:$0xff]
  %v27 = vld [vmem:[%s0 + $0x68] sm:$0xff]
  %v28 = vld [vmem:[%s0 + $0x70] sm:$0xff]
  %v29 = vld [vmem:[%s0 + $0x78] sm:$0xff]
  %v30 = vld [vmem:[%s0 + $0x80] sm:$0xff]
  %v31 = vld [vmem:[%s0 + $0x88] sm:$0xff]
  %v32 = vld [vmem:[%s0 + $0x90] sm:$0xff]
  %v33 = vld [vmem:[%s0 + $0x98] sm:$0xff]
  %v34 = vld [vmem:[%s0 + $0xa0] sm:$0xff]
  %v35 = vld [vmem:[%s0 + $0xa8] sm:$0xff]
  %v36 = vld [vmem:[%s0 + $0xb0] sm:$0xff]
  %v37 = vld [vmem:[%s0 + $0xb8] sm:$0xff]
  %v38 = vld [vmem:[%s0 + $0xc0] sm:$0xff]
  %v39 = vld [vmem:[%s0 + $0xc8] sm:$0xff]
  %v40 = vld [vmem:[%s0 + $0xd0] sm:$0xff]
  %v41 = vld [vmem:[%s0 + $0xd8] sm:$0xff]
  %v42 = vld [vmem:[%s0 + $0xe0] sm:$0xff]
  %v43 = vld [vmem:[%s0 + $0xe8] sm:$0xff]
  %v44 = vld [vmem:[%s0 + $0xf0] sm:$0xff]
  %v45 = vld [vmem:[%s0 + $0xf8] sm:$0xff]
  %v46 = vld [vmem:[%s0 + $0x100] sm:$0xff]
  %v47 = vld [vmem:[%s0 + $0x108] sm:$0xff]
  %v48 = vld [vmem:[%s0 + $0x110] sm:$0xff]
  %v49 = vld [vmem:[%s0 + $0x118] sm:$0xff]
  %v50 = vld [vmem:[%s0 + $0x120] sm:$0xff]
  %v51 = vld [vmem:[%s0 + $0x128] sm:$0xff]
  %v52 = vld [vmem:[%s0 + $0x130] sm:$0xff]
  %v53 = vld [vmem:[%s0 + $0x138] sm:$0xff]
  %v54 = vld [vmem:[%s0 + $0x140] sm:$0xff]
  %v55 = vld [vmem:[%s0 + $0x148] sm:$0xff]
  %v56 = vld [vmem:[%s0 + $0x150] sm:$0xff]
  %v57 = vld [vmem:[%s0 + $0x158] sm:$0xff]
  %v58 = vld [vmem:[%s0 + $0x160] sm:$0xff]
  %v59 = vld [vmem:[%s0 + $0x168] sm:$0xff]
  %v60 = vld [vmem:[%s0 + $0x170] sm:$0xff]
  %v61 = vld [vmem:[%s0 + $0x178] sm:$0xff]
  %v62 = vld [vmem:[%s0 + $0x180] sm:$0xff]
  %v63 = vld [vmem:[%s0 + $0x188] sm:$0xff]
  %v64 = vld [vmem:[%s0 + $0x190] sm:$0xff]
  %v65 = vld [vmem:[%s0 + $0x198] sm:$0xff]
  %v66 = vld [vmem:[%s0 + $0x1a0] sm:$0xff]
  %v67 = vld [vmem:[%s0 + $0x1a8] sm:$0xff]
  %v68 = vld [vmem:[%s0 + $0x1b0] sm:$0xff]
  %v69 = vld [vmem:[%s0 + $0x1b8] sm:$0xff]
  %v70 = vld [vmem:[%s0 + $0x1c0] sm:$0xff]
  %v71 = vld [vmem:[%s0 + $0x1c8] sm:$0xff]
  %v72 = vld [vmem:[%s0 + $0x1d0] sm:$0xff]
  %v73 = vld [vmem:[%s0 + $0x1d8] sm:$0xff]
  %v74 = vld [vmem:[%s0 + $0x1e0] sm:$0xff]
  %v75 = vld [vmem:[%s0 + $0x1e8] sm:$0xff]
  %v76 = vld [vmem:[%s0 + $0x1f0] sm:$0xff]
  %v77 = vld [vmem:[%s0 + $0x1f8] sm:$0xff]
  %v78 = vld [vmem:[%s1] sm:$0x1]
  %v80 = vperm.slane %v78, 0
  %v82 = vmul.f32 %v14, %v80
  %v83 = vmul.f32 %v15, %v80
  %v84 = vmul.f32 %v16, %v80
  %v85 = vmul.f32 %v17, %v80
  %v86 = vmul.f32 %v18, %v80
  %v87 = vmul.f32 %v19, %v80
  %v88 = vmul.f32 %v20, %v80
  %v89 = vmul.f32 %v21, %v80
  %v90 = vmul.f32 %v22, %v80
  %v91 = vmul.f32 %v23, %v80
  %v92 = vmul.f32 %v24, %v80
  %v93 = vmul.f32 %v25, %v80
  %v94 = vmul.f32 %v26, %v80
  %v95 = vmul.f32 %v27, %v80
  %v96 = vmul.f32 %v28, %v80
  %v97 = vmul.f32 %v29, %v80
  %v98 = vmul.f32 %v30, %v80
  %v99 = vmul.f32 %v31, %v80
  %v100 = vmul.f32 %v32, %v80
  %v101 = vmul.f32 %v33, %v80
  %v102 = vmul.f32 %v34, %v80
  %v103 = vmul.f32 %v35, %v80
  %v104 = vmul.f32 %v36, %v80
  %v105 = vmul.f32 %v37, %v80
  %v106 = vmul.f32 %v38, %v80
  %v107 = vmul.f32 %v39, %v80
  %v108 = vmul.f32 %v40, %v80
  %v109 = vmul.f32 %v41, %v80
  %v110 = vmul.f32 %v42, %v80
  %v111 = vmul.f32 %v43, %v80
  %v112 = vmul.f32 %v44, %v80
  %v113 = vmul.f32 %v45, %v80
  %v114 = vmul.f32 %v46, %v80
  %v115 = vmul.f32 %v47, %v80
  %v116 = vmul.f32 %v48, %v80
  %v117 = vmul.f32 %v49, %v80
  %v118 = vmul.f32 %v50, %v80
  %v119 = vmul.f32 %v51, %v80
  %v120 = vmul.f32 %v52, %v80
  %v121 = vmul.f32 %v53, %v80
  %v122 = vmul.f32 %v54, %v80
  %v123 = vmul.f32 %v55, %v80
  %v124 = vmul.f32 %v56, %v80
  %v125 = vmul.f32 %v57, %v80
  %v126 = vmul.f32 %v58, %v80
  %v127 = vmul.f32 %v59, %v80
  %v128 = vmul.f32 %v60, %v80
  %v129 = vmul.f32 %v61, %v80
  %v130 = vmul.f32 %v62, %v80
  %v131 = vmul.f32 %v63, %v80
  %v132 = vmul.f32 %v64, %v80
  %v133 = vmul.f32 %v65, %v80
  %v134 = vmul.f32 %v66, %v80
  %v135 = vmul.f32 %v67, %v80
  %v136 = vmul.f32 %v68, %v80
  %v137 = vmul.f32 %v69, %v80
  %v138 = vmul.f32 %v70, %v80
  %v139 = vmul.f32 %v71, %v80
  %v140 = vmul.f32 %v72, %v80
  %v141 = vmul.f32 %v73, %v80
  %v142 = vmul.f32 %v74, %v80
  %v143 = vmul.f32 %v75, %v80
  %v144 = vmul.f32 %v76, %v80
  %v145 = vmul.f32 %v77, %v80
  %v146 = vld [vmem:[%s2] sm:$0x1]
  %v148 = vperm.slane %v146, 0
  %v150 = vadd.f32 %v82, %v148
  %v151 = vadd.f32 %v83, %v148
  %v152 = vadd.f32 %v84, %v148
  %v153 = vadd.f32 %v85, %v148
  %v154 = vadd.f32 %v86, %v148
  %v155 = vadd.f32 %v87, %v148
  %v156 = vadd.f32 %v88, %v148
  %v157 = vadd.f32 %v89, %v148
  %v158 = vadd.f32 %v90, %v148
  %v159 = vadd.f32 %v91, %v148
  %v160 = vadd.f32 %v92, %v148
  %v161 = vadd.f32 %v93, %v148
  %v162 = vadd.f32 %v94, %v148
  %v163 = vadd.f32 %v95, %v148
  %v164 = vadd.f32 %v96, %v148
  %v165 = vadd.f32 %v97, %v148
  %v166 = vadd.f32 %v98, %v148
  %v167 = vadd.f32 %v99, %v148
  %v168 = vadd.f32 %v100, %v148
  %v169 = vadd.f32 %v101, %v148
  %v170 = vadd.f32 %v102, %v148
  %v171 = vadd.f32 %v103, %v148
  %v172 = vadd.f32 %v104, %v148
  %v173 = vadd.f32 %v105, %v148
  %v174 = vadd.f32 %v106, %v148
  %v175 = vadd.f32 %v107, %v148
  %v176 = vadd.f32 %v108, %v148
  %v177 = vadd.f32 %v109, %v148
  %v178 = vadd.f32 %v110, %v148
  %v179 = vadd.f32 %v111, %v148
  %v180 = vadd.f32 %v112, %v148
  %v181 = vadd.f32 %v113, %v148
  %v182 = vadd.f32 %v114, %v148
  %v183 = vadd.f32 %v115, %v148
  %v184 = vadd.f32 %v116, %v148
  %v185 = vadd.f32 %v117, %v148
  %v186 = vadd.f32 %v118, %v148
  %v187 = vadd.f32 %v119, %v148
  %v188 = vadd.f32 %v120, %v148
  %v189 = vadd.f32 %v121, %v148
  %v190 = vadd.f32 %v122, %v148
  %v191 = vadd.f32 %v123, %v148
  %v192 = vadd.f32 %v124, %v148
  %v193 = vadd.f32 %v125, %v148
  %v194 = vadd.f32 %v126, %v148
  %v195 = vadd.f32 %v127, %v148
  %v196 = vadd.f32 %v128, %v148
  %v197 = vadd.f32 %v129, %v148
  %v198 = vadd.f32 %v130, %v148
  %v199 = vadd.f32 %v131, %v148
  %v200 = vadd.f32 %v132, %v148
  %v201 = vadd.f32 %v133, %v148
  %v202 = vadd.f32 %v134, %v148
  %v203 = vadd.f32 %v135, %v148
  %v204 = vadd.f32 %v136, %v148
  %v205 = vadd.f32 %v137, %v148
  %v206 = vadd.f32 %v138, %v148
  %v207 = vadd.f32 %v139, %v148
  %v208 = vadd.f32 %v140, %v148
  %v209 = vadd.f32 %v141, %v148
  %v210 = vadd.f32 %v142, %v148
  %v211 = vadd.f32 %v143, %v148
  %v212 = vadd.f32 %v144, %v148
  %v213 = vadd.f32 %v145, %v148
  %v214 = vmax.f32 %v150, 0.0
  %v215 = vmax.f32 %v151, 0.0
  %v216 = vmax.f32 %v152, 0.0
  %v217 = vmax.f32 %v153, 0.0
  %v218 = vmax.f32 %v154, 0.0
  %v219 = vmax.f32 %v155, 0.0
  %v220 = vmax.f32 %v156, 0.0
  %v221 = vmax.f32 %v157, 0.0
  %v222 = vmax.f32 %v158, 0.0
  %v223 = vmax.f32 %v159, 0.0
  %v224 = vmax.f32 %v160, 0.0
  %v225 = vmax.f32 %v161, 0.0
  %v226 = vmax.f32 %v162, 0.0
  %v227 = vmax.f32 %v163, 0.0
  %v228 = vmax.f32 %v164, 0.0
  %v229 = vmax.f32 %v165, 0.0
  %v230 = vmax.f32 %v166, 0.0
  %v231 = vmax.f32 %v167, 0.0
  %v232 = vmax.f32 %v168, 0.0
  %v233 = vmax.f32 %v169, 0.0
  %v234 = vmax.f32 %v170, 0.0
  %v235 = vmax.f32 %v171, 0.0
  %v236 = vmax.f32 %v172, 0.0
  %v237 = vmax.f32 %v173, 0.0
  %v238 = vmax.f32 %v174, 0.0
  %v239 = vmax.f32 %v175, 0.0
  %v240 = vmax.f32 %v176, 0.0
  %v241 = vmax.f32 %v177, 0.0
  %v242 = vmax.f32 %v178, 0.0
  %v243 = vmax.f32 %v179, 0.0
  %v244 = vmax.f32 %v180, 0.0
  %v245 = vmax.f32 %v181, 0.0
  %v246 = vmax.f32 %v182, 0.0
  %v247 = vmax.f32 %v183, 0.0
  %v248 = vmax.f32 %v184, 0.0
  %v249 = vmax.f32 %v185, 0.0
  %v250 = vmax.f32 %v186, 0.0
  %v251 = vmax.f32 %v187, 0.0
  %v252 = vmax.f32 %v188, 0.0
  %v253 = vmax.f32 %v189, 0.0
  %v254 = vmax.f32 %v190, 0.0
  %v255 = vmax.f32 %v191, 0.0
  %v256 = vmax.f32 %v192, 0.0
  %v257 = vmax.f32 %v193, 0.0
  %v258 = vmax.f32 %v194, 0.0
  %v259 = vmax.f32 %v195, 0.0
  %v260 = vmax.f32 %v196, 0.0
  %v261 = vmax.f32 %v197, 0.0
  %v262 = vmax.f32 %v198, 0.0
  %v263 = vmax.f32 %v199, 0.0
  %v264 = vmax.f32 %v200, 0.0
  %v265 = vmax.f32 %v201, 0.0
  %v266 = vmax.f32 %v202, 0.0
  %v267 = vmax.f32 %v203, 0.0
  %v268 = vmax.f32 %v204, 0.0
  %v269 = vmax.f32 %v205, 0.0
  %v270 = vmax.f32 %v206, 0.0
  %v271 = vmax.f32 %v207, 0.0
  %v272 = vmax.f32 %v208, 0.0
  %v273 = vmax.f32 %v209, 0.0
  %v274 = vmax.f32 %v210, 0.0
  %v275 = vmax.f32 %v211, 0.0
  %v276 = vmax.f32 %v212, 0.0
  %v277 = vmax.f32 %v213, 0.0
  %278 = vst [vmem:[%s3] sm:$0xff] %v214
  %279 = vst [vmem:[%s3 + $0x8] sm:$0xff] %v215
  %280 = vst [vmem:[%s3 + $0x10] sm:$0xff] %v216
  %281 = vst [vmem:[%s3 + $0x18] sm:$0xff] %v217
  %282 = vst [vmem:[%s3 + $0x20] sm:$0xff] %v218
  %283 = vst [vmem:[%s3 + $0x28] sm:$0xff] %v219
  %284 = vst [vmem:[%s3 + $0x30] sm:$0xff] %v220
  %285 = vst [vmem:[%s3 + $0x38] sm:$0xff] %v221
  %286 = vst [vmem:[%s3 + $0x40] sm:$0xff] %v222
  %287 = vst [vmem:[%s3 + $0x48] sm:$0xff] %v223
  %288 = vst [vmem:[%s3 + $0x50] sm:$0xff] %v224
  %289 = vst [vmem:[%s3 + $0x58] sm:$0xff] %v225
  %290 = vst [vmem:[%s3 + $0x60] sm:$0xff] %v226
  %291 = vst [vmem:[%s3 + $0x68] sm:$0xff] %v227
  %292 = vst [vmem:[%s3 + $0x70] sm:$0xff] %v228
  %293 = vst [vmem:[%s3 + $0x78] sm:$0xff] %v229
  %294 = vst [vmem:[%s3 + $0x80] sm:$0xff] %v230
  %295 = vst [vmem:[%s3 + $0x88] sm:$0xff] %v231
  %296 = vst [vmem:[%s3 + $0x90] sm:$0xff] %v232
  %297 = vst [vmem:[%s3 + $0x98] sm:$0xff] %v233
  %298 = vst [vmem:[%s3 + $0xa0] sm:$0xff] %v234
  %299 = vst [vmem:[%s3 + $0xa8] sm:$0xff] %v235
  %300 = vst [vmem:[%s3 + $0xb0] sm:$0xff] %v236
  %301 = vst [vmem:[%s3 + $0xb8] sm:$0xff] %v237
  %302 = vst [vmem:[%s3 + $0xc0] sm:$0xff] %v238
  %303 = vst [vmem:[%s3 + $0xc8] sm:$0xff] %v239
  %304 = vst [vmem:[%s3 + $0xd0] sm:$0xff] %v240
  %305 = vst [vmem:[%s3 + $0xd8] sm:$0xff] %v241
  %306 = vst [vmem:[%s3 + $0xe0] sm:$0xff] %v242
  %307 = vst [vmem:[%s3 + $0xe8] sm:$0xff] %v243
  %308 = vst [vmem:[%s3 + $0xf0] sm:$0xff] %v244
  %309 = vst [vmem:[%s3 + $0xf8] sm:$0xff] %v245
  %310 = vst [vmem:[%s3 + $0x100] sm:$0xff] %v246
  %311 = vst [vmem:[%s3 + $0x108] sm:$0xff] %v247
  %312 = vst [vmem:[%s3 + $0x110] sm:$0xff] %v248
  %313 = vst [vmem:[%s3 + $0x118] sm:$0xff] %v249
  %314 = vst [vmem:[%s3 + $0x120] sm:$0xff] %v250
  %315 = vst [vmem:[%s3 + $0x128] sm:$0xff] %v251
  %316 = vst [vmem:[%s3 + $0x130] sm:$0xff] %v252
  %317 = vst [vmem:[%s3 + $0x138] sm:$0xff] %v253
  %318 = vst [vmem:[%s3 + $0x140] sm:$0xff] %v254
  %319 = vst [vmem:[%s3 + $0x148] sm:$0xff] %v255
  %320 = vst [vmem:[%s3 + $0x150] sm:$0xff] %v256
  %321 = vst [vmem:[%s3 + $0x158] sm:$0xff] %v257
  %322 = vst [vmem:[%s3 + $0x160] sm:$0xff] %v258
  %323 = vst [vmem:[%s3 + $0x168] sm:$0xff] %v259
  %324 = vst [vmem:[%s3 + $0x170] sm:$0xff] %v260
  %325 = vst [vmem:[%s3 + $0x178] sm:$0xff] %v261
  %326 = vst [vmem:[%s3 + $0x180] sm:$0xff] %v262
  %327 = vst [vmem:[%s3 + $0x188] sm:$0xff] %v263
  %328 = vst [vmem:[%s3 + $0x190] sm:$0xff] %v264
  %329 = vst [vmem:[%s3 + $0x198] sm:$0xff] %v265
  %330 = vst [vmem:[%s3 + $0x1a0] sm:$0xff] %v266
  %331 = vst [vmem:[%s3 + $0x1a8] sm:$0xff] %v267
  %332 = vst [vmem:[%s3 + $0x1b0] sm:$0xff] %v268
  %333 = vst [vmem:[%s3 + $0x1b8] sm:$0xff] %v269
  %334 = vst [vmem:[%s3 + $0x1c0] sm:$0xff] %v270
  %335 = vst [vmem:[%s3 + $0x1c8] sm:$0xff] %v271
  %336 = vst [vmem:[%s3 + $0x1d0] sm:$0xff] %v272
  %337 = vst [vmem:[%s3 + $0x1d8] sm:$0xff] %v273
  %338 = vst [vmem:[%s3 + $0x1e0] sm:$0xff] %v274
  %339 = vst [vmem:[%s3 + $0x1e8] sm:$0xff] %v275
  %340 = vst [vmem:[%s3 + $0x1f0] sm:$0xff] %v276
  %341 = vst [vmem:[%s3 + $0x1f8] sm:$0xff] %v277
  // Predicated region
  $region14: #{double_conv_forward.5} parent=0 // pred_check
    _
  $region15: #{double_conv_forward.5} parent=0 // pred_check_branch
    %343 = sbr.rel (0) target = $region17
  $region16: #{double_conv_forward.5} parent=0 // pred_region
    _
  $region17: #{double_conv_forward.5} parent=0 // pred_fallthru
    _
  // Predicated region
  $region18: #{double_conv_forward.5} parent=0 // pred_check
    _
  $region19: #{double_conv_forward.5} parent=0 // pred_check_branch
    %345 = sbr.rel (0) target = $region21
  $region20: #{double_conv_forward.5} parent=0 // pred_region
    _
  $region21: #{double_conv_forward.5} parent=0 // pred_fallthru
    _

// kernel: double_conv_forward.3
$region0: #{double_conv_forward.3}
  #allocation0 [shape = 'u32[]', space=smem, size = 0x4, offset = 0x4, fixed_abs, tag = 'smem constant byte address 0x4 - core index']
  #allocation1 [shape = 'u32[72,128]{1,0:T(1,128)}', space=vmem, size = 0x9000, scoped, tag = 'internal scratch']
  #allocation2 [shape = 'f32[18,32,4]{2,1,0:T(8,128)}', space=vmem, size = 0x48000, scoped, tag = 'scratch operand']
  %s0 = inlined_call_operand.vmem [shape: f32[2,16,16,4], index: 0, kind: input, shape index: {}, may-alias: {0,1,2}]
  %s1 = inlined_call_operand.vmem [shape: f32[2,16,16,4], index: 1, kind: input, shape index: {}, may-alias: {0,1,2}]
  %s2 = inlined_call_operand.vmem [shape: f32[2,16,16,4], index: 2, kind: input, shape index: {}, may-alias: {0,1,2}]
  %s3 = inlined_call_operand.vmem [shape: bf16[9,4,128], index: 3, kind: input, shape index: {}]
  %s4 = inlined_call_operand.vmem [shape: f32[1,4], index: 4, kind: input, shape index: {}, may-alias: {4,5}]
  %s5 = inlined_call_operand.vmem [shape: f32[1,4], index: 5, kind: input, shape index: {}, may-alias: {4,5}]
  %s6 = inlined_call_operand.vmem [shape: bf16[2,16,16,128], index: 6, kind: output, shape index: {0}]
  %s7 = inlined_call_operand.vmem [shape: f32[2,1,2,128], index: 7, kind: output, shape index: {1}]
  %8 = xla_tuple %s6, %s7
  %s9 = sld [smem:[#allocation0]]
  $region65: #{double_conv_forward.3} parent=0
    _
  %s11 = ssub.s32 1, %s9
  %s12 = scalar_select 0, %s11, %s9
  loop: start=0, step=1, limit=4
  $region2: #{double_conv_forward.3} parent=0 // loop_pre_header
    _
  $region3: #{double_conv_forward.3} parent=0 // loop_header
    %s14 = sphi 0, %s18
    %p15 = scmp.ge.s32.totalorder %s14, 4
    %s21 = sphi 0, %s33
    %s22 = sphi 0, %s29
    %s23 = sphi 0, %s21
    %s24 = sphi 0, %s22
    %s25 = sphi 0, %s23
    %s26 = sphi 0, %s24
    %s38 = sphi 0, %s40
    %s41 = sphi 0, %s38
    %s42 = sphi 0, %s41
    %s58 = sphi 0, %s42
    %s74 = sphi 0, %s76
    %s77 = sphi 0, %s74
    %s78 = sphi 0, %s77
    %s94 = sphi 0, %s78
    %s110 = sphi 0, %s112
    %s113 = sphi 0, %s110
    %s114 = sphi 0, %s113
    %s130 = sphi 0, %s114
    %s134 = sphi 0, %s134
    %s136 = sphi 0, %s134
    %s137 = sphi 0, %s136
    %s151 = sphi 0, %s137
    %s155 = sphi 0, %s155
    %s157 = sphi 0, %s155
    %s158 = sphi 0, %s157
    %s172 = sphi 0, %s158
    %s176 = sphi 0, %s176
    %s178 = sphi 0, %s176
    %s179 = sphi 0, %s178
    %s193 = sphi 0, %s179
    %s201 = sphi 0, %s203
    %s204 = sphi 0, %s201
    %s205 = sphi 0, %s204
    %s221 = sphi 0, %s205
    %s229 = sphi 0, %s231
    %s232 = sphi 0, %s229
    %s233 = sphi 0, %s232
    %s249 = sphi 0, %s233
  $region4: #{double_conv_forward.3} parent=0 // loop_header_branch
    %17 = sbr.rel (%p15) target = $region8
  $region5: #{double_conv_forward.3} parent=0 // loop_body
    %s19 = ssub.s32 %s14, 1
    %s20 = ssub.s32 %s14, 2
    %s27 = sadd.s32 1, %s22
    %p28 = scmp.ge.s32.totalorder %s27, 1
    %s29 = scalar_select %p28, 0, %s27
    %s30 = sadd.s32 1, %s21
    %s31 = scalar_select %p28, %s30, %s21
    %p32 = scmp.ge.s32.totalorder %s31, 2
    %s33 = scalar_select %p32, 0, %s31
    %s34 = ssub.s32 %s21, %s33
    %s35 = ssub.s32 %s22, %s29
    %s36 = sor.u32 %s34, %s35
    %p37 = scmp.eq.s32.totalorder %s36, 0
    %s39 = sadd.s32 %s38, 1
    %s40 = scalar_select %p37, %s38, %s39
    %p43 = pneg %p37
    %p44 = scmp.eq.s32.totalorder %s14, 1
    %p45 = por %p43, %p44
    %p46 = scmp.ne.s32.totalorder %s38, %s41
    %p47 = scmp.eq.s32.totalorder %s14, 0
    %p48 = por %p46, %p47
    %p49 = scmp.ne.s32.totalorder %s38, %s41
    %p50 = scmp.eq.s32.totalorder %s19, 1
    %p51 = por %p49, %p50
    %p52 = scmp.ne.s32.totalorder %s41, %s42
    %p53 = scmp.eq.s32.totalorder %s19, 0
    %p54 = por %p52, %p53
    %p55 = scmp.ne.s32.totalorder %s41, %s42
    %p56 = scmp.eq.s32.totalorder %s20, 1
    %p57 = por %p55, %p56
    %p59 = scmp.ne.s32.totalorder %s42, %s58
    %p60 = scmp.eq.s32.totalorder %s20, 0
    %p61 = por %p59, %p60
    %s62 = smul.u32 %s22, 16
    %s63 = ssub.s32 %s62, 1
    %p64 = scmp.gt.s32.totalorder %s63, 0
    %s65 = scalar_select %p64, %s63, 0
    %s66 = smul.u32 %s29, 16
    %s67 = ssub.s32 %s66, 1
    %p68 = scmp.gt.s32.totalorder %s67, 0
    %s69 = scalar_select %p68, %s67, 0
    %s70 = ssub.s32 %s21, %s33
    %s71 = ssub.s32 %s65, %s69
    %s72 = sor.u32 %s70, %s71
    %p73 = scmp.eq.s32.totalorder %s72, 0
    %s75 = sadd.s32 %s74, 1
    %s76 = scalar_select %p73, %s74, %s75
    %p79 = pneg %p73
    %p80 = scmp.eq.s32.totalorder %s14, 1
    %p81 = por %p79, %p80
    %p82 = scmp.ne.s32.totalorder %s74, %s77
    %p83 = scmp.eq.s32.totalorder %s14, 0
    %p84 = por %p82, %p83
    %p85 = scmp.ne.s32.totalorder %s74, %s77
    %p86 = scmp.eq.s32.totalorder %s19, 1
    %p87 = por %p85, %p86
    %p88 = scmp.ne.s32.totalorder %s77, %s78
    %p89 = scmp.eq.s32.totalorder %s19, 0
    %p90 = por %p88, %p89
    %p91 = scmp.ne.s32.totalorder %s77, %s78
    %p92 = scmp.eq.s32.totalorder %s20, 1
    %p93 = por %p91, %p92
    %p95 = scmp.ne.s32.totalorder %s78, %s94
    %p96 = scmp.eq.s32.totalorder %s20, 0
    %p97 = por %p95, %p96
    %s98 = sadd.s32 %s22, 1
    %s99 = smul.u32 %s98, 16
    %p100 = scmp.lt.s32.totalorder %s99, 15
    %s101 = scalar_select %p100, %s99, 15
    %s102 = sadd.s32 %s29, 1
    %s103 = smul.u32 %s102, 16
    %p104 = scmp.lt.s32.totalorder %s103, 15
    %s105 = scalar_select %p104, %s103, 15
    %s106 = ssub.s32 %s21, %s33
    %s107 = ssub.s32 %s101, %s105
    %s108 = sor.u32 %s106, %s107
    %p109 = scmp.eq.s32.totalorder %s108, 0
    %s111 = sadd.s32 %s110, 1
    %s112 = scalar_select %p109, %s110, %s111
    %p115 = pneg %p109
    %p116 = scmp.eq.s32.totalorder %s14, 1
    %p117 = por %p115, %p116
    %p118 = scmp.ne.s32.totalorder %s110, %s113
    %p119 = scmp.eq.s32.totalorder %s14, 0
    %p120 = por %p118, %p119
    %p121 = scmp.ne.s32.totalorder %s110, %s113
    %p122 = scmp.eq.s32.totalorder %s19, 1
    %p123 = por %p121, %p122
    %p124 = scmp.ne.s32.totalorder %s113, %s114
    %p125 = scmp.eq.s32.totalorder %s19, 0
    %p126 = por %p124, %p125
    %p127 = scmp.ne.s32.totalorder %s113, %s114
    %p128 = scmp.eq.s32.totalorder %s20, 1
    %p129 = por %p127, %p128
    %p131 = scmp.ne.s32.totalorder %s114, %s130
    %p132 = scmp.eq.s32.totalorder %s20, 0
    %p133 = por %p131, %p132
    %s135 = sadd.s32 %s134, 1
    %p138 = scmp.eq.s32.totalorder %s14, 1
    %p139 = scmp.ne.s32.totalorder %s134, %s136
    %p140 = scmp.eq.s32.totalorder %s14, 0
    %p141 = por %p139, %p140
    %p142 = scmp.ne.s32.totalorder %s134, %s136
    %p143 = scmp.eq.s32.totalorder %s19, 1
    %p144 = por %p142, %p143
    %p145 = scmp.ne.s32.totalorder %s136, %s137
    %p146 = scmp.eq.s32.totalorder %s19, 0
    %p147 = por %p145, %p146
    %p148 = scmp.ne.s32.totalorder %s136, %s137
    %p149 = scmp.eq.s32.totalorder %s20, 1
    %p150 = por %p148, %p149
    %p152 = scmp.ne.s32.totalorder %s137, %s151
    %p153 = scmp.eq.s32.totalorder %s20, 0
    %p154 = por %p152, %p153
    %s156 = sadd.s32 %s155, 1
    %p159 = scmp.eq.s32.totalorder %s14, 1
    %p160 = scmp.ne.s32.totalorder %s155, %s157
    %p161 = scmp.eq.s32.totalorder %s14, 0
    %p162 = por %p160, %p161
    %p163 = scmp.ne.s32.totalorder %s155, %s157
    %p164 = scmp.eq.s32.totalorder %s19, 1
    %p165 = por %p163, %p164
    %p166 = scmp.ne.s32.totalorder %s157, %s158
    %p167 = scmp.eq.s32.totalorder %s19, 0
    %p168 = por %p166, %p167
    %p169 = scmp.ne.s32.totalorder %s157, %s158
    %p170 = scmp.eq.s32.totalorder %s20, 1
    %p171 = por %p169, %p170
    %p173 = scmp.ne.s32.totalorder %s158, %s172
    %p174 = scmp.eq.s32.totalorder %s20, 0
    %p175 = por %p173, %p174
    %s177 = sadd.s32 %s176, 1
    %p180 = scmp.eq.s32.totalorder %s14, 1
    %p181 = scmp.ne.s32.totalorder %s176, %s178
    %p182 = scmp.eq.s32.totalorder %s14, 0
    %p183 = por %p181, %p182
    %p184 = scmp.ne.s32.totalorder %s176, %s178
    %p185 = scmp.eq.s32.totalorder %s19, 1
    %p186 = por %p184, %p185
    %p187 = scmp.ne.s32.totalorder %s178, %s179
    %p188 = scmp.eq.s32.totalorder %s19, 0
    %p189 = por %p187, %p188
    %p190 = scmp.ne.s32.totalorder %s178, %s179
    %p191 = scmp.eq.s32.totalorder %s20, 1
    %p192 = por %p190, %p191
    %p194 = scmp.ne.s32.totalorder %s179, %s193
    %p195 = scmp.eq.s32.totalorder %s20, 0
    %p196 = por %p194, %p195
    %s197 = ssub.s32 %s21, %s33
    %s198 = ssub.s32 %s22, %s29
    %s199 = sor.u32 %s197, %s198
    %p200 = scmp.eq.s32.totalorder %s199, 0
    %s202 = sadd.s32 %s201, 1
    %s203 = scalar_select %p200, %s201, %s202
    %p206 = pneg %p200
    %p207 = scmp.eq.s32.totalorder %s14, 1
    %p208 = por %p206, %p207
    %p209 = scmp.ne.s32.totalorder %s201, %s204
    %p210 = scmp.eq.s32.totalorder %s14, 0
    %p211 = por %p209, %p210
    %p212 = scmp.ne.s32.totalorder %s201, %s204
    %p213 = scmp.eq.s32.totalorder %s19, 1
    %p214 = por %p212, %p213
    %p215 = scmp.ne.s32.totalorder %s204, %s205
    %p216 = scmp.eq.s32.totalorder %s19, 0
    %p217 = por %p215, %p216
    %p218 = scmp.ne.s32.totalorder %s204, %s205
    %p219 = scmp.eq.s32.totalorder %s20, 1
    %p220 = por %p218, %p219
    %p222 = scmp.ne.s32.totalorder %s205, %s221
    %p223 = scmp.eq.s32.totalorder %s20, 0
    %p224 = por %p222, %p223
    %s225 = ssub.s32 %s21, %s33
    %s226 = ssub.s32 %s22, %s29
    %s227 = sor.u32 %s225, %s226
    %p228 = scmp.eq.s32.totalorder %s227, 0
    %s230 = sadd.s32 %s229, 1
    %s231 = scalar_select %p228, %s229, %s230
    %p234 = pneg %p228
    %p235 = scmp.eq.s32.totalorder %s14, 1
    %p236 = por %p234, %p235
    %p237 = scmp.ne.s32.totalorder %s229, %s232
    %p238 = scmp.eq.s32.totalorder %s14, 0
    %p239 = por %p237, %p238
    %p240 = scmp.ne.s32.totalorder %s229, %s232
    %p241 = scmp.eq.s32.totalorder %s19, 1
    %p242 = por %p240, %p241
    %p243 = scmp.ne.s32.totalorder %s232, %s233
    %p244 = scmp.eq.s32.totalorder %s19, 0
    %p245 = por %p243, %p244
    %p246 = scmp.ne.s32.totalorder %s232, %s233
    %p247 = scmp.eq.s32.totalorder %s20, 1
    %p248 = por %p246, %p247
    %p250 = scmp.ne.s32.totalorder %s233, %s249
    %p251 = scmp.eq.s32.totalorder %s20, 0
    %p252 = por %p250, %p251
    %p253 = scmp.le.s32.totalorder 1, %s14
    %p254 = scmp.lt.s32.totalorder %s14, 3
    %p255 = pnand %p253, %p254
    %p256 = pneg %p255
    // Predicated region
    $region9: #{double_conv_forward.3} parent=5 // pred_check
      _
    $region10: #{double_conv_forward.3} parent=5 // pred_check_branch
      %258 = sbr.rel (%p255) target = $region12
    $region11: #{double_conv_forward.3} parent=5 // pred_region
      %s259 = ssub.s32 %s14, 1
      // Predicated region
      $region13: #{double_conv_forward.3} parent=11 // pred_check
        %p260 = pneg %p147
      $region14: #{double_conv_forward.3} parent=11 // pred_check_branch
        %262 = sbr.rel (%p260) target = $region16
      $region15: #{double_conv_forward.3} parent=11 // pred_region
        _
      $region16: #{double_conv_forward.3} parent=11 // pred_fallthru
        _
      // Predicated region
      $region17: #{double_conv_forward.3} parent=11 // pred_check
        %p263 = pneg %p168
      $region18: #{double_conv_forward.3} parent=11 // pred_check_branch
        %265 = sbr.rel (%p263) target = $region20
      $region19: #{double_conv_forward.3} parent=11 // pred_region
        _
      $region20: #{double_conv_forward.3} parent=11 // pred_fallthru
        _
      // Predicated region
      $region21: #{double_conv_forward.3} parent=11 // pred_check
        %p266 = pneg %p189
      $region22: #{double_conv_forward.3} parent=11 // pred_check_branch
        %268 = sbr.rel (%p266) target = $region24
      $region23: #{double_conv_forward.3} parent=11 // pred_region
        _
      $region24: #{double_conv_forward.3} parent=11 // pred_fallthru
        _
    $region12: #{double_conv_forward.3} parent=5 // pred_fallthru
      _
    %p269 = scmp.lt.s32.totalorder %s14, 2
    // Predicated region
    $region25: #{double_conv_forward.3} parent=5 // pred_check
      %p270 = pneg %p269
    $region26: #{double_conv_forward.3} parent=5 // pred_check_branch
      %272 = sbr.rel (%p270) target = $region28
    $region27: #{double_conv_forward.3} parent=5 // pred_region
      // Predicated region
      $region29: #{double_conv_forward.3} parent=27 // pred_check
        %p273 = pneg %p48
      $region30: #{double_conv_forward.3} parent=27 // pred_check_branch
        %275 = sbr.rel (%p273) target = $region32
      $region31: #{double_conv_forward.3} parent=27 // pred_region
        %s276 = smul.u32 16, %s22
        %p277 = scmp.lt.s32.totalorder %s21, 1
        %s278 = scalar_select %p277, %s21, 1
        %p279 = scmp.lt.s32.totalorder %s276, 15
        %s280 = scalar_select %p279, %s276, 15
        %s281 = smul.addr %s280, 2
        %s282 = smul.addr %s278, 32
        %s283 = sadd.s32 %s281, %s282
        %s284 = smul.addr %s283, 8
        %s285 = scalar_lea.vmem %s0, %s284
        %s286 = smul.u32 16, %s22
      $region32: #{double_conv_forward.3} parent=27 // pred_fallthru
        _
      // Predicated region
      $region33: #{double_conv_forward.3} parent=27 // pred_check
        %p287 = pneg %p84
      $region34: #{double_conv_forward.3} parent=27 // pred_check_branch
        %289 = sbr.rel (%p287) target = $region36
      $region35: #{double_conv_forward.3} parent=27 // pred_region
        %s290 = smul.u32 %s22, 16
        %s291 = ssub.s32 %s290, 1
        %p292 = scmp.gt.s32.totalorder %s291, 0
        %s293 = scalar_select %p292, %s291, 0
        %p294 = scmp.lt.s32.totalorder %s21, 1
        %s295 = scalar_select %p294, %s21, 1
        %p296 = scmp.lt.s32.totalorder %s293, 15
        %s297 = scalar_select %p296, %s293, 15
        %s298 = smul.addr %s297, 2
        %s299 = smul.addr %s295, 32
        %s300 = sadd.s32 %s298, %s299
        %s301 = smul.addr %s300, 8
        %s302 = scalar_lea.vmem %s1, %s301
        %s303 = smul.u32 %s22, 16
        %s304 = ssub.s32 %s303, 1
        %p305 = scmp.gt.s32.totalorder %s304, 0
        %s306 = scalar_select %p305, %s304, 0
      $region36: #{double_conv_forward.3} parent=27 // pred_fallthru
        _
      // Predicated region
      $region37: #{double_conv_forward.3} parent=27 // pred_check
        %p307 = pneg %p120
      $region38: #{double_conv_forward.3} parent=27 // pred_check_branch
        %309 = sbr.rel (%p307) target = $region40
      $region39: #{double_conv_forward.3} parent=27 // pred_region
        %s310 = sadd.s32 %s22, 1
        %s311 = smul.u32 %s310, 16
        %p312 = scmp.lt.s32.totalorder %s311, 15
        %s313 = scalar_select %p312, %s311, 15
        %p314 = scmp.lt.s32.totalorder %s21, 1
        %s315 = scalar_select %p314, %s21, 1
        %p316 = scmp.lt.s32.totalorder %s313, 15
        %s317 = scalar_select %p316, %s313, 15
        %s318 = smul.addr %s317, 2
        %s319 = smul.addr %s315, 32
        %s320 = sadd.s32 %s318, %s319
        %s321 = smul.addr %s320, 8
        %s322 = scalar_lea.vmem %s2, %s321
        %s323 = sadd.s32 %s22, 1
        %s324 = smul.u32 %s323, 16
        %p325 = scmp.lt.s32.totalorder %s324, 15
        %s326 = scalar_select %p325, %s324, 15
      $region40: #{double_conv_forward.3} parent=27 // pred_fallthru
        _
    $region28: #{double_conv_forward.3} parent=5 // pred_fallthru
      _
    %p327 = scmp.le.s32.totalorder 1, %s14
    %p328 = scmp.lt.s32.totalorder %s14, 3
    %p329 = pnand %p327, %p328
    %p330 = pneg %p329
    // Predicated region
    $region41: #{double_conv_forward.3} parent=5 // pred_check
      _
    $region42: #{double_conv_forward.3} parent=5 // pred_check_branch
      %332 = sbr.rel (%p329) target = $region44
    $region43: #{double_conv_forward.3} parent=5 // pred_region
      %s333 = ssub.s32 %s14, 1
      %s334 = smul.u32 16, %s24
      %p335 = scmp.lt.s32.totalorder %s23, 1
      %s336 = scalar_select %p335, %s23, 1
      %p337 = scmp.lt.s32.totalorder %s334, 15
      %s338 = scalar_select %p337, %s334, 15
      %s339 = smul.addr %s338, 2
      %s340 = smul.addr %s336, 32
      %s341 = sadd.s32 %s339, %s340
      %s342 = smul.addr %s341, 8
      %s343 = scalar_lea.vmem %s0, %s342
      %p344 = pneg %p54
      %p345 = pneg %p51
      %s346 = smul.u32 %s24, 16
      %s347 = ssub.s32 %s346, 1
      %p348 = scmp.gt.s32.totalorder %s347, 0
      %s349 = scalar_select %p348, %s347, 0
      %p350 = scmp.lt.s32.totalorder %s23, 1
      %s351 = scalar_select %p350, %s23, 1
      %p352 = scmp.lt.s32.totalorder %s349, 15
      %s353 = scalar_select %p352, %s349, 15
      %s354 = smul.addr %s353, 2
      %s355 = smul.addr %s351, 32
      %s356 = sadd.s32 %s354, %s355
      %s357 = smul.addr %s356, 8
      %s358 = scalar_lea.vmem %s1, %s357
      %p359 = pneg %p90
      %p360 = pneg %p87
      %s361 = sadd.s32 %s24, 1
      %s362 = smul.u32 %s361, 16
      %p363 = scmp.lt.s32.totalorder %s362, 15
      %s364 = scalar_select %p363, %s362, 15
      %p365 = scmp.lt.s32.totalorder %s23, 1
      %s366 = scalar_select %p365, %s23, 1
      %p367 = scmp.lt.s32.totalorder %s364, 15
      %s368 = scalar_select %p367, %s364, 15
      %s369 = smul.addr %s368, 2
      %s370 = smul.addr %s366, 32
      %s371 = sadd.s32 %s369, %s370
      %s372 = smul.addr %s371, 8
      %s373 = scalar_lea.vmem %s2, %s372
      %p374 = pneg %p126
      %p375 = pneg %p123
      %p376 = pneg %p147
      %p377 = pneg %p144
      %p378 = pneg %p168
      %p379 = pneg %p165
      %p380 = pneg %p189
      %p381 = pneg %p186
      %p382 = pneg %p217
      %p383 = pneg %p214
      %s384 = smul.u32 16, %s24
      %p385 = scmp.lt.s32.totalorder %s23, 1
      %s386 = scalar_select %p385, %s23, 1
      %p387 = scmp.lt.s32.totalorder %s384, 15
      %s388 = scalar_select %p387, %s384, 15
      %s389 = smul.addr %s388, 2
      %s390 = smul.addr %s386, 32
      %s391 = sadd.s32 %s389, %s390
      %s392 = smul.addr %s391, 4
      %s393 = scalar_lea.vmem %s6, %s392
      %p394 = pneg %p245
      %p395 = pneg %p242
      %p396 = scmp.lt.s32.totalorder %s23, 1
      %s397 = scalar_select %p396, %s23, 1
      %p398 = scmp.lt.s32.totalorder %s24, 0
      %s399 = scalar_select %p398, %s24, 0
      %s400 = sadd.s32 %s399, %s397
      %s401 = smul.addr %s400, 2
      %s402 = scalar_lea.vmem %s7, %s401
      %s403 = smul.u32 16, %s24
      %p404 = scmp.lt.s32.totalorder %s23, 1
      %s405 = scalar_select %p404, %s23, 1
      %p406 = scmp.lt.s32.totalorder %s403, 15
      %s407 = scalar_select %p406, %s403, 15
      %s408 = smul.addr %s407, 2
      %s409 = smul.addr %s405, 32
      %s410 = sadd.s32 %s408, %s409
      %s411 = smul.addr %s410, 8
      %s412 = scalar_lea.vmem %s0, %s411
      %s413 = smul.u32 16, %s24
      %s414 = smul.u32 %s24, 16
      %s415 = ssub.s32 %s414, 1
      %p416 = scmp.gt.s32.totalorder %s415, 0
      %s417 = scalar_select %p416, %s415, 0
      %p418 = scmp.lt.s32.totalorder %s23, 1
      %s419 = scalar_select %p418, %s23, 1
      %p420 = scmp.lt.s32.totalorder %s417, 15
      %s421 = scalar_select %p420, %s417, 15
      %s422 = smul.addr %s421, 2
      %s423 = smul.addr %s419, 32
      %s424 = sadd.s32 %s422, %s423
      %s425 = smul.addr %s424, 8
      %s426 = scalar_lea.vmem %s1, %s425
      %s427 = smul.u32 %s24, 16
      %s428 = ssub.s32 %s427, 1
      %p429 = scmp.gt.s32.totalorder %s428, 0
      %s430 = scalar_select %p429, %s428, 0
      %s431 = sadd.s32 %s24, 1
      %s432 = smul.u32 %s431, 16
      %p433 = scmp.lt.s32.totalorder %s432, 15
      %s434 = scalar_select %p433, %s432, 15
      %p435 = scmp.lt.s32.totalorder %s23, 1
      %s436 = scalar_select %p435, %s23, 1
      %p437 = scmp.lt.s32.totalorder %s434, 15
      %s438 = scalar_select %p437, %s434, 15
      %s439 = smul.addr %s438, 2
      %s440 = smul.addr %s436, 32
      %s441 = sadd.s32 %s439, %s440
      %s442 = smul.addr %s441, 8
      %s443 = scalar_lea.vmem %s2, %s442
      %s444 = sadd.s32 %s24, 1
      %s445 = smul.u32 %s444, 16
      %p446 = scmp.lt.s32.totalorder %s445, 15
      %s447 = scalar_select %p446, %s445, 15
      %s448 = smul.u32 16, %s24
      %p449 = scmp.lt.s32.totalorder %s23, 1
      %s450 = scalar_select %p449, %s23, 1
      %p451 = scmp.lt.s32.totalorder %s448, 15
      %s452 = scalar_select %p451, %s448, 15
      %s453 = smul.addr %s452, 2
      %s454 = smul.addr %s450, 32
      %s455 = sadd.s32 %s453, %s454
      %s456 = smul.addr %s455, 4
      %s457 = scalar_lea.vmem %s6, %s456
      %s458 = smul.u32 16, %s24
      %p459 = scmp.lt.s32.totalorder %s23, 1
      %s460 = scalar_select %p459, %s23, 1
      %p461 = scmp.lt.s32.totalorder %s24, 0
      %s462 = scalar_select %p461, %s24, 0
      %s463 = sadd.s32 %s462, %s460
      %s464 = smul.addr %s463, 2
      %s465 = scalar_lea.vmem %s7, %s464
      %vm467 = vcmask 31744
      %468 = vst.msk [vmem:[#allocation2] sm:$0xff] %vm467, 0.0
      %469 = vst.msk [vmem:[#allocation2 + $0x8] sm:$0xff] %vm467, 0.0
      %470 = vst.msk [vmem:[#allocation2 + $0x10] sm:$0xff] %vm467, 0.0
      %471 = vst.msk [vmem:[#allocation2 + $0x18] sm:$0xff] %vm467, 0.0
      %472 = vst.msk [vmem:[#allocation2 + $0x20] sm:$0xff] %vm467, 0.0
      %473 = vst.msk [vmem:[#allocation2 + $0x28] sm:$0xff] %vm467, 0.0
      %474 = vst.msk [vmem:[#allocation2 + $0x30] sm:$0xff] %vm467, 0.0
      %475 = vst.msk [vmem:[#allocation2 + $0x38] sm:$0xff] %vm467, 0.0
      %476 = vst.msk [vmem:[#allocation2 + $0x40] sm:$0xff] %vm467, 0.0
      %477 = vst.msk [vmem:[#allocation2 + $0x48] sm:$0xff] %vm467, 0.0
      %478 = vst.msk [vmem:[#allocation2 + $0x50] sm:$0xff] %vm467, 0.0
      %479 = vst.msk [vmem:[#allocation2 + $0x58] sm:$0xff] %vm467, 0.0
      %480 = vst.msk [vmem:[#allocation2 + $0x60] sm:$0xff] %vm467, 0.0
      %481 = vst.msk [vmem:[#allocation2 + $0x68] sm:$0xff] %vm467, 0.0
      %482 = vst.msk [vmem:[#allocation2 + $0x70] sm:$0xff] %vm467, 0.0
      %483 = vst.msk [vmem:[#allocation2 + $0x78] sm:$0xff] %vm467, 0.0
      %484 = vst.msk [vmem:[#allocation2 + $0x80] sm:$0xff] %vm467, 0.0
      %485 = vst.msk [vmem:[#allocation2 + $0x88] sm:$0xff] %vm467, 0.0
      %486 = vst.msk [vmem:[#allocation2 + $0x90] sm:$0xff] %vm467, 0.0
      %487 = vst.msk [vmem:[#allocation2 + $0x98] sm:$0xff] %vm467, 0.0
      %488 = vst.msk [vmem:[#allocation2 + $0xa0] sm:$0xff] %vm467, 0.0
      %489 = vst.msk [vmem:[#allocation2 + $0xa8] sm:$0xff] %vm467, 0.0
      %490 = vst.msk [vmem:[#allocation2 + $0xb0] sm:$0xff] %vm467, 0.0
      %491 = vst.msk [vmem:[#allocation2 + $0xb8] sm:$0xff] %vm467, 0.0
      %492 = vst.msk [vmem:[#allocation2 + $0xc0] sm:$0xff] %vm467, 0.0
      %493 = vst.msk [vmem:[#allocation2 + $0xc8] sm:$0xff] %vm467, 0.0
      %494 = vst.msk [vmem:[#allocation2 + $0xd0] sm:$0xff] %vm467, 0.0
      %495 = vst.msk [vmem:[#allocation2 + $0xd8] sm:$0xff] %vm467, 0.0
      %496 = vst.msk [vmem:[#allocation2 + $0xe0] sm:$0xff] %vm467, 0.0
      %497 = vst.msk [vmem:[#allocation2 + $0xe8] sm:$0xff] %vm467, 0.0
      %498 = vst.msk [vmem:[#allocation2 + $0xf0] sm:$0xff] %vm467, 0.0
      %499 = vst.msk [vmem:[#allocation2 + $0xf8] sm:$0xff] %vm467, 0.0
      %500 = vst.msk [vmem:[#allocation2 + $0x100] sm:$0xff] %vm467, 0.0
      %501 = vst.msk [vmem:[#allocation2 + $0x108] sm:$0xff] %vm467, 0.0
      %502 = vst.msk [vmem:[#allocation2 + $0x110] sm:$0xff] %vm467, 0.0
      %503 = vst.msk [vmem:[#allocation2 + $0x118] sm:$0xff] %vm467, 0.0
      %504 = vst.msk [vmem:[#allocation2 + $0x120] sm:$0xff] %vm467, 0.0
      %505 = vst.msk [vmem:[#allocation2 + $0x128] sm:$0xff] %vm467, 0.0
      %506 = vst.msk [vmem:[#allocation2 + $0x130] sm:$0xff] %vm467, 0.0
      %507 = vst.msk [vmem:[#allocation2 + $0x138] sm:$0xff] %vm467, 0.0
      %508 = vst.msk [vmem:[#allocation2 + $0x140] sm:$0xff] %vm467, 0.0
      %509 = vst.msk [vmem:[#allocation2 + $0x148] sm:$0xff] %vm467, 0.0
      %510 = vst.msk [vmem:[#allocation2 + $0x150] sm:$0xff] %vm467, 0.0
      %511 = vst.msk [vmem:[#allocation2 + $0x158] sm:$0xff] %vm467, 0.0
      %512 = vst.msk [vmem:[#allocation2 + $0x160] sm:$0xff] %vm467, 0.0
      %513 = vst.msk [vmem:[#allocation2 + $0x168] sm:$0xff] %vm467, 0.0
      %514 = vst.msk [vmem:[#allocation2 + $0x170] sm:$0xff] %vm467, 0.0
      %515 = vst.msk [vmem:[#allocation2 + $0x178] sm:$0xff] %vm467, 0.0
      %516 = vst.msk [vmem:[#allocation2 + $0x180] sm:$0xff] %vm467, 0.0
      %517 = vst.msk [vmem:[#allocation2 + $0x188] sm:$0xff] %vm467, 0.0
      %518 = vst.msk [vmem:[#allocation2 + $0x190] sm:$0xff] %vm467, 0.0
      %519 = vst.msk [vmem:[#allocation2 + $0x198] sm:$0xff] %vm467, 0.0
      %520 = vst.msk [vmem:[#allocation2 + $0x1a0] sm:$0xff] %vm467, 0.0
      %521 = vst.msk [vmem:[#allocation2 + $0x1a8] sm:$0xff] %vm467, 0.0
      %522 = vst.msk [vmem:[#allocation2 + $0x1b0] sm:$0xff] %vm467, 0.0
      %523 = vst.msk [vmem:[#allocation2 + $0x1b8] sm:$0xff] %vm467, 0.0
      %524 = vst.msk [vmem:[#allocation2 + $0x1c0] sm:$0xff] %vm467, 0.0
      %525 = vst.msk [vmem:[#allocation2 + $0x1c8] sm:$0xff] %vm467, 0.0
      %526 = vst.msk [vmem:[#allocation2 + $0x1d0] sm:$0xff] %vm467, 0.0
      %527 = vst.msk [vmem:[#allocation2 + $0x1d8] sm:$0xff] %vm467, 0.0
      %528 = vst.msk [vmem:[#allocation2 + $0x1e0] sm:$0xff] %vm467, 0.0
      %529 = vst.msk [vmem:[#allocation2 + $0x1e8] sm:$0xff] %vm467, 0.0
      %530 = vst.msk [vmem:[#allocation2 + $0x1f0] sm:$0xff] %vm467, 0.0
      %531 = vst.msk [vmem:[#allocation2 + $0x1f8] sm:$0xff] %vm467, 0.0
      %532 = vst.msk [vmem:[#allocation2 + $0x200] sm:$0xff] %vm467, 0.0
      %533 = vst.msk [vmem:[#allocation2 + $0x208] sm:$0xff] %vm467, 0.0
      %534 = vst.msk [vmem:[#allocation2 + $0x210] sm:$0xff] %vm467, 0.0
      %535 = vst.msk [vmem:[#allocation2 + $0x218] sm:$0xff] %vm467, 0.0
      %536 = vst.msk [vmem:[#allocation2 + $0x220] sm:$0xff] %vm467, 0.0
      %537 = vst.msk [vmem:[#allocation2 + $0x228] sm:$0xff] %vm467, 0.0
      %538 = vst.msk [vmem:[#allocation2 + $0x230] sm:$0xff] %vm467, 0.0
      %539 = vst.msk [vmem:[#allocation2 + $0x238] sm:$0xff] %vm467, 0.0
      %v540 = vld [vmem:[%s412] sm:$0xff]
      %v541 = vld [vmem:[%s412 + $0x8] sm:$0xff]
      %v542 = vld [vmem:[%s412 + $0x10] sm:$0xff]
      %v543 = vld [vmem:[%s412 + $0x18] sm:$0xff]
      %v544 = vld [vmem:[%s412 + $0x20] sm:$0xff]
      %v545 = vld [vmem:[%s412 + $0x28] sm:$0xff]
      %v546 = vld [vmem:[%s412 + $0x30] sm:$0xff]
      %v547 = vld [vmem:[%s412 + $0x38] sm:$0xff]
      %v548 = vld [vmem:[%s412 + $0x40] sm:$0xff]
      %v549 = vld [vmem:[%s412 + $0x48] sm:$0xff]
      %v550 = vld [vmem:[%s412 + $0x50] sm:$0xff]
      %v551 = vld [vmem:[%s412 + $0x58] sm:$0xff]
      %v552 = vld [vmem:[%s412 + $0x60] sm:$0xff]
      %v553 = vld [vmem:[%s412 + $0x68] sm:$0xff]
      %v554 = vld [vmem:[%s412 + $0x70] sm:$0xff]
      %v555 = vld [vmem:[%s412 + $0x78] sm:$0xff]
      %v556 = vld [vmem:[%s412 + $0x80] sm:$0xff]
      %v557 = vld [vmem:[%s412 + $0x88] sm:$0xff]
      %v558 = vld [vmem:[%s412 + $0x90] sm:$0xff]
      %v559 = vld [vmem:[%s412 + $0x98] sm:$0xff]
      %v560 = vld [vmem:[%s412 + $0xa0] sm:$0xff]
      %v561 = vld [vmem:[%s412 + $0xa8] sm:$0xff]
      %v562 = vld [vmem:[%s412 + $0xb0] sm:$0xff]
      %v563 = vld [vmem:[%s412 + $0xb8] sm:$0xff]
      %v564 = vld [vmem:[%s412 + $0xc0] sm:$0xff]
      %v565 = vld [vmem:[%s412 + $0xc8] sm:$0xff]
      %v566 = vld [vmem:[%s412 + $0xd0] sm:$0xff]
      %v567 = vld [vmem:[%s412 + $0xd8] sm:$0xff]
      %v568 = vld [vmem:[%s412 + $0xe0] sm:$0xff]
      %v569 = vld [vmem:[%s412 + $0xe8] sm:$0xff]
      %v570 = vld [vmem:[%s412 + $0xf0] sm:$0xff]
      %v571 = vld [vmem:[%s412 + $0xf8] sm:$0xff]
      %s572 = scalar_lea.vmem [#allocation2], 32
      %573 = vst.msk [vmem:[%s572 + $0x8] sm:$0xff] %vm467, %v540
      %574 = vst.msk [vmem:[%s572 + $0x10] sm:$0xff] %vm467, %v541
      %575 = vst.msk [vmem:[%s572 + $0x28] sm:$0xff] %vm467, %v542
      %576 = vst.msk [vmem:[%s572 + $0x30] sm:$0xff] %vm467, %v543
      %577 = vst.msk [vmem:[%s572 + $0x48] sm:$0xff] %vm467, %v544
      %578 = vst.msk [vmem:[%s572 + $0x50] sm:$0xff] %vm467, %v545
      %579 = vst.msk [vmem:[%s572 + $0x68] sm:$0xff] %vm467, %v546
      %580 = vst.msk [vmem:[%s572 + $0x70] sm:$0xff] %vm467, %v547
      %581 = vst.msk [vmem:[%s572 + $0x88] sm:$0xff] %vm467, %v548
      %582 = vst.msk [vmem:[%s572 + $0x90] sm:$0xff] %vm467, %v549
      %583 = vst.msk [vmem:[%s572 + $0xa8] sm:$0xff] %vm467, %v550
      %584 = vst.msk [vmem:[%s572 + $0xb0] sm:$0xff] %vm467, %v551
      %585 = vst.msk [vmem:[%s572 + $0xc8] sm:$0xff] %vm467, %v552
      %586 = vst.msk [vmem:[%s572 + $0xd0] sm:$0xff] %vm467, %v553
      %587 = vst.msk [vmem:[%s572 + $0xe8] sm:$0xff] %vm467, %v554
      %588 = vst.msk [vmem:[%s572 + $0xf0] sm:$0xff] %vm467, %v555
      %589 = vst.msk [vmem:[%s572 + $0x108] sm:$0xff] %vm467, %v556
      %590 = vst.msk [vmem:[%s572 + $0x110] sm:$0xff] %vm467, %v557
      %591 = vst.msk [vmem:[%s572 + $0x128] sm:$0xff] %vm467, %v558
      %592 = vst.msk [vmem:[%s572 + $0x130] sm:$0xff] %vm467, %v559
      %593 = vst.msk [vmem:[%s572 + $0x148] sm:$0xff] %vm467, %v560
      %594 = vst.msk [vmem:[%s572 + $0x150] sm:$0xff] %vm467, %v561
      %595 = vst.msk [vmem:[%s572 + $0x168] sm:$0xff] %vm467, %v562
      %596 = vst.msk [vmem:[%s572 + $0x170] sm:$0xff] %vm467, %v563
      %597 = vst.msk [vmem:[%s572 + $0x188] sm:$0xff] %vm467, %v564
      %598 = vst.msk [vmem:[%s572 + $0x190] sm:$0xff] %vm467, %v565
      %599 = vst.msk [vmem:[%s572 + $0x1a8] sm:$0xff] %vm467, %v566
      %600 = vst.msk [vmem:[%s572 + $0x1b0] sm:$0xff] %vm467, %v567
      %601 = vst.msk [vmem:[%s572 + $0x1c8] sm:$0xff] %vm467, %v568
      %602 = vst.msk [vmem:[%s572 + $0x1d0] sm:$0xff] %vm467, %v569
      %603 = vst.msk [vmem:[%s572 + $0x1e8] sm:$0xff] %vm467, %v570
      %604 = vst.msk [vmem:[%s572 + $0x1f0] sm:$0xff] %vm467, %v571
      %p605 = scmp.gt.s32.totalorder %s24, 0
      %v606 = vld [vmem:[%s426] sm:$0xff]
      %v607 = vld [vmem:[%s426 + $0x8] sm:$0xff]
      %s608 = scalar_select %p605, 1, 0
      %v609 = vstv %s608
      %vm610 = vcmp.eq.s32.totalorder %v609, 1
      %v611 = vsel %vm610, %v606, 0.0
      %v612 = vsel %vm610, %v607, 0.0
      %613 = vst.msk [vmem:[#allocation2 + $0x8] sm:$0xff] %vm467, %v611
      %614 = vst.msk [vmem:[#allocation2 + $0x10] sm:$0xff] %vm467, %v612
      %p615 = scmp.lt.s32.totalorder %s24, 0
      %v616 = vld [vmem:[%s443] sm:$0xff]
      %v617 = vld [vmem:[%s443 + $0x8] sm:$0xff]
      %s618 = scalar_select %p615, 1, 0
      %v619 = vstv %s618
      %vm620 = vcmp.eq.s32.totalorder %v619, 1
      %v621 = vsel %vm620, %v616, 0.0
      %v622 = vsel %vm620, %v617, 0.0
      %s623 = scalar_lea.vmem [#allocation2], 544
      %624 = vst.msk [vmem:[%s623 + $0x8] sm:$0xff] %vm467, %v621
      %625 = vst.msk [vmem:[%s623 + $0x10] sm:$0xff] %vm467, %v622
      %v626 = vld [vmem:[#allocation2] sm:$0xff]
      %v627 = vld [vmem:[#allocation2 + $0x8] sm:$0xff]
      %v628 = vld [vmem:[#allocation2 + $0x10] sm:$0xff]
      %v629 = vld [vmem:[#allocation2 + $0x18] sm:$0xff]
      %v630 = vld [vmem:[#allocation2 + $0x20] sm:$0xff]
      %v631 = vld [vmem:[#allocation2 + $0x28] sm:$0xff]
      %v632 = vld [vmem:[#allocation2 + $0x30] sm:$0xff]
      %v633 = vld [vmem:[#allocation2 + $0x38] sm:$0xff]
      %v634 = vld [vmem:[#allocation2 + $0x40] sm:$0xff]
      %v635 = vld [vmem:[#allocation2 + $0x48] sm:$0xff]
      %v636 = vld [vmem:[#allocation2 + $0x50] sm:$0xff]
      %v637 = vld [vmem:[#allocation2 + $0x58] sm:$0xff]
      %v638 = vld [vmem:[#allocation2 + $0x60] sm:$0xff]
      %v639 = vld [vmem:[#allocation2 + $0x68] sm:$0xff]
      %v640 = vld [vmem:[#allocation2 + $0x70] sm:$0xff]
      %v641 = vld [vmem:[#allocation2 + $0x78] sm:$0xff]
      %v642 = vld [vmem:[#allocation2 + $0x80] sm:$0xff]
      %v643 = vld [vmem:[#allocation2 + $0x88] sm:$0xff]
      %v644 = vld [vmem:[#allocation2 + $0x90] sm:$0xff]
      %v645 = vld [vmem:[#allocation2 + $0x98] sm:$0xff]
      %v646 = vld [vmem:[#allocation2 + $0xa0] sm:$0xff]
      %v647 = vld [vmem:[#allocation2 + $0xa8] sm:$0xff]
      %v648 = vld [vmem:[#allocation2 + $0xb0] sm:$0xff]
      %v649 = vld [vmem:[#allocation2 + $0xb8] sm:$0xff]
      %v650 = vld [vmem:[#allocation2 + $0xc0] sm:$0xff]
      %v651 = vld [vmem:[#allocation2 + $0xc8] sm:$0xff]
      %v652 = vld [vmem:[#allocation2 + $0xd0] sm:$0xff]
      %v653 = vld [vmem:[#allocation2 + $0xd8] sm:$0xff]
      %v654 = vld [vmem:[#allocation2 + $0xe0] sm:$0xff]
      %v655 = vld [vmem:[#allocation2 + $0xe8] sm:$0xff]
      %v656 = vld [vmem:[#allocation2 + $0xf0] sm:$0xff]
      %v657 = vld [vmem:[#allocation2 + $0xf8] sm:$0xff]
      %v658 = vld [vmem:[#allocation2 + $0x100] sm:$0xff]
      %v659 = vld [vmem:[#allocation2 + $0x108] sm:$0xff]
      %v660 = vld [vmem:[#allocation2 + $0x110] sm:$0xff]
      %v661 = vld [vmem:[#allocation2 + $0x118] sm:$0xff]
      %v662 = vld [vmem:[#allocation2 + $0x120] sm:$0xff]
      %v663 = vld [vmem:[#allocation2 + $0x128] sm:$0xff]
      %v664 = vld [vmem:[#allocation2 + $0x130] sm:$0xff]
      %v665 = vld [vmem:[#allocation2 + $0x138] sm:$0xff]
      %v666 = vld [vmem:[#allocation2 + $0x140] sm:$0xff]
      %v667 = vld [vmem:[#allocation2 + $0x148] sm:$0xff]
      %v668 = vld [vmem:[#allocation2 + $0x150] sm:$0xff]
      %v669 = vld [vmem:[#allocation2 + $0x158] sm:$0xff]
      %v670 = vld [vmem:[#allocation2 + $0x160] sm:$0xff]
      %v671 = vld [vmem:[#allocation2 + $0x168] sm:$0xff]
      %v672 = vld [vmem:[#allocation2 + $0x170] sm:$0xff]
      %v673 = vld [vmem:[#allocation2 + $0x178] sm:$0xff]
      %v674 = vld [vmem:[#allocation2 + $0x180] sm:$0xff]
      %v675 = vld [vmem:[#allocation2 + $0x188] sm:$0xff]
      %v676 = vld [vmem:[#allocation2 + $0x190] sm:$0xff]
      %v677 = vld [vmem:[#allocation2 + $0x198] sm:$0xff]
      %v678 = vld [vmem:[#allocation2 + $0x1a0] sm:$0xff]
      %v679 = vld [vmem:[#allocation2 + $0x1a8] sm:$0xff]
      %v680 = vld [vmem:[#allocation2 + $0x1b0] sm:$0xff]
      %v681 = vld [vmem:[#allocation2 + $0x1b8] sm:$0xff]
      %v682 = vld [vmem:[#allocation2 + $0x1c0] sm:$0xff]
      %v683 = vld [vmem:[#allocation2 + $0x1c8] sm:$0xff]
      %v684 = vld [vmem:[#allocation2 + $0x1d0] sm:$0xff]
      %v685 = vld [vmem:[#allocation2 + $0x1d8] sm:$0xff]
      %v686 = vld [vmem:[#allocation2 + $0x1e0] sm:$0xff]
      %v687 = vld [vmem:[#allocation2 + $0x1e8] sm:$0xff]
      %v688 = vld [vmem:[#allocation2 + $0x1f0] sm:$0xff]
      %v689 = vld [vmem:[#allocation2 + $0x1f8] sm:$0xff]
      %v690 = vld [vmem:[#allocation2 + $0x200] sm:$0xff]
      %v691 = vld [vmem:[#allocation2 + $0x208] sm:$0xff]
      %v692 = vld [vmem:[#allocation2 + $0x210] sm:$0xff]
      %v693 = vld [vmem:[#allocation2 + $0x218] sm:$0xff]
      %v694 = vld [vmem:[#allocation2 + $0x220] sm:$0xff]
      %v695 = vld [vmem:[#allocation2 + $0x228] sm:$0xff]
      %v696 = vld [vmem:[#allocation2 + $0x230] sm:$0xff]
      %v697 = vld [vmem:[#allocation2 + $0x238] sm:$0xff]
      %v698 = vpack.c.bf16 %v626, %v626
      %v699 = vpack.c.bf16 %v627, %v627
      %v700 = vpack.c.bf16 %v628, %v628
      %v701 = vpack.c.bf16 %v629, %v629
      %v702 = vpack.c.bf16 %v630, %v630
      %v703 = vpack.c.bf16 %v631, %v631
      %v704 = vpack.c.bf16 %v632, %v632
      %v705 = vpack.c.bf16 %v633, %v633
      %v706 = vpack.c.bf16 %v634, %v634
      %v707 = vpack.c.bf16 %v635, %v635
      %v708 = vpack.c.bf16 %v636, %v636
      %v709 = vpack.c.bf16 %v637, %v637
      %v710 = vpack.c.bf16 %v638, %v638
      %v711 = vpack.c.bf16 %v639, %v639
      %v712 = vpack.c.bf16 %v640, %v640
      %v713 = vpack.c.bf16 %v641, %v641
      %v714 = vpack.c.bf16 %v642, %v642
      %v715 = vpack.c.bf16 %v643, %v643
      %v716 = vpack.c.bf16 %v644, %v644
      %v717 = vpack.c.bf16 %v645, %v645
      %v718 = vpack.c.bf16 %v646, %v646
      %v719 = vpack.c.bf16 %v647, %v647
      %v720 = vpack.c.bf16 %v648, %v648
      %v721 = vpack.c.bf16 %v649, %v649
      %v722 = vpack.c.bf16 %v650, %v650
      %v723 = vpack.c.bf16 %v651, %v651
      %v724 = vpack.c.bf16 %v652, %v652
      %v725 = vpack.c.bf16 %v653, %v653
      %v726 = vpack.c.bf16 %v654, %v654
      %v727 = vpack.c.bf16 %v655, %v655
      %v728 = vpack.c.bf16 %v656, %v656
      %v729 = vpack.c.bf16 %v657, %v657
      %v730 = vpack.c.bf16 %v658, %v658
      %v731 = vpack.c.bf16 %v659, %v659
      %v732 = vpack.c.bf16 %v660, %v660
      %v733 = vpack.c.bf16 %v661, %v661
      %v734 = vpack.c.bf16 %v662, %v662
      %v735 = vpack.c.bf16 %v663, %v663
      %v736 = vpack.c.bf16 %v664, %v664
      %v737 = vpack.c.bf16 %v665, %v665
      %v738 = vpack.c.bf16 %v666, %v666
      %v739 = vpack.c.bf16 %v667, %v667
      %v740 = vpack.c.bf16 %v668, %v668
      %v741 = vpack.c.bf16 %v669, %v669
      %v742 = vpack.c.bf16 %v670, %v670
      %v743 = vpack.c.bf16 %v671, %v671
      %v744 = vpack.c.bf16 %v672, %v672
      %v745 = vpack.c.bf16 %v673, %v673
      %v746 = vpack.c.bf16 %v674, %v674
      %v747 = vpack.c.bf16 %v675, %v675
      %v748 = vpack.c.bf16 %v676, %v676
      %v749 = vpack.c.bf16 %v677, %v677
      %v750 = vpack.c.bf16 %v678, %v678
      %v751 = vpack.c.bf16 %v679, %v679
      %v752 = vpack.c.bf16 %v680, %v680
      %v753 = vpack.c.bf16 %v681, %v681
      %v754 = vpack.c.bf16 %v682, %v682
      %v755 = vpack.c.bf16 %v683, %v683
      %v756 = vpack.c.bf16 %v684, %v684
      %v757 = vpack.c.bf16 %v685, %v685
      %v758 = vpack.c.bf16 %v686, %v686
      %v759 = vpack.c.bf16 %v687, %v687
      %v760 = vpack.c.bf16 %v688, %v688
      %v761 = vpack.c.bf16 %v689, %v689
      %v762 = vpack.c.bf16 %v690, %v690
      %v763 = vpack.c.bf16 %v691, %v691
      %v764 = vpack.c.bf16 %v692, %v692
      %v765 = vpack.c.bf16 %v693, %v693
      %v766 = vpack.c.bf16 %v694, %v694
      %v767 = vpack.c.bf16 %v695, %v695
      %v768 = vpack.c.bf16 %v696, %v696
      %v769 = vpack.c.bf16 %v697, %v697
      %vm770 = vsmask.f32 256
      %vm771 = vsmask.f32 4368
      %vm772 = vmor %vm770, %vm771
      %v774 = vshrl.u32 %v698, 16
      %v776 = vrot.slane %v774, 7
      %v777 = vrot.slane %v776, 4
      %v779 = vshrl.u32 %v699, 16
      %v781 = vrot.slane %v779, 7
      %v782 = vshll.u32 %v699, 16
      %v784 = vor.u32 %v781, %v782
      %v785 = vsel %vm772, %v777, %v784
      %v786 = vrot.slane %v781, 4
      %v788 = vshrl.u32 %v700, 16
      %v790 = vrot.slane %v788, 7
      %v791 = vshll.u32 %v700, 16
      %v793 = vor.u32 %v790, %v791
      %v794 = vsel %vm772, %v786, %v793
      %v796 = vshrl.u32 %v702, 16
      %v798 = vrot.slane %v796, 7
      %v799 = vrot.slane %v798, 4
      %v801 = vshrl.u32 %v703, 16
      %v803 = vrot.slane %v801, 7
      %v804 = vshll.u32 %v703, 16
      %v806 = vor.u32 %v803, %v804
      %v807 = vsel %vm772, %v799, %v806
      %v808 = vrot.slane %v803, 4
      %v810 = vshrl.u32 %v704, 16
      %v812 = vrot.slane %v810, 7
      %v813 = vshll.u32 %v704, 16
      %v815 = vor.u32 %v812, %v813
      %v816 = vsel %vm772, %v808, %v815
      %v818 = vshrl.u32 %v706, 16
      %v820 = vrot.slane %v818, 7
      %v821 = vrot.slane %v820, 4
      %v823 = vshrl.u32 %v707, 16
      %v825 = vrot.slane %v823, 7
      %v826 = vshll.u32 %v707, 16
      %v828 = vor.u32 %v825, %v826
      %v829 = vsel %vm772, %v821, %v828
      %v830 = vrot.slane %v825, 4
      %v832 = vshrl.u32 %v708, 16
      %v834 = vrot.slane %v832, 7
      %v835 = vshll.u32 %v708, 16
      %v837 = vor.u32 %v834, %v835
      %v838 = vsel %vm772, %v830, %v837
      %v840 = vshrl.u32 %v710, 16
      %v842 = vrot.slane %v840, 7
      %v843 = vrot.slane %v842, 4
      %v845 = vshrl.u32 %v711, 16
      %v847 = vrot.slane %v845, 7
      %v848 = vshll.u32 %v711, 16
      %v850 = vor.u32 %v847, %v848
      %v851 = vsel %vm772, %v843, %v850
      %v852 = vrot.slane %v847, 4
      %v854 = vshrl.u32 %v712, 16
      %v856 = vrot.slane %v854, 7
      %v857 = vshll.u32 %v712, 16
      %v859 = vor.u32 %v856, %v857
      %v860 = vsel %vm772, %v852, %v859
      %v862 = vshrl.u32 %v714, 16
      %v864 = vrot.slane %v862, 7
      %v865 = vrot.slane %v864, 4
      %v867 = vshrl.u32 %v715, 16
      %v869 = vrot.slane %v867, 7
      %v870 = vshll.u32 %v715, 16
      %v872 = vor.u32 %v869, %v870
      %v873 = vsel %vm772, %v865, %v872
      %v874 = vrot.slane %v869, 4
      %v876 = vshrl.u32 %v716, 16
      %v878 = vrot.slane %v876, 7
      %v879 = vshll.u32 %v716, 16
      %v881 = vor.u32 %v878, %v879
      %v882 = vsel %vm772, %v874, %v881
      %v884 = vshrl.u32 %v718, 16
      %v886 = vrot.slane %v884, 7
      %v887 = vrot.slane %v886, 4
      %v889 = vshrl.u32 %v719, 16
      %v891 = vrot.slane %v889, 7
      %v892 = vshll.u32 %v719, 16
      %v894 = vor.u32 %v891, %v892
      %v895 = vsel %vm772, %v887, %v894
      %v896 = vrot.slane %v891, 4
      %v898 = vshrl.u32 %v720, 16
      %v900 = vrot.slane %v898, 7
      %v901 = vshll.u32 %v720, 16
      %v903 = vor.u32 %v900, %v901
      %v904 = vsel %vm772, %v896, %v903
      %v906 = vshrl.u32 %v722, 16
      %v908 = vrot.slane %v906, 7
      %v909 = vrot.slane %v908, 4
      %v911 = vshrl.u32 %v723, 16
      %v913 = vrot.slane %v911, 7
      %v914 = vshll.u32 %v723, 16
      %v916 = vor.u32 %v913, %v914
      %v917 = vsel %vm772, %v909, %v916
      %v918 = vrot.slane %v913, 4
      %v920 = vshrl.u32 %v724, 16
      %v922 = vrot.slane %v920, 7
      %v923 = vshll.u32 %v724, 16
      %v925 = vor.u32 %v922, %v923
      %v926 = vsel %vm772, %v918, %v925
      %v928 = vshrl.u32 %v726, 16
      %v930 = vrot.slane %v928, 7
      %v931 = vrot.slane %v930, 4
      %v933 = vshrl.u32 %v727, 16
      %v935 = vrot.slane %v933, 7
      %v936 = vshll.u32 %v727, 16
      %v938 = vor.u32 %v935, %v936
      %v939 = vsel %vm772, %v931, %v938
      %v940 = vrot.slane %v935, 4
      %v942 = vshrl.u32 %v728, 16
      %v944 = vrot.slane %v942, 7
      %v945 = vshll.u32 %v728, 16
      %v947 = vor.u32 %v944, %v945
      %v948 = vsel %vm772, %v940, %v947
      %v950 = vshrl.u32 %v730, 16
      %v952 = vrot.slane %v950, 7
      %v953 = vrot.slane %v952, 4
      %v955 = vshrl.u32 %v731, 16
      %v957 = vrot.slane %v955, 7
      %v958 = vshll.u32 %v731, 16
      %v960 = vor.u32 %v957, %v958
      %v961 = vsel %vm772, %v953, %v960
      %v962 = vrot.slane %v957, 4
      %v964 = vshrl.u32 %v732, 16
      %v966 = vrot.slane %v964, 7
      %v967 = vshll.u32 %v732, 16
      %v969 = vor.u32 %v966, %v967
      %v970 = vsel %vm772, %v962, %v969
      %v972 = vshrl.u32 %v734, 16
      %v974 = vrot.slane %v972, 7
      %v975 = vrot.slane %v974, 4
      %v977 = vshrl.u32 %v735, 16
      %v979 = vrot.slane %v977, 7
      %v980 = vshll.u32 %v735, 16
      %v982 = vor.u32 %v979, %v980
      %v983 = vsel %vm772, %v975, %v982
      %v984 = vrot.slane %v979, 4
      %v986 = vshrl.u32 %v736, 16
      %v988 = vrot.slane %v986, 7
      %v989 = vshll.u32 %v736, 16
      %v991 = vor.u32 %v988, %v989
      %v992 = vsel %vm772, %v984, %v991
      %v994 = vshrl.u32 %v738, 16
      %v996 = vrot.slane %v994, 7
      %v997 = vrot.slane %v996, 4
      %v999 = vshrl.u32 %v739, 16
      %v1001 = vrot.slane %v999, 7
      %v1002 = vshll.u32 %v739, 16
      %v1004 = vor.u32 %v1001, %v1002
      %v1005 = vsel %vm772, %v997, %v1004
      %v1006 = vrot.slane %v1001, 4
      %v1008 = vshrl.u32 %v740, 16
      %v1010 = vrot.slane %v1008, 7
      %v1011 = vshll.u32 %v740, 16
      %v1013 = vor.u32 %v1010, %v1011
      %v1014 = vsel %vm772, %v1006, %v1013
      %v1016 = vshrl.u32 %v742, 16
      %v1018 = vrot.slane %v1016, 7
      %v1019 = vrot.slane %v1018, 4
      %v1021 = vshrl.u32 %v743, 16
      %v1023 = vrot.slane %v1021, 7
      %v1024 = vshll.u32 %v743, 16
      %v1026 = vor.u32 %v1023, %v1024
      %v1027 = vsel %vm772, %v1019, %v1026
      %v1028 = vrot.slane %v1023, 4
      %v1030 = vshrl.u32 %v744, 16
      %v1032 = vrot.slane %v1030, 7
      %v1033 = vshll.u32 %v744, 16
      %v1035 = vor.u32 %v1032, %v1033
      %v1036 = vsel %vm772, %v1028, %v1035
      %v1038 = vshrl.u32 %v746, 16
      %v1040 = vrot.slane %v1038, 7
      %v1041 = vrot.slane %v1040, 4
      %v1043 = vshrl.u32 %v747, 16
      %v1045 = vrot.slane %v1043, 7
      %v1046 = vshll.u32 %v747, 16
      %v1048 = vor.u32 %v1045, %v1046
      %v1049 = vsel %vm772, %v1041, %v1048
      %v1050 = vrot.slane %v1045, 4
      %v1052 = vshrl.u32 %v748, 16
      %v1054 = vrot.slane %v1052, 7
      %v1055 = vshll.u32 %v748, 16
      %v1057 = vor.u32 %v1054, %v1055
      %v1058 = vsel %vm772, %v1050, %v1057
      %v1060 = vshrl.u32 %v750, 16
      %v1062 = vrot.slane %v1060, 7
      %v1063 = vrot.slane %v1062, 4
      %v1065 = vshrl.u32 %v751, 16
      %v1067 = vrot.slane %v1065, 7
      %v1068 = vshll.u32 %v751, 16
      %v1070 = vor.u32 %v1067, %v1068
      %v1071 = vsel %vm772, %v1063, %v1070
      %v1072 = vrot.slane %v1067, 4
      %v1074 = vshrl.u32 %v752, 16
      %v1076 = vrot.slane %v1074, 7
      %v1077 = vshll.u32 %v752, 16
      %v1079 = vor.u32 %v1076, %v1077
      %v1080 = vsel %vm772, %v1072, %v1079
      %v1082 = vshrl.u32 %v754, 16
      %v1084 = vrot.slane %v1082, 7
      %v1085 = vrot.slane %v1084, 4
      %v1087 = vshrl.u32 %v755, 16
      %v1089 = vrot.slane %v1087, 7
      %v1090 = vshll.u32 %v755, 16
      %v1092 = vor.u32 %v1089, %v1090
      %v1093 = vsel %vm772, %v1085, %v1092
      %v1094 = vrot.slane %v1089, 4
      %v1096 = vshrl.u32 %v756, 16
      %v1098 = vrot.slane %v1096, 7
      %v1099 = vshll.u32 %v756, 16
      %v1101 = vor.u32 %v1098, %v1099
      %v1102 = vsel %vm772, %v1094, %v1101
      %v1104 = vshrl.u32 %v758, 16
      %v1106 = vrot.slane %v1104, 7
      %v1107 = vrot.slane %v1106, 4
      %v1109 = vshrl.u32 %v759, 16
      %v1111 = vrot.slane %v1109, 7
      %v1112 = vshll.u32 %v759, 16
      %v1114 = vor.u32 %v1111, %v1112
      %v1115 = vsel %vm772, %v1107, %v1114
      %v1116 = vrot.slane %v1111, 4
      %v1118 = vshrl.u32 %v760, 16
      %v1120 = vrot.slane %v1118, 7
      %v1121 = vshll.u32 %v760, 16
      %v1123 = vor.u32 %v1120, %v1121
      %v1124 = vsel %vm772, %v1116, %v1123
      %v1125 = vld [vmem:[%s3] sm:$0x3]
      %s1126 = scalar_lea.vmem %s3, 2
      %v1127 = vld [vmem:[%s1126] sm:$0x3]
      %v1160 = vunpack.c.l.b16 %v699
      %v1161 = vunpack.c.l.b16 %v700
      %v1162 = vunpack.c.l.b16 %v703
      %v1163 = vunpack.c.l.b16 %v704
      %v1164 = vunpack.c.l.b16 %v707
      %v1165 = vunpack.c.l.b16 %v708
      %v1166 = vunpack.c.l.b16 %v711
      %v1167 = vunpack.c.l.b16 %v712
      %v1168 = vunpack.c.l.b16 %v715
      %v1169 = vunpack.c.l.b16 %v716
      %v1170 = vunpack.c.l.b16 %v719
      %v1171 = vunpack.c.l.b16 %v720
      %v1172 = vunpack.c.l.b16 %v723
      %v1173 = vunpack.c.l.b16 %v724
      %v1174 = vunpack.c.l.b16 %v727
      %v1175 = vunpack.c.l.b16 %v728
      %v1176 = vunpack.c.l.b16 %v731
      %v1177 = vunpack.c.l.b16 %v732
      %v1178 = vunpack.c.l.b16 %v735
      %v1179 = vunpack.c.l.b16 %v736
      %v1180 = vunpack.c.l.b16 %v739
      %v1181 = vunpack.c.l.b16 %v740
      %v1182 = vunpack.c.l.b16 %v743
      %v1183 = vunpack.c.l.b16 %v744
      %v1184 = vunpack.c.l.b16 %v747
      %v1185 = vunpack.c.l.b16 %v748
      %v1186 = vunpack.c.l.b16 %v751
      %v1187 = vunpack.c.l.b16 %v752
      %v1188 = vunpack.c.l.b16 %v755
      %v1189 = vunpack.c.l.b16 %v756
      %v1190 = vunpack.c.l.b16 %v759
      %v1191 = vunpack.c.l.b16 %v760
      %v1192 = vpack.c.b16 %v1161, %v1160
      %v1193 = vpack.c.b16 %v1163, %v1162
      %v1194 = vpack.c.b16 %v1165, %v1164
      %v1195 = vpack.c.b16 %v1167, %v1166
      %v1196 = vpack.c.b16 %v1169, %v1168
      %v1197 = vpack.c.b16 %v1171, %v1170
      %v1198 = vpack.c.b16 %v1173, %v1172
      %v1199 = vpack.c.b16 %v1175, %v1174
      %v1200 = vpack.c.b16 %v1177, %v1176
      %v1201 = vpack.c.b16 %v1179, %v1178
      %v1202 = vpack.c.b16 %v1181, %v1180
      %v1203 = vpack.c.b16 %v1183, %v1182
      %v1204 = vpack.c.b16 %v1185, %v1184
      %v1205 = vpack.c.b16 %v1187, %v1186
      %v1206 = vpack.c.b16 %v1189, %v1188
      %v1207 = vpack.c.b16 %v1191, %v1190
      %v1209 = vsel %vm467, %v1192, 0
      %v1212 = vsel %vm467, %v1193, 0
      %v1215 = vsel %vm467, %v1194, 0
      %v1218 = vsel %vm467, %v1195, 0
      %v1221 = vsel %vm467, %v1196, 0
      %v1224 = vsel %vm467, %v1197, 0
      %v1227 = vsel %vm467, %v1198, 0
      %v1230 = vsel %vm467, %v1199, 0
      %v1233 = vsel %vm467, %v1200, 0
      %v1236 = vsel %vm467, %v1201, 0
      %v1239 = vsel %vm467, %v1202, 0
      %v1242 = vsel %vm467, %v1203, 0
      %v1245 = vsel %vm467, %v1204, 0
      %v1248 = vsel %vm467, %v1205, 0
      %v1251 = vsel %vm467, %v1206, 0
      %v1254 = vsel %vm467, %v1207, 0
      %vm1256 = vcmask 1041408
      %v1258 = vsel %vm1256, %v1127, 0
      %1260 = vmatpush.bf16.msra.mxu0 0
      %1261 = vmatpush.bf16.msra.mxu0 0
      %1262 = vmatpush.bf16.msra.mxu0 0
      %1263 = vmatpush.bf16.msra.mxu0 0
      %1264 = vmatpush.bf16.msra.mxu0 0
      %1265 = vmatpush.bf16.msra.mxu0 0
      %1266 = vmatpush.bf16.msra.mxu0 0
      %1267 = vmatpush.bf16.msra.mxu0 %v1258
      %1268 = vmatmul.bf16.gmra.mxu0 %v1209
      %v1269 = vpop.f32.mrf.mxu0
      %v1270 = vadd.f32 0.0, %v1269
      %v1271 = vpop.f32.mrf.mxu0
      %v1272 = vadd.f32 0.0, %v1271
      %1273 = vmatmul.bf16.gmra.mxu0 %v1212
      %v1274 = vpop.f32.mrf.mxu0
      %v1275 = vadd.f32 0.0, %v1274
      %v1276 = vpop.f32.mrf.mxu0
      %v1277 = vadd.f32 0.0, %v1276
      %1278 = vmatmul.bf16.gmra.mxu0 %v1215
      %v1279 = vpop.f32.mrf.mxu0
      %v1280 = vadd.f32 0.0, %v1279
      %v1281 = vpop.f32.mrf.mxu0
      %v1282 = vadd.f32 0.0, %v1281
      %1283 = vmatmul.bf16.gmra.mxu0 %v1218
      %v1284 = vpop.f32.mrf.mxu0
      %v1285 = vadd.f32 0.0, %v1284
      %v1286 = vpop.f32.mrf.mxu0
      %v1287 = vadd.f32 0.0, %v1286
      %1288 = vmatmul.bf16.gmra.mxu0 %v1221
      %v1289 = vpop.f32.mrf.mxu0
      %v1290 = vadd.f32 0.0, %v1289
      %v1291 = vpop.f32.mrf.mxu0
      %v1292 = vadd.f32 0.0, %v1291
      %1293 = vmatmul.bf16.gmra.mxu0 %v1224
      %v1294 = vpop.f32.mrf.mxu0
      %v1295 = vadd.f32 0.0, %v1294
      %v1296 = vpop.f32.mrf.mxu0
      %v1297 = vadd.f32 0.0, %v1296
      %1298 = vmatmul.bf16.gmra.mxu0 %v1227
      %v1299 = vpop.f32.mrf.mxu0
      %v1300 = vadd.f32 0.0, %v1299
      %v1301 = vpop.f32.mrf.mxu0
      %v1302 = vadd.f32 0.0, %v1301
      %1303 = vmatmul.bf16.gmra.mxu0 %v1230
      %v1304 = vpop.f32.mrf.mxu0
      %v1305 = vadd.f32 0.0, %v1304
      %v1306 = vpop.f32.mrf.mxu0
      %v1307 = vadd.f32 0.0, %v1306
      %1308 = vmatmul.bf16.gmra.mxu0 %v1233
      %v1309 = vpop.f32.mrf.mxu0
      %v1310 = vadd.f32 0.0, %v1309
      %v1311 = vpop.f32.mrf.mxu0
      %v1312 = vadd.f32 0.0, %v1311
      %1313 = vmatmul.bf16.gmra.mxu0 %v1236
      %v1314 = vpop.f32.mrf.mxu0
      %v1315 = vadd.f32 0.0, %v1314
      %v1316 = vpop.f32.mrf.mxu0
      %v1317 = vadd.f32 0.0, %v1316
      %1318 = vmatmul.bf16.gmra.mxu0 %v1239
      %v1319 = vpop.f32.mrf.mxu0
      %v1320 = vadd.f32 0.0, %v1319
      %v1321 = vpop.f32.mrf.mxu0
      %v1322 = vadd.f32 0.0, %v1321
      %1323 = vmatmul.bf16.gmra.mxu0 %v1242
      %v1324 = vpop.f32.mrf.mxu0
      %v1325 = vadd.f32 0.0, %v1324
      %v1326 = vpop.f32.mrf.mxu0
      %v1327 = vadd.f32 0.0, %v1326
      %1328 = vmatmul.bf16.gmra.mxu0 %v1245
      %v1329 = vpop.f32.mrf.mxu0
      %v1330 = vadd.f32 0.0, %v1329
      %v1331 = vpop.f32.mrf.mxu0
      %v1332 = vadd.f32 0.0, %v1331
      %1333 = vmatmul.bf16.gmra.mxu0 %v1248
      %v1334 = vpop.f32.mrf.mxu0
      %v1335 = vadd.f32 0.0, %v1334
      %v1336 = vpop.f32.mrf.mxu0
      %v1337 = vadd.f32 0.0, %v1336
      %1338 = vmatmul.bf16.gmra.mxu0 %v1251
      %v1339 = vpop.f32.mrf.mxu0
      %v1340 = vadd.f32 0.0, %v1339
      %v1341 = vpop.f32.mrf.mxu0
      %v1342 = vadd.f32 0.0, %v1341
      %1343 = vmatmul.bf16.gmra.mxu0 %v1254
      %v1344 = vpop.f32.mrf.mxu0
      %v1345 = vadd.f32 0.0, %v1344
      %v1346 = vpop.f32.mrf.mxu0
      %v1347 = vadd.f32 0.0, %v1346
      %1348 = vdwg.mxu0
      %v1349 = vunpack.c.l.b16 %v785
      %v1350 = vunpack.c.l.b16 %v794
      %v1351 = vunpack.c.l.b16 %v807
      %v1352 = vunpack.c.l.b16 %v816
      %v1353 = vunpack.c.l.b16 %v829
      %v1354 = vunpack.c.l.b16 %v838
      %v1355 = vunpack.c.l.b16 %v851
      %v1356 = vunpack.c.l.b16 %v860
      %v1357 = vunpack.c.l.b16 %v873
      %v1358 = vunpack.c.l.b16 %v882
      %v1359 = vunpack.c.l.b16 %v895
      %v1360 = vunpack.c.l.b16 %v904
      %v1361 = vunpack.c.l.b16 %v917
      %v1362 = vunpack.c.l.b16 %v926
      %v1363 = vunpack.c.l.b16 %v939
      %v1364 = vunpack.c.l.b16 %v948
      %v1365 = vunpack.c.l.b16 %v961
      %v1366 = vunpack.c.l.b16 %v970
      %v1367 = vunpack.c.l.b16 %v983
      %v1368 = vunpack.c.l.b16 %v992
      %v1369 = vunpack.c.l.b16 %v1005
      %v1370 = vunpack.c.l.b16 %v1014
      %v1371 = vunpack.c.l.b16 %v1027
      %v1372 = vunpack.c.l.b16 %v1036
      %v1373 = vunpack.c.l.b16 %v1049
      %v1374 = vunpack.c.l.b16 %v1058
      %v1375 = vunpack.c.l.b16 %v1071
      %v1376 = vunpack.c.l.b16 %v1080
      %v1377 = vunpack.c.l.b16 %v1093
      %v1378 = vunpack.c.l.b16 %v1102
      %v1379 = vunpack.c.l.b16 %v1115
      %v1380 = vunpack.c.l.b16 %v1124
      %v1381 = vpack.c.b16 %v1350, %v1349
      %v1382 = vpack.c.b16 %v1352, %v1351
      %v1383 = vpack.c.b16 %v1354, %v1353
      %v1384 = vpack.c.b16 %v1356, %v1355
      %v1385 = vpack.c.b16 %v1358, %v1357
      %v1386 = vpack.c.b16 %v1360, %v1359
      %v1387 = vpack.c.b16 %v1362, %v1361
      %v1388 = vpack.c.b16 %v1364, %v1363
      %v1389 = vpack.c.b16 %v1366, %v1365
      %v1390 = vpack.c.b16 %v1368, %v1367
      %v1391 = vpack.c.b16 %v1370, %v1369
      %v1392 = vpack.c.b16 %v1372, %v1371
      %v1393 = vpack.c.b16 %v1374, %v1373
      %v1394 = vpack.c.b16 %v1376, %v1375
      %v1395 = vpack.c.b16 %v1378, %v1377
      %v1396 = vpack.c.b16 %v1380, %v1379
      %v1398 = vsel %vm467, %v1381, 0
      %v1401 = vsel %vm467, %v1382, 0
      %v1404 = vsel %vm467, %v1383, 0
      %v1407 = vsel %vm467, %v1384, 0
      %v1410 = vsel %vm467, %v1385, 0
      %v1413 = vsel %vm467, %v1386, 0
      %v1416 = vsel %vm467, %v1387, 0
      %v1419 = vsel %vm467, %v1388, 0
      %v1422 = vsel %vm467, %v1389, 0
      %v1425 = vsel %vm467, %v1390, 0
      %v1428 = vsel %vm467, %v1391, 0
      %v1431 = vsel %vm467, %v1392, 0
      %v1434 = vsel %vm467, %v1393, 0
      %v1437 = vsel %vm467, %v1394, 0
      %v1440 = vsel %vm467, %v1395, 0
      %v1443 = vsel %vm467, %v1396, 0
      %v1446 = vsel %vm1256, %v1125, 0
      %1448 = vmatpush.bf16.msra.mxu0 0
      %1449 = vmatpush.bf16.msra.mxu0 0
      %1450 = vmatpush.bf16.msra.mxu0 0
      %1451 = vmatpush.bf16.msra.mxu0 0
      %1452 = vmatpush.bf16.msra.mxu0 0
      %1453 = vmatpush.bf16.msra.mxu0 0
      %1454 = vmatpush.bf16.msra.mxu0 0
      %1455 = vmatpush.bf16.msra.mxu0 %v1446
      %1456 = vmatmul.bf16.gmra.mxu0 %v1398
      %v1457 = vpop.f32.mrf.mxu0
      %v1458 = vadd.f32 %v1270, %v1457
      %v1459 = vpop.f32.mrf.mxu0
      %v1460 = vadd.f32 %v1272, %v1459
      %1461 = vmatmul.bf16.gmra.mxu0 %v1401
      %v1462 = vpop.f32.mrf.mxu0
      %v1463 = vadd.f32 %v1275, %v1462
      %v1464 = vpop.f32.mrf.mxu0
      %v1465 = vadd.f32 %v1277, %v1464
      %1466 = vmatmul.bf16.gmra.mxu0 %v1404
      %v1467 = vpop.f32.mrf.mxu0
      %v1468 = vadd.f32 %v1280, %v1467
      %v1469 = vpop.f32.mrf.mxu0
      %v1470 = vadd.f32 %v1282, %v1469
      %1471 = vmatmul.bf16.gmra.mxu0 %v1407
      %v1472 = vpop.f32.mrf.mxu0
      %v1473 = vadd.f32 %v1285, %v1472
      %v1474 = vpop.f32.mrf.mxu0
      %v1475 = vadd.f32 %v1287, %v1474
      %1476 = vmatmul.bf16.gmra.mxu0 %v1410
      %v1477 = vpop.f32.mrf.mxu0
      %v1478 = vadd.f32 %v1290, %v1477
      %v1479 = vpop.f32.mrf.mxu0
      %v1480 = vadd.f32 %v1292, %v1479
      %1481 = vmatmul.bf16.gmra.mxu0 %v1413
      %v1482 = vpop.f32.mrf.mxu0
      %v1483 = vadd.f32 %v1295, %v1482
      %v1484 = vpop.f32.mrf.mxu0
      %v1485 = vadd.f32 %v1297, %v1484
      %1486 = vmatmul.bf16.gmra.mxu0 %v1416
      %v1487 = vpop.f32.mrf.mxu0
      %v1488 = vadd.f32 %v1300, %v1487
      %v1489 = vpop.f32.mrf.mxu0
      %v1490 = vadd.f32 %v1302, %v1489
      %1491 = vmatmul.bf16.gmra.mxu0 %v1419
      %v1492 = vpop.f32.mrf.mxu0
      %v1493 = vadd.f32 %v1305, %v1492
      %v1494 = vpop.f32.mrf.mxu0
      %v1495 = vadd.f32 %v1307, %v1494
      %1496 = vmatmul.bf16.gmra.mxu0 %v1422
      %v1497 = vpop.f32.mrf.mxu0
      %v1498 = vadd.f32 %v1310, %v1497
      %v1499 = vpop.f32.mrf.mxu0
      %v1500 = vadd.f32 %v1312, %v1499
      %1501 = vmatmul.bf16.gmra.mxu0 %v1425
      %v1502 = vpop.f32.mrf.mxu0
      %v1503 = vadd.f32 %v1315, %v1502
      %v1504 = vpop.f32.mrf.mxu0
      %v1505 = vadd.f32 %v1317, %v1504
      %1506 = vmatmul.bf16.gmra.mxu0 %v1428
      %v1507 = vpop.f32.mrf.mxu0
      %v1508 = vadd.f32 %v1320, %v1507
      %v1509 = vpop.f32.mrf.mxu0
      %v1510 = vadd.f32 %v1322, %v1509
      %1511 = vmatmul.bf16.gmra.mxu0 %v1431
      %v1512 = vpop.f32.mrf.mxu0
      %v1513 = vadd.f32 %v1325, %v1512
      %v1514 = vpop.f32.mrf.mxu0
      %v1515 = vadd.f32 %v1327, %v1514
      %1516 = vmatmul.bf16.gmra.mxu0 %v1434
      %v1517 = vpop.f32.mrf.mxu0
      %v1518 = vadd.f32 %v1330, %v1517
      %v1519 = vpop.f32.mrf.mxu0
      %v1520 = vadd.f32 %v1332, %v1519
      %1521 = vmatmul.bf16.gmra.mxu0 %v1437
      %v1522 = vpop.f32.mrf.mxu0
      %v1523 = vadd.f32 %v1335, %v1522
      %v1524 = vpop.f32.mrf.mxu0
      %v1525 = vadd.f32 %v1337, %v1524
      %1526 = vmatmul.bf16.gmra.mxu0 %v1440
      %v1527 = vpop.f32.mrf.mxu0
      %v1528 = vadd.f32 %v1340, %v1527
      %v1529 = vpop.f32.mrf.mxu0
      %v1530 = vadd.f32 %v1342, %v1529
      %1531 = vmatmul.bf16.gmra.mxu0 %v1443
      %v1532 = vpop.f32.mrf.mxu0
      %v1533 = vadd.f32 %v1345, %v1532
      %v1534 = vpop.f32.mrf.mxu0
      %v1535 = vadd.f32 %v1347, %v1534
      %1536 = vdwg.mxu0
      %vm1537 = vsmask.f32 3328
      %vm1538 = vsmask.f32 7440
      %vm1539 = vmor %vm1537, %vm1538
      %v1540 = vrot.slane %v779, 4
      %v1541 = vrot.slane %v782, 5
      %v1542 = vor.u32 %v1540, %v1541
      %v1543 = vrot.slane %v1542, 4
      %v1544 = vrot.slane %v791, 5
      %v1545 = vsel %vm1539, %v1543, %v1544
      %v1546 = vrot.slane %v788, 4
      %v1547 = vor.u32 %v1546, %v1544
      %v1548 = vrot.slane %v1547, 4
      %v1550 = vshll.u32 %v701, 16
      %v1552 = vrot.slane %v1550, 5
      %v1553 = vsel %vm1539, %v1548, %v1552
      %v1554 = vrot.slane %v801, 4
      %v1555 = vrot.slane %v804, 5
      %v1556 = vor.u32 %v1554, %v1555
      %v1557 = vrot.slane %v1556, 4
      %v1558 = vrot.slane %v813, 5
      %v1559 = vsel %vm1539, %v1557, %v1558
      %v1560 = vrot.slane %v810, 4
      %v1561 = vor.u32 %v1560, %v1558
      %v1562 = vrot.slane %v1561, 4
      %v1564 = vshll.u32 %v705, 16
      %v1566 = vrot.slane %v1564, 5
      %v1567 = vsel %vm1539, %v1562, %v1566
      %v1568 = vrot.slane %v823, 4
      %v1569 = vrot.slane %v826, 5
      %v1570 = vor.u32 %v1568, %v1569
      %v1571 = vrot.slane %v1570, 4
      %v1572 = vrot.slane %v835, 5
      %v1573 = vsel %vm1539, %v1571, %v1572
      %v1574 = vrot.slane %v832, 4
      %v1575 = vor.u32 %v1574, %v1572
      %v1576 = vrot.slane %v1575, 4
      %v1578 = vshll.u32 %v709, 16
      %v1580 = vrot.slane %v1578, 5
      %v1581 = vsel %vm1539, %v1576, %v1580
      %v1582 = vrot.slane %v845, 4
      %v1583 = vrot.slane %v848, 5
      %v1584 = vor.u32 %v1582, %v1583
      %v1585 = vrot.slane %v1584, 4
      %v1586 = vrot.slane %v857, 5
      %v1587 = vsel %vm1539, %v1585, %v1586
      %v1588 = vrot.slane %v854, 4
      %v1589 = vor.u32 %v1588, %v1586
      %v1590 = vrot.slane %v1589, 4
      %v1592 = vshll.u32 %v713, 16
      %v1594 = vrot.slane %v1592, 5
      %v1595 = vsel %vm1539, %v1590, %v1594
      %v1596 = vrot.slane %v867, 4
      %v1597 = vrot.slane %v870, 5
      %v1598 = vor.u32 %v1596, %v1597
      %v1599 = vrot.slane %v1598, 4
      %v1600 = vrot.slane %v879, 5
      %v1601 = vsel %vm1539, %v1599, %v1600
      %v1602 = vrot.slane %v876, 4
      %v1603 = vor.u32 %v1602, %v1600
      %v1604 = vrot.slane %v1603, 4
      %v1606 = vshll.u32 %v717, 16
      %v1608 = vrot.slane %v1606, 5
      %v1609 = vsel %vm1539, %v1604, %v1608
      %v1610 = vrot.slane %v889, 4
      %v1611 = vrot.slane %v892, 5
      %v1612 = vor.u32 %v1610, %v1611
      %v1613 = vrot.slane %v1612, 4
      %v1614 = vrot.slane %v901, 5
      %v1615 = vsel %vm1539, %v1613, %v1614
      %v1616 = vrot.slane %v898, 4
      %v1617 = vor.u32 %v1616, %v1614
      %v1618 = vrot.slane %v1617, 4
      %v1620 = vshll.u32 %v721, 16
      %v1622 = vrot.slane %v1620, 5
      %v1623 = vsel %vm1539, %v1618, %v1622
      %v1624 = vrot.slane %v911, 4
      %v1625 = vrot.slane %v914, 5
      %v1626 = vor.u32 %v1624, %v1625
      %v1627 = vrot.slane %v1626, 4
      %v1628 = vrot.slane %v923, 5
      %v1629 = vsel %vm1539, %v1627, %v1628
      %v1630 = vrot.slane %v920, 4
      %v1631 = vor.u32 %v1630, %v1628
      %v1632 = vrot.slane %v1631, 4
      %v1634 = vshll.u32 %v725, 16
      %v1636 = vrot.slane %v1634, 5
      %v1637 = vsel %vm1539, %v1632, %v1636
      %v1638 = vrot.slane %v933, 4
      %v1639 = vrot.slane %v936, 5
      %v1640 = vor.u32 %v1638, %v1639
      %v1641 = vrot.slane %v1640, 4
      %v1642 = vrot.slane %v945, 5
      %v1643 = vsel %vm1539, %v1641, %v1642
      %v1644 = vrot.slane %v942, 4
      %v1645 = vor.u32 %v1644, %v1642
      %v1646 = vrot.slane %v1645, 4
      %v1648 = vshll.u32 %v729, 16
      %v1650 = vrot.slane %v1648, 5
      %v1651 = vsel %vm1539, %v1646, %v1650
      %v1652 = vrot.slane %v955, 4
      %v1653 = vrot.slane %v958, 5
      %v1654 = vor.u32 %v1652, %v1653
      %v1655 = vrot.slane %v1654, 4
      %v1656 = vrot.slane %v967, 5
      %v1657 = vsel %vm1539, %v1655, %v1656
      %v1658 = vrot.slane %v964, 4
      %v1659 = vor.u32 %v1658, %v1656
      %v1660 = vrot.slane %v1659, 4
      %v1662 = vshll.u32 %v733, 16
      %v1664 = vrot.slane %v1662, 5
      %v1665 = vsel %vm1539, %v1660, %v1664
      %v1666 = vrot.slane %v977, 4
      %v1667 = vrot.slane %v980, 5
      %v1668 = vor.u32 %v1666, %v1667
      %v1669 = vrot.slane %v1668, 4
      %v1670 = vrot.slane %v989, 5
      %v1671 = vsel %vm1539, %v1669, %v1670
      %v1672 = vrot.slane %v986, 4
      %v1673 = vor.u32 %v1672, %v1670
      %v1674 = vrot.slane %v1673, 4
      %v1676 = vshll.u32 %v737, 16
      %v1678 = vrot.slane %v1676, 5
      %v1679 = vsel %vm1539, %v1674, %v1678
      %v1680 = vrot.slane %v999, 4
      %v1681 = vrot.slane %v1002, 5
      %v1682 = vor.u32 %v1680, %v1681
      %v1683 = vrot.slane %v1682, 4
      %v1684 = vrot.slane %v1011, 5
      %v1685 = vsel %vm1539, %v1683, %v1684
      %v1686 = vrot.slane %v1008, 4
      %v1687 = vor.u32 %v1686, %v1684
      %v1688 = vrot.slane %v1687, 4
      %v1690 = vshll.u32 %v741, 16
      %v1692 = vrot.slane %v1690, 5
      %v1693 = vsel %vm1539, %v1688, %v1692
      %v1694 = vrot.slane %v1021, 4
      %v1695 = vrot.slane %v1024, 5
      %v1696 = vor.u32 %v1694, %v1695
      %v1697 = vrot.slane %v1696, 4
      %v1698 = vrot.slane %v1033, 5
      %v1699 = vsel %vm1539, %v1697, %v1698
      %v1700 = vrot.slane %v1030, 4
      %v1701 = vor.u32 %v1700, %v1698
      %v1702 = vrot.slane %v1701, 4
      %v1704 = vshll.u32 %v745, 16
      %v1706 = vrot.slane %v1704, 5
      %v1707 = vsel %vm1539, %v1702, %v1706
      %v1708 = vrot.slane %v1043, 4
      %v1709 = vrot.slane %v1046, 5
      %v1710 = vor.u32 %v1708, %v1709
      %v1711 = vrot.slane %v1710, 4
      %v1712 = vrot.slane %v1055, 5
      %v1713 = vsel %vm1539, %v1711, %v1712
      %v1714 = vrot.slane %v1052, 4
      %v1715 = vor.u32 %v1714, %v1712
      %v1716 = vrot.slane %v1715, 4
      %v1718 = vshll.u32 %v749, 16
      %v1720 = vrot.slane %v1718, 5
      %v1721 = vsel %vm1539, %v1716, %v1720
      %v1722 = vrot.slane %v1065, 4
      %v1723 = vrot.slane %v1068, 5
      %v1724 = vor.u32 %v1722, %v1723
      %v1725 = vrot.slane %v1724, 4
      %v1726 = vrot.slane %v1077, 5
      %v1727 = vsel %vm1539, %v1725, %v1726
      %v1728 = vrot.slane %v1074, 4
      %v1729 = vor.u32 %v1728, %v1726
      %v1730 = vrot.slane %v1729, 4
      %v1732 = vshll.u32 %v753, 16
      %v1734 = vrot.slane %v1732, 5
      %v1735 = vsel %vm1539, %v1730, %v1734
      %v1736 = vrot.slane %v1087, 4
      %v1737 = vrot.slane %v1090, 5
      %v1738 = vor.u32 %v1736, %v1737
      %v1739 = vrot.slane %v1738, 4
      %v1740 = vrot.slane %v1099, 5
      %v1741 = vsel %vm1539, %v1739, %v1740
      %v1742 = vrot.slane %v1096, 4
      %v1743 = vor.u32 %v1742, %v1740
      %v1744 = vrot.slane %v1743, 4
      %v1746 = vshll.u32 %v757, 16
      %v1748 = vrot.slane %v1746, 5
      %v1749 = vsel %vm1539, %v1744, %v1748
      %v1750 = vrot.slane %v1109, 4
      %v1751 = vrot.slane %v1112, 5
      %v1752 = vor.u32 %v1750, %v1751
      %v1753 = vrot.slane %v1752, 4
      %v1754 = vrot.slane %v1121, 5
      %v1755 = vsel %vm1539, %v1753, %v1754
      %v1756 = vrot.slane %v1118, 4
      %v1757 = vor.u32 %v1756, %v1754
      %v1758 = vrot.slane %v1757, 4
      %v1760 = vshll.u32 %v761, 16
      %v1762 = vrot.slane %v1760, 5
      %v1763 = vsel %vm1539, %v1758, %v1762
      %s1764 = scalar_lea.vmem %s3, 4
      %v1765 = vld [vmem:[%s1764] sm:$0x3]
      %v1766 = vunpack.c.l.b16 %v1545
      %v1767 = vunpack.c.l.b16 %v1553
      %v1768 = vunpack.c.l.b16 %v1559
      %v1769 = vunpack.c.l.b16 %v1567
      %v1770 = vunpack.c.l.b16 %v1573
      %v1771 = vunpack.c.l.b16 %v1581
      %v1772 = vunpack.c.l.b16 %v1587
      %v1773 = vunpack.c.l.b16 %v1595
      %v1774 = vunpack.c.l.b16 %v1601
      %v1775 = vunpack.c.l.b16 %v1609
      %v1776 = vunpack.c.l.b16 %v1615
      %v1777 = vunpack.c.l.b16 %v1623
      %v1778 = vunpack.c.l.b16 %v1629
      %v1779 = vunpack.c.l.b16 %v1637
      %v1780 = vunpack.c.l.b16 %v1643
      %v1781 = vunpack.c.l.b16 %v1651
      %v1782 = vunpack.c.l.b16 %v1657
      %v1783 = vunpack.c.l.b16 %v1665
      %v1784 = vunpack.c.l.b16 %v1671
      %v1785 = vunpack.c.l.b16 %v1679
      %v1786 = vunpack.c.l.b16 %v1685
      %v1787 = vunpack.c.l.b16 %v1693
      %v1788 = vunpack.c.l.b16 %v1699
      %v1789 = vunpack.c.l.b16 %v1707
      %v1790 = vunpack.c.l.b16 %v1713
      %v1791 = vunpack.c.l.b16 %v1721
      %v1792 = vunpack.c.l.b16 %v1727
      %v1793 = vunpack.c.l.b16 %v1735
      %v1794 = vunpack.c.l.b16 %v1741
      %v1795 = vunpack.c.l.b16 %v1749
      %v1796 = vunpack.c.l.b16 %v1755
      %v1797 = vunpack.c.l.b16 %v1763
      %v1798 = vpack.c.b16 %v1767, %v1766
      %v1799 = vpack.c.b16 %v1769, %v1768
      %v1800 = vpack.c.b16 %v1771, %v1770
      %v1801 = vpack.c.b16 %v1773, %v1772
      %v1802 = vpack.c.b16 %v1775, %v1774
      %v1803 = vpack.c.b16 %v1777, %v1776
      %v1804 = vpack.c.b16 %v1779, %v1778
      %v1805 = vpack.c.b16 %v1781, %v1780
      %v1806 = vpack.c.b16 %v1783, %v1782
      %v1807 = vpack.c.b16 %v1785, %v1784
      %v1808 = vpack.c.b16 %v1787, %v1786
      %v1809 = vpack.c.b16 %v1789, %v1788
      %v1810 = vpack.c.b16 %v1791, %v1790
      %v1811 = vpack.c.b16 %v1793, %v1792
      %v1812 = vpack.c.b16 %v1795, %v1794
      %v1813 = vpack.c.b16 %v1797, %v1796
      %v1815 = vsel %vm467, %v1798, 0
      %v1818 = vsel %vm467, %v1799, 0
      %v1821 = vsel %vm467, %v1800, 0
      %v1824 = vsel %vm467, %v1801, 0
      %v1827 = vsel %vm467, %v1802, 0
      %v1830 = vsel %vm467, %v1803, 0
      %v1833 = vsel %vm467, %v1804, 0
      %v1836 = vsel %vm467, %v1805, 0
      %v1839 = vsel %vm467, %v1806, 0
      %v1842 = vsel %vm467, %v1807, 0
      %v1845 = vsel %vm467, %v1808, 0
      %v1848 = vsel %vm467, %v1809, 0
      %v1851 = vsel %vm467, %v1810, 0
      %v1854 = vsel %vm467, %v1811, 0
      %v1857 = vsel %vm467, %v1812, 0
      %v1860 = vsel %vm467, %v1813, 0
      %v1863 = vsel %vm1256, %v1765, 0
      %1865 = vmatpush.bf16.msra.mxu0 0
      %1866 = vmatpush.bf16.msra.mxu0 0
      %1867 = vmatpush.bf16.msra.mxu0 0
      %1868 = vmatpush.bf16.msra.mxu0 0
      %1869 = vmatpush.bf16.msra.mxu0 0
      %1870 = vmatpush.bf16.msra.mxu0 0
      %1871 = vmatpush.bf16.msra.mxu0 0
      %1872 = vmatpush.bf16.msra.mxu0 %v1863
      %1873 = vmatmul.bf16.gmra.mxu0 %v1815
      %v1874 = vpop.f32.mrf.mxu0
      %v1875 = vadd.f32 0.0, %v1874
      %v1876 = vpop.f32.mrf.mxu0
      %v1877 = vadd.f32 0.0, %v1876
      %1878 = vmatmul.bf16.gmra.mxu0 %v1818
      %v1879 = vpop.f32.mrf.mxu0
      %v1880 = vadd.f32 0.0, %v1879
      %v1881 = vpop.f32.mrf.mxu0
      %v1882 = vadd.f32 0.0, %v1881
      %1883 = vmatmul.bf16.gmra.mxu0 %v1821
      %v1884 = vpop.f32.mrf.mxu0
      %v1885 = vadd.f32 0.0, %v1884
      %v1886 = vpop.f32.mrf.mxu0
      %v1887 = vadd.f32 0.0, %v1886
      %1888 = vmatmul.bf16.gmra.mxu0 %v1824
      %v1889 = vpop.f32.mrf.mxu0
      %v1890 = vadd.f32 0.0, %v1889
      %v1891 = vpop.f32.mrf.mxu0
      %v1892 = vadd.f32 0.0, %v1891
      %1893 = vmatmul.bf16.gmra.mxu0 %v1827
      %v1894 = vpop.f32.mrf.mxu0
      %v1895 = vadd.f32 0.0, %v1894
      %v1896 = vpop.f32.mrf.mxu0
      %v1897 = vadd.f32 0.0, %v1896
      %1898 = vmatmul.bf16.gmra.mxu0 %v1830
      %v1899 = vpop.f32.mrf.mxu0
      %v1900 = vadd.f32 0.0, %v1899
      %v1901 = vpop.f32.mrf.mxu0
      %v1902 = vadd.f32 0.0, %v1901
      %1903 = vmatmul.bf16.gmra.mxu0 %v1833
      %v1904 = vpop.f32.mrf.mxu0
      %v1905 = vadd.f32 0.0, %v1904
      %v1906 = vpop.f32.mrf.mxu0
      %v1907 = vadd.f32 0.0, %v1906
      %1908 = vmatmul.bf16.gmra.mxu0 %v1836
      %v1909 = vpop.f32.mrf.mxu0
      %v1910 = vadd.f32 0.0, %v1909
      %v1911 = vpop.f32.mrf.mxu0
      %v1912 = vadd.f32 0.0, %v1911
      %1913 = vmatmul.bf16.gmra.mxu0 %v1839
      %v1914 = vpop.f32.mrf.mxu0
      %v1915 = vadd.f32 0.0, %v1914
      %v1916 = vpop.f32.mrf.mxu0
      %v1917 = vadd.f32 0.0, %v1916
      %1918 = vmatmul.bf16.gmra.mxu0 %v1842
      %v1919 = vpop.f32.mrf.mxu0
      %v1920 = vadd.f32 0.0, %v1919
      %v1921 = vpop.f32.mrf.mxu0
      %v1922 = vadd.f32 0.0, %v1921
      %1923 = vmatmul.bf16.gmra.mxu0 %v1845
      %v1924 = vpop.f32.mrf.mxu0
      %v1925 = vadd.f32 0.0, %v1924
      %v1926 = vpop.f32.mrf.mxu0
      %v1927 = vadd.f32 0.0, %v1926
      %1928 = vmatmul.bf16.gmra.mxu0 %v1848
      %v1929 = vpop.f32.mrf.mxu0
      %v1930 = vadd.f32 0.0, %v1929
      %v1931 = vpop.f32.mrf.mxu0
      %v1932 = vadd.f32 0.0, %v1931
      %1933 = vmatmul.bf16.gmra.mxu0 %v1851
      %v1934 = vpop.f32.mrf.mxu0
      %v1935 = vadd.f32 0.0, %v1934
      %v1936 = vpop.f32.mrf.mxu0
      %v1937 = vadd.f32 0.0, %v1936
      %1938 = vmatmul.bf16.gmra.mxu0 %v1854
      %v1939 = vpop.f32.mrf.mxu0
      %v1940 = vadd.f32 0.0, %v1939
      %v1941 = vpop.f32.mrf.mxu0
      %v1942 = vadd.f32 0.0, %v1941
      %1943 = vmatmul.bf16.gmra.mxu0 %v1857
      %v1944 = vpop.f32.mrf.mxu0
      %v1945 = vadd.f32 0.0, %v1944
      %v1946 = vpop.f32.mrf.mxu0
      %v1947 = vadd.f32 0.0, %v1946
      %1948 = vmatmul.bf16.gmra.mxu0 %v1860
      %v1949 = vpop.f32.mrf.mxu0
      %v1950 = vadd.f32 0.0, %v1949
      %v1951 = vpop.f32.mrf.mxu0
      %v1952 = vadd.f32 0.0, %v1951
      %1953 = vdwg.mxu0
      %v1954 = vadd.f32 %v1458, %v1875
      %v1955 = vadd.f32 %v1460, %v1877
      %v1956 = vadd.f32 %v1463, %v1880
      %v1957 = vadd.f32 %v1465, %v1882
      %v1958 = vadd.f32 %v1468, %v1885
      %v1959 = vadd.f32 %v1470, %v1887
      %v1960 = vadd.f32 %v1473, %v1890
      %v1961 = vadd.f32 %v1475, %v1892
      %v1962 = vadd.f32 %v1478, %v1895
      %v1963 = vadd.f32 %v1480, %v1897
      %v1964 = vadd.f32 %v1483, %v1900
      %v1965 = vadd.f32 %v1485, %v1902
      %v1966 = vadd.f32 %v1488, %v1905
      %v1967 = vadd.f32 %v1490, %v1907
      %v1968 = vadd.f32 %v1493, %v1910
      %v1969 = vadd.f32 %v1495, %v1912
      %v1970 = vadd.f32 %v1498, %v1915
      %v1971 = vadd.f32 %v1500, %v1917
      %v1972 = vadd.f32 %v1503, %v1920
      %v1973 = vadd.f32 %v1505, %v1922
      %v1974 = vadd.f32 %v1508, %v1925
      %v1975 = vadd.f32 %v1510, %v1927
      %v1976 = vadd.f32 %v1513, %v1930
      %v1977 = vadd.f32 %v1515, %v1932
      %v1978 = vadd.f32 %v1518, %v1935
      %v1979 = vadd.f32 %v1520, %v1937
      %v1980 = vadd.f32 %v1523, %v1940
      %v1981 = vadd.f32 %v1525, %v1942
      %v1982 = vadd.f32 %v1528, %v1945
      %v1983 = vadd.f32 %v1530, %v1947
      %v1984 = vadd.f32 %v1533, %v1950
      %v1985 = vadd.f32 %v1535, %v1952
      %v1987 = vshrl.u32 %v762, 16
      %v1989 = vrot.slane %v1987, 7
      %v1990 = vrot.slane %v1989, 4
      %v1992 = vshrl.u32 %v763, 16
      %v1994 = vrot.slane %v1992, 7
      %v1995 = vshll.u32 %v763, 16
      %v1997 = vor.u32 %v1994, %v1995
      %v1998 = vsel %vm772, %v1990, %v1997
      %v1999 = vrot.slane %v1994, 4
      %v2001 = vshrl.u32 %v764, 16
      %v2003 = vrot.slane %v2001, 7
      %v2004 = vshll.u32 %v764, 16
      %v2006 = vor.u32 %v2003, %v2004
      %v2007 = vsel %vm772, %v1999, %v2006
      %s2008 = scalar_lea.vmem %s3, 6
      %v2009 = vld [vmem:[%s2008] sm:$0x3]
      %v2010 = vunpack.c.l.b16 %v1998
      %v2011 = vunpack.c.l.b16 %v2007
      %v2012 = vpack.c.b16 %v2011, %v2010
      %v2014 = vsel %vm467, %v2012, 0
      %v2017 = vsel %vm1256, %v2009, 0
      %2019 = vmatpush.bf16.msra.mxu0 0
      %2020 = vmatpush.bf16.msra.mxu0 0
      %2021 = vmatpush.bf16.msra.mxu0 0
      %2022 = vmatpush.bf16.msra.mxu0 0
      %2023 = vmatpush.bf16.msra.mxu0 0
      %2024 = vmatpush.bf16.msra.mxu0 0
      %2025 = vmatpush.bf16.msra.mxu0 0
      %2026 = vmatpush.bf16.msra.mxu0 %v2017
      %2027 = vmatmul.bf16.gmra.mxu0 %v1401
      %v2028 = vpop.f32.mrf.mxu0
      %v2029 = vadd.f32 0.0, %v2028
      %v2030 = vpop.f32.mrf.mxu0
      %v2031 = vadd.f32 0.0, %v2030
      %2032 = vmatmul.bf16.gmra.mxu0 %v1404
      %v2033 = vpop.f32.mrf.mxu0
      %v2034 = vadd.f32 0.0, %v2033
      %v2035 = vpop.f32.mrf.mxu0
      %v2036 = vadd.f32 0.0, %v2035
      %2037 = vmatmul.bf16.gmra.mxu0 %v1407
      %v2038 = vpop.f32.mrf.mxu0
      %v2039 = vadd.f32 0.0, %v2038
      %v2040 = vpop.f32.mrf.mxu0
      %v2041 = vadd.f32 0.0, %v2040
      %2042 = vmatmul.bf16.gmra.mxu0 %v1410
      %v2043 = vpop.f32.mrf.mxu0
      %v2044 = vadd.f32 0.0, %v2043
      %v2045 = vpop.f32.mrf.mxu0
      %v2046 = vadd.f32 0.0, %v2045
      %2047 = vmatmul.bf16.gmra.mxu0 %v1413
      %v2048 = vpop.f32.mrf.mxu0
      %v2049 = vadd.f32 0.0, %v2048
      %v2050 = vpop.f32.mrf.mxu0
      %v2051 = vadd.f32 0.0, %v2050
      %2052 = vmatmul.bf16.gmra.mxu0 %v1416
      %v2053 = vpop.f32.mrf.mxu0
      %v2054 = vadd.f32 0.0, %v2053
      %v2055 = vpop.f32.mrf.mxu0
      %v2056 = vadd.f32 0.0, %v2055
      %2057 = vmatmul.bf16.gmra.mxu0 %v1419
      %v2058 = vpop.f32.mrf.mxu0
      %v2059 = vadd.f32 0.0, %v2058
      %v2060 = vpop.f32.mrf.mxu0
      %v2061 = vadd.f32 0.0, %v2060
      %2062 = vmatmul.bf16.gmra.mxu0 %v1422
      %v2063 = vpop.f32.mrf.mxu0
      %v2064 = vadd.f32 0.0, %v2063
      %v2065 = vpop.f32.mrf.mxu0
      %v2066 = vadd.f32 0.0, %v2065
      %2067 = vmatmul.bf16.gmra.mxu0 %v1425
      %v2068 = vpop.f32.mrf.mxu0
      %v2069 = vadd.f32 0.0, %v2068
      %v2070 = vpop.f32.mrf.mxu0
      %v2071 = vadd.f32 0.0, %v2070
      %2072 = vmatmul.bf16.gmra.mxu0 %v1428
      %v2073 = vpop.f32.mrf.mxu0
      %v2074 = vadd.f32 0.0, %v2073
      %v2075 = vpop.f32.mrf.mxu0
      %v2076 = vadd.f32 0.0, %v2075
      %2077 = vmatmul.bf16.gmra.mxu0 %v1431
      %v2078 = vpop.f32.mrf.mxu0
      %v2079 = vadd.f32 0.0, %v2078
      %v2080 = vpop.f32.mrf.mxu0
      %v2081 = vadd.f32 0.0, %v2080
      %2082 = vmatmul.bf16.gmra.mxu0 %v1434
      %v2083 = vpop.f32.mrf.mxu0
      %v2084 = vadd.f32 0.0, %v2083
      %v2085 = vpop.f32.mrf.mxu0
      %v2086 = vadd.f32 0.0, %v2085
      %2087 = vmatmul.bf16.gmra.mxu0 %v1437
      %v2088 = vpop.f32.mrf.mxu0
      %v2089 = vadd.f32 0.0, %v2088
      %v2090 = vpop.f32.mrf.mxu0
      %v2091 = vadd.f32 0.0, %v2090
      %2092 = vmatmul.bf16.gmra.mxu0 %v1440
      %v2093 = vpop.f32.mrf.mxu0
      %v2094 = vadd.f32 0.0, %v2093
      %v2095 = vpop.f32.mrf.mxu0
      %v2096 = vadd.f32 0.0, %v2095
      %2097 = vmatmul.bf16.gmra.mxu0 %v1443
      %v2098 = vpop.f32.mrf.mxu0
      %v2099 = vadd.f32 0.0, %v2098
      %v2100 = vpop.f32.mrf.mxu0
      %v2101 = vadd.f32 0.0, %v2100
      %2102 = vmatmul.bf16.gmra.mxu0 %v2014
      %v2103 = vpop.f32.mrf.mxu0
      %v2104 = vadd.f32 0.0, %v2103
      %v2105 = vpop.f32.mrf.mxu0
      %v2106 = vadd.f32 0.0, %v2105
      %2107 = vdwg.mxu0
      %v2108 = vadd.f32 %v1954, %v2029
      %v2109 = vadd.f32 %v1955, %v2031
      %v2110 = vadd.f32 %v1956, %v2034
      %v2111 = vadd.f32 %v1957, %v2036
      %v2112 = vadd.f32 %v1958, %v2039
      %v2113 = vadd.f32 %v1959, %v2041
      %v2114 = vadd.f32 %v1960, %v2044
      %v2115 = vadd.f32 %v1961, %v2046
      %v2116 = vadd.f32 %v1962, %v2049
      %v2117 = vadd.f32 %v1963, %v2051
      %v2118 = vadd.f32 %v1964, %v2054
      %v2119 = vadd.f32 %v1965, %v2056
      %v2120 = vadd.f32 %v1966, %v2059
      %v2121 = vadd.f32 %v1967, %v2061
      %v2122 = vadd.f32 %v1968, %v2064
      %v2123 = vadd.f32 %v1969, %v2066
      %v2124 = vadd.f32 %v1970, %v2069
      %v2125 = vadd.f32 %v1971, %v2071
      %v2126 = vadd.f32 %v1972, %v2074
      %v2127 = vadd.f32 %v1973, %v2076
      %v2128 = vadd.f32 %v1974, %v2079
      %v2129 = vadd.f32 %v1975, %v2081
      %v2130 = vadd.f32 %v1976, %v2084
      %v2131 = vadd.f32 %v1977, %v2086
      %v2132 = vadd.f32 %v1978, %v2089
      %v2133 = vadd.f32 %v1979, %v2091
      %v2134 = vadd.f32 %v1980, %v2094
      %v2135 = vadd.f32 %v1981, %v2096
      %v2136 = vadd.f32 %v1982, %v2099
      %v2137 = vadd.f32 %v1983, %v2101
      %v2138 = vadd.f32 %v1984, %v2104
      %v2139 = vadd.f32 %v1985, %v2106
      %s2140 = scalar_lea.vmem %s3, 8
      %v2141 = vld [vmem:[%s2140] sm:$0x3]
      %v2144 = vunpack.c.l.b16 %v763
      %v2145 = vunpack.c.l.b16 %v764
      %v2146 = vpack.c.b16 %v2145, %v2144
      %v2148 = vsel %vm467, %v2146, 0
      %v2151 = vsel %vm1256, %v2141, 0
      %2153 = vmatpush.bf16.msra.mxu0 0
      %2154 = vmatpush.bf16.msra.mxu0 0
      %2155 = vmatpush.bf16.msra.mxu0 0
      %2156 = vmatpush.bf16.msra.mxu0 0
      %2157 = vmatpush.bf16.msra.mxu0 0
      %2158 = vmatpush.bf16.msra.mxu0 0
      %2159 = vmatpush.bf16.msra.mxu0 0
      %2160 = vmatpush.bf16.msra.mxu0 %v2151
      %2161 = vmatmul.bf16.gmra.mxu0 %v1212
      %v2162 = vpop.f32.mrf.mxu0
      %v2163 = vadd.f32 0.0, %v2162
      %v2164 = vpop.f32.mrf.mxu0
      %v2165 = vadd.f32 0.0, %v2164
      %2166 = vmatmul.bf16.gmra.mxu0 %v1215
      %v2167 = vpop.f32.mrf.mxu0
      %v2168 = vadd.f32 0.0, %v2167
      %v2169 = vpop.f32.mrf.mxu0
      %v2170 = vadd.f32 0.0, %v2169
      %2171 = vmatmul.bf16.gmra.mxu0 %v1218
      %v2172 = vpop.f32.mrf.mxu0
      %v2173 = vadd.f32 0.0, %v2172
      %v2174 = vpop.f32.mrf.mxu0
      %v2175 = vadd.f32 0.0, %v2174
      %2176 = vmatmul.bf16.gmra.mxu0 %v1221
      %v2177 = vpop.f32.mrf.mxu0
      %v2178 = vadd.f32 0.0, %v2177
      %v2179 = vpop.f32.mrf.mxu0
      %v2180 = vadd.f32 0.0, %v2179
      %2181 = vmatmul.bf16.gmra.mxu0 %v1224
      %v2182 = vpop.f32.mrf.mxu0
      %v2183 = vadd.f32 0.0, %v2182
      %v2184 = vpop.f32.mrf.mxu0
      %v2185 = vadd.f32 0.0, %v2184
      %2186 = vmatmul.bf16.gmra.mxu0 %v1227
      %v2187 = vpop.f32.mrf.mxu0
      %v2188 = vadd.f32 0.0, %v2187
      %v2189 = vpop.f32.mrf.mxu0
      %v2190 = vadd.f32 0.0, %v2189
      %2191 = vmatmul.bf16.gmra.mxu0 %v1230
      %v2192 = vpop.f32.mrf.mxu0
      %v2193 = vadd.f32 0.0, %v2192
      %v2194 = vpop.f32.mrf.mxu0
      %v2195 = vadd.f32 0.0, %v2194
      %2196 = vmatmul.bf16.gmra.mxu0 %v1233
      %v2197 = vpop.f32.mrf.mxu0
      %v2198 = vadd.f32 0.0, %v2197
      %v2199 = vpop.f32.mrf.mxu0
      %v2200 = vadd.f32 0.0, %v2199
      %2201 = vmatmul.bf16.gmra.mxu0 %v1236
      %v2202 = vpop.f32.mrf.mxu0
      %v2203 = vadd.f32 0.0, %v2202
      %v2204 = vpop.f32.mrf.mxu0
      %v2205 = vadd.f32 0.0, %v2204
      %2206 = vmatmul.bf16.gmra.mxu0 %v1239
      %v2207 = vpop.f32.mrf.mxu0
      %v2208 = vadd.f32 0.0, %v2207
      %v2209 = vpop.f32.mrf.mxu0
      %v2210 = vadd.f32 0.0, %v2209
      %2211 = vmatmul.bf16.gmra.mxu0 %v1242
      %v2212 = vpop.f32.mrf.mxu0
      %v2213 = vadd.f32 0.0, %v2212
      %v2214 = vpop.f32.mrf.mxu0
      %v2215 = vadd.f32 0.0, %v2214
      %2216 = vmatmul.bf16.gmra.mxu0 %v1245
      %v2217 = vpop.f32.mrf.mxu0
      %v2218 = vadd.f32 0.0, %v2217
      %v2219 = vpop.f32.mrf.mxu0
      %v2220 = vadd.f32 0.0, %v2219
      %2221 = vmatmul.bf16.gmra.mxu0 %v1248
      %v2222 = vpop.f32.mrf.mxu0
      %v2223 = vadd.f32 0.0, %v2222
      %v2224 = vpop.f32.mrf.mxu0
      %v2225 = vadd.f32 0.0, %v2224
      %2226 = vmatmul.bf16.gmra.mxu0 %v1251
      %v2227 = vpop.f32.mrf.mxu0
      %v2228 = vadd.f32 0.0, %v2227
      %v2229 = vpop.f32.mrf.mxu0
      %v2230 = vadd.f32 0.0, %v2229
      %2231 = vmatmul.bf16.gmra.mxu0 %v1254
      %v2232 = vpop.f32.mrf.mxu0
      %v2233 = vadd.f32 0.0, %v2232
      %v2234 = vpop.f32.mrf.mxu0
      %v2235 = vadd.f32 0.0, %v2234
      %2236 = vmatmul.bf16.gmra.mxu0 %v2148
      %v2237 = vpop.f32.mrf.mxu0
      %v2238 = vadd.f32 0.0, %v2237
      %v2239 = vpop.f32.mrf.mxu0
      %v2240 = vadd.f32 0.0, %v2239
      %2241 = vdwg.mxu0
      %v2242 = vadd.f32 %v2108, %v2163
      %v2243 = vadd.f32 %v2109, %v2165
      %v2244 = vadd.f32 %v2110, %v2168
      %v2245 = vadd.f32 %v2111, %v2170
      %v2246 = vadd.f32 %v2112, %v2173
      %v2247 = vadd.f32 %v2113, %v2175
      %v2248 = vadd.f32 %v2114, %v2178
      %v2249 = vadd.f32 %v2115, %v2180
      %v2250 = vadd.f32 %v2116, %v2183
      %v2251 = vadd.f32 %v2117, %v2185
      %v2252 = vadd.f32 %v2118, %v2188
      %v2253 = vadd.f32 %v2119, %v2190
      %v2254 = vadd.f32 %v2120, %v2193
      %v2255 = vadd.f32 %v2121, %v2195
      %v2256 = vadd.f32 %v2122, %v2198
      %v2257 = vadd.f32 %v2123, %v2200
      %v2258 = vadd.f32 %v2124, %v2203
      %v2259 = vadd.f32 %v2125, %v2205
      %v2260 = vadd.f32 %v2126, %v2208
      %v2261 = vadd.f32 %v2127, %v2210
      %v2262 = vadd.f32 %v2128, %v2213
      %v2263 = vadd.f32 %v2129, %v2215
      %v2264 = vadd.f32 %v2130, %v2218
      %v2265 = vadd.f32 %v2131, %v2220
      %v2266 = vadd.f32 %v2132, %v2223
      %v2267 = vadd.f32 %v2133, %v2225
      %v2268 = vadd.f32 %v2134, %v2228
      %v2269 = vadd.f32 %v2135, %v2230
      %v2270 = vadd.f32 %v2136, %v2233
      %v2271 = vadd.f32 %v2137, %v2235
      %v2272 = vadd.f32 %v2138, %v2238
      %v2273 = vadd.f32 %v2139, %v2240
      %v2274 = vrot.slane %v1992, 4
      %v2275 = vrot.slane %v1995, 5
      %v2276 = vor.u32 %v2274, %v2275
      %v2277 = vrot.slane %v2276, 4
      %v2278 = vrot.slane %v2004, 5
      %v2279 = vsel %vm1539, %v2277, %v2278
      %v2280 = vrot.slane %v2001, 4
      %v2281 = vor.u32 %v2280, %v2278
      %v2282 = vrot.slane %v2281, 4
      %v2284 = vshll.u32 %v765, 16
      %v2286 = vrot.slane %v2284, 5
      %v2287 = vsel %vm1539, %v2282, %v2286
      %s2288 = scalar_lea.vmem %s3, 10
      %v2289 = vld [vmem:[%s2288] sm:$0x3]
      %v2290 = vunpack.c.l.b16 %v2279
      %v2291 = vunpack.c.l.b16 %v2287
      %v2292 = vpack.c.b16 %v2291, %v2290
      %v2294 = vsel %vm467, %v2292, 0
      %v2297 = vsel %vm1256, %v2289, 0
      %2299 = vmatpush.bf16.msra.mxu0 0
      %2300 = vmatpush.bf16.msra.mxu0 0
      %2301 = vmatpush.bf16.msra.mxu0 0
      %2302 = vmatpush.bf16.msra.mxu0 0
      %2303 = vmatpush.bf16.msra.mxu0 0
      %2304 = vmatpush.bf16.msra.mxu0 0
      %2305 = vmatpush.bf16.msra.mxu0 0
      %2306 = vmatpush.bf16.msra.mxu0 %v2297
      %2307 = vmatmul.bf16.gmra.mxu0 %v1818
      %v2308 = vpop.f32.mrf.mxu0
      %v2309 = vadd.f32 0.0, %v2308
      %v2310 = vpop.f32.mrf.mxu0
      %v2311 = vadd.f32 0.0, %v2310
      %2312 = vmatmul.bf16.gmra.mxu0 %v1821
      %v2313 = vpop.f32.mrf.mxu0
      %v2314 = vadd.f32 0.0, %v2313
      %v2315 = vpop.f32.mrf.mxu0
      %v2316 = vadd.f32 0.0, %v2315
      %2317 = vmatmul.bf16.gmra.mxu0 %v1824
      %v2318 = vpop.f32.mrf.mxu0
      %v2319 = vadd.f32 0.0, %v2318
      %v2320 = vpop.f32.mrf.mxu0
      %v2321 = vadd.f32 0.0, %v2320
      %2322 = vmatmul.bf16.gmra.mxu0 %v1827
      %v2323 = vpop.f32.mrf.mxu0
      %v2324 = vadd.f32 0.0, %v2323
      %v2325 = vpop.f32.mrf.mxu0
      %v2326 = vadd.f32 0.0, %v2325
      %2327 = vmatmul.bf16.gmra.mxu0 %v1830
      %v2328 = vpop.f32.mrf.mxu0
      %v2329 = vadd.f32 0.0, %v2328
      %v2330 = vpop.f32.mrf.mxu0
      %v2331 = vadd.f32 0.0, %v2330
      %2332 = vmatmul.bf16.gmra.mxu0 %v1833
      %v2333 = vpop.f32.mrf.mxu0
      %v2334 = vadd.f32 0.0, %v2333
      %v2335 = vpop.f32.mrf.mxu0
      %v2336 = vadd.f32 0.0, %v2335
      %2337 = vmatmul.bf16.gmra.mxu0 %v1836
      %v2338 = vpop.f32.mrf.mxu0
      %v2339 = vadd.f32 0.0, %v2338
      %v2340 = vpop.f32.mrf.mxu0
      %v2341 = vadd.f32 0.0, %v2340
      %2342 = vmatmul.bf16.gmra.mxu0 %v1839
      %v2343 = vpop.f32.mrf.mxu0
      %v2344 = vadd.f32 0.0, %v2343
      %v2345 = vpop.f32.mrf.mxu0
      %v2346 = vadd.f32 0.0, %v2345
      %2347 = vmatmul.bf16.gmra.mxu0 %v1842
      %v2348 = vpop.f32.mrf.mxu0
      %v2349 = vadd.f32 0.0, %v2348
      %v2350 = vpop.f32.mrf.mxu0
      %v2351 = vadd.f32 0.0, %v2350
      %2352 = vmatmul.bf16.gmra.mxu0 %v1845
      %v2353 = vpop.f32.mrf.mxu0
      %v2354 = vadd.f32 0.0, %v2353
      %v2355 = vpop.f32.mrf.mxu0
      %v2356 = vadd.f32 0.0, %v2355
      %2357 = vmatmul.bf16.gmra.mxu0 %v1848
      %v2358 = vpop.f32.mrf.mxu0
      %v2359 = vadd.f32 0.0, %v2358
      %v2360 = vpop.f32.mrf.mxu0
      %v2361 = vadd.f32 0.0, %v2360
      %2362 = vmatmul.bf16.gmra.mxu0 %v1851
      %v2363 = vpop.f32.mrf.mxu0
      %v2364 = vadd.f32 0.0, %v2363
      %v2365 = vpop.f32.mrf.mxu0
      %v2366 = vadd.f32 0.0, %v2365
      %2367 = vmatmul.bf16.gmra.mxu0 %v1854
      %v2368 = vpop.f32.mrf.mxu0
      %v2369 = vadd.f32 0.0, %v2368
      %v2370 = vpop.f32.mrf.mxu0
      %v2371 = vadd.f32 0.0, %v2370
      %2372 = vmatmul.bf16.gmra.mxu0 %v1857
      %v2373 = vpop.f32.mrf.mxu0
      %v2374 = vadd.f32 0.0, %v2373
      %v2375 = vpop.f32.mrf.mxu0
      %v2376 = vadd.f32 0.0, %v2375
      %2377 = vmatmul.bf16.gmra.mxu0 %v1860
      %v2378 = vpop.f32.mrf.mxu0
      %v2379 = vadd.f32 0.0, %v2378
      %v2380 = vpop.f32.mrf.mxu0
      %v2381 = vadd.f32 0.0, %v2380
      %2382 = vmatmul.bf16.gmra.mxu0 %v2294
      %v2383 = vpop.f32.mrf.mxu0
      %v2384 = vadd.f32 0.0, %v2383
      %v2385 = vpop.f32.mrf.mxu0
      %v2386 = vadd.f32 0.0, %v2385
      %2387 = vdwg.mxu0
      %v2388 = vadd.f32 %v2242, %v2309
      %v2389 = vadd.f32 %v2243, %v2311
      %v2390 = vadd.f32 %v2244, %v2314
      %v2391 = vadd.f32 %v2245, %v2316
      %v2392 = vadd.f32 %v2246, %v2319
      %v2393 = vadd.f32 %v2247, %v2321
      %v2394 = vadd.f32 %v2248, %v2324
      %v2395 = vadd.f32 %v2249, %v2326
      %v2396 = vadd.f32 %v2250, %v2329
      %v2397 = vadd.f32 %v2251, %v2331
      %v2398 = vadd.f32 %v2252, %v2334
      %v2399 = vadd.f32 %v2253, %v2336
      %v2400 = vadd.f32 %v2254, %v2339
      %v2401 = vadd.f32 %v2255, %v2341
      %v2402 = vadd.f32 %v2256, %v2344
      %v2403 = vadd.f32 %v2257, %v2346
      %v2404 = vadd.f32 %v2258, %v2349
      %v2405 = vadd.f32 %v2259, %v2351
      %v2406 = vadd.f32 %v2260, %v2354
      %v2407 = vadd.f32 %v2261, %v2356
      %v2408 = vadd.f32 %v2262, %v2359
      %v2409 = vadd.f32 %v2263, %v2361
      %v2410 = vadd.f32 %v2264, %v2364
      %v2411 = vadd.f32 %v2265, %v2366
      %v2412 = vadd.f32 %v2266, %v2369
      %v2413 = vadd.f32 %v2267, %v2371
      %v2414 = vadd.f32 %v2268, %v2374
      %v2415 = vadd.f32 %v2269, %v2376
      %v2416 = vadd.f32 %v2270, %v2379
      %v2417 = vadd.f32 %v2271, %v2381
      %v2418 = vadd.f32 %v2272, %v2384
      %v2419 = vadd.f32 %v2273, %v2386
      %v2421 = vshrl.u32 %v766, 16
      %v2423 = vrot.slane %v2421, 7
      %v2424 = vrot.slane %v2423, 4
      %v2426 = vshrl.u32 %v767, 16
      %v2428 = vrot.slane %v2426, 7
      %v2429 = vshll.u32 %v767, 16
      %v2431 = vor.u32 %v2428, %v2429
      %v2432 = vsel %vm772, %v2424, %v2431
      %v2433 = vrot.slane %v2428, 4
      %v2435 = vshrl.u32 %v768, 16
      %v2437 = vrot.slane %v2435, 7
      %v2438 = vshll.u32 %v768, 16
      %v2440 = vor.u32 %v2437, %v2438
      %v2441 = vsel %vm772, %v2433, %v2440
      %s2442 = scalar_lea.vmem %s3, 12
      %v2443 = vld [vmem:[%s2442] sm:$0x3]
      %v2444 = vunpack.c.l.b16 %v2432
      %v2445 = vunpack.c.l.b16 %v2441
      %v2446 = vpack.c.b16 %v2445, %v2444
      %v2448 = vsel %vm467, %v2446, 0
      %v2451 = vsel %vm1256, %v2443, 0
      %2453 = vmatpush.bf16.msra.mxu0 0
      %2454 = vmatpush.bf16.msra.mxu0 0
      %2455 = vmatpush.bf16.msra.mxu0 0
      %2456 = vmatpush.bf16.msra.mxu0 0
      %2457 = vmatpush.bf16.msra.mxu0 0
      %2458 = vmatpush.bf16.msra.mxu0 0
      %2459 = vmatpush.bf16.msra.mxu0 0
      %2460 = vmatpush.bf16.msra.mxu0 %v2451
      %2461 = vmatmul.bf16.gmra.mxu0 %v1404
      %v2462 = vpop.f32.mrf.mxu0
      %v2463 = vadd.f32 0.0, %v2462
      %v2464 = vpop.f32.mrf.mxu0
      %v2465 = vadd.f32 0.0, %v2464
      %2466 = vmatmul.bf16.gmra.mxu0 %v1407
      %v2467 = vpop.f32.mrf.mxu0
      %v2468 = vadd.f32 0.0, %v2467
      %v2469 = vpop.f32.mrf.mxu0
      %v2470 = vadd.f32 0.0, %v2469
      %2471 = vmatmul.bf16.gmra.mxu0 %v1410
      %v2472 = vpop.f32.mrf.mxu0
      %v2473 = vadd.f32 0.0, %v2472
      %v2474 = vpop.f32.mrf.mxu0
      %v2475 = vadd.f32 0.0, %v2474
      %2476 = vmatmul.bf16.gmra.mxu0 %v1413
      %v2477 = vpop.f32.mrf.mxu0
      %v2478 = vadd.f32 0.0, %v2477
      %v2479 = vpop.f32.mrf.mxu0
      %v2480 = vadd.f32 0.0, %v2479
      %2481 = vmatmul.bf16.gmra.mxu0 %v1416
      %v2482 = vpop.f32.mrf.mxu0
      %v2483 = vadd.f32 0.0, %v2482
      %v2484 = vpop.f32.mrf.mxu0
      %v2485 = vadd.f32 0.0, %v2484
      %2486 = vmatmul.bf16.gmra.mxu0 %v1419
      %v2487 = vpop.f32.mrf.mxu0
      %v2488 = vadd.f32 0.0, %v2487
      %v2489 = vpop.f32.mrf.mxu0
      %v2490 = vadd.f32 0.0, %v2489
      %2491 = vmatmul.bf16.gmra.mxu0 %v1422
      %v2492 = vpop.f32.mrf.mxu0
      %v2493 = vadd.f32 0.0, %v2492
      %v2494 = vpop.f32.mrf.mxu0
      %v2495 = vadd.f32 0.0, %v2494
      %2496 = vmatmul.bf16.gmra.mxu0 %v1425
      %v2497 = vpop.f32.mrf.mxu0
      %v2498 = vadd.f32 0.0, %v2497
      %v2499 = vpop.f32.mrf.mxu0
      %v2500 = vadd.f32 0.0, %v2499
      %2501 = vmatmul.bf16.gmra.mxu0 %v1428
      %v2502 = vpop.f32.mrf.mxu0
      %v2503 = vadd.f32 0.0, %v2502
      %v2504 = vpop.f32.mrf.mxu0
      %v2505 = vadd.f32 0.0, %v2504
      %2506 = vmatmul.bf16.gmra.mxu0 %v1431
      %v2507 = vpop.f32.mrf.mxu0
      %v2508 = vadd.f32 0.0, %v2507
      %v2509 = vpop.f32.mrf.mxu0
      %v2510 = vadd.f32 0.0, %v2509
      %2511 = vmatmul.bf16.gmra.mxu0 %v1434
      %v2512 = vpop.f32.mrf.mxu0
      %v2513 = vadd.f32 0.0, %v2512
      %v2514 = vpop.f32.mrf.mxu0
      %v2515 = vadd.f32 0.0, %v2514
      %2516 = vmatmul.bf16.gmra.mxu0 %v1437
      %v2517 = vpop.f32.mrf.mxu0
      %v2518 = vadd.f32 0.0, %v2517
      %v2519 = vpop.f32.mrf.mxu0
      %v2520 = vadd.f32 0.0, %v2519
      %2521 = vmatmul.bf16.gmra.mxu0 %v1440
      %v2522 = vpop.f32.mrf.mxu0
      %v2523 = vadd.f32 0.0, %v2522
      %v2524 = vpop.f32.mrf.mxu0
      %v2525 = vadd.f32 0.0, %v2524
      %2526 = vmatmul.bf16.gmra.mxu0 %v1443
      %v2527 = vpop.f32.mrf.mxu0
      %v2528 = vadd.f32 0.0, %v2527
      %v2529 = vpop.f32.mrf.mxu0
      %v2530 = vadd.f32 0.0, %v2529
      %2531 = vmatmul.bf16.gmra.mxu0 %v2014
      %v2532 = vpop.f32.mrf.mxu0
      %v2533 = vadd.f32 0.0, %v2532
      %v2534 = vpop.f32.mrf.mxu0
      %v2535 = vadd.f32 0.0, %v2534
      %2536 = vmatmul.bf16.gmra.mxu0 %v2448
      %v2537 = vpop.f32.mrf.mxu0
      %v2538 = vadd.f32 0.0, %v2537
      %v2539 = vpop.f32.mrf.mxu0
      %v2540 = vadd.f32 0.0, %v2539
      %2541 = vdwg.mxu0
      %v2542 = vadd.f32 %v2388, %v2463
      %v2543 = vadd.f32 %v2389, %v2465
      %v2544 = vadd.f32 %v2390, %v2468
      %v2545 = vadd.f32 %v2391, %v2470
      %v2546 = vadd.f32 %v2392, %v2473
      %v2547 = vadd.f32 %v2393, %v2475
      %v2548 = vadd.f32 %v2394, %v2478
      %v2549 = vadd.f32 %v2395, %v2480
      %v2550 = vadd.f32 %v2396, %v2483
      %v2551 = vadd.f32 %v2397, %v2485
      %v2552 = vadd.f32 %v2398, %v2488
      %v2553 = vadd.f32 %v2399, %v2490
      %v2554 = vadd.f32 %v2400, %v2493
      %v2555 = vadd.f32 %v2401, %v2495
      %v2556 = vadd.f32 %v2402, %v2498
      %v2557 = vadd.f32 %v2403, %v2500
      %v2558 = vadd.f32 %v2404, %v2503
      %v2559 = vadd.f32 %v2405, %v2505
      %v2560 = vadd.f32 %v2406, %v2508
      %v2561 = vadd.f32 %v2407, %v2510
      %v2562 = vadd.f32 %v2408, %v2513
      %v2563 = vadd.f32 %v2409, %v2515
      %v2564 = vadd.f32 %v2410, %v2518
      %v2565 = vadd.f32 %v2411, %v2520
      %v2566 = vadd.f32 %v2412, %v2523
      %v2567 = vadd.f32 %v2413, %v2525
      %v2568 = vadd.f32 %v2414, %v2528
      %v2569 = vadd.f32 %v2415, %v2530
      %v2570 = vadd.f32 %v2416, %v2533
      %v2571 = vadd.f32 %v2417, %v2535
      %v2572 = vadd.f32 %v2418, %v2538
      %v2573 = vadd.f32 %v2419, %v2540
      %s2574 = scalar_lea.vmem %s3, 14
      %v2575 = vld [vmem:[%s2574] sm:$0x3]
      %v2578 = vunpack.c.l.b16 %v767
      %v2579 = vunpack.c.l.b16 %v768
      %v2580 = vpack.c.b16 %v2579, %v2578
      %v2582 = vsel %vm467, %v2580, 0
      %v2585 = vsel %vm1256, %v2575, 0
      %2587 = vmatpush.bf16.msra.mxu0 0
      %2588 = vmatpush.bf16.msra.mxu0 0
      %2589 = vmatpush.bf16.msra.mxu0 0
      %2590 = vmatpush.bf16.msra.mxu0 0
      %2591 = vmatpush.bf16.msra.mxu0 0
      %2592 = vmatpush.bf16.msra.mxu0 0
      %2593 = vmatpush.bf16.msra.mxu0 0
      %2594 = vmatpush.bf16.msra.mxu0 %v2585
      %2595 = vmatmul.bf16.gmra.mxu0 %v1215
      %v2596 = vpop.f32.mrf.mxu0
      %v2597 = vadd.f32 0.0, %v2596
      %v2598 = vpop.f32.mrf.mxu0
      %v2599 = vadd.f32 0.0, %v2598
      %2600 = vmatmul.bf16.gmra.mxu0 %v1218
      %v2601 = vpop.f32.mrf.mxu0
      %v2602 = vadd.f32 0.0, %v2601
      %v2603 = vpop.f32.mrf.mxu0
      %v2604 = vadd.f32 0.0, %v2603
      %2605 = vmatmul.bf16.gmra.mxu0 %v1221
      %v2606 = vpop.f32.mrf.mxu0
      %v2607 = vadd.f32 0.0, %v2606
      %v2608 = vpop.f32.mrf.mxu0
      %v2609 = vadd.f32 0.0, %v2608
      %2610 = vmatmul.bf16.gmra.mxu0 %v1224
      %v2611 = vpop.f32.mrf.mxu0
      %v2612 = vadd.f32 0.0, %v2611
      %v2613 = vpop.f32.mrf.mxu0
      %v2614 = vadd.f32 0.0, %v2613
      %2615 = vmatmul.bf16.gmra.mxu0 %v1227
      %v2616 = vpop.f32.mrf.mxu0
      %v2617 = vadd.f32 0.0, %v2616
      %v2618 = vpop.f32.mrf.mxu0
      %v2619 = vadd.f32 0.0, %v2618
      %2620 = vmatmul.bf16.gmra.mxu0 %v1230
      %v2621 = vpop.f32.mrf.mxu0
      %v2622 = vadd.f32 0.0, %v2621
      %v2623 = vpop.f32.mrf.mxu0
      %v2624 = vadd.f32 0.0, %v2623
      %2625 = vmatmul.bf16.gmra.mxu0 %v1233
      %v2626 = vpop.f32.mrf.mxu0
      %v2627 = vadd.f32 0.0, %v2626
      %v2628 = vpop.f32.mrf.mxu0
      %v2629 = vadd.f32 0.0, %v2628
      %2630 = vmatmul.bf16.gmra.mxu0 %v1236
      %v2631 = vpop.f32.mrf.mxu0
      %v2632 = vadd.f32 0.0, %v2631
      %v2633 = vpop.f32.mrf.mxu0
      %v2634 = vadd.f32 0.0, %v2633
      %2635 = vmatmul.bf16.gmra.mxu0 %v1239
      %v2636 = vpop.f32.mrf.mxu0
      %v2637 = vadd.f32 0.0, %v2636
      %v2638 = vpop.f32.mrf.mxu0
      %v2639 = vadd.f32 0.0, %v2638
      %2640 = vmatmul.bf16.gmra.mxu0 %v1242
      %v2641 = vpop.f32.mrf.mxu0
      %v2642 = vadd.f32 0.0, %v2641
      %v2643 = vpop.f32.mrf.mxu0
      %v2644 = vadd.f32 0.0, %v2643
      %2645 = vmatmul.bf16.gmra.mxu0 %v1245
      %v2646 = vpop.f32.mrf.mxu0
      %v2647 = vadd.f32 0.0, %v2646
      %v2648 = vpop.f32.mrf.mxu0
      %v2649 = vadd.f32 0.0, %v2648
      %2650 = vmatmul.bf16.gmra.mxu0 %v1248
      %v2651 = vpop.f32.mrf.mxu0
      %v2652 = vadd.f32 0.0, %v2651
      %v2653 = vpop.f32.mrf.mxu0
      %v2654 = vadd.f32 0.0, %v2653
      %2655 = vmatmul.bf16.gmra.mxu0 %v1251
      %v2656 = vpop.f32.mrf.mxu0
      %v2657 = vadd.f32 0.0, %v2656
      %v2658 = vpop.f32.mrf.mxu0
      %v2659 = vadd.f32 0.0, %v2658
      %2660 = vmatmul.bf16.gmra.mxu0 %v1254
      %v2661 = vpop.f32.mrf.mxu0
      %v2662 = vadd.f32 0.0, %v2661
      %v2663 = vpop.f32.mrf.mxu0
      %v2664 = vadd.f32 0.0, %v2663
      %2665 = vmatmul.bf16.gmra.mxu0 %v2148
      %v2666 = vpop.f32.mrf.mxu0
      %v2667 = vadd.f32 0.0, %v2666
      %v2668 = vpop.f32.mrf.mxu0
      %v2669 = vadd.f32 0.0, %v2668
      %2670 = vmatmul.bf16.gmra.mxu0 %v2582
      %v2671 = vpop.f32.mrf.mxu0
      %v2672 = vadd.f32 0.0, %v2671
      %v2673 = vpop.f32.mrf.mxu0
      %v2674 = vadd.f32 0.0, %v2673
      %2675 = vdwg.mxu0
      %v2676 = vadd.f32 %v2542, %v2597
      %v2677 = vadd.f32 %v2543, %v2599
      %v2678 = vadd.f32 %v2544, %v2602
      %v2679 = vadd.f32 %v2545, %v2604
      %v2680 = vadd.f32 %v2546, %v2607
      %v2681 = vadd.f32 %v2547, %v2609
      %v2682 = vadd.f32 %v2548, %v2612
      %v2683 = vadd.f32 %v2549, %v2614
      %v2684 = vadd.f32 %v2550, %v2617
      %v2685 = vadd.f32 %v2551, %v2619
      %v2686 = vadd.f32 %v2552, %v2622
      %v2687 = vadd.f32 %v2553, %v2624
      %v2688 = vadd.f32 %v2554, %v2627
      %v2689 = vadd.f32 %v2555, %v2629
      %v2690 = vadd.f32 %v2556, %v2632
      %v2691 = vadd.f32 %v2557, %v2634
      %v2692 = vadd.f32 %v2558, %v2637
      %v2693 = vadd.f32 %v2559, %v2639
      %v2694 = vadd.f32 %v2560, %v2642
      %v2695 = vadd.f32 %v2561, %v2644
      %v2696 = vadd.f32 %v2562, %v2647
      %v2697 = vadd.f32 %v2563, %v2649
      %v2698 = vadd.f32 %v2564, %v2652
      %v2699 = vadd.f32 %v2565, %v2654
      %v2700 = vadd.f32 %v2566, %v2657
      %v2701 = vadd.f32 %v2567, %v2659
      %v2702 = vadd.f32 %v2568, %v2662
      %v2703 = vadd.f32 %v2569, %v2664
      %v2704 = vadd.f32 %v2570, %v2667
      %v2705 = vadd.f32 %v2571, %v2669
      %v2706 = vadd.f32 %v2572, %v2672
      %v2707 = vadd.f32 %v2573, %v2674
      %v2708 = vrot.slane %v2426, 4
      %v2709 = vrot.slane %v2429, 5
      %v2710 = vor.u32 %v2708, %v2709
      %v2711 = vrot.slane %v2710, 4
      %v2712 = vrot.slane %v2438, 5
      %v2713 = vsel %vm1539, %v2711, %v2712
      %v2714 = vrot.slane %v2435, 4
      %v2715 = vor.u32 %v2714, %v2712
      %v2716 = vrot.slane %v2715, 4
      %v2718 = vshll.u32 %v769, 16
      %v2720 = vrot.slane %v2718, 5
      %v2721 = vsel %vm1539, %v2716, %v2720
      %s2722 = scalar_lea.vmem %s3, 16
      %v2723 = vld [vmem:[%s2722] sm:$0x3]
      %v2724 = vunpack.c.l.b16 %v2713
      %v2725 = vunpack.c.l.b16 %v2721
      %v2726 = vpack.c.b16 %v2725, %v2724
      %v2728 = vsel %vm467, %v2726, 0
      %v2731 = vsel %vm1256, %v2723, 0
      %2733 = vmatpush.bf16.msra.mxu0 0
      %2734 = vmatpush.bf16.msra.mxu0 0
      %2735 = vmatpush.bf16.msra.mxu0 0
      %2736 = vmatpush.bf16.msra.mxu0 0
      %2737 = vmatpush.bf16.msra.mxu0 0
      %2738 = vmatpush.bf16.msra.mxu0 0
      %2739 = vmatpush.bf16.msra.mxu0 0
      %2740 = vmatpush.bf16.msra.mxu0 %v2731
      %2741 = vmatmul.bf16.gmra.mxu0 %v1821
      %v2742 = vpop.f32.mrf.mxu0
      %v2743 = vadd.f32 0.0, %v2742
      %v2744 = vpop.f32.mrf.mxu0
      %v2745 = vadd.f32 0.0, %v2744
      %2746 = vmatmul.bf16.gmra.mxu0 %v1824
      %v2747 = vpop.f32.mrf.mxu0
      %v2748 = vadd.f32 0.0, %v2747
      %v2749 = vpop.f32.mrf.mxu0
      %v2750 = vadd.f32 0.0, %v2749
      %2751 = vmatmul.bf16.gmra.mxu0 %v1827
      %v2752 = vpop.f32.mrf.mxu0
      %v2753 = vadd.f32 0.0, %v2752
      %v2754 = vpop.f32.mrf.mxu0
      %v2755 = vadd.f32 0.0, %v2754
      %2756 = vmatmul.bf16.gmra.mxu0 %v1830
      %v2757 = vpop.f32.mrf.mxu0
      %v2758 = vadd.f32 0.0, %v2757
      %v2759 = vpop.f32.mrf.mxu0
      %v2760 = vadd.f32 0.0, %v2759
      %2761 = vmatmul.bf16.gmra.mxu0 %v1833
      %v2762 = vpop.f32.mrf.mxu0
      %v2763 = vadd.f32 0.0, %v2762
      %v2764 = vpop.f32.mrf.mxu0
      %v2765 = vadd.f32 0.0, %v2764
      %2766 = vmatmul.bf16.gmra.mxu0 %v1836
      %v2767 = vpop.f32.mrf.mxu0
      %v2768 = vadd.f32 0.0, %v2767
      %v2769 = vpop.f32.mrf.mxu0
      %v2770 = vadd.f32 0.0, %v2769
      %2771 = vmatmul.bf16.gmra.mxu0 %v1839
      %v2772 = vpop.f32.mrf.mxu0
      %v2773 = vadd.f32 0.0, %v2772
      %v2774 = vpop.f32.mrf.mxu0
      %v2775 = vadd.f32 0.0, %v2774
      %2776 = vmatmul.bf16.gmra.mxu0 %v1842
      %v2777 = vpop.f32.mrf.mxu0
      %v2778 = vadd.f32 0.0, %v2777
      %v2779 = vpop.f32.mrf.mxu0
      %v2780 = vadd.f32 0.0, %v2779
      %2781 = vmatmul.bf16.gmra.mxu0 %v1845
      %v2782 = vpop.f32.mrf.mxu0
      %v2783 = vadd.f32 0.0, %v2782
      %v2784 = vpop.f32.mrf.mxu0
      %v2785 = vadd.f32 0.0, %v2784
      %2786 = vmatmul.bf16.gmra.mxu0 %v1848
      %v2787 = vpop.f32.mrf.mxu0
      %v2788 = vadd.f32 0.0, %v2787
      %v2789 = vpop.f32.mrf.mxu0
      %v2790 = vadd.f32 0.0, %v2789
      %2791 = vmatmul.bf16.gmra.mxu0 %v1851
      %v2792 = vpop.f32.mrf.mxu0
      %v2793 = vadd.f32 0.0, %v2792
      %v2794 = vpop.f32.mrf.mxu0
      %v2795 = vadd.f32 0.0, %v2794
      %2796 = vmatmul.bf16.gmra.mxu0 %v1854
      %v2797 = vpop.f32.mrf.mxu0
      %v2798 = vadd.f32 0.0, %v2797
      %v2799 = vpop.f32.mrf.mxu0
      %v2800 = vadd.f32 0.0, %v2799
      %2801 = vmatmul.bf16.gmra.mxu0 %v1857
      %v2802 = vpop.f32.mrf.mxu0
      %v2803 = vadd.f32 0.0, %v2802
      %v2804 = vpop.f32.mrf.mxu0
      %v2805 = vadd.f32 0.0, %v2804
      %2806 = vmatmul.bf16.gmra.mxu0 %v1860
      %v2807 = vpop.f32.mrf.mxu0
      %v2808 = vadd.f32 0.0, %v2807
      %v2809 = vpop.f32.mrf.mxu0
      %v2810 = vadd.f32 0.0, %v2809
      %2811 = vmatmul.bf16.gmra.mxu0 %v2294
      %v2812 = vpop.f32.mrf.mxu0
      %v2813 = vadd.f32 0.0, %v2812
      %v2814 = vpop.f32.mrf.mxu0
      %v2815 = vadd.f32 0.0, %v2814
      %2816 = vmatmul.bf16.gmra.mxu0 %v2728
      %v2817 = vpop.f32.mrf.mxu0
      %v2818 = vadd.f32 0.0, %v2817
      %v2819 = vpop.f32.mrf.mxu0
      %v2820 = vadd.f32 0.0, %v2819
      %2821 = vdwg.mxu0
      %v2822 = vadd.f32 %v2676, %v2743
      %v2823 = vadd.f32 %v2677, %v2745
      %v2824 = vadd.f32 %v2678, %v2748
      %v2825 = vadd.f32 %v2679, %v2750
      %v2826 = vadd.f32 %v2680, %v2753
      %v2827 = vadd.f32 %v2681, %v2755
      %v2828 = vadd.f32 %v2682, %v2758
      %v2829 = vadd.f32 %v2683, %v2760
      %v2830 = vadd.f32 %v2684, %v2763
      %v2831 = vadd.f32 %v2685, %v2765
      %v2832 = vadd.f32 %v2686, %v2768
      %v2833 = vadd.f32 %v2687, %v2770
      %v2834 = vadd.f32 %v2688, %v2773
      %v2835 = vadd.f32 %v2689, %v2775
      %v2836 = vadd.f32 %v2690, %v2778
      %v2837 = vadd.f32 %v2691, %v2780
      %v2838 = vadd.f32 %v2692, %v2783
      %v2839 = vadd.f32 %v2693, %v2785
      %v2840 = vadd.f32 %v2694, %v2788
      %v2841 = vadd.f32 %v2695, %v2790
      %v2842 = vadd.f32 %v2696, %v2793
      %v2843 = vadd.f32 %v2697, %v2795
      %v2844 = vadd.f32 %v2698, %v2798
      %v2845 = vadd.f32 %v2699, %v2800
      %v2846 = vadd.f32 %v2700, %v2803
      %v2847 = vadd.f32 %v2701, %v2805
      %v2848 = vadd.f32 %v2702, %v2808
      %v2849 = vadd.f32 %v2703, %v2810
      %v2850 = vadd.f32 %v2704, %v2813
      %v2851 = vadd.f32 %v2705, %v2815
      %v2852 = vadd.f32 %v2706, %v2818
      %v2853 = vadd.f32 %v2707, %v2820
      %v2854 = vpack.c.bf16 %v2822, %v2822
      %v2855 = vpack.c.bf16 %v2823, %v2823
      %v2856 = vpack.c.bf16 %v2824, %v2824
      %v2857 = vpack.c.bf16 %v2825, %v2825
      %v2858 = vpack.c.bf16 %v2826, %v2826
      %v2859 = vpack.c.bf16 %v2827, %v2827
      %v2860 = vpack.c.bf16 %v2828, %v2828
      %v2861 = vpack.c.bf16 %v2829, %v2829
      %v2862 = vpack.c.bf16 %v2830, %v2830
      %v2863 = vpack.c.bf16 %v2831, %v2831
      %v2864 = vpack.c.bf16 %v2832, %v2832
      %v2865 = vpack.c.bf16 %v2833, %v2833
      %v2866 = vpack.c.bf16 %v2834, %v2834
      %v2867 = vpack.c.bf16 %v2835, %v2835
      %v2868 = vpack.c.bf16 %v2836, %v2836
      %v2869 = vpack.c.bf16 %v2837, %v2837
      %v2870 = vpack.c.bf16 %v2838, %v2838
      %v2871 = vpack.c.bf16 %v2839, %v2839
      %v2872 = vpack.c.bf16 %v2840, %v2840
      %v2873 = vpack.c.bf16 %v2841, %v2841
      %v2874 = vpack.c.bf16 %v2842, %v2842
      %v2875 = vpack.c.bf16 %v2843, %v2843
      %v2876 = vpack.c.bf16 %v2844, %v2844
      %v2877 = vpack.c.bf16 %v2845, %v2845
      %v2878 = vpack.c.bf16 %v2846, %v2846
      %v2879 = vpack.c.bf16 %v2847, %v2847
      %v2880 = vpack.c.bf16 %v2848, %v2848
      %v2881 = vpack.c.bf16 %v2849, %v2849
      %v2882 = vpack.c.bf16 %v2850, %v2850
      %v2883 = vpack.c.bf16 %v2851, %v2851
      %v2884 = vpack.c.bf16 %v2852, %v2852
      %v2885 = vpack.c.bf16 %v2853, %v2853
      %2886 = vst [vmem:[%s457] sm:$0xf] %v2854
      %2887 = vst [vmem:[%s457 + $0x4] sm:$0xf] %v2855
      %2888 = vst [vmem:[%s457 + $0x8] sm:$0xf] %v2856
      %2889 = vst [vmem:[%s457 + $0xc] sm:$0xf] %v2857
      %2890 = vst [vmem:[%s457 + $0x10] sm:$0xf] %v2858
      %2891 = vst [vmem:[%s457 + $0x14] sm:$0xf] %v2859
      %2892 = vst [vmem:[%s457 + $0x18] sm:$0xf] %v2860
      %2893 = vst [vmem:[%s457 + $0x1c] sm:$0xf] %v2861
      %2894 = vst [vmem:[%s457 + $0x20] sm:$0xf] %v2862
      %2895 = vst [vmem:[%s457 + $0x24] sm:$0xf] %v2863
      %2896 = vst [vmem:[%s457 + $0x28] sm:$0xf] %v2864
      %2897 = vst [vmem:[%s457 + $0x2c] sm:$0xf] %v2865
      %2898 = vst [vmem:[%s457 + $0x30] sm:$0xf] %v2866
      %2899 = vst [vmem:[%s457 + $0x34] sm:$0xf] %v2867
      %2900 = vst [vmem:[%s457 + $0x38] sm:$0xf] %v2868
      %2901 = vst [vmem:[%s457 + $0x3c] sm:$0xf] %v2869
      %2902 = vst [vmem:[%s457 + $0x40] sm:$0xf] %v2870
      %2903 = vst [vmem:[%s457 + $0x44] sm:$0xf] %v2871
      %2904 = vst [vmem:[%s457 + $0x48] sm:$0xf] %v2872
      %2905 = vst [vmem:[%s457 + $0x4c] sm:$0xf] %v2873
      %2906 = vst [vmem:[%s457 + $0x50] sm:$0xf] %v2874
      %2907 = vst [vmem:[%s457 + $0x54] sm:$0xf] %v2875
      %2908 = vst [vmem:[%s457 + $0x58] sm:$0xf] %v2876
      %2909 = vst [vmem:[%s457 + $0x5c] sm:$0xf] %v2877
      %2910 = vst [vmem:[%s457 + $0x60] sm:$0xf] %v2878
      %2911 = vst [vmem:[%s457 + $0x64] sm:$0xf] %v2879
      %2912 = vst [vmem:[%s457 + $0x68] sm:$0xf] %v2880
      %2913 = vst [vmem:[%s457 + $0x6c] sm:$0xf] %v2881
      %2914 = vst [vmem:[%s457 + $0x70] sm:$0xf] %v2882
      %2915 = vst [vmem:[%s457 + $0x74] sm:$0xf] %v2883
      %2916 = vst [vmem:[%s457 + $0x78] sm:$0xf] %v2884
      %2917 = vst [vmem:[%s457 + $0x7c] sm:$0xf] %v2885
      %v2918 = vadd.f32 %v2822, %v2823
      %v2919 = vadd.f32 %v2918, %v2824
      %v2920 = vadd.f32 %v2919, %v2825
      %v2921 = vadd.f32 %v2920, %v2826
      %v2922 = vadd.f32 %v2921, %v2827
      %v2923 = vadd.f32 %v2922, %v2828
      %v2924 = vadd.f32 %v2923, %v2829
      %v2925 = vadd.f32 %v2924, %v2830
      %v2926 = vadd.f32 %v2925, %v2831
      %v2927 = vadd.f32 %v2926, %v2832
      %v2928 = vadd.f32 %v2927, %v2833
      %v2929 = vadd.f32 %v2928, %v2834
      %v2930 = vadd.f32 %v2929, %v2835
      %v2931 = vadd.f32 %v2930, %v2836
      %v2932 = vadd.f32 %v2931, %v2837
      %v2933 = vadd.f32 %v2932, %v2838
      %v2934 = vadd.f32 %v2933, %v2839
      %v2935 = vadd.f32 %v2934, %v2840
      %v2936 = vadd.f32 %v2935, %v2841
      %v2937 = vadd.f32 %v2936, %v2842
      %v2938 = vadd.f32 %v2937, %v2843
      %v2939 = vadd.f32 %v2938, %v2844
      %v2940 = vadd.f32 %v2939, %v2845
      %v2941 = vadd.f32 %v2940, %v2846
      %v2942 = vadd.f32 %v2941, %v2847
      %v2943 = vadd.f32 %v2942, %v2848
      %v2944 = vadd.f32 %v2943, %v2849
      %v2945 = vadd.f32 %v2944, %v2850
      %v2946 = vadd.f32 %v2945, %v2851
      %v2947 = vadd.f32 %v2946, %v2852
      %v2948 = vadd.f32 %v2947, %v2853
      %v2949 = vrot.slane %v2948, 4
      %v2950 = vadd.f32 %v2948, %v2949
      %v2951 = vrot.slane %v2950, 2
      %v2952 = vadd.f32 %v2950, %v2951
      %v2953 = vrot.slane %v2952, 1
      %v2954 = vadd.f32 %v2952, %v2953
      %v2955 = vmul.f32 %v2822, %v2822
      %v2956 = vmul.f32 %v2823, %v2823
      %v2957 = vmul.f32 %v2824, %v2824
      %v2958 = vmul.f32 %v2825, %v2825
      %v2959 = vmul.f32 %v2826, %v2826
      %v2960 = vmul.f32 %v2827, %v2827
      %v2961 = vmul.f32 %v2828, %v2828
      %v2962 = vmul.f32 %v2829, %v2829
      %v2963 = vmul.f32 %v2830, %v2830
      %v2964 = vmul.f32 %v2831, %v2831
      %v2965 = vmul.f32 %v2832, %v2832
      %v2966 = vmul.f32 %v2833, %v2833
      %v2967 = vmul.f32 %v2834, %v2834
      %v2968 = vmul.f32 %v2835, %v2835
      %v2969 = vmul.f32 %v2836, %v2836
      %v2970 = vmul.f32 %v2837, %v2837
      %v2971 = vmul.f32 %v2838, %v2838
      %v2972 = vmul.f32 %v2839, %v2839
      %v2973 = vmul.f32 %v2840, %v2840
      %v2974 = vmul.f32 %v2841, %v2841
      %v2975 = vmul.f32 %v2842, %v2842
      %v2976 = vmul.f32 %v2843, %v2843
      %v2977 = vmul.f32 %v2844, %v2844
      %v2978 = vmul.f32 %v2845, %v2845
      %v2979 = vmul.f32 %v2846, %v2846
      %v2980 = vmul.f32 %v2847, %v2847
      %v2981 = vmul.f32 %v2848, %v2848
      %v2982 = vmul.f32 %v2849, %v2849
      %v2983 = vmul.f32 %v2850, %v2850
      %v2984 = vmul.f32 %v2851, %v2851
      %v2985 = vmul.f32 %v2852, %v2852
      %v2986 = vmul.f32 %v2853, %v2853
      %v2987 = vadd.f32 %v2955, %v2956
      %v2988 = vadd.f32 %v2987, %v2957
      %v2989 = vadd.f32 %v2988, %v2958
      %v2990 = vadd.f32 %v2989, %v2959
      %v2991 = vadd.f32 %v2990, %v2960
      %v2992 = vadd.f32 %v2991, %v2961
      %v2993 = vadd.f32 %v2992, %v2962
      %v2994 = vadd.f32 %v2993, %v2963
      %v2995 = vadd.f32 %v2994, %v2964
      %v2996 = vadd.f32 %v2995, %v2965
      %v2997 = vadd.f32 %v2996, %v2966
      %v2998 = vadd.f32 %v2997, %v2967
      %v2999 = vadd.f32 %v2998, %v2968
      %v3000 = vadd.f32 %v2999, %v2969
      %v3001 = vadd.f32 %v3000, %v2970
      %v3002 = vadd.f32 %v3001, %v2971
      %v3003 = vadd.f32 %v3002, %v2972
      %v3004 = vadd.f32 %v3003, %v2973
      %v3005 = vadd.f32 %v3004, %v2974
      %v3006 = vadd.f32 %v3005, %v2975
      %v3007 = vadd.f32 %v3006, %v2976
      %v3008 = vadd.f32 %v3007, %v2977
      %v3009 = vadd.f32 %v3008, %v2978
      %v3010 = vadd.f32 %v3009, %v2979
      %v3011 = vadd.f32 %v3010, %v2980
      %v3012 = vadd.f32 %v3011, %v2981
      %v3013 = vadd.f32 %v3012, %v2982
      %v3014 = vadd.f32 %v3013, %v2983
      %v3015 = vadd.f32 %v3014, %v2984
      %v3016 = vadd.f32 %v3015, %v2985
      %v3017 = vadd.f32 %v3016, %v2986
      %v3018 = vrot.slane %v3017, 4
      %v3019 = vadd.f32 %v3017, %v3018
      %v3020 = vrot.slane %v3019, 2
      %v3021 = vadd.f32 %v3019, %v3020
      %v3022 = vrot.slane %v3021, 1
      %v3023 = vadd.f32 %v3021, %v3022
      %vm3024 = vcmask 1040384
      %v3025 = vsel %vm3024, %v2954, %v3023
      %3026 = vst [vmem:[%s465] sm:$0x3] %v3025
      %s3027 = smul.u32 16, %s24
      %p3028 = scmp.lt.s32.totalorder %s23, 1
      %s3029 = scalar_select %p3028, %s23, 1
      %p3030 = scmp.lt.s32.totalorder %s3027, 15
      %s3031 = scalar_select %p3030, %s3027, 15
      %s3032 = smul.addr %s3031, 2
      %s3033 = smul.addr %s3029, 32
      %s3034 = sadd.s32 %s3032, %s3033
      %s3035 = smul.addr %s3034, 4
      %s3036 = scalar_lea.vmem %s6, %s3035
      %p3037 = scmp.lt.s32.totalorder %s23, 1
      %s3038 = scalar_select %p3037, %s23, 1
      %p3039 = scmp.lt.s32.totalorder %s24, 0
      %s3040 = scalar_select %p3039, %s24, 0
      %s3041 = sadd.s32 %s3040, %s3038
      %s3042 = smul.addr %s3041, 2
      %s3043 = scalar_lea.vmem %s7, %s3042
      // Predicated region
      $region45: #{double_conv_forward.3} parent=43 // pred_check
        %p3044 = pneg %p214
      $region46: #{double_conv_forward.3} parent=43 // pred_check_branch
        %3046 = sbr.rel (%p3044) target = $region48
      $region47: #{double_conv_forward.3} parent=43 // pred_region
        %s3047 = smul.u32 16, %s24
      $region48: #{double_conv_forward.3} parent=43 // pred_fallthru
        _
      // Predicated region
      $region49: #{double_conv_forward.3} parent=43 // pred_check
        %p3048 = pneg %p242
      $region50: #{double_conv_forward.3} parent=43 // pred_check_branch
        %3050 = sbr.rel (%p3048) target = $region52
      $region51: #{double_conv_forward.3} parent=43 // pred_region
        _
      $region52: #{double_conv_forward.3} parent=43 // pred_fallthru
        _
    $region44: #{double_conv_forward.3} parent=5 // pred_fallthru
      _
    %p3051 = scmp.le.s32.totalorder 2, %s14
    // Predicated region
    $region53: #{double_conv_forward.3} parent=5 // pred_check
      %p3052 = pneg %p3051
    $region54: #{double_conv_forward.3} parent=5 // pred_check_branch
      %3054 = sbr.rel (%p3052) target = $region56
    $region55: #{double_conv_forward.3} parent=5 // pred_region
      %s3055 = ssub.s32 %s14, 2
      // Predicated region
      $region57: #{double_conv_forward.3} parent=55 // pred_check
        %p3056 = pneg %p220
      $region58: #{double_conv_forward.3} parent=55 // pred_check_branch
        %3058 = sbr.rel (%p3056) target = $region60
      $region59: #{double_conv_forward.3} parent=55 // pred_region
        %s3059 = smul.u32 16, %s26
        %p3060 = scmp.lt.s32.totalorder %s25, 1
        %s3061 = scalar_select %p3060, %s25, 1
        %p3062 = scmp.lt.s32.totalorder %s3059, 15
        %s3063 = scalar_select %p3062, %s3059, 15
        %s3064 = smul.addr %s3063, 2
        %s3065 = smul.addr %s3061, 32
        %s3066 = sadd.s32 %s3064, %s3065
        %s3067 = smul.addr %s3066, 4
        %s3068 = scalar_lea.vmem %s6, %s3067
      $region60: #{double_conv_forward.3} parent=55 // pred_fallthru
        _
      // Predicated region
      $region61: #{double_conv_forward.3} parent=55 // pred_check
        %p3069 = pneg %p248
      $region62: #{double_conv_forward.3} parent=55 // pred_check_branch
        %3071 = sbr.rel (%p3069) target = $region64
      $region63: #{double_conv_forward.3} parent=55 // pred_region
        %p3072 = scmp.lt.s32.totalorder %s25, 1
        %s3073 = scalar_select %p3072, %s25, 1
        %p3074 = scmp.lt.s32.totalorder %s26, 0
        %s3075 = scalar_select %p3074, %s26, 0
        %s3076 = sadd.s32 %s3075, %s3073
        %s3077 = smul.addr %s3076, 2
        %s3078 = scalar_lea.vmem %s7, %s3077
      $region64: #{double_conv_forward.3} parent=55 // pred_fallthru
        _
    $region56: #{double_conv_forward.3} parent=5 // pred_fallthru
      _
  $region6: #{double_conv_forward.3} parent=0 // loop_footer
    %s18 = sadd.s32 1, %s14
  $region7: #{double_conv_forward.3} parent=0 // loop_footer_branch
    %13 = sbr.rel target = $region3
  $region8: #{double_conv_forward.3} parent=0 // loop_exit
    _

// kernel: double_conv_forward.4
$region0: #{double_conv_forward.4}
  #allocation0 [shape = 'u32[]', space=smem, size = 0x4, offset = 0x4, fixed_abs, tag = 'smem constant byte address 0x4 - core index']
  #allocation1 [shape = 'u32[72,128]{1,0:T(1,128)}', space=vmem, size = 0x9000, scoped, tag = 'internal scratch']
  #allocation2 [shape = 'f32[18,32,128]{2,1,0:T(8,128)}', space=vmem, size = 0x48000, scoped, tag = 'scratch operand']
  %s0 = inlined_call_operand.vmem [shape: bf16[2,16,16,128], index: 0, kind: input, shape index: {}, may-alias: {0,1,2}]
  %s1 = inlined_call_operand.vmem [shape: bf16[2,16,16,128], index: 1, kind: input, shape index: {}, may-alias: {0,1,2}]
  %s2 = inlined_call_operand.vmem [shape: bf16[2,16,16,128], index: 2, kind: input, shape index: {}, may-alias: {0,1,2}]
  %s3 = inlined_call_operand.vmem [shape: bf16[9,128,128], index: 3, kind: input, shape index: {}]
  %s4 = inlined_call_operand.vmem [shape: f32[1,128], index: 4, kind: input, shape index: {}]
  %s5 = inlined_call_operand.vmem [shape: f32[1,128], index: 5, kind: input, shape index: {}]
  %s6 = inlined_call_operand.vmem [shape: f32[2,16,16,128], index: 6, kind: output, shape index: {0}]
  %s7 = inlined_call_operand.vmem [shape: f32[2,1,2,128], index: 7, kind: output, shape index: {1}]
  %8 = xla_tuple %s6, %s7
  %s9 = sld [smem:[#allocation0]]
  $region65: #{double_conv_forward.4} parent=0
    _
  %s11 = ssub.s32 1, %s9
  %s12 = scalar_select 0, %s11, %s9
  loop: start=0, step=1, limit=4
  $region2: #{double_conv_forward.4} parent=0 // loop_pre_header
    _
  $region3: #{double_conv_forward.4} parent=0 // loop_header
    %s14 = sphi 0, %s18
    %p15 = scmp.ge.s32.totalorder %s14, 4
    %s21 = sphi 0, %s33
    %s22 = sphi 0, %s29
    %s23 = sphi 0, %s21
    %s24 = sphi 0, %s22
    %s25 = sphi 0, %s23
    %s26 = sphi 0, %s24
    %s38 = sphi 0, %s40
    %s41 = sphi 0, %s38
    %s42 = sphi 0, %s41
    %s58 = sphi 0, %s42
    %s74 = sphi 0, %s76
    %s77 = sphi 0, %s74
    %s78 = sphi 0, %s77
    %s94 = sphi 0, %s78
    %s110 = sphi 0, %s112
    %s113 = sphi 0, %s110
    %s114 = sphi 0, %s113
    %s130 = sphi 0, %s114
    %s134 = sphi 0, %s134
    %s136 = sphi 0, %s134
    %s137 = sphi 0, %s136
    %s151 = sphi 0, %s137
    %s155 = sphi 0, %s155
    %s157 = sphi 0, %s155
    %s158 = sphi 0, %s157
    %s172 = sphi 0, %s158
    %s176 = sphi 0, %s176
    %s178 = sphi 0, %s176
    %s179 = sphi 0, %s178
    %s193 = sphi 0, %s179
    %s201 = sphi 0, %s203
    %s204 = sphi 0, %s201
    %s205 = sphi 0, %s204
    %s221 = sphi 0, %s205
    %s229 = sphi 0, %s231
    %s232 = sphi 0, %s229
    %s233 = sphi 0, %s232
    %s249 = sphi 0, %s233
  $region4: #{double_conv_forward.4} parent=0 // loop_header_branch
    %17 = sbr.rel (%p15) target = $region8
  $region5: #{double_conv_forward.4} parent=0 // loop_body
    %s19 = ssub.s32 %s14, 1
    %s20 = ssub.s32 %s14, 2
    %s27 = sadd.s32 1, %s22
    %p28 = scmp.ge.s32.totalorder %s27, 1
    %s29 = scalar_select %p28, 0, %s27
    %s30 = sadd.s32 1, %s21
    %s31 = scalar_select %p28, %s30, %s21
    %p32 = scmp.ge.s32.totalorder %s31, 2
    %s33 = scalar_select %p32, 0, %s31
    %s34 = ssub.s32 %s21, %s33
    %s35 = ssub.s32 %s22, %s29
    %s36 = sor.u32 %s34, %s35
    %p37 = scmp.eq.s32.totalorder %s36, 0
    %s39 = sadd.s32 %s38, 1
    %s40 = scalar_select %p37, %s38, %s39
    %p43 = pneg %p37
    %p44 = scmp.eq.s32.totalorder %s14, 1
    %p45 = por %p43, %p44
    %p46 = scmp.ne.s32.totalorder %s38, %s41
    %p47 = scmp.eq.s32.totalorder %s14, 0
    %p48 = por %p46, %p47
    %p49 = scmp.ne.s32.totalorder %s38, %s41
    %p50 = scmp.eq.s32.totalorder %s19, 1
    %p51 = por %p49, %p50
    %p52 = scmp.ne.s32.totalorder %s41, %s42
    %p53 = scmp.eq.s32.totalorder %s19, 0
    %p54 = por %p52, %p53
    %p55 = scmp.ne.s32.totalorder %s41, %s42
    %p56 = scmp.eq.s32.totalorder %s20, 1
    %p57 = por %p55, %p56
    %p59 = scmp.ne.s32.totalorder %s42, %s58
    %p60 = scmp.eq.s32.totalorder %s20, 0
    %p61 = por %p59, %p60
    %s62 = smul.u32 %s22, 16
    %s63 = ssub.s32 %s62, 1
    %p64 = scmp.gt.s32.totalorder %s63, 0
    %s65 = scalar_select %p64, %s63, 0
    %s66 = smul.u32 %s29, 16
    %s67 = ssub.s32 %s66, 1
    %p68 = scmp.gt.s32.totalorder %s67, 0
    %s69 = scalar_select %p68, %s67, 0
    %s70 = ssub.s32 %s21, %s33
    %s71 = ssub.s32 %s65, %s69
    %s72 = sor.u32 %s70, %s71
    %p73 = scmp.eq.s32.totalorder %s72, 0
    %s75 = sadd.s32 %s74, 1
    %s76 = scalar_select %p73, %s74, %s75
    %p79 = pneg %p73
    %p80 = scmp.eq.s32.totalorder %s14, 1
    %p81 = por %p79, %p80
    %p82 = scmp.ne.s32.totalorder %s74, %s77
    %p83 = scmp.eq.s32.totalorder %s14, 0
    %p84 = por %p82, %p83
    %p85 = scmp.ne.s32.totalorder %s74, %s77
    %p86 = scmp.eq.s32.totalorder %s19, 1
    %p87 = por %p85, %p86
    %p88 = scmp.ne.s32.totalorder %s77, %s78
    %p89 = scmp.eq.s32.totalorder %s19, 0
    %p90 = por %p88, %p89
    %p91 = scmp.ne.s32.totalorder %s77, %s78
    %p92 = scmp.eq.s32.totalorder %s20, 1
    %p93 = por %p91, %p92
    %p95 = scmp.ne.s32.totalorder %s78, %s94
    %p96 = scmp.eq.s32.totalorder %s20, 0
    %p97 = por %p95, %p96
    %s98 = sadd.s32 %s22, 1
    %s99 = smul.u32 %s98, 16
    %p100 = scmp.lt.s32.totalorder %s99, 15
    %s101 = scalar_select %p100, %s99, 15
    %s102 = sadd.s32 %s29, 1
    %s103 = smul.u32 %s102, 16
    %p104 = scmp.lt.s32.totalorder %s103, 15
    %s105 = scalar_select %p104, %s103, 15
    %s106 = ssub.s32 %s21, %s33
    %s107 = ssub.s32 %s101, %s105
    %s108 = sor.u32 %s106, %s107
    %p109 = scmp.eq.s32.totalorder %s108, 0
    %s111 = sadd.s32 %s110, 1
    %s112 = scalar_select %p109, %s110, %s111
    %p115 = pneg %p109
    %p116 = scmp.eq.s32.totalorder %s14, 1
    %p117 = por %p115, %p116
    %p118 = scmp.ne.s32.totalorder %s110, %s113
    %p119 = scmp.eq.s32.totalorder %s14, 0
    %p120 = por %p118, %p119
    %p121 = scmp.ne.s32.totalorder %s110, %s113
    %p122 = scmp.eq.s32.totalorder %s19, 1
    %p123 = por %p121, %p122
    %p124 = scmp.ne.s32.totalorder %s113, %s114
    %p125 = scmp.eq.s32.totalorder %s19, 0
    %p126 = por %p124, %p125
    %p127 = scmp.ne.s32.totalorder %s113, %s114
    %p128 = scmp.eq.s32.totalorder %s20, 1
    %p129 = por %p127, %p128
    %p131 = scmp.ne.s32.totalorder %s114, %s130
    %p132 = scmp.eq.s32.totalorder %s20, 0
    %p133 = por %p131, %p132
    %s135 = sadd.s32 %s134, 1
    %p138 = scmp.eq.s32.totalorder %s14, 1
    %p139 = scmp.ne.s32.totalorder %s134, %s136
    %p140 = scmp.eq.s32.totalorder %s14, 0
    %p141 = por %p139, %p140
    %p142 = scmp.ne.s32.totalorder %s134, %s136
    %p143 = scmp.eq.s32.totalorder %s19, 1
    %p144 = por %p142, %p143
    %p145 = scmp.ne.s32.totalorder %s136, %s137
    %p146 = scmp.eq.s32.totalorder %s19, 0
    %p147 = por %p145, %p146
    %p148 = scmp.ne.s32.totalorder %s136, %s137
    %p149 = scmp.eq.s32.totalorder %s20, 1
    %p150 = por %p148, %p149
    %p152 = scmp.ne.s32.totalorder %s137, %s151
    %p153 = scmp.eq.s32.totalorder %s20, 0
    %p154 = por %p152, %p153
    %s156 = sadd.s32 %s155, 1
    %p159 = scmp.eq.s32.totalorder %s14, 1
    %p160 = scmp.ne.s32.totalorder %s155, %s157
    %p161 = scmp.eq.s32.totalorder %s14, 0
    %p162 = por %p160, %p161
    %p163 = scmp.ne.s32.totalorder %s155, %s157
    %p164 = scmp.eq.s32.totalorder %s19, 1
    %p165 = por %p163, %p164
    %p166 = scmp.ne.s32.totalorder %s157, %s158
    %p167 = scmp.eq.s32.totalorder %s19, 0
    %p168 = por %p166, %p167
    %p169 = scmp.ne.s32.totalorder %s157, %s158
    %p170 = scmp.eq.s32.totalorder %s20, 1
    %p171 = por %p169, %p170
    %p173 = scmp.ne.s32.totalorder %s158, %s172
    %p174 = scmp.eq.s32.totalorder %s20, 0
    %p175 = por %p173, %p174
    %s177 = sadd.s32 %s176, 1
    %p180 = scmp.eq.s32.totalorder %s14, 1
    %p181 = scmp.ne.s32.totalorder %s176, %s178
    %p182 = scmp.eq.s32.totalorder %s14, 0
    %p183 = por %p181, %p182
    %p184 = scmp.ne.s32.totalorder %s176, %s178
    %p185 = scmp.eq.s32.totalorder %s19, 1
    %p186 = por %p184, %p185
    %p187 = scmp.ne.s32.totalorder %s178, %s179
    %p188 = scmp.eq.s32.totalorder %s19, 0
    %p189 = por %p187, %p188
    %p190 = scmp.ne.s32.totalorder %s178, %s179
    %p191 = scmp.eq.s32.totalorder %s20, 1
    %p192 = por %p190, %p191
    %p194 = scmp.ne.s32.totalorder %s179, %s193
    %p195 = scmp.eq.s32.totalorder %s20, 0
    %p196 = por %p194, %p195
    %s197 = ssub.s32 %s21, %s33
    %s198 = ssub.s32 %s22, %s29
    %s199 = sor.u32 %s197, %s198
    %p200 = scmp.eq.s32.totalorder %s199, 0
    %s202 = sadd.s32 %s201, 1
    %s203 = scalar_select %p200, %s201, %s202
    %p206 = pneg %p200
    %p207 = scmp.eq.s32.totalorder %s14, 1
    %p208 = por %p206, %p207
    %p209 = scmp.ne.s32.totalorder %s201, %s204
    %p210 = scmp.eq.s32.totalorder %s14, 0
    %p211 = por %p209, %p210
    %p212 = scmp.ne.s32.totalorder %s201, %s204
    %p213 = scmp.eq.s32.totalorder %s19, 1
    %p214 = por %p212, %p213
    %p215 = scmp.ne.s32.totalorder %s204, %s205
    %p216 = scmp.eq.s32.totalorder %s19, 0
    %p217 = por %p215, %p216
    %p218 = scmp.ne.s32.totalorder %s204, %s205
    %p219 = scmp.eq.s32.totalorder %s20, 1
    %p220 = por %p218, %p219
    %p222 = scmp.ne.s32.totalorder %s205, %s221
    %p223 = scmp.eq.s32.totalorder %s20, 0
    %p224 = por %p222, %p223
    %s225 = ssub.s32 %s21, %s33
    %s226 = ssub.s32 %s22, %s29
    %s227 = sor.u32 %s225, %s226
    %p228 = scmp.eq.s32.totalorder %s227, 0
    %s230 = sadd.s32 %s229, 1
    %s231 = scalar_select %p228, %s229, %s230
    %p234 = pneg %p228
    %p235 = scmp.eq.s32.totalorder %s14, 1
    %p236 = por %p234, %p235
    %p237 = scmp.ne.s32.totalorder %s229, %s232
    %p238 = scmp.eq.s32.totalorder %s14, 0
    %p239 = por %p237, %p238
    %p240 = scmp.ne.s32.totalorder %s229, %s232
    %p241 = scmp.eq.s32.totalorder %s19, 1
    %p242 = por %p240, %p241
    %p243 = scmp.ne.s32.totalorder %s232, %s233
    %p244 = scmp.eq.s32.totalorder %s19, 0
    %p245 = por %p243, %p244
    %p246 = scmp.ne.s32.totalorder %s232, %s233
    %p247 = scmp.eq.s32.totalorder %s20, 1
    %p248 = por %p246, %p247
    %p250 = scmp.ne.s32.totalorder %s233, %s249
    %p251 = scmp.eq.s32.totalorder %s20, 0
    %p252 = por %p250, %p251
    %p253 = scmp.le.s32.totalorder 1, %s14
    %p254 = scmp.lt.s32.totalorder %s14, 3
    %p255 = pnand %p253, %p254
    %p256 = pneg %p255
    // Predicated region
    $region9: #{double_conv_forward.4} parent=5 // pred_check
      _
    $region10: #{double_conv_forward.4} parent=5 // pred_check_branch
      %258 = sbr.rel (%p255) target = $region12
    $region11: #{double_conv_forward.4} parent=5 // pred_region
      %s259 = ssub.s32 %s14, 1
      // Predicated region
      $region13: #{double_conv_forward.4} parent=11 // pred_check
        %p260 = pneg %p147
      $region14: #{double_conv_forward.4} parent=11 // pred_check_branch
        %262 = sbr.rel (%p260) target = $region16
      $region15: #{double_conv_forward.4} parent=11 // pred_region
        _
      $region16: #{double_conv_forward.4} parent=11 // pred_fallthru
        _
      // Predicated region
      $region17: #{double_conv_forward.4} parent=11 // pred_check
        %p263 = pneg %p168
      $region18: #{double_conv_forward.4} parent=11 // pred_check_branch
        %265 = sbr.rel (%p263) target = $region20
      $region19: #{double_conv_forward.4} parent=11 // pred_region
        _
      $region20: #{double_conv_forward.4} parent=11 // pred_fallthru
        _
      // Predicated region
      $region21: #{double_conv_forward.4} parent=11 // pred_check
        %p266 = pneg %p189
      $region22: #{double_conv_forward.4} parent=11 // pred_check_branch
        %268 = sbr.rel (%p266) target = $region24
      $region23: #{double_conv_forward.4} parent=11 // pred_region
        _
      $region24: #{double_conv_forward.4} parent=11 // pred_fallthru
        _
    $region12: #{double_conv_forward.4} parent=5 // pred_fallthru
      _
    %p269 = scmp.lt.s32.totalorder %s14, 2
    // Predicated region
    $region25: #{double_conv_forward.4} parent=5 // pred_check
      %p270 = pneg %p269
    $region26: #{double_conv_forward.4} parent=5 // pred_check_branch
      %272 = sbr.rel (%p270) target = $region28
    $region27: #{double_conv_forward.4} parent=5 // pred_region
      // Predicated region
      $region29: #{double_conv_forward.4} parent=27 // pred_check
        %p273 = pneg %p48
      $region30: #{double_conv_forward.4} parent=27 // pred_check_branch
        %275 = sbr.rel (%p273) target = $region32
      $region31: #{double_conv_forward.4} parent=27 // pred_region
        %s276 = smul.u32 16, %s22
        %p277 = scmp.lt.s32.totalorder %s21, 1
        %s278 = scalar_select %p277, %s21, 1
        %p279 = scmp.lt.s32.totalorder %s276, 15
        %s280 = scalar_select %p279, %s276, 15
        %s281 = smul.addr %s280, 2
        %s282 = smul.addr %s278, 32
        %s283 = sadd.s32 %s281, %s282
        %s284 = smul.addr %s283, 4
        %s285 = scalar_lea.vmem %s0, %s284
        %s286 = smul.u32 16, %s22
      $region32: #{double_conv_forward.4} parent=27 // pred_fallthru
        _
      // Predicated region
      $region33: #{double_conv_forward.4} parent=27 // pred_check
        %p287 = pneg %p84
      $region34: #{double_conv_forward.4} parent=27 // pred_check_branch
        %289 = sbr.rel (%p287) target = $region36
      $region35: #{double_conv_forward.4} parent=27 // pred_region
        %s290 = smul.u32 %s22, 16
        %s291 = ssub.s32 %s290, 1
        %p292 = scmp.gt.s32.totalorder %s291, 0
        %s293 = scalar_select %p292, %s291, 0
        %p294 = scmp.lt.s32.totalorder %s21, 1
        %s295 = scalar_select %p294, %s21, 1
        %p296 = scmp.lt.s32.totalorder %s293, 15
        %s297 = scalar_select %p296, %s293, 15
        %s298 = smul.addr %s297, 2
        %s299 = smul.addr %s295, 32
        %s300 = sadd.s32 %s298, %s299
        %s301 = smul.addr %s300, 4
        %s302 = scalar_lea.vmem %s1, %s301
        %s303 = smul.u32 %s22, 16
        %s304 = ssub.s32 %s303, 1
        %p305 = scmp.gt.s32.totalorder %s304, 0
        %s306 = scalar_select %p305, %s304, 0
      $region36: #{double_conv_forward.4} parent=27 // pred_fallthru
        _
      // Predicated region
      $region37: #{double_conv_forward.4} parent=27 // pred_check
        %p307 = pneg %p120
      $region38: #{double_conv_forward.4} parent=27 // pred_check_branch
        %309 = sbr.rel (%p307) target = $region40
      $region39: #{double_conv_forward.4} parent=27 // pred_region
        %s310 = sadd.s32 %s22, 1
        %s311 = smul.u32 %s310, 16
        %p312 = scmp.lt.s32.totalorder %s311, 15
        %s313 = scalar_select %p312, %s311, 15
        %p314 = scmp.lt.s32.totalorder %s21, 1
        %s315 = scalar_select %p314, %s21, 1
        %p316 = scmp.lt.s32.totalorder %s313, 15
        %s317 = scalar_select %p316, %s313, 15
        %s318 = smul.addr %s317, 2
        %s319 = smul.addr %s315, 32
        %s320 = sadd.s32 %s318, %s319
        %s321 = smul.addr %s320, 4
        %s322 = scalar_lea.vmem %s2, %s321
        %s323 = sadd.s32 %s22, 1
        %s324 = smul.u32 %s323, 16
        %p325 = scmp.lt.s32.totalorder %s324, 15
        %s326 = scalar_select %p325, %s324, 15
      $region40: #{double_conv_forward.4} parent=27 // pred_fallthru
        _
    $region28: #{double_conv_forward.4} parent=5 // pred_fallthru
      _
    %p327 = scmp.le.s32.totalorder 1, %s14
    %p328 = scmp.lt.s32.totalorder %s14, 3
    %p329 = pnand %p327, %p328
    %p330 = pneg %p329
    // Predicated region
    $region41: #{double_conv_forward.4} parent=5 // pred_check
      _
    $region42: #{double_conv_forward.4} parent=5 // pred_check_branch
      %332 = sbr.rel (%p329) target = $region44
    $region43: #{double_conv_forward.4} parent=5 // pred_region
      %s333 = ssub.s32 %s14, 1
      %s334 = smul.u32 16, %s24
      %p335 = scmp.lt.s32.totalorder %s23, 1
      %s336 = scalar_select %p335, %s23, 1
      %p337 = scmp.lt.s32.totalorder %s334, 15
      %s338 = scalar_select %p337, %s334, 15
      %s339 = smul.addr %s338, 2
      %s340 = smul.addr %s336, 32
      %s341 = sadd.s32 %s339, %s340
      %s342 = smul.addr %s341, 4
      %s343 = scalar_lea.vmem %s0, %s342
      %p344 = pneg %p54
      %p345 = pneg %p51
      %s346 = smul.u32 %s24, 16
      %s347 = ssub.s32 %s346, 1
      %p348 = scmp.gt.s32.totalorder %s347, 0
      %s349 = scalar_select %p348, %s347, 0
      %p350 = scmp.lt.s32.totalorder %s23, 1
      %s351 = scalar_select %p350, %s23, 1
      %p352 = scmp.lt.s32.totalorder %s349, 15
      %s353 = scalar_select %p352, %s349, 15
      %s354 = smul.addr %s353, 2
      %s355 = smul.addr %s351, 32
      %s356 = sadd.s32 %s354, %s355
      %s357 = smul.addr %s356, 4
      %s358 = scalar_lea.vmem %s1, %s357
      %p359 = pneg %p90
      %p360 = pneg %p87
      %s361 = sadd.s32 %s24, 1
      %s362 = smul.u32 %s361, 16
      %p363 = scmp.lt.s32.totalorder %s362, 15
      %s364 = scalar_select %p363, %s362, 15
      %p365 = scmp.lt.s32.totalorder %s23, 1
      %s366 = scalar_select %p365, %s23, 1
      %p367 = scmp.lt.s32.totalorder %s364, 15
      %s368 = scalar_select %p367, %s364, 15
      %s369 = smul.addr %s368, 2
      %s370 = smul.addr %s366, 32
      %s371 = sadd.s32 %s369, %s370
      %s372 = smul.addr %s371, 4
      %s373 = scalar_lea.vmem %s2, %s372
      %p374 = pneg %p126
      %p375 = pneg %p123
      %p376 = pneg %p147
      %p377 = pneg %p144
      %p378 = pneg %p168
      %p379 = pneg %p165
      %p380 = pneg %p189
      %p381 = pneg %p186
      %p382 = pneg %p217
      %p383 = pneg %p214
      %s384 = smul.u32 16, %s24
      %p385 = scmp.lt.s32.totalorder %s23, 1
      %s386 = scalar_select %p385, %s23, 1
      %p387 = scmp.lt.s32.totalorder %s384, 15
      %s388 = scalar_select %p387, %s384, 15
      %s389 = smul.addr %s388, 2
      %s390 = smul.addr %s386, 32
      %s391 = sadd.s32 %s389, %s390
      %s392 = smul.addr %s391, 8
      %s393 = scalar_lea.vmem %s6, %s392
      %p394 = pneg %p245
      %p395 = pneg %p242
      %p396 = scmp.lt.s32.totalorder %s23, 1
      %s397 = scalar_select %p396, %s23, 1
      %p398 = scmp.lt.s32.totalorder %s24, 0
      %s399 = scalar_select %p398, %s24, 0
      %s400 = sadd.s32 %s399, %s397
      %s401 = smul.addr %s400, 2
      %s402 = scalar_lea.vmem %s7, %s401
      %s403 = smul.u32 16, %s24
      %p404 = scmp.lt.s32.totalorder %s23, 1
      %s405 = scalar_select %p404, %s23, 1
      %p406 = scmp.lt.s32.totalorder %s403, 15
      %s407 = scalar_select %p406, %s403, 15
      %s408 = smul.addr %s407, 2
      %s409 = smul.addr %s405, 32
      %s410 = sadd.s32 %s408, %s409
      %s411 = smul.addr %s410, 4
      %s412 = scalar_lea.vmem %s0, %s411
      %s413 = smul.u32 16, %s24
      %s414 = smul.u32 %s24, 16
      %s415 = ssub.s32 %s414, 1
      %p416 = scmp.gt.s32.totalorder %s415, 0
      %s417 = scalar_select %p416, %s415, 0
      %p418 = scmp.lt.s32.totalorder %s23, 1
      %s419 = scalar_select %p418, %s23, 1
      %p420 = scmp.lt.s32.totalorder %s417, 15
      %s421 = scalar_select %p420, %s417, 15
      %s422 = smul.addr %s421, 2
      %s423 = smul.addr %s419, 32
      %s424 = sadd.s32 %s422, %s423
      %s425 = smul.addr %s424, 4
      %s426 = scalar_lea.vmem %s1, %s425
      %s427 = smul.u32 %s24, 16
      %s428 = ssub.s32 %s427, 1
      %p429 = scmp.gt.s32.totalorder %s428, 0
      %s430 = scalar_select %p429, %s428, 0
      %s431 = sadd.s32 %s24, 1
      %s432 = smul.u32 %s431, 16
      %p433 = scmp.lt.s32.totalorder %s432, 15
      %s434 = scalar_select %p433, %s432, 15
      %p435 = scmp.lt.s32.totalorder %s23, 1
      %s436 = scalar_select %p435, %s23, 1
      %p437 = scmp.lt.s32.totalorder %s434, 15
      %s438 = scalar_select %p437, %s434, 15
      %s439 = smul.addr %s438, 2
      %s440 = smul.addr %s436, 32
      %s441 = sadd.s32 %s439, %s440
      %s442 = smul.addr %s441, 4
      %s443 = scalar_lea.vmem %s2, %s442
      %s444 = sadd.s32 %s24, 1
      %s445 = smul.u32 %s444, 16
      %p446 = scmp.lt.s32.totalorder %s445, 15
      %s447 = scalar_select %p446, %s445, 15
      %s448 = smul.u32 16, %s24
      %p449 = scmp.lt.s32.totalorder %s23, 1
      %s450 = scalar_select %p449, %s23, 1
      %p451 = scmp.lt.s32.totalorder %s448, 15
      %s452 = scalar_select %p451, %s448, 15
      %s453 = smul.addr %s452, 2
      %s454 = smul.addr %s450, 32
      %s455 = sadd.s32 %s453, %s454
      %s456 = smul.addr %s455, 8
      %s457 = scalar_lea.vmem %s6, %s456
      %s458 = smul.u32 16, %s24
      %p459 = scmp.lt.s32.totalorder %s23, 1
      %s460 = scalar_select %p459, %s23, 1
      %p461 = scmp.lt.s32.totalorder %s24, 0
      %s462 = scalar_select %p461, %s24, 0
      %s463 = sadd.s32 %s462, %s460
      %s464 = smul.addr %s463, 2
      %s465 = scalar_lea.vmem %s7, %s464
      %v466 = vld [vmem:[%s4] sm:$0x1]
      %v467 = vld [vmem:[%s5] sm:$0x1]
      %468 = vst [vmem:[#allocation2] sm:$0xff] 0.0
      %469 = vst [vmem:[#allocation2 + $0x8] sm:$0xff] 0.0
      %470 = vst [vmem:[#allocation2 + $0x10] sm:$0xff] 0.0
      %471 = vst [vmem:[#allocation2 + $0x18] sm:$0xff] 0.0
      %472 = vst [vmem:[#allocation2 + $0x20] sm:$0xff] 0.0
      %473 = vst [vmem:[#allocation2 + $0x28] sm:$0xff] 0.0
      %474 = vst [vmem:[#allocation2 + $0x30] sm:$0xff] 0.0
      %475 = vst [vmem:[#allocation2 + $0x38] sm:$0xff] 0.0
      %476 = vst [vmem:[#allocation2 + $0x40] sm:$0xff] 0.0
      %477 = vst [vmem:[#allocation2 + $0x48] sm:$0xff] 0.0
      %478 = vst [vmem:[#allocation2 + $0x50] sm:$0xff] 0.0
      %479 = vst [vmem:[#allocation2 + $0x58] sm:$0xff] 0.0
      %480 = vst [vmem:[#allocation2 + $0x60] sm:$0xff] 0.0
      %481 = vst [vmem:[#allocation2 + $0x68] sm:$0xff] 0.0
      %482 = vst [vmem:[#allocation2 + $0x70] sm:$0xff] 0.0
      %483 = vst [vmem:[#allocation2 + $0x78] sm:$0xff] 0.0
      %484 = vst [vmem:[#allocation2 + $0x80] sm:$0xff] 0.0
      %485 = vst [vmem:[#allocation2 + $0x88] sm:$0xff] 0.0
      %486 = vst [vmem:[#allocation2 + $0x90] sm:$0xff] 0.0
      %487 = vst [vmem:[#allocation2 + $0x98] sm:$0xff] 0.0
      %488 = vst [vmem:[#allocation2 + $0xa0] sm:$0xff] 0.0
      %489 = vst [vmem:[#allocation2 + $0xa8] sm:$0xff] 0.0
      %490 = vst [vmem:[#allocation2 + $0xb0] sm:$0xff] 0.0
      %491 = vst [vmem:[#allocation2 + $0xb8] sm:$0xff] 0.0
      %492 = vst [vmem:[#allocation2 + $0xc0] sm:$0xff] 0.0
      %493 = vst [vmem:[#allocation2 + $0xc8] sm:$0xff] 0.0
      %494 = vst [vmem:[#allocation2 + $0xd0] sm:$0xff] 0.0
      %495 = vst [vmem:[#allocation2 + $0xd8] sm:$0xff] 0.0
      %496 = vst [vmem:[#allocation2 + $0xe0] sm:$0xff] 0.0
      %497 = vst [vmem:[#allocation2 + $0xe8] sm:$0xff] 0.0
      %498 = vst [vmem:[#allocation2 + $0xf0] sm:$0xff] 0.0
      %499 = vst [vmem:[#allocation2 + $0xf8] sm:$0xff] 0.0
      %500 = vst [vmem:[#allocation2 + $0x100] sm:$0xff] 0.0
      %501 = vst [vmem:[#allocation2 + $0x108] sm:$0xff] 0.0
      %502 = vst [vmem:[#allocation2 + $0x110] sm:$0xff] 0.0
      %503 = vst [vmem:[#allocation2 + $0x118] sm:$0xff] 0.0
      %504 = vst [vmem:[#allocation2 + $0x120] sm:$0xff] 0.0
      %505 = vst [vmem:[#allocation2 + $0x128] sm:$0xff] 0.0
      %506 = vst [vmem:[#allocation2 + $0x130] sm:$0xff] 0.0
      %507 = vst [vmem:[#allocation2 + $0x138] sm:$0xff] 0.0
      %508 = vst [vmem:[#allocation2 + $0x140] sm:$0xff] 0.0
      %509 = vst [vmem:[#allocation2 + $0x148] sm:$0xff] 0.0
      %510 = vst [vmem:[#allocation2 + $0x150] sm:$0xff] 0.0
      %511 = vst [vmem:[#allocation2 + $0x158] sm:$0xff] 0.0
      %512 = vst [vmem:[#allocation2 + $0x160] sm:$0xff] 0.0
      %513 = vst [vmem:[#allocation2 + $0x168] sm:$0xff] 0.0
      %514 = vst [vmem:[#allocation2 + $0x170] sm:$0xff] 0.0
      %515 = vst [vmem:[#allocation2 + $0x178] sm:$0xff] 0.0
      %516 = vst [vmem:[#allocation2 + $0x180] sm:$0xff] 0.0
      %517 = vst [vmem:[#allocation2 + $0x188] sm:$0xff] 0.0
      %518 = vst [vmem:[#allocation2 + $0x190] sm:$0xff] 0.0
      %519 = vst [vmem:[#allocation2 + $0x198] sm:$0xff] 0.0
      %520 = vst [vmem:[#allocation2 + $0x1a0] sm:$0xff] 0.0
      %521 = vst [vmem:[#allocation2 + $0x1a8] sm:$0xff] 0.0
      %522 = vst [vmem:[#allocation2 + $0x1b0] sm:$0xff] 0.0
      %523 = vst [vmem:[#allocation2 + $0x1b8] sm:$0xff] 0.0
      %524 = vst [vmem:[#allocation2 + $0x1c0] sm:$0xff] 0.0
      %525 = vst [vmem:[#allocation2 + $0x1c8] sm:$0xff] 0.0
      %526 = vst [vmem:[#allocation2 + $0x1d0] sm:$0xff] 0.0
      %527 = vst [vmem:[#allocation2 + $0x1d8] sm:$0xff] 0.0
      %528 = vst [vmem:[#allocation2 + $0x1e0] sm:$0xff] 0.0
      %529 = vst [vmem:[#allocation2 + $0x1e8] sm:$0xff] 0.0
      %530 = vst [vmem:[#allocation2 + $0x1f0] sm:$0xff] 0.0
      %531 = vst [vmem:[#allocation2 + $0x1f8] sm:$0xff] 0.0
      %532 = vst [vmem:[#allocation2 + $0x200] sm:$0xff] 0.0
      %533 = vst [vmem:[#allocation2 + $0x208] sm:$0xff] 0.0
      %534 = vst [vmem:[#allocation2 + $0x210] sm:$0xff] 0.0
      %535 = vst [vmem:[#allocation2 + $0x218] sm:$0xff] 0.0
      %536 = vst [vmem:[#allocation2 + $0x220] sm:$0xff] 0.0
      %537 = vst [vmem:[#allocation2 + $0x228] sm:$0xff] 0.0
      %538 = vst [vmem:[#allocation2 + $0x230] sm:$0xff] 0.0
      %539 = vst [vmem:[#allocation2 + $0x238] sm:$0xff] 0.0
      %v540 = vld [vmem:[%s412] sm:$0xf]
      %v541 = vld [vmem:[%s412 + $0x4] sm:$0xf]
      %v542 = vld [vmem:[%s412 + $0x8] sm:$0xf]
      %v543 = vld [vmem:[%s412 + $0xc] sm:$0xf]
      %v544 = vld [vmem:[%s412 + $0x10] sm:$0xf]
      %v545 = vld [vmem:[%s412 + $0x14] sm:$0xf]
      %v546 = vld [vmem:[%s412 + $0x18] sm:$0xf]
      %v547 = vld [vmem:[%s412 + $0x1c] sm:$0xf]
      %v548 = vld [vmem:[%s412 + $0x20] sm:$0xf]
      %v549 = vld [vmem:[%s412 + $0x24] sm:$0xf]
      %v550 = vld [vmem:[%s412 + $0x28] sm:$0xf]
      %v551 = vld [vmem:[%s412 + $0x2c] sm:$0xf]
      %v552 = vld [vmem:[%s412 + $0x30] sm:$0xf]
      %v553 = vld [vmem:[%s412 + $0x34] sm:$0xf]
      %v554 = vld [vmem:[%s412 + $0x38] sm:$0xf]
      %v555 = vld [vmem:[%s412 + $0x3c] sm:$0xf]
      %v556 = vld [vmem:[%s412 + $0x40] sm:$0xf]
      %v557 = vld [vmem:[%s412 + $0x44] sm:$0xf]
      %v558 = vld [vmem:[%s412 + $0x48] sm:$0xf]
      %v559 = vld [vmem:[%s412 + $0x4c] sm:$0xf]
      %v560 = vld [vmem:[%s412 + $0x50] sm:$0xf]
      %v561 = vld [vmem:[%s412 + $0x54] sm:$0xf]
      %v562 = vld [vmem:[%s412 + $0x58] sm:$0xf]
      %v563 = vld [vmem:[%s412 + $0x5c] sm:$0xf]
      %v564 = vld [vmem:[%s412 + $0x60] sm:$0xf]
      %v565 = vld [vmem:[%s412 + $0x64] sm:$0xf]
      %v566 = vld [vmem:[%s412 + $0x68] sm:$0xf]
      %v567 = vld [vmem:[%s412 + $0x6c] sm:$0xf]
      %v568 = vld [vmem:[%s412 + $0x70] sm:$0xf]
      %v569 = vld [vmem:[%s412 + $0x74] sm:$0xf]
      %v570 = vld [vmem:[%s412 + $0x78] sm:$0xf]
      %v571 = vld [vmem:[%s412 + $0x7c] sm:$0xf]
      %v572 = vunpack.c.l.bf16 %v540
      %v573 = vunpack.c.l.bf16 %v541
      %v574 = vunpack.c.l.bf16 %v542
      %v575 = vunpack.c.l.bf16 %v543
      %v576 = vunpack.c.l.bf16 %v544
      %v577 = vunpack.c.l.bf16 %v545
      %v578 = vunpack.c.l.bf16 %v546
      %v579 = vunpack.c.l.bf16 %v547
      %v580 = vunpack.c.l.bf16 %v548
      %v581 = vunpack.c.l.bf16 %v549
      %v582 = vunpack.c.l.bf16 %v550
      %v583 = vunpack.c.l.bf16 %v551
      %v584 = vunpack.c.l.bf16 %v552
      %v585 = vunpack.c.l.bf16 %v553
      %v586 = vunpack.c.l.bf16 %v554
      %v587 = vunpack.c.l.bf16 %v555
      %v588 = vunpack.c.l.bf16 %v556
      %v589 = vunpack.c.l.bf16 %v557
      %v590 = vunpack.c.l.bf16 %v558
      %v591 = vunpack.c.l.bf16 %v559
      %v592 = vunpack.c.l.bf16 %v560
      %v593 = vunpack.c.l.bf16 %v561
      %v594 = vunpack.c.l.bf16 %v562
      %v595 = vunpack.c.l.bf16 %v563
      %v596 = vunpack.c.l.bf16 %v564
      %v597 = vunpack.c.l.bf16 %v565
      %v598 = vunpack.c.l.bf16 %v566
      %v599 = vunpack.c.l.bf16 %v567
      %v600 = vunpack.c.l.bf16 %v568
      %v601 = vunpack.c.l.bf16 %v569
      %v602 = vunpack.c.l.bf16 %v570
      %v603 = vunpack.c.l.bf16 %v571
      %v605 = vperm.slane %v466, 0
      %v607 = vmul.f32 %v572, %v605
      %v608 = vmul.f32 %v573, %v605
      %v609 = vmul.f32 %v574, %v605
      %v610 = vmul.f32 %v575, %v605
      %v611 = vmul.f32 %v576, %v605
      %v612 = vmul.f32 %v577, %v605
      %v613 = vmul.f32 %v578, %v605
      %v614 = vmul.f32 %v579, %v605
      %v615 = vmul.f32 %v580, %v605
      %v616 = vmul.f32 %v581, %v605
      %v617 = vmul.f32 %v582, %v605
      %v618 = vmul.f32 %v583, %v605
      %v619 = vmul.f32 %v584, %v605
      %v620 = vmul.f32 %v585, %v605
      %v621 = vmul.f32 %v586, %v605
      %v622 = vmul.f32 %v587, %v605
      %v623 = vmul.f32 %v588, %v605
      %v624 = vmul.f32 %v589, %v605
      %v625 = vmul.f32 %v590, %v605
      %v626 = vmul.f32 %v591, %v605
      %v627 = vmul.f32 %v592, %v605
      %v628 = vmul.f32 %v593, %v605
      %v629 = vmul.f32 %v594, %v605
      %v630 = vmul.f32 %v595, %v605
      %v631 = vmul.f32 %v596, %v605
      %v632 = vmul.f32 %v597, %v605
      %v633 = vmul.f32 %v598, %v605
      %v634 = vmul.f32 %v599, %v605
      %v635 = vmul.f32 %v600, %v605
      %v636 = vmul.f32 %v601, %v605
      %v637 = vmul.f32 %v602, %v605
      %v638 = vmul.f32 %v603, %v605
      %v640 = vperm.slane %v467, 0
      %v642 = vadd.f32 %v607, %v640
      %v643 = vadd.f32 %v608, %v640
      %v644 = vadd.f32 %v609, %v640
      %v645 = vadd.f32 %v610, %v640
      %v646 = vadd.f32 %v611, %v640
      %v647 = vadd.f32 %v612, %v640
      %v648 = vadd.f32 %v613, %v640
      %v649 = vadd.f32 %v614, %v640
      %v650 = vadd.f32 %v615, %v640
      %v651 = vadd.f32 %v616, %v640
      %v652 = vadd.f32 %v617, %v640
      %v653 = vadd.f32 %v618, %v640
      %v654 = vadd.f32 %v619, %v640
      %v655 = vadd.f32 %v620, %v640
      %v656 = vadd.f32 %v621, %v640
      %v657 = vadd.f32 %v622, %v640
      %v658 = vadd.f32 %v623, %v640
      %v659 = vadd.f32 %v624, %v640
      %v660 = vadd.f32 %v625, %v640
      %v661 = vadd.f32 %v626, %v640
      %v662 = vadd.f32 %v627, %v640
      %v663 = vadd.f32 %v628, %v640
      %v664 = vadd.f32 %v629, %v640
      %v665 = vadd.f32 %v630, %v640
      %v666 = vadd.f32 %v631, %v640
      %v667 = vadd.f32 %v632, %v640
      %v668 = vadd.f32 %v633, %v640
      %v669 = vadd.f32 %v634, %v640
      %v670 = vadd.f32 %v635, %v640
      %v671 = vadd.f32 %v636, %v640
      %v672 = vadd.f32 %v637, %v640
      %v673 = vadd.f32 %v638, %v640
      %v674 = vmax.f32 %v642, 0.0
      %v675 = vmax.f32 %v643, 0.0
      %v676 = vmax.f32 %v644, 0.0
      %v677 = vmax.f32 %v645, 0.0
      %v678 = vmax.f32 %v646, 0.0
      %v679 = vmax.f32 %v647, 0.0
      %v680 = vmax.f32 %v648, 0.0
      %v681 = vmax.f32 %v649, 0.0
      %v682 = vmax.f32 %v650, 0.0
      %v683 = vmax.f32 %v651, 0.0
      %v684 = vmax.f32 %v652, 0.0
      %v685 = vmax.f32 %v653, 0.0
      %v686 = vmax.f32 %v654, 0.0
      %v687 = vmax.f32 %v655, 0.0
      %v688 = vmax.f32 %v656, 0.0
      %v689 = vmax.f32 %v657, 0.0
      %v690 = vmax.f32 %v658, 0.0
      %v691 = vmax.f32 %v659, 0.0
      %v692 = vmax.f32 %v660, 0.0
      %v693 = vmax.f32 %v661, 0.0
      %v694 = vmax.f32 %v662, 0.0
      %v695 = vmax.f32 %v663, 0.0
      %v696 = vmax.f32 %v664, 0.0
      %v697 = vmax.f32 %v665, 0.0
      %v698 = vmax.f32 %v666, 0.0
      %v699 = vmax.f32 %v667, 0.0
      %v700 = vmax.f32 %v668, 0.0
      %v701 = vmax.f32 %v669, 0.0
      %v702 = vmax.f32 %v670, 0.0
      %v703 = vmax.f32 %v671, 0.0
      %v704 = vmax.f32 %v672, 0.0
      %v705 = vmax.f32 %v673, 0.0
      %s706 = scalar_lea.vmem [#allocation2], 32
      %707 = vst [vmem:[%s706 + $0x8] sm:$0xff] %v674
      %708 = vst [vmem:[%s706 + $0x10] sm:$0xff] %v675
      %709 = vst [vmem:[%s706 + $0x28] sm:$0xff] %v676
      %710 = vst [vmem:[%s706 + $0x30] sm:$0xff] %v677
      %711 = vst [vmem:[%s706 + $0x48] sm:$0xff] %v678
      %712 = vst [vmem:[%s706 + $0x50] sm:$0xff] %v679
      %713 = vst [vmem:[%s706 + $0x68] sm:$0xff] %v680
      %714 = vst [vmem:[%s706 + $0x70] sm:$0xff] %v681
      %715 = vst [vmem:[%s706 + $0x88] sm:$0xff] %v682
      %716 = vst [vmem:[%s706 + $0x90] sm:$0xff] %v683
      %717 = vst [vmem:[%s706 + $0xa8] sm:$0xff] %v684
      %718 = vst [vmem:[%s706 + $0xb0] sm:$0xff] %v685
      %719 = vst [vmem:[%s706 + $0xc8] sm:$0xff] %v686
      %720 = vst [vmem:[%s706 + $0xd0] sm:$0xff] %v687
      %721 = vst [vmem:[%s706 + $0xe8] sm:$0xff] %v688
      %722 = vst [vmem:[%s706 + $0xf0] sm:$0xff] %v689
      %723 = vst [vmem:[%s706 + $0x108] sm:$0xff] %v690
      %724 = vst [vmem:[%s706 + $0x110] sm:$0xff] %v691
      %725 = vst [vmem:[%s706 + $0x128] sm:$0xff] %v692
      %726 = vst [vmem:[%s706 + $0x130] sm:$0xff] %v693
      %727 = vst [vmem:[%s706 + $0x148] sm:$0xff] %v694
      %728 = vst [vmem:[%s706 + $0x150] sm:$0xff] %v695
      %729 = vst [vmem:[%s706 + $0x168] sm:$0xff] %v696
      %730 = vst [vmem:[%s706 + $0x170] sm:$0xff] %v697
      %731 = vst [vmem:[%s706 + $0x188] sm:$0xff] %v698
      %732 = vst [vmem:[%s706 + $0x190] sm:$0xff] %v699
      %733 = vst [vmem:[%s706 + $0x1a8] sm:$0xff] %v700
      %734 = vst [vmem:[%s706 + $0x1b0] sm:$0xff] %v701
      %735 = vst [vmem:[%s706 + $0x1c8] sm:$0xff] %v702
      %736 = vst [vmem:[%s706 + $0x1d0] sm:$0xff] %v703
      %737 = vst [vmem:[%s706 + $0x1e8] sm:$0xff] %v704
      %738 = vst [vmem:[%s706 + $0x1f0] sm:$0xff] %v705
      %p739 = scmp.gt.s32.totalorder %s24, 0
      %v740 = vld [vmem:[%s426] sm:$0xf]
      %v741 = vld [vmem:[%s426 + $0x4] sm:$0xf]
      %v742 = vunpack.c.l.bf16 %v740
      %v743 = vunpack.c.l.bf16 %v741
      %v744 = vmul.f32 %v742, %v605
      %v745 = vmul.f32 %v743, %v605
      %v746 = vadd.f32 %v744, %v640
      %v747 = vadd.f32 %v745, %v640
      %v748 = vmax.f32 %v746, 0.0
      %v749 = vmax.f32 %v747, 0.0
      %s750 = scalar_select %p739, 1, 0
      %v751 = vstv %s750
      %vm752 = vcmp.eq.s32.totalorder %v751, 1
      %v753 = vsel %vm752, %v748, 0.0
      %v754 = vsel %vm752, %v749, 0.0
      %755 = vst [vmem:[#allocation2 + $0x8] sm:$0xff] %v753
      %756 = vst [vmem:[#allocation2 + $0x10] sm:$0xff] %v754
      %p757 = scmp.lt.s32.totalorder %s24, 0
      %v758 = vld [vmem:[%s443] sm:$0xf]
      %v759 = vld [vmem:[%s443 + $0x4] sm:$0xf]
      %v760 = vunpack.c.l.bf16 %v758
      %v761 = vunpack.c.l.bf16 %v759
      %v762 = vmul.f32 %v760, %v605
      %v763 = vmul.f32 %v761, %v605
      %v764 = vadd.f32 %v762, %v640
      %v765 = vadd.f32 %v763, %v640
      %v766 = vmax.f32 %v764, 0.0
      %v767 = vmax.f32 %v765, 0.0
      %s768 = scalar_select %p757, 1, 0
      %v769 = vstv %s768
      %vm770 = vcmp.eq.s32.totalorder %v769, 1
      %v771 = vsel %vm770, %v766, 0.0
      %v772 = vsel %vm770, %v767, 0.0
      %s773 = scalar_lea.vmem [#allocation2], 544
      %774 = vst [vmem:[%s773 + $0x8] sm:$0xff] %v771
      %775 = vst [vmem:[%s773 + $0x10] sm:$0xff] %v772
      %v776 = vld [vmem:[#allocation2] sm:$0xff]
      %v777 = vld [vmem:[#allocation2 + $0x8] sm:$0xff]
      %v778 = vld [vmem:[#allocation2 + $0x10] sm:$0xff]
      %v779 = vld [vmem:[#allocation2 + $0x18] sm:$0xff]
      %v780 = vld [vmem:[#allocation2 + $0x20] sm:$0xff]
      %v781 = vld [vmem:[#allocation2 + $0x28] sm:$0xff]
      %v782 = vld [vmem:[#allocation2 + $0x30] sm:$0xff]
      %v783 = vld [vmem:[#allocation2 + $0x38] sm:$0xff]
      %v784 = vld [vmem:[#allocation2 + $0x40] sm:$0xff]
      %v785 = vld [vmem:[#allocation2 + $0x48] sm:$0xff]
      %v786 = vld [vmem:[#allocation2 + $0x50] sm:$0xff]
      %v787 = vld [vmem:[#allocation2 + $0x58] sm:$0xff]
      %v788 = vld [vmem:[#allocation2 + $0x60] sm:$0xff]
      %v789 = vld [vmem:[#allocation2 + $0x68] sm:$0xff]
      %v790 = vld [vmem:[#allocation2 + $0x70] sm:$0xff]
      %v791 = vld [vmem:[#allocation2 + $0x78] sm:$0xff]
      %v792 = vld [vmem:[#allocation2 + $0x80] sm:$0xff]
      %v793 = vld [vmem:[#allocation2 + $0x88] sm:$0xff]
      %v794 = vld [vmem:[#allocation2 + $0x90] sm:$0xff]
      %v795 = vld [vmem:[#allocation2 + $0x98] sm:$0xff]
      %v796 = vld [vmem:[#allocation2 + $0xa0] sm:$0xff]
      %v797 = vld [vmem:[#allocation2 + $0xa8] sm:$0xff]
      %v798 = vld [vmem:[#allocation2 + $0xb0] sm:$0xff]
      %v799 = vld [vmem:[#allocation2 + $0xb8] sm:$0xff]
      %v800 = vld [vmem:[#allocation2 + $0xc0] sm:$0xff]
      %v801 = vld [vmem:[#allocation2 + $0xc8] sm:$0xff]
      %v802 = vld [vmem:[#allocation2 + $0xd0] sm:$0xff]
      %v803 = vld [vmem:[#allocation2 + $0xd8] sm:$0xff]
      %v804 = vld [vmem:[#allocation2 + $0xe0] sm:$0xff]
      %v805 = vld [vmem:[#allocation2 + $0xe8] sm:$0xff]
      %v806 = vld [vmem:[#allocation2 + $0xf0] sm:$0xff]
      %v807 = vld [vmem:[#allocation2 + $0xf8] sm:$0xff]
      %v808 = vld [vmem:[#allocation2 + $0x100] sm:$0xff]
      %v809 = vld [vmem:[#allocation2 + $0x108] sm:$0xff]
      %v810 = vld [vmem:[#allocation2 + $0x110] sm:$0xff]
      %v811 = vld [vmem:[#allocation2 + $0x118] sm:$0xff]
      %v812 = vld [vmem:[#allocation2 + $0x120] sm:$0xff]
      %v813 = vld [vmem:[#allocation2 + $0x128] sm:$0xff]
      %v814 = vld [vmem:[#allocation2 + $0x130] sm:$0xff]
      %v815 = vld [vmem:[#allocation2 + $0x138] sm:$0xff]
      %v816 = vld [vmem:[#allocation2 + $0x140] sm:$0xff]
      %v817 = vld [vmem:[#allocation2 + $0x148] sm:$0xff]
      %v818 = vld [vmem:[#allocation2 + $0x150] sm:$0xff]
      %v819 = vld [vmem:[#allocation2 + $0x158] sm:$0xff]
      %v820 = vld [vmem:[#allocation2 + $0x160] sm:$0xff]
      %v821 = vld [vmem:[#allocation2 + $0x168] sm:$0xff]
      %v822 = vld [vmem:[#allocation2 + $0x170] sm:$0xff]
      %v823 = vld [vmem:[#allocation2 + $0x178] sm:$0xff]
      %v824 = vld [vmem:[#allocation2 + $0x180] sm:$0xff]
      %v825 = vld [vmem:[#allocation2 + $0x188] sm:$0xff]
      %v826 = vld [vmem:[#allocation2 + $0x190] sm:$0xff]
      %v827 = vld [vmem:[#allocation2 + $0x198] sm:$0xff]
      %v828 = vld [vmem:[#allocation2 + $0x1a0] sm:$0xff]
      %v829 = vld [vmem:[#allocation2 + $0x1a8] sm:$0xff]
      %v830 = vld [vmem:[#allocation2 + $0x1b0] sm:$0xff]
      %v831 = vld [vmem:[#allocation2 + $0x1b8] sm:$0xff]
      %v832 = vld [vmem:[#allocation2 + $0x1c0] sm:$0xff]
      %v833 = vld [vmem:[#allocation2 + $0x1c8] sm:$0xff]
      %v834 = vld [vmem:[#allocation2 + $0x1d0] sm:$0xff]
      %v835 = vld [vmem:[#allocation2 + $0x1d8] sm:$0xff]
      %v836 = vld [vmem:[#allocation2 + $0x1e0] sm:$0xff]
      %v837 = vld [vmem:[#allocation2 + $0x1e8] sm:$0xff]
      %v838 = vld [vmem:[#allocation2 + $0x1f0] sm:$0xff]
      %v839 = vld [vmem:[#allocation2 + $0x1f8] sm:$0xff]
      %v840 = vld [vmem:[#allocation2 + $0x200] sm:$0xff]
      %v841 = vld [vmem:[#allocation2 + $0x208] sm:$0xff]
      %v842 = vld [vmem:[#allocation2 + $0x210] sm:$0xff]
      %v843 = vld [vmem:[#allocation2 + $0x218] sm:$0xff]
      %v844 = vld [vmem:[#allocation2 + $0x220] sm:$0xff]
      %v845 = vld [vmem:[#allocation2 + $0x228] sm:$0xff]
      %v846 = vld [vmem:[#allocation2 + $0x230] sm:$0xff]
      %v847 = vld [vmem:[#allocation2 + $0x238] sm:$0xff]
      %v848 = vpack.c.bf16 %v776, %v776
      %v849 = vpack.c.bf16 %v777, %v777
      %v850 = vpack.c.bf16 %v778, %v778
      %v851 = vpack.c.bf16 %v779, %v779
      %v852 = vpack.c.bf16 %v780, %v780
      %v853 = vpack.c.bf16 %v781, %v781
      %v854 = vpack.c.bf16 %v782, %v782
      %v855 = vpack.c.bf16 %v783, %v783
      %v856 = vpack.c.bf16 %v784, %v784
      %v857 = vpack.c.bf16 %v785, %v785
      %v858 = vpack.c.bf16 %v786, %v786
      %v859 = vpack.c.bf16 %v787, %v787
      %v860 = vpack.c.bf16 %v788, %v788
      %v861 = vpack.c.bf16 %v789, %v789
      %v862 = vpack.c.bf16 %v790, %v790
      %v863 = vpack.c.bf16 %v791, %v791
      %v864 = vpack.c.bf16 %v792, %v792
      %v865 = vpack.c.bf16 %v793, %v793
      %v866 = vpack.c.bf16 %v794, %v794
      %v867 = vpack.c.bf16 %v795, %v795
      %v868 = vpack.c.bf16 %v796, %v796
      %v869 = vpack.c.bf16 %v797, %v797
      %v870 = vpack.c.bf16 %v798, %v798
      %v871 = vpack.c.bf16 %v799, %v799
      %v872 = vpack.c.bf16 %v800, %v800
      %v873 = vpack.c.bf16 %v801, %v801
      %v874 = vpack.c.bf16 %v802, %v802
      %v875 = vpack.c.bf16 %v803, %v803
      %v876 = vpack.c.bf16 %v804, %v804
      %v877 = vpack.c.bf16 %v805, %v805
      %v878 = vpack.c.bf16 %v806, %v806
      %v879 = vpack.c.bf16 %v807, %v807
      %v880 = vpack.c.bf16 %v808, %v808
      %v881 = vpack.c.bf16 %v809, %v809
      %v882 = vpack.c.bf16 %v810, %v810
      %v883 = vpack.c.bf16 %v811, %v811
      %v884 = vpack.c.bf16 %v812, %v812
      %v885 = vpack.c.bf16 %v813, %v813
      %v886 = vpack.c.bf16 %v814, %v814
      %v887 = vpack.c.bf16 %v815, %v815
      %v888 = vpack.c.bf16 %v816, %v816
      %v889 = vpack.c.bf16 %v817, %v817
      %v890 = vpack.c.bf16 %v818, %v818
      %v891 = vpack.c.bf16 %v819, %v819
      %v892 = vpack.c.bf16 %v820, %v820
      %v893 = vpack.c.bf16 %v821, %v821
      %v894 = vpack.c.bf16 %v822, %v822
      %v895 = vpack.c.bf16 %v823, %v823
      %v896 = vpack.c.bf16 %v824, %v824
      %v897 = vpack.c.bf16 %v825, %v825
      %v898 = vpack.c.bf16 %v826, %v826
      %v899 = vpack.c.bf16 %v827, %v827
      %v900 = vpack.c.bf16 %v828, %v828
      %v901 = vpack.c.bf16 %v829, %v829
      %v902 = vpack.c.bf16 %v830, %v830
      %v903 = vpack.c.bf16 %v831, %v831
      %v904 = vpack.c.bf16 %v832, %v832
      %v905 = vpack.c.bf16 %v833, %v833
      %v906 = vpack.c.bf16 %v834, %v834
      %v907 = vpack.c.bf16 %v835, %v835
      %v908 = vpack.c.bf16 %v836, %v836
      %v909 = vpack.c.bf16 %v837, %v837
      %v910 = vpack.c.bf16 %v838, %v838
      %v911 = vpack.c.bf16 %v839, %v839
      %v912 = vpack.c.bf16 %v840, %v840
      %v913 = vpack.c.bf16 %v841, %v841
      %v914 = vpack.c.bf16 %v842, %v842
      %v915 = vpack.c.bf16 %v843, %v843
      %v916 = vpack.c.bf16 %v844, %v844
      %v917 = vpack.c.bf16 %v845, %v845
      %v918 = vpack.c.bf16 %v846, %v846
      %v919 = vpack.c.bf16 %v847, %v847
      %vm920 = vsmask.f32 256
      %vm921 = vsmask.f32 4368
      %vm922 = vmor %vm920, %vm921
      %v924 = vshrl.u32 %v848, 16
      %v926 = vrot.slane %v924, 7
      %v927 = vrot.slane %v926, 4
      %v929 = vshrl.u32 %v849, 16
      %v931 = vrot.slane %v929, 7
      %v932 = vshll.u32 %v849, 16
      %v934 = vor.u32 %v931, %v932
      %v935 = vsel %vm922, %v927, %v934
      %v936 = vrot.slane %v931, 4
      %v938 = vshrl.u32 %v850, 16
      %v940 = vrot.slane %v938, 7
      %v941 = vshll.u32 %v850, 16
      %v943 = vor.u32 %v940, %v941
      %v944 = vsel %vm922, %v936, %v943
      %v946 = vshrl.u32 %v852, 16
      %v948 = vrot.slane %v946, 7
      %v949 = vrot.slane %v948, 4
      %v951 = vshrl.u32 %v853, 16
      %v953 = vrot.slane %v951, 7
      %v954 = vshll.u32 %v853, 16
      %v956 = vor.u32 %v953, %v954
      %v957 = vsel %vm922, %v949, %v956
      %v958 = vrot.slane %v953, 4
      %v960 = vshrl.u32 %v854, 16
      %v962 = vrot.slane %v960, 7
      %v963 = vshll.u32 %v854, 16
      %v965 = vor.u32 %v962, %v963
      %v966 = vsel %vm922, %v958, %v965
      %v968 = vshrl.u32 %v856, 16
      %v970 = vrot.slane %v968, 7
      %v971 = vrot.slane %v970, 4
      %v973 = vshrl.u32 %v857, 16
      %v975 = vrot.slane %v973, 7
      %v976 = vshll.u32 %v857, 16
      %v978 = vor.u32 %v975, %v976
      %v979 = vsel %vm922, %v971, %v978
      %v980 = vrot.slane %v975, 4
      %v982 = vshrl.u32 %v858, 16
      %v984 = vrot.slane %v982, 7
      %v985 = vshll.u32 %v858, 16
      %v987 = vor.u32 %v984, %v985
      %v988 = vsel %vm922, %v980, %v987
      %v990 = vshrl.u32 %v860, 16
      %v992 = vrot.slane %v990, 7
      %v993 = vrot.slane %v992, 4
      %v995 = vshrl.u32 %v861, 16
      %v997 = vrot.slane %v995, 7
      %v998 = vshll.u32 %v861, 16
      %v1000 = vor.u32 %v997, %v998
      %v1001 = vsel %vm922, %v993, %v1000
      %v1002 = vrot.slane %v997, 4
      %v1004 = vshrl.u32 %v862, 16
      %v1006 = vrot.slane %v1004, 7
      %v1007 = vshll.u32 %v862, 16
      %v1009 = vor.u32 %v1006, %v1007
      %v1010 = vsel %vm922, %v1002, %v1009
      %v1012 = vshrl.u32 %v864, 16
      %v1014 = vrot.slane %v1012, 7
      %v1015 = vrot.slane %v1014, 4
      %v1017 = vshrl.u32 %v865, 16
      %v1019 = vrot.slane %v1017, 7
      %v1020 = vshll.u32 %v865, 16
      %v1022 = vor.u32 %v1019, %v1020
      %v1023 = vsel %vm922, %v1015, %v1022
      %v1024 = vrot.slane %v1019, 4
      %v1026 = vshrl.u32 %v866, 16
      %v1028 = vrot.slane %v1026, 7
      %v1029 = vshll.u32 %v866, 16
      %v1031 = vor.u32 %v1028, %v1029
      %v1032 = vsel %vm922, %v1024, %v1031
      %v1034 = vshrl.u32 %v868, 16
      %v1036 = vrot.slane %v1034, 7
      %v1037 = vrot.slane %v1036, 4
      %v1039 = vshrl.u32 %v869, 16
      %v1041 = vrot.slane %v1039, 7
      %v1042 = vshll.u32 %v869, 16
      %v1044 = vor.u32 %v1041, %v1042
      %v1045 = vsel %vm922, %v1037, %v1044
      %v1046 = vrot.slane %v1041, 4
      %v1048 = vshrl.u32 %v870, 16
      %v1050 = vrot.slane %v1048, 7
      %v1051 = vshll.u32 %v870, 16
      %v1053 = vor.u32 %v1050, %v1051
      %v1054 = vsel %vm922, %v1046, %v1053
      %v1056 = vshrl.u32 %v872, 16
      %v1058 = vrot.slane %v1056, 7
      %v1059 = vrot.slane %v1058, 4
      %v1061 = vshrl.u32 %v873, 16
      %v1063 = vrot.slane %v1061, 7
      %v1064 = vshll.u32 %v873, 16
      %v1066 = vor.u32 %v1063, %v1064
      %v1067 = vsel %vm922, %v1059, %v1066
      %v1068 = vrot.slane %v1063, 4
      %v1070 = vshrl.u32 %v874, 16
      %v1072 = vrot.slane %v1070, 7
      %v1073 = vshll.u32 %v874, 16
      %v1075 = vor.u32 %v1072, %v1073
      %v1076 = vsel %vm922, %v1068, %v1075
      %v1078 = vshrl.u32 %v876, 16
      %v1080 = vrot.slane %v1078, 7
      %v1081 = vrot.slane %v1080, 4
      %v1083 = vshrl.u32 %v877, 16
      %v1085 = vrot.slane %v1083, 7
      %v1086 = vshll.u32 %v877, 16
      %v1088 = vor.u32 %v1085, %v1086
      %v1089 = vsel %vm922, %v1081, %v1088
      %v1090 = vrot.slane %v1085, 4
      %v1092 = vshrl.u32 %v878, 16
      %v1094 = vrot.slane %v1092, 7
      %v1095 = vshll.u32 %v878, 16
      %v1097 = vor.u32 %v1094, %v1095
      %v1098 = vsel %vm922, %v1090, %v1097
      %v1100 = vshrl.u32 %v880, 16
      %v1102 = vrot.slane %v1100, 7
      %v1103 = vrot.slane %v1102, 4
      %v1105 = vshrl.u32 %v881, 16
      %v1107 = vrot.slane %v1105, 7
      %v1108 = vshll.u32 %v881, 16
      %v1110 = vor.u32 %v1107, %v1108
      %v1111 = vsel %vm922, %v1103, %v1110
      %v1112 = vrot.slane %v1107, 4
      %v1114 = vshrl.u32 %v882, 16
      %v1116 = vrot.slane %v1114, 7
      %v1117 = vshll.u32 %v882, 16
      %v1119 = vor.u32 %v1116, %v1117
      %v1120 = vsel %vm922, %v1112, %v1119
      %v1122 = vshrl.u32 %v884, 16
      %v1124 = vrot.slane %v1122, 7
      %v1125 = vrot.slane %v1124, 4
      %v1127 = vshrl.u32 %v885, 16
      %v1129 = vrot.slane %v1127, 7
      %v1130 = vshll.u32 %v885, 16
      %v1132 = vor.u32 %v1129, %v1130
      %v1133 = vsel %vm922, %v1125, %v1132
      %v1134 = vrot.slane %v1129, 4
      %v1136 = vshrl.u32 %v886, 16
      %v1138 = vrot.slane %v1136, 7
      %v1139 = vshll.u32 %v886, 16
      %v1141 = vor.u32 %v1138, %v1139
      %v1142 = vsel %vm922, %v1134, %v1141
      %v1144 = vshrl.u32 %v888, 16
      %v1146 = vrot.slane %v1144, 7
      %v1147 = vrot.slane %v1146, 4
      %v1149 = vshrl.u32 %v889, 16
      %v1151 = vrot.slane %v1149, 7
      %v1152 = vshll.u32 %v889, 16
      %v1154 = vor.u32 %v1151, %v1152
      %v1155 = vsel %vm922, %v1147, %v1154
      %v1156 = vrot.slane %v1151, 4
      %v1158 = vshrl.u32 %v890, 16
      %v1160 = vrot.slane %v1158, 7
      %v1161 = vshll.u32 %v890, 16
      %v1163 = vor.u32 %v1160, %v1161
      %v1164 = vsel %vm922, %v1156, %v1163
      %v1166 = vshrl.u32 %v892, 16
      %v1168 = vrot.slane %v1166, 7
      %v1169 = vrot.slane %v1168, 4
      %v1171 = vshrl.u32 %v893, 16
      %v1173 = vrot.slane %v1171, 7
      %v1174 = vshll.u32 %v893, 16
      %v1176 = vor.u32 %v1173, %v1174
      %v1177 = vsel %vm922, %v1169, %v1176
      %v1178 = vrot.slane %v1173, 4
      %v1180 = vshrl.u32 %v894, 16
      %v1182 = vrot.slane %v1180, 7
      %v1183 = vshll.u32 %v894, 16
      %v1185 = vor.u32 %v1182, %v1183
      %v1186 = vsel %vm922, %v1178, %v1185
      %v1188 = vshrl.u32 %v896, 16
      %v1190 = vrot.slane %v1188, 7
      %v1191 = vrot.slane %v1190, 4
      %v1193 = vshrl.u32 %v897, 16
      %v1195 = vrot.slane %v1193, 7
      %v1196 = vshll.u32 %v897, 16
      %v1198 = vor.u32 %v1195, %v1196
      %v1199 = vsel %vm922, %v1191, %v1198
      %v1200 = vrot.slane %v1195, 4
      %v1202 = vshrl.u32 %v898, 16
      %v1204 = vrot.slane %v1202, 7
      %v1205 = vshll.u32 %v898, 16
      %v1207 = vor.u32 %v1204, %v1205
      %v1208 = vsel %vm922, %v1200, %v1207
      %v1210 = vshrl.u32 %v900, 16
      %v1212 = vrot.slane %v1210, 7
      %v1213 = vrot.slane %v1212, 4
      %v1215 = vshrl.u32 %v901, 16
      %v1217 = vrot.slane %v1215, 7
      %v1218 = vshll.u32 %v901, 16
      %v1220 = vor.u32 %v1217, %v1218
      %v1221 = vsel %vm922, %v1213, %v1220
      %v1222 = vrot.slane %v1217, 4
      %v1224 = vshrl.u32 %v902, 16
      %v1226 = vrot.slane %v1224, 7
      %v1227 = vshll.u32 %v902, 16
      %v1229 = vor.u32 %v1226, %v1227
      %v1230 = vsel %vm922, %v1222, %v1229
      %v1232 = vshrl.u32 %v904, 16
      %v1234 = vrot.slane %v1232, 7
      %v1235 = vrot.slane %v1234, 4
      %v1237 = vshrl.u32 %v905, 16
      %v1239 = vrot.slane %v1237, 7
      %v1240 = vshll.u32 %v905, 16
      %v1242 = vor.u32 %v1239, %v1240
      %v1243 = vsel %vm922, %v1235, %v1242
      %v1244 = vrot.slane %v1239, 4
      %v1246 = vshrl.u32 %v906, 16
      %v1248 = vrot.slane %v1246, 7
      %v1249 = vshll.u32 %v906, 16
      %v1251 = vor.u32 %v1248, %v1249
      %v1252 = vsel %vm922, %v1244, %v1251
      %v1254 = vshrl.u32 %v908, 16
      %v1256 = vrot.slane %v1254, 7
      %v1257 = vrot.slane %v1256, 4
      %v1259 = vshrl.u32 %v909, 16
      %v1261 = vrot.slane %v1259, 7
      %v1262 = vshll.u32 %v909, 16
      %v1264 = vor.u32 %v1261, %v1262
      %v1265 = vsel %vm922, %v1257, %v1264
      %v1266 = vrot.slane %v1261, 4
      %v1268 = vshrl.u32 %v910, 16
      %v1270 = vrot.slane %v1268, 7
      %v1271 = vshll.u32 %v910, 16
      %v1273 = vor.u32 %v1270, %v1271
      %v1274 = vsel %vm922, %v1266, %v1273
      %v1275 = vld [vmem:[%s3] sm:$0xf]
      %v1276 = vld [vmem:[%s3 + $0x4] sm:$0xf]
      %v1277 = vld [vmem:[%s3 + $0x8] sm:$0xf]
      %v1278 = vld [vmem:[%s3 + $0xc] sm:$0xf]
      %v1279 = vld [vmem:[%s3 + $0x10] sm:$0xf]
      %v1280 = vld [vmem:[%s3 + $0x14] sm:$0xf]
      %v1281 = vld [vmem:[%s3 + $0x18] sm:$0xf]
      %v1282 = vld [vmem:[%s3 + $0x1c] sm:$0xf]
      %v1283 = vld [vmem:[%s3 + $0x20] sm:$0xf]
      %v1284 = vld [vmem:[%s3 + $0x24] sm:$0xf]
      %v1285 = vld [vmem:[%s3 + $0x28] sm:$0xf]
      %v1286 = vld [vmem:[%s3 + $0x2c] sm:$0xf]
      %v1287 = vld [vmem:[%s3 + $0x30] sm:$0xf]
      %v1288 = vld [vmem:[%s3 + $0x34] sm:$0xf]
      %v1289 = vld [vmem:[%s3 + $0x38] sm:$0xf]
      %v1290 = vld [vmem:[%s3 + $0x3c] sm:$0xf]
      %s1291 = scalar_lea.vmem %s3, 64
      %v1292 = vld [vmem:[%s1291] sm:$0xf]
      %v1293 = vld [vmem:[%s1291 + $0x4] sm:$0xf]
      %v1294 = vld [vmem:[%s1291 + $0x8] sm:$0xf]
      %v1295 = vld [vmem:[%s1291 + $0xc] sm:$0xf]
      %v1296 = vld [vmem:[%s1291 + $0x10] sm:$0xf]
      %v1297 = vld [vmem:[%s1291 + $0x14] sm:$0xf]
      %v1298 = vld [vmem:[%s1291 + $0x18] sm:$0xf]
      %v1299 = vld [vmem:[%s1291 + $0x1c] sm:$0xf]
      %v1300 = vld [vmem:[%s1291 + $0x20] sm:$0xf]
      %v1301 = vld [vmem:[%s1291 + $0x24] sm:$0xf]
      %v1302 = vld [vmem:[%s1291 + $0x28] sm:$0xf]
      %v1303 = vld [vmem:[%s1291 + $0x2c] sm:$0xf]
      %v1304 = vld [vmem:[%s1291 + $0x30] sm:$0xf]
      %v1305 = vld [vmem:[%s1291 + $0x34] sm:$0xf]
      %v1306 = vld [vmem:[%s1291 + $0x38] sm:$0xf]
      %v1307 = vld [vmem:[%s1291 + $0x3c] sm:$0xf]
      %v1340 = vunpack.c.l.b16 %v849
      %v1341 = vunpack.c.l.b16 %v850
      %v1342 = vunpack.c.l.b16 %v853
      %v1343 = vunpack.c.l.b16 %v854
      %v1344 = vunpack.c.l.b16 %v857
      %v1345 = vunpack.c.l.b16 %v858
      %v1346 = vunpack.c.l.b16 %v861
      %v1347 = vunpack.c.l.b16 %v862
      %v1348 = vunpack.c.l.b16 %v865
      %v1349 = vunpack.c.l.b16 %v866
      %v1350 = vunpack.c.l.b16 %v869
      %v1351 = vunpack.c.l.b16 %v870
      %v1352 = vunpack.c.l.b16 %v873
      %v1353 = vunpack.c.l.b16 %v874
      %v1354 = vunpack.c.l.b16 %v877
      %v1355 = vunpack.c.l.b16 %v878
      %v1356 = vunpack.c.l.b16 %v881
      %v1357 = vunpack.c.l.b16 %v882
      %v1358 = vunpack.c.l.b16 %v885
      %v1359 = vunpack.c.l.b16 %v886
      %v1360 = vunpack.c.l.b16 %v889
      %v1361 = vunpack.c.l.b16 %v890
      %v1362 = vunpack.c.l.b16 %v893
      %v1363 = vunpack.c.l.b16 %v894
      %v1364 = vunpack.c.l.b16 %v897
      %v1365 = vunpack.c.l.b16 %v898
      %v1366 = vunpack.c.l.b16 %v901
      %v1367 = vunpack.c.l.b16 %v902
      %v1368 = vunpack.c.l.b16 %v905
      %v1369 = vunpack.c.l.b16 %v906
      %v1370 = vunpack.c.l.b16 %v909
      %v1371 = vunpack.c.l.b16 %v910
      %v1372 = vpack.c.b16 %v1341, %v1340
      %v1373 = vpack.c.b16 %v1343, %v1342
      %v1374 = vpack.c.b16 %v1345, %v1344
      %v1375 = vpack.c.b16 %v1347, %v1346
      %v1376 = vpack.c.b16 %v1349, %v1348
      %v1377 = vpack.c.b16 %v1351, %v1350
      %v1378 = vpack.c.b16 %v1353, %v1352
      %v1379 = vpack.c.b16 %v1355, %v1354
      %v1380 = vpack.c.b16 %v1357, %v1356
      %v1381 = vpack.c.b16 %v1359, %v1358
      %v1382 = vpack.c.b16 %v1361, %v1360
      %v1383 = vpack.c.b16 %v1363, %v1362
      %v1384 = vpack.c.b16 %v1365, %v1364
      %v1385 = vpack.c.b16 %v1367, %v1366
      %v1386 = vpack.c.b16 %v1369, %v1368
      %v1387 = vpack.c.b16 %v1371, %v1370
      %v1420 = vunpack.c.l.b16 %v1292
      %v1421 = vunpack.c.l.b16 %v1293
      %v1422 = vunpack.c.l.b16 %v1294
      %v1423 = vunpack.c.l.b16 %v1295
      %v1424 = vunpack.c.l.b16 %v1296
      %v1425 = vunpack.c.l.b16 %v1297
      %v1426 = vunpack.c.l.b16 %v1298
      %v1427 = vunpack.c.l.b16 %v1299
      %v1428 = vunpack.c.l.b16 %v1300
      %v1429 = vunpack.c.l.b16 %v1301
      %v1430 = vunpack.c.l.b16 %v1302
      %v1431 = vunpack.c.l.b16 %v1303
      %v1432 = vunpack.c.l.b16 %v1304
      %v1433 = vunpack.c.l.b16 %v1305
      %v1434 = vunpack.c.l.b16 %v1306
      %v1435 = vunpack.c.l.b16 %v1307
      %v1436 = vpack.c.b16 %v1421, %v1420
      %v1437 = vpack.c.b16 %v1423, %v1422
      %v1438 = vpack.c.b16 %v1425, %v1424
      %v1439 = vpack.c.b16 %v1427, %v1426
      %v1440 = vpack.c.b16 %v1429, %v1428
      %v1441 = vpack.c.b16 %v1431, %v1430
      %v1442 = vpack.c.b16 %v1433, %v1432
      %v1443 = vpack.c.b16 %v1435, %v1434
      %1452 = vmatpush.bf16.msra.mxu0 %v1443
      %1453 = vmatpush.bf16.msra.mxu0 %v1442
      %1454 = vmatpush.bf16.msra.mxu0 %v1441
      %1455 = vmatpush.bf16.msra.mxu0 %v1440
      %1456 = vmatpush.bf16.msra.mxu0 %v1439
      %1457 = vmatpush.bf16.msra.mxu0 %v1438
      %1458 = vmatpush.bf16.msra.mxu0 %v1437
      %1459 = vmatpush.bf16.msra.mxu0 %v1436
      %1460 = vmatmul.bf16.gmra.mxu0 %v1372
      %v1461 = vpop.f32.mrf.mxu0
      %v1462 = vadd.f32 0.0, %v1461
      %v1463 = vpop.f32.mrf.mxu0
      %v1464 = vadd.f32 0.0, %v1463
      %1465 = vmatmul.bf16.gmra.mxu0 %v1373
      %v1466 = vpop.f32.mrf.mxu0
      %v1467 = vadd.f32 0.0, %v1466
      %v1468 = vpop.f32.mrf.mxu0
      %v1469 = vadd.f32 0.0, %v1468
      %1470 = vmatmul.bf16.gmra.mxu0 %v1374
      %v1471 = vpop.f32.mrf.mxu0
      %v1472 = vadd.f32 0.0, %v1471
      %v1473 = vpop.f32.mrf.mxu0
      %v1474 = vadd.f32 0.0, %v1473
      %1475 = vmatmul.bf16.gmra.mxu0 %v1375
      %v1476 = vpop.f32.mrf.mxu0
      %v1477 = vadd.f32 0.0, %v1476
      %v1478 = vpop.f32.mrf.mxu0
      %v1479 = vadd.f32 0.0, %v1478
      %1480 = vmatmul.bf16.gmra.mxu0 %v1376
      %v1481 = vpop.f32.mrf.mxu0
      %v1482 = vadd.f32 0.0, %v1481
      %v1483 = vpop.f32.mrf.mxu0
      %v1484 = vadd.f32 0.0, %v1483
      %1485 = vmatmul.bf16.gmra.mxu0 %v1377
      %v1486 = vpop.f32.mrf.mxu0
      %v1487 = vadd.f32 0.0, %v1486
      %v1488 = vpop.f32.mrf.mxu0
      %v1489 = vadd.f32 0.0, %v1488
      %1490 = vmatmul.bf16.gmra.mxu0 %v1378
      %v1491 = vpop.f32.mrf.mxu0
      %v1492 = vadd.f32 0.0, %v1491
      %v1493 = vpop.f32.mrf.mxu0
      %v1494 = vadd.f32 0.0, %v1493
      %1495 = vmatmul.bf16.gmra.mxu0 %v1379
      %v1496 = vpop.f32.mrf.mxu0
      %v1497 = vadd.f32 0.0, %v1496
      %v1498 = vpop.f32.mrf.mxu0
      %v1499 = vadd.f32 0.0, %v1498
      %1500 = vmatmul.bf16.gmra.mxu0 %v1380
      %v1501 = vpop.f32.mrf.mxu0
      %v1502 = vadd.f32 0.0, %v1501
      %v1503 = vpop.f32.mrf.mxu0
      %v1504 = vadd.f32 0.0, %v1503
      %1505 = vmatmul.bf16.gmra.mxu0 %v1381
      %v1506 = vpop.f32.mrf.mxu0
      %v1507 = vadd.f32 0.0, %v1506
      %v1508 = vpop.f32.mrf.mxu0
      %v1509 = vadd.f32 0.0, %v1508
      %1510 = vmatmul.bf16.gmra.mxu0 %v1382
      %v1511 = vpop.f32.mrf.mxu0
      %v1512 = vadd.f32 0.0, %v1511
      %v1513 = vpop.f32.mrf.mxu0
      %v1514 = vadd.f32 0.0, %v1513
      %1515 = vmatmul.bf16.gmra.mxu0 %v1383
      %v1516 = vpop.f32.mrf.mxu0
      %v1517 = vadd.f32 0.0, %v1516
      %v1518 = vpop.f32.mrf.mxu0
      %v1519 = vadd.f32 0.0, %v1518
      %1520 = vmatmul.bf16.gmra.mxu0 %v1384
      %v1521 = vpop.f32.mrf.mxu0
      %v1522 = vadd.f32 0.0, %v1521
      %v1523 = vpop.f32.mrf.mxu0
      %v1524 = vadd.f32 0.0, %v1523
      %1525 = vmatmul.bf16.gmra.mxu0 %v1385
      %v1526 = vpop.f32.mrf.mxu0
      %v1527 = vadd.f32 0.0, %v1526
      %v1528 = vpop.f32.mrf.mxu0
      %v1529 = vadd.f32 0.0, %v1528
      %1530 = vmatmul.bf16.gmra.mxu0 %v1386
      %v1531 = vpop.f32.mrf.mxu0
      %v1532 = vadd.f32 0.0, %v1531
      %v1533 = vpop.f32.mrf.mxu0
      %v1534 = vadd.f32 0.0, %v1533
      %1535 = vmatmul.bf16.gmra.mxu0 %v1387
      %v1536 = vpop.f32.mrf.mxu0
      %v1537 = vadd.f32 0.0, %v1536
      %v1538 = vpop.f32.mrf.mxu0
      %v1539 = vadd.f32 0.0, %v1538
      %1540 = vdwg.mxu0
      %v1541 = vunpack.c.l.b16 %v935
      %v1542 = vunpack.c.l.b16 %v944
      %v1543 = vunpack.c.l.b16 %v957
      %v1544 = vunpack.c.l.b16 %v966
      %v1545 = vunpack.c.l.b16 %v979
      %v1546 = vunpack.c.l.b16 %v988
      %v1547 = vunpack.c.l.b16 %v1001
      %v1548 = vunpack.c.l.b16 %v1010
      %v1549 = vunpack.c.l.b16 %v1023
      %v1550 = vunpack.c.l.b16 %v1032
      %v1551 = vunpack.c.l.b16 %v1045
      %v1552 = vunpack.c.l.b16 %v1054
      %v1553 = vunpack.c.l.b16 %v1067
      %v1554 = vunpack.c.l.b16 %v1076
      %v1555 = vunpack.c.l.b16 %v1089
      %v1556 = vunpack.c.l.b16 %v1098
      %v1557 = vunpack.c.l.b16 %v1111
      %v1558 = vunpack.c.l.b16 %v1120
      %v1559 = vunpack.c.l.b16 %v1133
      %v1560 = vunpack.c.l.b16 %v1142
      %v1561 = vunpack.c.l.b16 %v1155
      %v1562 = vunpack.c.l.b16 %v1164
      %v1563 = vunpack.c.l.b16 %v1177
      %v1564 = vunpack.c.l.b16 %v1186
      %v1565 = vunpack.c.l.b16 %v1199
      %v1566 = vunpack.c.l.b16 %v1208
      %v1567 = vunpack.c.l.b16 %v1221
      %v1568 = vunpack.c.l.b16 %v1230
      %v1569 = vunpack.c.l.b16 %v1243
      %v1570 = vunpack.c.l.b16 %v1252
      %v1571 = vunpack.c.l.b16 %v1265
      %v1572 = vunpack.c.l.b16 %v1274
      %v1573 = vpack.c.b16 %v1542, %v1541
      %v1574 = vpack.c.b16 %v1544, %v1543
      %v1575 = vpack.c.b16 %v1546, %v1545
      %v1576 = vpack.c.b16 %v1548, %v1547
      %v1577 = vpack.c.b16 %v1550, %v1549
      %v1578 = vpack.c.b16 %v1552, %v1551
      %v1579 = vpack.c.b16 %v1554, %v1553
      %v1580 = vpack.c.b16 %v1556, %v1555
      %v1581 = vpack.c.b16 %v1558, %v1557
      %v1582 = vpack.c.b16 %v1560, %v1559
      %v1583 = vpack.c.b16 %v1562, %v1561
      %v1584 = vpack.c.b16 %v1564, %v1563
      %v1585 = vpack.c.b16 %v1566, %v1565
      %v1586 = vpack.c.b16 %v1568, %v1567
      %v1587 = vpack.c.b16 %v1570, %v1569
      %v1588 = vpack.c.b16 %v1572, %v1571
      %v1621 = vunpack.c.l.b16 %v1275
      %v1622 = vunpack.c.l.b16 %v1276
      %v1623 = vunpack.c.l.b16 %v1277
      %v1624 = vunpack.c.l.b16 %v1278
      %v1625 = vunpack.c.l.b16 %v1279
      %v1626 = vunpack.c.l.b16 %v1280
      %v1627 = vunpack.c.l.b16 %v1281
      %v1628 = vunpack.c.l.b16 %v1282
      %v1629 = vunpack.c.l.b16 %v1283
      %v1630 = vunpack.c.l.b16 %v1284
      %v1631 = vunpack.c.l.b16 %v1285
      %v1632 = vunpack.c.l.b16 %v1286
      %v1633 = vunpack.c.l.b16 %v1287
      %v1634 = vunpack.c.l.b16 %v1288
      %v1635 = vunpack.c.l.b16 %v1289
      %v1636 = vunpack.c.l.b16 %v1290
      %v1637 = vpack.c.b16 %v1622, %v1621
      %v1638 = vpack.c.b16 %v1624, %v1623
      %v1639 = vpack.c.b16 %v1626, %v1625
      %v1640 = vpack.c.b16 %v1628, %v1627
      %v1641 = vpack.c.b16 %v1630, %v1629
      %v1642 = vpack.c.b16 %v1632, %v1631
      %v1643 = vpack.c.b16 %v1634, %v1633
      %v1644 = vpack.c.b16 %v1636, %v1635
      %1653 = vmatpush.bf16.msra.mxu0 %v1644
      %1654 = vmatpush.bf16.msra.mxu0 %v1643
      %1655 = vmatpush.bf16.msra.mxu0 %v1642
      %1656 = vmatpush.bf16.msra.mxu0 %v1641
      %1657 = vmatpush.bf16.msra.mxu0 %v1640
      %1658 = vmatpush.bf16.msra.mxu0 %v1639
      %1659 = vmatpush.bf16.msra.mxu0 %v1638
      %1660 = vmatpush.bf16.msra.mxu0 %v1637
      %1661 = vmatmul.bf16.gmra.mxu0 %v1573
      %v1662 = vpop.f32.mrf.mxu0
      %v1663 = vadd.f32 %v1462, %v1662
      %v1664 = vpop.f32.mrf.mxu0
      %v1665 = vadd.f32 %v1464, %v1664
      %1666 = vmatmul.bf16.gmra.mxu0 %v1574
      %v1667 = vpop.f32.mrf.mxu0
      %v1668 = vadd.f32 %v1467, %v1667
      %v1669 = vpop.f32.mrf.mxu0
      %v1670 = vadd.f32 %v1469, %v1669
      %1671 = vmatmul.bf16.gmra.mxu0 %v1575
      %v1672 = vpop.f32.mrf.mxu0
      %v1673 = vadd.f32 %v1472, %v1672
      %v1674 = vpop.f32.mrf.mxu0
      %v1675 = vadd.f32 %v1474, %v1674
      %1676 = vmatmul.bf16.gmra.mxu0 %v1576
      %v1677 = vpop.f32.mrf.mxu0
      %v1678 = vadd.f32 %v1477, %v1677
      %v1679 = vpop.f32.mrf.mxu0
      %v1680 = vadd.f32 %v1479, %v1679
      %1681 = vmatmul.bf16.gmra.mxu0 %v1577
      %v1682 = vpop.f32.mrf.mxu0
      %v1683 = vadd.f32 %v1482, %v1682
      %v1684 = vpop.f32.mrf.mxu0
      %v1685 = vadd.f32 %v1484, %v1684
      %1686 = vmatmul.bf16.gmra.mxu0 %v1578
      %v1687 = vpop.f32.mrf.mxu0
      %v1688 = vadd.f32 %v1487, %v1687
      %v1689 = vpop.f32.mrf.mxu0
      %v1690 = vadd.f32 %v1489, %v1689
      %1691 = vmatmul.bf16.gmra.mxu0 %v1579
      %v1692 = vpop.f32.mrf.mxu0
      %v1693 = vadd.f32 %v1492, %v1692
      %v1694 = vpop.f32.mrf.mxu0
      %v1695 = vadd.f32 %v1494, %v1694
      %1696 = vmatmul.bf16.gmra.mxu0 %v1580
      %v1697 = vpop.f32.mrf.mxu0
      %v1698 = vadd.f32 %v1497, %v1697
      %v1699 = vpop.f32.mrf.mxu0
      %v1700 = vadd.f32 %v1499, %v1699
      %1701 = vmatmul.bf16.gmra.mxu0 %v1581
      %v1702 = vpop.f32.mrf.mxu0
      %v1703 = vadd.f32 %v1502, %v1702
      %v1704 = vpop.f32.mrf.mxu0
      %v1705 = vadd.f32 %v1504, %v1704
      %1706 = vmatmul.bf16.gmra.mxu0 %v1582
      %v1707 = vpop.f32.mrf.mxu0
      %v1708 = vadd.f32 %v1507, %v1707
      %v1709 = vpop.f32.mrf.mxu0
      %v1710 = vadd.f32 %v1509, %v1709
      %1711 = vmatmul.bf16.gmra.mxu0 %v1583
      %v1712 = vpop.f32.mrf.mxu0
      %v1713 = vadd.f32 %v1512, %v1712
      %v1714 = vpop.f32.mrf.mxu0
      %v1715 = vadd.f32 %v1514, %v1714
      %1716 = vmatmul.bf16.gmra.mxu0 %v1584
      %v1717 = vpop.f32.mrf.mxu0
      %v1718 = vadd.f32 %v1517, %v1717
      %v1719 = vpop.f32.mrf.mxu0
      %v1720 = vadd.f32 %v1519, %v1719
      %1721 = vmatmul.bf16.gmra.mxu0 %v1585
      %v1722 = vpop.f32.mrf.mxu0
      %v1723 = vadd.f32 %v1522, %v1722
      %v1724 = vpop.f32.mrf.mxu0
      %v1725 = vadd.f32 %v1524, %v1724
      %1726 = vmatmul.bf16.gmra.mxu0 %v1586
      %v1727 = vpop.f32.mrf.mxu0
      %v1728 = vadd.f32 %v1527, %v1727
      %v1729 = vpop.f32.mrf.mxu0
      %v1730 = vadd.f32 %v1529, %v1729
      %1731 = vmatmul.bf16.gmra.mxu0 %v1587
      %v1732 = vpop.f32.mrf.mxu0
      %v1733 = vadd.f32 %v1532, %v1732
      %v1734 = vpop.f32.mrf.mxu0
      %v1735 = vadd.f32 %v1534, %v1734
      %1736 = vmatmul.bf16.gmra.mxu0 %v1588
      %v1737 = vpop.f32.mrf.mxu0
      %v1738 = vadd.f32 %v1537, %v1737
      %v1739 = vpop.f32.mrf.mxu0
      %v1740 = vadd.f32 %v1539, %v1739
      %1741 = vdwg.mxu0
      %vm1742 = vsmask.f32 3328
      %vm1743 = vsmask.f32 7440
      %vm1744 = vmor %vm1742, %vm1743
      %v1745 = vrot.slane %v929, 4
      %v1746 = vrot.slane %v932, 5
      %v1747 = vor.u32 %v1745, %v1746
      %v1748 = vrot.slane %v1747, 4
      %v1749 = vrot.slane %v941, 5
      %v1750 = vsel %vm1744, %v1748, %v1749
      %v1751 = vrot.slane %v938, 4
      %v1752 = vor.u32 %v1751, %v1749
      %v1753 = vrot.slane %v1752, 4
      %v1755 = vshll.u32 %v851, 16
      %v1757 = vrot.slane %v1755, 5
      %v1758 = vsel %vm1744, %v1753, %v1757
      %v1759 = vrot.slane %v951, 4
      %v1760 = vrot.slane %v954, 5
      %v1761 = vor.u32 %v1759, %v1760
      %v1762 = vrot.slane %v1761, 4
      %v1763 = vrot.slane %v963, 5
      %v1764 = vsel %vm1744, %v1762, %v1763
      %v1765 = vrot.slane %v960, 4
      %v1766 = vor.u32 %v1765, %v1763
      %v1767 = vrot.slane %v1766, 4
      %v1769 = vshll.u32 %v855, 16
      %v1771 = vrot.slane %v1769, 5
      %v1772 = vsel %vm1744, %v1767, %v1771
      %v1773 = vrot.slane %v973, 4
      %v1774 = vrot.slane %v976, 5
      %v1775 = vor.u32 %v1773, %v1774
      %v1776 = vrot.slane %v1775, 4
      %v1777 = vrot.slane %v985, 5
      %v1778 = vsel %vm1744, %v1776, %v1777
      %v1779 = vrot.slane %v982, 4
      %v1780 = vor.u32 %v1779, %v1777
      %v1781 = vrot.slane %v1780, 4
      %v1783 = vshll.u32 %v859, 16
      %v1785 = vrot.slane %v1783, 5
      %v1786 = vsel %vm1744, %v1781, %v1785
      %v1787 = vrot.slane %v995, 4
      %v1788 = vrot.slane %v998, 5
      %v1789 = vor.u32 %v1787, %v1788
      %v1790 = vrot.slane %v1789, 4
      %v1791 = vrot.slane %v1007, 5
      %v1792 = vsel %vm1744, %v1790, %v1791
      %v1793 = vrot.slane %v1004, 4
      %v1794 = vor.u32 %v1793, %v1791
      %v1795 = vrot.slane %v1794, 4
      %v1797 = vshll.u32 %v863, 16
      %v1799 = vrot.slane %v1797, 5
      %v1800 = vsel %vm1744, %v1795, %v1799
      %v1801 = vrot.slane %v1017, 4
      %v1802 = vrot.slane %v1020, 5
      %v1803 = vor.u32 %v1801, %v1802
      %v1804 = vrot.slane %v1803, 4
      %v1805 = vrot.slane %v1029, 5
      %v1806 = vsel %vm1744, %v1804, %v1805
      %v1807 = vrot.slane %v1026, 4
      %v1808 = vor.u32 %v1807, %v1805
      %v1809 = vrot.slane %v1808, 4
      %v1811 = vshll.u32 %v867, 16
      %v1813 = vrot.slane %v1811, 5
      %v1814 = vsel %vm1744, %v1809, %v1813
      %v1815 = vrot.slane %v1039, 4
      %v1816 = vrot.slane %v1042, 5
      %v1817 = vor.u32 %v1815, %v1816
      %v1818 = vrot.slane %v1817, 4
      %v1819 = vrot.slane %v1051, 5
      %v1820 = vsel %vm1744, %v1818, %v1819
      %v1821 = vrot.slane %v1048, 4
      %v1822 = vor.u32 %v1821, %v1819
      %v1823 = vrot.slane %v1822, 4
      %v1825 = vshll.u32 %v871, 16
      %v1827 = vrot.slane %v1825, 5
      %v1828 = vsel %vm1744, %v1823, %v1827
      %v1829 = vrot.slane %v1061, 4
      %v1830 = vrot.slane %v1064, 5
      %v1831 = vor.u32 %v1829, %v1830
      %v1832 = vrot.slane %v1831, 4
      %v1833 = vrot.slane %v1073, 5
      %v1834 = vsel %vm1744, %v1832, %v1833
      %v1835 = vrot.slane %v1070, 4
      %v1836 = vor.u32 %v1835, %v1833
      %v1837 = vrot.slane %v1836, 4
      %v1839 = vshll.u32 %v875, 16
      %v1841 = vrot.slane %v1839, 5
      %v1842 = vsel %vm1744, %v1837, %v1841
      %v1843 = vrot.slane %v1083, 4
      %v1844 = vrot.slane %v1086, 5
      %v1845 = vor.u32 %v1843, %v1844
      %v1846 = vrot.slane %v1845, 4
      %v1847 = vrot.slane %v1095, 5
      %v1848 = vsel %vm1744, %v1846, %v1847
      %v1849 = vrot.slane %v1092, 4
      %v1850 = vor.u32 %v1849, %v1847
      %v1851 = vrot.slane %v1850, 4
      %v1853 = vshll.u32 %v879, 16
      %v1855 = vrot.slane %v1853, 5
      %v1856 = vsel %vm1744, %v1851, %v1855
      %v1857 = vrot.slane %v1105, 4
      %v1858 = vrot.slane %v1108, 5
      %v1859 = vor.u32 %v1857, %v1858
      %v1860 = vrot.slane %v1859, 4
      %v1861 = vrot.slane %v1117, 5
      %v1862 = vsel %vm1744, %v1860, %v1861
      %v1863 = vrot.slane %v1114, 4
      %v1864 = vor.u32 %v1863, %v1861
      %v1865 = vrot.slane %v1864, 4
      %v1867 = vshll.u32 %v883, 16
      %v1869 = vrot.slane %v1867, 5
      %v1870 = vsel %vm1744, %v1865, %v1869
      %v1871 = vrot.slane %v1127, 4
      %v1872 = vrot.slane %v1130, 5
      %v1873 = vor.u32 %v1871, %v1872
      %v1874 = vrot.slane %v1873, 4
      %v1875 = vrot.slane %v1139, 5
      %v1876 = vsel %vm1744, %v1874, %v1875
      %v1877 = vrot.slane %v1136, 4
      %v1878 = vor.u32 %v1877, %v1875
      %v1879 = vrot.slane %v1878, 4
      %v1881 = vshll.u32 %v887, 16
      %v1883 = vrot.slane %v1881, 5
      %v1884 = vsel %vm1744, %v1879, %v1883
      %v1885 = vrot.slane %v1149, 4
      %v1886 = vrot.slane %v1152, 5
      %v1887 = vor.u32 %v1885, %v1886
      %v1888 = vrot.slane %v1887, 4
      %v1889 = vrot.slane %v1161, 5
      %v1890 = vsel %vm1744, %v1888, %v1889
      %v1891 = vrot.slane %v1158, 4
      %v1892 = vor.u32 %v1891, %v1889
      %v1893 = vrot.slane %v1892, 4
      %v1895 = vshll.u32 %v891, 16
      %v1897 = vrot.slane %v1895, 5
      %v1898 = vsel %vm1744, %v1893, %v1897
      %v1899 = vrot.slane %v1171, 4
      %v1900 = vrot.slane %v1174, 5
      %v1901 = vor.u32 %v1899, %v1900
      %v1902 = vrot.slane %v1901, 4
      %v1903 = vrot.slane %v1183, 5
      %v1904 = vsel %vm1744, %v1902, %v1903
      %v1905 = vrot.slane %v1180, 4
      %v1906 = vor.u32 %v1905, %v1903
      %v1907 = vrot.slane %v1906, 4
      %v1909 = vshll.u32 %v895, 16
      %v1911 = vrot.slane %v1909, 5
      %v1912 = vsel %vm1744, %v1907, %v1911
      %v1913 = vrot.slane %v1193, 4
      %v1914 = vrot.slane %v1196, 5
      %v1915 = vor.u32 %v1913, %v1914
      %v1916 = vrot.slane %v1915, 4
      %v1917 = vrot.slane %v1205, 5
      %v1918 = vsel %vm1744, %v1916, %v1917
      %v1919 = vrot.slane %v1202, 4
      %v1920 = vor.u32 %v1919, %v1917
      %v1921 = vrot.slane %v1920, 4
      %v1923 = vshll.u32 %v899, 16
      %v1925 = vrot.slane %v1923, 5
      %v1926 = vsel %vm1744, %v1921, %v1925
      %v1927 = vrot.slane %v1215, 4
      %v1928 = vrot.slane %v1218, 5
      %v1929 = vor.u32 %v1927, %v1928
      %v1930 = vrot.slane %v1929, 4
      %v1931 = vrot.slane %v1227, 5
      %v1932 = vsel %vm1744, %v1930, %v1931
      %v1933 = vrot.slane %v1224, 4
      %v1934 = vor.u32 %v1933, %v1931
      %v1935 = vrot.slane %v1934, 4
      %v1937 = vshll.u32 %v903, 16
      %v1939 = vrot.slane %v1937, 5
      %v1940 = vsel %vm1744, %v1935, %v1939
      %v1941 = vrot.slane %v1237, 4
      %v1942 = vrot.slane %v1240, 5
      %v1943 = vor.u32 %v1941, %v1942
      %v1944 = vrot.slane %v1943, 4
      %v1945 = vrot.slane %v1249, 5
      %v1946 = vsel %vm1744, %v1944, %v1945
      %v1947 = vrot.slane %v1246, 4
      %v1948 = vor.u32 %v1947, %v1945
      %v1949 = vrot.slane %v1948, 4
      %v1951 = vshll.u32 %v907, 16
      %v1953 = vrot.slane %v1951, 5
      %v1954 = vsel %vm1744, %v1949, %v1953
      %v1955 = vrot.slane %v1259, 4
      %v1956 = vrot.slane %v1262, 5
      %v1957 = vor.u32 %v1955, %v1956
      %v1958 = vrot.slane %v1957, 4
      %v1959 = vrot.slane %v1271, 5
      %v1960 = vsel %vm1744, %v1958, %v1959
      %v1961 = vrot.slane %v1268, 4
      %v1962 = vor.u32 %v1961, %v1959
      %v1963 = vrot.slane %v1962, 4
      %v1965 = vshll.u32 %v911, 16
      %v1967 = vrot.slane %v1965, 5
      %v1968 = vsel %vm1744, %v1963, %v1967
      %s1969 = scalar_lea.vmem %s3, 128
      %v1970 = vld [vmem:[%s1969] sm:$0xf]
      %v1971 = vld [vmem:[%s1969 + $0x4] sm:$0xf]
      %v1972 = vld [vmem:[%s1969 + $0x8] sm:$0xf]
      %v1973 = vld [vmem:[%s1969 + $0xc] sm:$0xf]
      %v1974 = vld [vmem:[%s1969 + $0x10] sm:$0xf]
      %v1975 = vld [vmem:[%s1969 + $0x14] sm:$0xf]
      %v1976 = vld [vmem:[%s1969 + $0x18] sm:$0xf]
      %v1977 = vld [vmem:[%s1969 + $0x1c] sm:$0xf]
      %v1978 = vld [vmem:[%s1969 + $0x20] sm:$0xf]
      %v1979 = vld [vmem:[%s1969 + $0x24] sm:$0xf]
      %v1980 = vld [vmem:[%s1969 + $0x28] sm:$0xf]
      %v1981 = vld [vmem:[%s1969 + $0x2c] sm:$0xf]
      %v1982 = vld [vmem:[%s1969 + $0x30] sm:$0xf]
      %v1983 = vld [vmem:[%s1969 + $0x34] sm:$0xf]
      %v1984 = vld [vmem:[%s1969 + $0x38] sm:$0xf]
      %v1985 = vld [vmem:[%s1969 + $0x3c] sm:$0xf]
      %v1986 = vunpack.c.l.b16 %v1750
      %v1987 = vunpack.c.l.b16 %v1758
      %v1988 = vunpack.c.l.b16 %v1764
      %v1989 = vunpack.c.l.b16 %v1772
      %v1990 = vunpack.c.l.b16 %v1778
      %v1991 = vunpack.c.l.b16 %v1786
      %v1992 = vunpack.c.l.b16 %v1792
      %v1993 = vunpack.c.l.b16 %v1800
      %v1994 = vunpack.c.l.b16 %v1806
      %v1995 = vunpack.c.l.b16 %v1814
      %v1996 = vunpack.c.l.b16 %v1820
      %v1997 = vunpack.c.l.b16 %v1828
      %v1998 = vunpack.c.l.b16 %v1834
      %v1999 = vunpack.c.l.b16 %v1842
      %v2000 = vunpack.c.l.b16 %v1848
      %v2001 = vunpack.c.l.b16 %v1856
      %v2002 = vunpack.c.l.b16 %v1862
      %v2003 = vunpack.c.l.b16 %v1870
      %v2004 = vunpack.c.l.b16 %v1876
      %v2005 = vunpack.c.l.b16 %v1884
      %v2006 = vunpack.c.l.b16 %v1890
      %v2007 = vunpack.c.l.b16 %v1898
      %v2008 = vunpack.c.l.b16 %v1904
      %v2009 = vunpack.c.l.b16 %v1912
      %v2010 = vunpack.c.l.b16 %v1918
      %v2011 = vunpack.c.l.b16 %v1926
      %v2012 = vunpack.c.l.b16 %v1932
      %v2013 = vunpack.c.l.b16 %v1940
      %v2014 = vunpack.c.l.b16 %v1946
      %v2015 = vunpack.c.l.b16 %v1954
      %v2016 = vunpack.c.l.b16 %v1960
      %v2017 = vunpack.c.l.b16 %v1968
      %v2018 = vpack.c.b16 %v1987, %v1986
      %v2019 = vpack.c.b16 %v1989, %v1988
      %v2020 = vpack.c.b16 %v1991, %v1990
      %v2021 = vpack.c.b16 %v1993, %v1992
      %v2022 = vpack.c.b16 %v1995, %v1994
      %v2023 = vpack.c.b16 %v1997, %v1996
      %v2024 = vpack.c.b16 %v1999, %v1998
      %v2025 = vpack.c.b16 %v2001, %v2000
      %v2026 = vpack.c.b16 %v2003, %v2002
      %v2027 = vpack.c.b16 %v2005, %v2004
      %v2028 = vpack.c.b16 %v2007, %v2006
      %v2029 = vpack.c.b16 %v2009, %v2008
      %v2030 = vpack.c.b16 %v2011, %v2010
      %v2031 = vpack.c.b16 %v2013, %v2012
      %v2032 = vpack.c.b16 %v2015, %v2014
      %v2033 = vpack.c.b16 %v2017, %v2016
      %v2066 = vunpack.c.l.b16 %v1970
      %v2067 = vunpack.c.l.b16 %v1971
      %v2068 = vunpack.c.l.b16 %v1972
      %v2069 = vunpack.c.l.b16 %v1973
      %v2070 = vunpack.c.l.b16 %v1974
      %v2071 = vunpack.c.l.b16 %v1975
      %v2072 = vunpack.c.l.b16 %v1976
      %v2073 = vunpack.c.l.b16 %v1977
      %v2074 = vunpack.c.l.b16 %v1978
      %v2075 = vunpack.c.l.b16 %v1979
      %v2076 = vunpack.c.l.b16 %v1980
      %v2077 = vunpack.c.l.b16 %v1981
      %v2078 = vunpack.c.l.b16 %v1982
      %v2079 = vunpack.c.l.b16 %v1983
      %v2080 = vunpack.c.l.b16 %v1984
      %v2081 = vunpack.c.l.b16 %v1985
      %v2082 = vpack.c.b16 %v2067, %v2066
      %v2083 = vpack.c.b16 %v2069, %v2068
      %v2084 = vpack.c.b16 %v2071, %v2070
      %v2085 = vpack.c.b16 %v2073, %v2072
      %v2086 = vpack.c.b16 %v2075, %v2074
      %v2087 = vpack.c.b16 %v2077, %v2076
      %v2088 = vpack.c.b16 %v2079, %v2078
      %v2089 = vpack.c.b16 %v2081, %v2080
      %2098 = vmatpush.bf16.msra.mxu0 %v2089
      %2099 = vmatpush.bf16.msra.mxu0 %v2088
      %2100 = vmatpush.bf16.msra.mxu0 %v2087
      %2101 = vmatpush.bf16.msra.mxu0 %v2086
      %2102 = vmatpush.bf16.msra.mxu0 %v2085
      %2103 = vmatpush.bf16.msra.mxu0 %v2084
      %2104 = vmatpush.bf16.msra.mxu0 %v2083
      %2105 = vmatpush.bf16.msra.mxu0 %v2082
      %2106 = vmatmul.bf16.gmra.mxu0 %v2018
      %v2107 = vpop.f32.mrf.mxu0
      %v2108 = vadd.f32 0.0, %v2107
      %v2109 = vpop.f32.mrf.mxu0
      %v2110 = vadd.f32 0.0, %v2109
      %2111 = vmatmul.bf16.gmra.mxu0 %v2019
      %v2112 = vpop.f32.mrf.mxu0
      %v2113 = vadd.f32 0.0, %v2112
      %v2114 = vpop.f32.mrf.mxu0
      %v2115 = vadd.f32 0.0, %v2114
      %2116 = vmatmul.bf16.gmra.mxu0 %v2020
      %v2117 = vpop.f32.mrf.mxu0
      %v2118 = vadd.f32 0.0, %v2117
      %v2119 = vpop.f32.mrf.mxu0
      %v2120 = vadd.f32 0.0, %v2119
      %2121 = vmatmul.bf16.gmra.mxu0 %v2021
      %v2122 = vpop.f32.mrf.mxu0
      %v2123 = vadd.f32 0.0, %v2122
      %v2124 = vpop.f32.mrf.mxu0
      %v2125 = vadd.f32 0.0, %v2124
      %2126 = vmatmul.bf16.gmra.mxu0 %v2022
      %v2127 = vpop.f32.mrf.mxu0
      %v2128 = vadd.f32 0.0, %v2127
      %v2129 = vpop.f32.mrf.mxu0
      %v2130 = vadd.f32 0.0, %v2129
      %2131 = vmatmul.bf16.gmra.mxu0 %v2023
      %v2132 = vpop.f32.mrf.mxu0
      %v2133 = vadd.f32 0.0, %v2132
      %v2134 = vpop.f32.mrf.mxu0
      %v2135 = vadd.f32 0.0, %v2134
      %2136 = vmatmul.bf16.gmra.mxu0 %v2024
      %v2137 = vpop.f32.mrf.mxu0
      %v2138 = vadd.f32 0.0, %v2137
      %v2139 = vpop.f32.mrf.mxu0
      %v2140 = vadd.f32 0.0, %v2139
      %2141 = vmatmul.bf16.gmra.mxu0 %v2025
      %v2142 = vpop.f32.mrf.mxu0
      %v2143 = vadd.f32 0.0, %v2142
      %v2144 = vpop.f32.mrf.mxu0
      %v2145 = vadd.f32 0.0, %v2144
      %2146 = vmatmul.bf16.gmra.mxu0 %v2026
      %v2147 = vpop.f32.mrf.mxu0
      %v2148 = vadd.f32 0.0, %v2147
      %v2149 = vpop.f32.mrf.mxu0
      %v2150 = vadd.f32 0.0, %v2149
      %2151 = vmatmul.bf16.gmra.mxu0 %v2027
      %v2152 = vpop.f32.mrf.mxu0
      %v2153 = vadd.f32 0.0, %v2152
      %v2154 = vpop.f32.mrf.mxu0
      %v2155 = vadd.f32 0.0, %v2154
      %2156 = vmatmul.bf16.gmra.mxu0 %v2028
      %v2157 = vpop.f32.mrf.mxu0
      %v2158 = vadd.f32 0.0, %v2157
      %v2159 = vpop.f32.mrf.mxu0
      %v2160 = vadd.f32 0.0, %v2159
      %2161 = vmatmul.bf16.gmra.mxu0 %v2029
      %v2162 = vpop.f32.mrf.mxu0
      %v2163 = vadd.f32 0.0, %v2162
      %v2164 = vpop.f32.mrf.mxu0
      %v2165 = vadd.f32 0.0, %v2164
      %2166 = vmatmul.bf16.gmra.mxu0 %v2030
      %v2167 = vpop.f32.mrf.mxu0
      %v2168 = vadd.f32 0.0, %v2167
      %v2169 = vpop.f32.mrf.mxu0
      %v2170 = vadd.f32 0.0, %v2169
      %2171 = vmatmul.bf16.gmra.mxu0 %v2031
      %v2172 = vpop.f32.mrf.mxu0
      %v2173 = vadd.f32 0.0, %v2172
      %v2174 = vpop.f32.mrf.mxu0
      %v2175 = vadd.f32 0.0, %v2174
      %2176 = vmatmul.bf16.gmra.mxu0 %v2032
      %v2177 = vpop.f32.mrf.mxu0
      %v2178 = vadd.f32 0.0, %v2177
      %v2179 = vpop.f32.mrf.mxu0
      %v2180 = vadd.f32 0.0, %v2179
      %2181 = vmatmul.bf16.gmra.mxu0 %v2033
      %v2182 = vpop.f32.mrf.mxu0
      %v2183 = vadd.f32 0.0, %v2182
      %v2184 = vpop.f32.mrf.mxu0
      %v2185 = vadd.f32 0.0, %v2184
      %2186 = vdwg.mxu0
      %v2187 = vadd.f32 %v1663, %v2108
      %v2188 = vadd.f32 %v1665, %v2110
      %v2189 = vadd.f32 %v1668, %v2113
      %v2190 = vadd.f32 %v1670, %v2115
      %v2191 = vadd.f32 %v1673, %v2118
      %v2192 = vadd.f32 %v1675, %v2120
      %v2193 = vadd.f32 %v1678, %v2123
      %v2194 = vadd.f32 %v1680, %v2125
      %v2195 = vadd.f32 %v1683, %v2128
      %v2196 = vadd.f32 %v1685, %v2130
      %v2197 = vadd.f32 %v1688, %v2133
      %v2198 = vadd.f32 %v1690, %v2135
      %v2199 = vadd.f32 %v1693, %v2138
      %v2200 = vadd.f32 %v1695, %v2140
      %v2201 = vadd.f32 %v1698, %v2143
      %v2202 = vadd.f32 %v1700, %v2145
      %v2203 = vadd.f32 %v1703, %v2148
      %v2204 = vadd.f32 %v1705, %v2150
      %v2205 = vadd.f32 %v1708, %v2153
      %v2206 = vadd.f32 %v1710, %v2155
      %v2207 = vadd.f32 %v1713, %v2158
      %v2208 = vadd.f32 %v1715, %v2160
      %v2209 = vadd.f32 %v1718, %v2163
      %v2210 = vadd.f32 %v1720, %v2165
      %v2211 = vadd.f32 %v1723, %v2168
      %v2212 = vadd.f32 %v1725, %v2170
      %v2213 = vadd.f32 %v1728, %v2173
      %v2214 = vadd.f32 %v1730, %v2175
      %v2215 = vadd.f32 %v1733, %v2178
      %v2216 = vadd.f32 %v1735, %v2180
      %v2217 = vadd.f32 %v1738, %v2183
      %v2218 = vadd.f32 %v1740, %v2185
      %v2220 = vshrl.u32 %v912, 16
      %v2222 = vrot.slane %v2220, 7
      %v2223 = vrot.slane %v2222, 4
      %v2225 = vshrl.u32 %v913, 16
      %v2227 = vrot.slane %v2225, 7
      %v2228 = vshll.u32 %v913, 16
      %v2230 = vor.u32 %v2227, %v2228
      %v2231 = vsel %vm922, %v2223, %v2230
      %v2232 = vrot.slane %v2227, 4
      %v2234 = vshrl.u32 %v914, 16
      %v2236 = vrot.slane %v2234, 7
      %v2237 = vshll.u32 %v914, 16
      %v2239 = vor.u32 %v2236, %v2237
      %v2240 = vsel %vm922, %v2232, %v2239
      %s2241 = scalar_lea.vmem %s3, 192
      %v2242 = vld [vmem:[%s2241] sm:$0xf]
      %v2243 = vld [vmem:[%s2241 + $0x4] sm:$0xf]
      %v2244 = vld [vmem:[%s2241 + $0x8] sm:$0xf]
      %v2245 = vld [vmem:[%s2241 + $0xc] sm:$0xf]
      %v2246 = vld [vmem:[%s2241 + $0x10] sm:$0xf]
      %v2247 = vld [vmem:[%s2241 + $0x14] sm:$0xf]
      %v2248 = vld [vmem:[%s2241 + $0x18] sm:$0xf]
      %v2249 = vld [vmem:[%s2241 + $0x1c] sm:$0xf]
      %v2250 = vld [vmem:[%s2241 + $0x20] sm:$0xf]
      %v2251 = vld [vmem:[%s2241 + $0x24] sm:$0xf]
      %v2252 = vld [vmem:[%s2241 + $0x28] sm:$0xf]
      %v2253 = vld [vmem:[%s2241 + $0x2c] sm:$0xf]
      %v2254 = vld [vmem:[%s2241 + $0x30] sm:$0xf]
      %v2255 = vld [vmem:[%s2241 + $0x34] sm:$0xf]
      %v2256 = vld [vmem:[%s2241 + $0x38] sm:$0xf]
      %v2257 = vld [vmem:[%s2241 + $0x3c] sm:$0xf]
      %v2258 = vunpack.c.l.b16 %v2231
      %v2259 = vunpack.c.l.b16 %v2240
      %v2260 = vpack.c.b16 %v2259, %v2258
      %v2278 = vunpack.c.l.b16 %v2242
      %v2279 = vunpack.c.l.b16 %v2243
      %v2280 = vunpack.c.l.b16 %v2244
      %v2281 = vunpack.c.l.b16 %v2245
      %v2282 = vunpack.c.l.b16 %v2246
      %v2283 = vunpack.c.l.b16 %v2247
      %v2284 = vunpack.c.l.b16 %v2248
      %v2285 = vunpack.c.l.b16 %v2249
      %v2286 = vunpack.c.l.b16 %v2250
      %v2287 = vunpack.c.l.b16 %v2251
      %v2288 = vunpack.c.l.b16 %v2252
      %v2289 = vunpack.c.l.b16 %v2253
      %v2290 = vunpack.c.l.b16 %v2254
      %v2291 = vunpack.c.l.b16 %v2255
      %v2292 = vunpack.c.l.b16 %v2256
      %v2293 = vunpack.c.l.b16 %v2257
      %v2294 = vpack.c.b16 %v2279, %v2278
      %v2295 = vpack.c.b16 %v2281, %v2280
      %v2296 = vpack.c.b16 %v2283, %v2282
      %v2297 = vpack.c.b16 %v2285, %v2284
      %v2298 = vpack.c.b16 %v2287, %v2286
      %v2299 = vpack.c.b16 %v2289, %v2288
      %v2300 = vpack.c.b16 %v2291, %v2290
      %v2301 = vpack.c.b16 %v2293, %v2292
      %2310 = vmatpush.bf16.msra.mxu0 %v2301
      %2311 = vmatpush.bf16.msra.mxu0 %v2300
      %2312 = vmatpush.bf16.msra.mxu0 %v2299
      %2313 = vmatpush.bf16.msra.mxu0 %v2298
      %2314 = vmatpush.bf16.msra.mxu0 %v2297
      %2315 = vmatpush.bf16.msra.mxu0 %v2296
      %2316 = vmatpush.bf16.msra.mxu0 %v2295
      %2317 = vmatpush.bf16.msra.mxu0 %v2294
      %2318 = vmatmul.bf16.gmra.mxu0 %v1574
      %v2319 = vpop.f32.mrf.mxu0
      %v2320 = vadd.f32 0.0, %v2319
      %v2321 = vpop.f32.mrf.mxu0
      %v2322 = vadd.f32 0.0, %v2321
      %2323 = vmatmul.bf16.gmra.mxu0 %v1575
      %v2324 = vpop.f32.mrf.mxu0
      %v2325 = vadd.f32 0.0, %v2324
      %v2326 = vpop.f32.mrf.mxu0
      %v2327 = vadd.f32 0.0, %v2326
      %2328 = vmatmul.bf16.gmra.mxu0 %v1576
      %v2329 = vpop.f32.mrf.mxu0
      %v2330 = vadd.f32 0.0, %v2329
      %v2331 = vpop.f32.mrf.mxu0
      %v2332 = vadd.f32 0.0, %v2331
      %2333 = vmatmul.bf16.gmra.mxu0 %v1577
      %v2334 = vpop.f32.mrf.mxu0
      %v2335 = vadd.f32 0.0, %v2334
      %v2336 = vpop.f32.mrf.mxu0
      %v2337 = vadd.f32 0.0, %v2336
      %2338 = vmatmul.bf16.gmra.mxu0 %v1578
      %v2339 = vpop.f32.mrf.mxu0
      %v2340 = vadd.f32 0.0, %v2339
      %v2341 = vpop.f32.mrf.mxu0
      %v2342 = vadd.f32 0.0, %v2341
      %2343 = vmatmul.bf16.gmra.mxu0 %v1579
      %v2344 = vpop.f32.mrf.mxu0
      %v2345 = vadd.f32 0.0, %v2344
      %v2346 = vpop.f32.mrf.mxu0
      %v2347 = vadd.f32 0.0, %v2346
      %2348 = vmatmul.bf16.gmra.mxu0 %v1580
      %v2349 = vpop.f32.mrf.mxu0
      %v2350 = vadd.f32 0.0, %v2349
      %v2351 = vpop.f32.mrf.mxu0
      %v2352 = vadd.f32 0.0, %v2351
      %2353 = vmatmul.bf16.gmra.mxu0 %v1581
      %v2354 = vpop.f32.mrf.mxu0
      %v2355 = vadd.f32 0.0, %v2354
      %v2356 = vpop.f32.mrf.mxu0
      %v2357 = vadd.f32 0.0, %v2356
      %2358 = vmatmul.bf16.gmra.mxu0 %v1582
      %v2359 = vpop.f32.mrf.mxu0
      %v2360 = vadd.f32 0.0, %v2359
      %v2361 = vpop.f32.mrf.mxu0
      %v2362 = vadd.f32 0.0, %v2361
      %2363 = vmatmul.bf16.gmra.mxu0 %v1583
      %v2364 = vpop.f32.mrf.mxu0
      %v2365 = vadd.f32 0.0, %v2364
      %v2366 = vpop.f32.mrf.mxu0
      %v2367 = vadd.f32 0.0, %v2366
      %2368 = vmatmul.bf16.gmra.mxu0 %v1584
      %v2369 = vpop.f32.mrf.mxu0
      %v2370 = vadd.f32 0.0, %v2369
      %v2371 = vpop.f32.mrf.mxu0
      %v2372 = vadd.f32 0.0, %v2371
      %2373 = vmatmul.bf16.gmra.mxu0 %v1585
      %v2374 = vpop.f32.mrf.mxu0
      %v2375 = vadd.f32 0.0, %v2374
      %v2376 = vpop.f32.mrf.mxu0
      %v2377 = vadd.f32 0.0, %v2376
      %2378 = vmatmul.bf16.gmra.mxu0 %v1586
      %v2379 = vpop.f32.mrf.mxu0
      %v2380 = vadd.f32 0.0, %v2379
      %v2381 = vpop.f32.mrf.mxu0
      %v2382 = vadd.f32 0.0, %v2381
      %2383 = vmatmul.bf16.gmra.mxu0 %v1587
      %v2384 = vpop.f32.mrf.mxu0
      %v2385 = vadd.f32 0.0, %v2384
      %v2386 = vpop.f32.mrf.mxu0
      %v2387 = vadd.f32 0.0, %v2386
      %2388 = vmatmul.bf16.gmra.mxu0 %v1588
      %v2389 = vpop.f32.mrf.mxu0
      %v2390 = vadd.f32 0.0, %v2389
      %v2391 = vpop.f32.mrf.mxu0
      %v2392 = vadd.f32 0.0, %v2391
      %2393 = vmatmul.bf16.gmra.mxu0 %v2260
      %v2394 = vpop.f32.mrf.mxu0
      %v2395 = vadd.f32 0.0, %v2394
      %v2396 = vpop.f32.mrf.mxu0
      %v2397 = vadd.f32 0.0, %v2396
      %2398 = vdwg.mxu0
      %v2399 = vadd.f32 %v2187, %v2320
      %v2400 = vadd.f32 %v2188, %v2322
      %v2401 = vadd.f32 %v2189, %v2325
      %v2402 = vadd.f32 %v2190, %v2327
      %v2403 = vadd.f32 %v2191, %v2330
      %v2404 = vadd.f32 %v2192, %v2332
      %v2405 = vadd.f32 %v2193, %v2335
      %v2406 = vadd.f32 %v2194, %v2337
      %v2407 = vadd.f32 %v2195, %v2340
      %v2408 = vadd.f32 %v2196, %v2342
      %v2409 = vadd.f32 %v2197, %v2345
      %v2410 = vadd.f32 %v2198, %v2347
      %v2411 = vadd.f32 %v2199, %v2350
      %v2412 = vadd.f32 %v2200, %v2352
      %v2413 = vadd.f32 %v2201, %v2355
      %v2414 = vadd.f32 %v2202, %v2357
      %v2415 = vadd.f32 %v2203, %v2360
      %v2416 = vadd.f32 %v2204, %v2362
      %v2417 = vadd.f32 %v2205, %v2365
      %v2418 = vadd.f32 %v2206, %v2367
      %v2419 = vadd.f32 %v2207, %v2370
      %v2420 = vadd.f32 %v2208, %v2372
      %v2421 = vadd.f32 %v2209, %v2375
      %v2422 = vadd.f32 %v2210, %v2377
      %v2423 = vadd.f32 %v2211, %v2380
      %v2424 = vadd.f32 %v2212, %v2382
      %v2425 = vadd.f32 %v2213, %v2385
      %v2426 = vadd.f32 %v2214, %v2387
      %v2427 = vadd.f32 %v2215, %v2390
      %v2428 = vadd.f32 %v2216, %v2392
      %v2429 = vadd.f32 %v2217, %v2395
      %v2430 = vadd.f32 %v2218, %v2397
      %s2431 = scalar_lea.vmem %s3, 256
      %v2432 = vld [vmem:[%s2431] sm:$0xf]
      %v2433 = vld [vmem:[%s2431 + $0x4] sm:$0xf]
      %v2434 = vld [vmem:[%s2431 + $0x8] sm:$0xf]
      %v2435 = vld [vmem:[%s2431 + $0xc] sm:$0xf]
      %v2436 = vld [vmem:[%s2431 + $0x10] sm:$0xf]
      %v2437 = vld [vmem:[%s2431 + $0x14] sm:$0xf]
      %v2438 = vld [vmem:[%s2431 + $0x18] sm:$0xf]
      %v2439 = vld [vmem:[%s2431 + $0x1c] sm:$0xf]
      %v2440 = vld [vmem:[%s2431 + $0x20] sm:$0xf]
      %v2441 = vld [vmem:[%s2431 + $0x24] sm:$0xf]
      %v2442 = vld [vmem:[%s2431 + $0x28] sm:$0xf]
      %v2443 = vld [vmem:[%s2431 + $0x2c] sm:$0xf]
      %v2444 = vld [vmem:[%s2431 + $0x30] sm:$0xf]
      %v2445 = vld [vmem:[%s2431 + $0x34] sm:$0xf]
      %v2446 = vld [vmem:[%s2431 + $0x38] sm:$0xf]
      %v2447 = vld [vmem:[%s2431 + $0x3c] sm:$0xf]
      %v2450 = vunpack.c.l.b16 %v913
      %v2451 = vunpack.c.l.b16 %v914
      %v2452 = vpack.c.b16 %v2451, %v2450
      %v2470 = vunpack.c.l.b16 %v2432
      %v2471 = vunpack.c.l.b16 %v2433
      %v2472 = vunpack.c.l.b16 %v2434
      %v2473 = vunpack.c.l.b16 %v2435
      %v2474 = vunpack.c.l.b16 %v2436
      %v2475 = vunpack.c.l.b16 %v2437
      %v2476 = vunpack.c.l.b16 %v2438
      %v2477 = vunpack.c.l.b16 %v2439
      %v2478 = vunpack.c.l.b16 %v2440
      %v2479 = vunpack.c.l.b16 %v2441
      %v2480 = vunpack.c.l.b16 %v2442
      %v2481 = vunpack.c.l.b16 %v2443
      %v2482 = vunpack.c.l.b16 %v2444
      %v2483 = vunpack.c.l.b16 %v2445
      %v2484 = vunpack.c.l.b16 %v2446
      %v2485 = vunpack.c.l.b16 %v2447
      %v2486 = vpack.c.b16 %v2471, %v2470
      %v2487 = vpack.c.b16 %v2473, %v2472
      %v2488 = vpack.c.b16 %v2475, %v2474
      %v2489 = vpack.c.b16 %v2477, %v2476
      %v2490 = vpack.c.b16 %v2479, %v2478
      %v2491 = vpack.c.b16 %v2481, %v2480
      %v2492 = vpack.c.b16 %v2483, %v2482
      %v2493 = vpack.c.b16 %v2485, %v2484
      %2502 = vmatpush.bf16.msra.mxu0 %v2493
      %2503 = vmatpush.bf16.msra.mxu0 %v2492
      %2504 = vmatpush.bf16.msra.mxu0 %v2491
      %2505 = vmatpush.bf16.msra.mxu0 %v2490
      %2506 = vmatpush.bf16.msra.mxu0 %v2489
      %2507 = vmatpush.bf16.msra.mxu0 %v2488
      %2508 = vmatpush.bf16.msra.mxu0 %v2487
      %2509 = vmatpush.bf16.msra.mxu0 %v2486
      %2510 = vmatmul.bf16.gmra.mxu0 %v1373
      %v2511 = vpop.f32.mrf.mxu0
      %v2512 = vadd.f32 0.0, %v2511
      %v2513 = vpop.f32.mrf.mxu0
      %v2514 = vadd.f32 0.0, %v2513
      %2515 = vmatmul.bf16.gmra.mxu0 %v1374
      %v2516 = vpop.f32.mrf.mxu0
      %v2517 = vadd.f32 0.0, %v2516
      %v2518 = vpop.f32.mrf.mxu0
      %v2519 = vadd.f32 0.0, %v2518
      %2520 = vmatmul.bf16.gmra.mxu0 %v1375
      %v2521 = vpop.f32.mrf.mxu0
      %v2522 = vadd.f32 0.0, %v2521
      %v2523 = vpop.f32.mrf.mxu0
      %v2524 = vadd.f32 0.0, %v2523
      %2525 = vmatmul.bf16.gmra.mxu0 %v1376
      %v2526 = vpop.f32.mrf.mxu0
      %v2527 = vadd.f32 0.0, %v2526
      %v2528 = vpop.f32.mrf.mxu0
      %v2529 = vadd.f32 0.0, %v2528
      %2530 = vmatmul.bf16.gmra.mxu0 %v1377
      %v2531 = vpop.f32.mrf.mxu0
      %v2532 = vadd.f32 0.0, %v2531
      %v2533 = vpop.f32.mrf.mxu0
      %v2534 = vadd.f32 0.0, %v2533
      %2535 = vmatmul.bf16.gmra.mxu0 %v1378
      %v2536 = vpop.f32.mrf.mxu0
      %v2537 = vadd.f32 0.0, %v2536
      %v2538 = vpop.f32.mrf.mxu0
      %v2539 = vadd.f32 0.0, %v2538
      %2540 = vmatmul.bf16.gmra.mxu0 %v1379
      %v2541 = vpop.f32.mrf.mxu0
      %v2542 = vadd.f32 0.0, %v2541
      %v2543 = vpop.f32.mrf.mxu0
      %v2544 = vadd.f32 0.0, %v2543
      %2545 = vmatmul.bf16.gmra.mxu0 %v1380
      %v2546 = vpop.f32.mrf.mxu0
      %v2547 = vadd.f32 0.0, %v2546
      %v2548 = vpop.f32.mrf.mxu0
      %v2549 = vadd.f32 0.0, %v2548
      %2550 = vmatmul.bf16.gmra.mxu0 %v1381
      %v2551 = vpop.f32.mrf.mxu0
      %v2552 = vadd.f32 0.0, %v2551
      %v2553 = vpop.f32.mrf.mxu0
      %v2554 = vadd.f32 0.0, %v2553
      %2555 = vmatmul.bf16.gmra.mxu0 %v1382
      %v2556 = vpop.f32.mrf.mxu0
      %v2557 = vadd.f32 0.0, %v2556
      %v2558 = vpop.f32.mrf.mxu0
      %v2559 = vadd.f32 0.0, %v2558
      %2560 = vmatmul.bf16.gmra.mxu0 %v1383
      %v2561 = vpop.f32.mrf.mxu0
      %v2562 = vadd.f32 0.0, %v2561
      %v2563 = vpop.f32.mrf.mxu0
      %v2564 = vadd.f32 0.0, %v2563
      %2565 = vmatmul.bf16.gmra.mxu0 %v1384
      %v2566 = vpop.f32.mrf.mxu0
      %v2567 = vadd.f32 0.0, %v2566
      %v2568 = vpop.f32.mrf.mxu0
      %v2569 = vadd.f32 0.0, %v2568
      %2570 = vmatmul.bf16.gmra.mxu0 %v1385
      %v2571 = vpop.f32.mrf.mxu0
      %v2572 = vadd.f32 0.0, %v2571
      %v2573 = vpop.f32.mrf.mxu0
      %v2574 = vadd.f32 0.0, %v2573
      %2575 = vmatmul.bf16.gmra.mxu0 %v1386
      %v2576 = vpop.f32.mrf.mxu0
      %v2577 = vadd.f32 0.0, %v2576
      %v2578 = vpop.f32.mrf.mxu0
      %v2579 = vadd.f32 0.0, %v2578
      %2580 = vmatmul.bf16.gmra.mxu0 %v1387
      %v2581 = vpop.f32.mrf.mxu0
      %v2582 = vadd.f32 0.0, %v2581
      %v2583 = vpop.f32.mrf.mxu0
      %v2584 = vadd.f32 0.0, %v2583
      %2585 = vmatmul.bf16.gmra.mxu0 %v2452
      %v2586 = vpop.f32.mrf.mxu0
      %v2587 = vadd.f32 0.0, %v2586
      %v2588 = vpop.f32.mrf.mxu0
      %v2589 = vadd.f32 0.0, %v2588
      %2590 = vdwg.mxu0
      %v2591 = vadd.f32 %v2399, %v2512
      %v2592 = vadd.f32 %v2400, %v2514
      %v2593 = vadd.f32 %v2401, %v2517
      %v2594 = vadd.f32 %v2402, %v2519
      %v2595 = vadd.f32 %v2403, %v2522
      %v2596 = vadd.f32 %v2404, %v2524
      %v2597 = vadd.f32 %v2405, %v2527
      %v2598 = vadd.f32 %v2406, %v2529
      %v2599 = vadd.f32 %v2407, %v2532
      %v2600 = vadd.f32 %v2408, %v2534
      %v2601 = vadd.f32 %v2409, %v2537
      %v2602 = vadd.f32 %v2410, %v2539
      %v2603 = vadd.f32 %v2411, %v2542
      %v2604 = vadd.f32 %v2412, %v2544
      %v2605 = vadd.f32 %v2413, %v2547
      %v2606 = vadd.f32 %v2414, %v2549
      %v2607 = vadd.f32 %v2415, %v2552
      %v2608 = vadd.f32 %v2416, %v2554
      %v2609 = vadd.f32 %v2417, %v2557
      %v2610 = vadd.f32 %v2418, %v2559
      %v2611 = vadd.f32 %v2419, %v2562
      %v2612 = vadd.f32 %v2420, %v2564
      %v2613 = vadd.f32 %v2421, %v2567
      %v2614 = vadd.f32 %v2422, %v2569
      %v2615 = vadd.f32 %v2423, %v2572
      %v2616 = vadd.f32 %v2424, %v2574
      %v2617 = vadd.f32 %v2425, %v2577
      %v2618 = vadd.f32 %v2426, %v2579
      %v2619 = vadd.f32 %v2427, %v2582
      %v2620 = vadd.f32 %v2428, %v2584
      %v2621 = vadd.f32 %v2429, %v2587
      %v2622 = vadd.f32 %v2430, %v2589
      %v2623 = vrot.slane %v2225, 4
      %v2624 = vrot.slane %v2228, 5
      %v2625 = vor.u32 %v2623, %v2624
      %v2626 = vrot.slane %v2625, 4
      %v2627 = vrot.slane %v2237, 5
      %v2628 = vsel %vm1744, %v2626, %v2627
      %v2629 = vrot.slane %v2234, 4
      %v2630 = vor.u32 %v2629, %v2627
      %v2631 = vrot.slane %v2630, 4
      %v2633 = vshll.u32 %v915, 16
      %v2635 = vrot.slane %v2633, 5
      %v2636 = vsel %vm1744, %v2631, %v2635
      %s2637 = scalar_lea.vmem %s3, 320
      %v2638 = vld [vmem:[%s2637] sm:$0xf]
      %v2639 = vld [vmem:[%s2637 + $0x4] sm:$0xf]
      %v2640 = vld [vmem:[%s2637 + $0x8] sm:$0xf]
      %v2641 = vld [vmem:[%s2637 + $0xc] sm:$0xf]
      %v2642 = vld [vmem:[%s2637 + $0x10] sm:$0xf]
      %v2643 = vld [vmem:[%s2637 + $0x14] sm:$0xf]
      %v2644 = vld [vmem:[%s2637 + $0x18] sm:$0xf]
      %v2645 = vld [vmem:[%s2637 + $0x1c] sm:$0xf]
      %v2646 = vld [vmem:[%s2637 + $0x20] sm:$0xf]
      %v2647 = vld [vmem:[%s2637 + $0x24] sm:$0xf]
      %v2648 = vld [vmem:[%s2637 + $0x28] sm:$0xf]
      %v2649 = vld [vmem:[%s2637 + $0x2c] sm:$0xf]
      %v2650 = vld [vmem:[%s2637 + $0x30] sm:$0xf]
      %v2651 = vld [vmem:[%s2637 + $0x34] sm:$0xf]
      %v2652 = vld [vmem:[%s2637 + $0x38] sm:$0xf]
      %v2653 = vld [vmem:[%s2637 + $0x3c] sm:$0xf]
      %v2654 = vunpack.c.l.b16 %v2628
      %v2655 = vunpack.c.l.b16 %v2636
      %v2656 = vpack.c.b16 %v2655, %v2654
      %v2674 = vunpack.c.l.b16 %v2638
      %v2675 = vunpack.c.l.b16 %v2639
      %v2676 = vunpack.c.l.b16 %v2640
      %v2677 = vunpack.c.l.b16 %v2641
      %v2678 = vunpack.c.l.b16 %v2642
      %v2679 = vunpack.c.l.b16 %v2643
      %v2680 = vunpack.c.l.b16 %v2644
      %v2681 = vunpack.c.l.b16 %v2645
      %v2682 = vunpack.c.l.b16 %v2646
      %v2683 = vunpack.c.l.b16 %v2647
      %v2684 = vunpack.c.l.b16 %v2648
      %v2685 = vunpack.c.l.b16 %v2649
      %v2686 = vunpack.c.l.b16 %v2650
      %v2687 = vunpack.c.l.b16 %v2651
      %v2688 = vunpack.c.l.b16 %v2652
      %v2689 = vunpack.c.l.b16 %v2653
      %v2690 = vpack.c.b16 %v2675, %v2674
      %v2691 = vpack.c.b16 %v2677, %v2676
      %v2692 = vpack.c.b16 %v2679, %v2678
      %v2693 = vpack.c.b16 %v2681, %v2680
      %v2694 = vpack.c.b16 %v2683, %v2682
      %v2695 = vpack.c.b16 %v2685, %v2684
      %v2696 = vpack.c.b16 %v2687, %v2686
      %v2697 = vpack.c.b16 %v2689, %v2688
      %2706 = vmatpush.bf16.msra.mxu0 %v2697
      %2707 = vmatpush.bf16.msra.mxu0 %v2696
      %2708 = vmatpush.bf16.msra.mxu0 %v2695
      %2709 = vmatpush.bf16.msra.mxu0 %v2694
      %2710 = vmatpush.bf16.msra.mxu0 %v2693
      %2711 = vmatpush.bf16.msra.mxu0 %v2692
      %2712 = vmatpush.bf16.msra.mxu0 %v2691
      %2713 = vmatpush.bf16.msra.mxu0 %v2690
      %2714 = vmatmul.bf16.gmra.mxu0 %v2019
      %v2715 = vpop.f32.mrf.mxu0
      %v2716 = vadd.f32 0.0, %v2715
      %v2717 = vpop.f32.mrf.mxu0
      %v2718 = vadd.f32 0.0, %v2717
      %2719 = vmatmul.bf16.gmra.mxu0 %v2020
      %v2720 = vpop.f32.mrf.mxu0
      %v2721 = vadd.f32 0.0, %v2720
      %v2722 = vpop.f32.mrf.mxu0
      %v2723 = vadd.f32 0.0, %v2722
      %2724 = vmatmul.bf16.gmra.mxu0 %v2021
      %v2725 = vpop.f32.mrf.mxu0
      %v2726 = vadd.f32 0.0, %v2725
      %v2727 = vpop.f32.mrf.mxu0
      %v2728 = vadd.f32 0.0, %v2727
      %2729 = vmatmul.bf16.gmra.mxu0 %v2022
      %v2730 = vpop.f32.mrf.mxu0
      %v2731 = vadd.f32 0.0, %v2730
      %v2732 = vpop.f32.mrf.mxu0
      %v2733 = vadd.f32 0.0, %v2732
      %2734 = vmatmul.bf16.gmra.mxu0 %v2023
      %v2735 = vpop.f32.mrf.mxu0
      %v2736 = vadd.f32 0.0, %v2735
      %v2737 = vpop.f32.mrf.mxu0
      %v2738 = vadd.f32 0.0, %v2737
      %2739 = vmatmul.bf16.gmra.mxu0 %v2024
      %v2740 = vpop.f32.mrf.mxu0
      %v2741 = vadd.f32 0.0, %v2740
      %v2742 = vpop.f32.mrf.mxu0
      %v2743 = vadd.f32 0.0, %v2742
      %2744 = vmatmul.bf16.gmra.mxu0 %v2025
      %v2745 = vpop.f32.mrf.mxu0
      %v2746 = vadd.f32 0.0, %v2745
      %v2747 = vpop.f32.mrf.mxu0
      %v2748 = vadd.f32 0.0, %v2747
      %2749 = vmatmul.bf16.gmra.mxu0 %v2026
      %v2750 = vpop.f32.mrf.mxu0
      %v2751 = vadd.f32 0.0, %v2750
      %v2752 = vpop.f32.mrf.mxu0
      %v2753 = vadd.f32 0.0, %v2752
      %2754 = vmatmul.bf16.gmra.mxu0 %v2027
      %v2755 = vpop.f32.mrf.mxu0
      %v2756 = vadd.f32 0.0, %v2755
      %v2757 = vpop.f32.mrf.mxu0
      %v2758 = vadd.f32 0.0, %v2757
      %2759 = vmatmul.bf16.gmra.mxu0 %v2028
      %v2760 = vpop.f32.mrf.mxu0
      %v2761 = vadd.f32 0.0, %v2760
      %v2762 = vpop.f32.mrf.mxu0
      %v2763 = vadd.f32 0.0, %v2762
      %2764 = vmatmul.bf16.gmra.mxu0 %v2029
      %v2765 = vpop.f32.mrf.mxu0
      %v2766 = vadd.f32 0.0, %v2765
      %v2767 = vpop.f32.mrf.mxu0
      %v2768 = vadd.f32 0.0, %v2767
      %2769 = vmatmul.bf16.gmra.mxu0 %v2030
      %v2770 = vpop.f32.mrf.mxu0
      %v2771 = vadd.f32 0.0, %v2770
      %v2772 = vpop.f32.mrf.mxu0
      %v2773 = vadd.f32 0.0, %v2772
      %2774 = vmatmul.bf16.gmra.mxu0 %v2031
      %v2775 = vpop.f32.mrf.mxu0
      %v2776 = vadd.f32 0.0, %v2775
      %v2777 = vpop.f32.mrf.mxu0
      %v2778 = vadd.f32 0.0, %v2777
      %2779 = vmatmul.bf16.gmra.mxu0 %v2032
      %v2780 = vpop.f32.mrf.mxu0
      %v2781 = vadd.f32 0.0, %v2780
      %v2782 = vpop.f32.mrf.mxu0
      %v2783 = vadd.f32 0.0, %v2782
      %2784 = vmatmul.bf16.gmra.mxu0 %v2033
      %v2785 = vpop.f32.mrf.mxu0
      %v2786 = vadd.f32 0.0, %v2785
      %v2787 = vpop.f32.mrf.mxu0
      %v2788 = vadd.f32 0.0, %v2787
      %2789 = vmatmul.bf16.gmra.mxu0 %v2656
      %v2790 = vpop.f32.mrf.mxu0
      %v2791 = vadd.f32 0.0, %v2790
      %v2792 = vpop.f32.mrf.mxu0
      %v2793 = vadd.f32 0.0, %v2792
      %2794 = vdwg.mxu0
      %v2795 = vadd.f32 %v2591, %v2716
      %v2796 = vadd.f32 %v2592, %v2718
      %v2797 = vadd.f32 %v2593, %v2721
      %v2798 = vadd.f32 %v2594, %v2723
      %v2799 = vadd.f32 %v2595, %v2726
      %v2800 = vadd.f32 %v2596, %v2728
      %v2801 = vadd.f32 %v2597, %v2731
      %v2802 = vadd.f32 %v2598, %v2733
      %v2803 = vadd.f32 %v2599, %v2736
      %v2804 = vadd.f32 %v2600, %v2738
      %v2805 = vadd.f32 %v2601, %v2741
      %v2806 = vadd.f32 %v2602, %v2743
      %v2807 = vadd.f32 %v2603, %v2746
      %v2808 = vadd.f32 %v2604, %v2748
      %v2809 = vadd.f32 %v2605, %v2751
      %v2810 = vadd.f32 %v2606, %v2753
      %v2811 = vadd.f32 %v2607, %v2756
      %v2812 = vadd.f32 %v2608, %v2758
      %v2813 = vadd.f32 %v2609, %v2761
      %v2814 = vadd.f32 %v2610, %v2763
      %v2815 = vadd.f32 %v2611, %v2766
      %v2816 = vadd.f32 %v2612, %v2768
      %v2817 = vadd.f32 %v2613, %v2771
      %v2818 = vadd.f32 %v2614, %v2773
      %v2819 = vadd.f32 %v2615, %v2776
      %v2820 = vadd.f32 %v2616, %v2778
      %v2821 = vadd.f32 %v2617, %v2781
      %v2822 = vadd.f32 %v2618, %v2783
      %v2823 = vadd.f32 %v2619, %v2786
      %v2824 = vadd.f32 %v2620, %v2788
      %v2825 = vadd.f32 %v2621, %v2791
      %v2826 = vadd.f32 %v2622, %v2793
      %v2828 = vshrl.u32 %v916, 16
      %v2830 = vrot.slane %v2828, 7
      %v2831 = vrot.slane %v2830, 4
      %v2833 = vshrl.u32 %v917, 16
      %v2835 = vrot.slane %v2833, 7
      %v2836 = vshll.u32 %v917, 16
      %v2838 = vor.u32 %v2835, %v2836
      %v2839 = vsel %vm922, %v2831, %v2838
      %v2840 = vrot.slane %v2835, 4
      %v2842 = vshrl.u32 %v918, 16
      %v2844 = vrot.slane %v2842, 7
      %v2845 = vshll.u32 %v918, 16
      %v2847 = vor.u32 %v2844, %v2845
      %v2848 = vsel %vm922, %v2840, %v2847
      %s2849 = scalar_lea.vmem %s3, 384
      %v2850 = vld [vmem:[%s2849] sm:$0xf]
      %v2851 = vld [vmem:[%s2849 + $0x4] sm:$0xf]
      %v2852 = vld [vmem:[%s2849 + $0x8] sm:$0xf]
      %v2853 = vld [vmem:[%s2849 + $0xc] sm:$0xf]
      %v2854 = vld [vmem:[%s2849 + $0x10] sm:$0xf]
      %v2855 = vld [vmem:[%s2849 + $0x14] sm:$0xf]
      %v2856 = vld [vmem:[%s2849 + $0x18] sm:$0xf]
      %v2857 = vld [vmem:[%s2849 + $0x1c] sm:$0xf]
      %v2858 = vld [vmem:[%s2849 + $0x20] sm:$0xf]
      %v2859 = vld [vmem:[%s2849 + $0x24] sm:$0xf]
      %v2860 = vld [vmem:[%s2849 + $0x28] sm:$0xf]
      %v2861 = vld [vmem:[%s2849 + $0x2c] sm:$0xf]
      %v2862 = vld [vmem:[%s2849 + $0x30] sm:$0xf]
      %v2863 = vld [vmem:[%s2849 + $0x34] sm:$0xf]
      %v2864 = vld [vmem:[%s2849 + $0x38] sm:$0xf]
      %v2865 = vld [vmem:[%s2849 + $0x3c] sm:$0xf]
      %v2866 = vunpack.c.l.b16 %v2839
      %v2867 = vunpack.c.l.b16 %v2848
      %v2868 = vpack.c.b16 %v2867, %v2866
      %v2886 = vunpack.c.l.b16 %v2850
      %v2887 = vunpack.c.l.b16 %v2851
      %v2888 = vunpack.c.l.b16 %v2852
      %v2889 = vunpack.c.l.b16 %v2853
      %v2890 = vunpack.c.l.b16 %v2854
      %v2891 = vunpack.c.l.b16 %v2855
      %v2892 = vunpack.c.l.b16 %v2856
      %v2893 = vunpack.c.l.b16 %v2857
      %v2894 = vunpack.c.l.b16 %v2858
      %v2895 = vunpack.c.l.b16 %v2859
      %v2896 = vunpack.c.l.b16 %v2860
      %v2897 = vunpack.c.l.b16 %v2861
      %v2898 = vunpack.c.l.b16 %v2862
      %v2899 = vunpack.c.l.b16 %v2863
      %v2900 = vunpack.c.l.b16 %v2864
      %v2901 = vunpack.c.l.b16 %v2865
      %v2902 = vpack.c.b16 %v2887, %v2886
      %v2903 = vpack.c.b16 %v2889, %v2888
      %v2904 = vpack.c.b16 %v2891, %v2890
      %v2905 = vpack.c.b16 %v2893, %v2892
      %v2906 = vpack.c.b16 %v2895, %v2894
      %v2907 = vpack.c.b16 %v2897, %v2896
      %v2908 = vpack.c.b16 %v2899, %v2898
      %v2909 = vpack.c.b16 %v2901, %v2900
      %2918 = vmatpush.bf16.msra.mxu0 %v2909
      %2919 = vmatpush.bf16.msra.mxu0 %v2908
      %2920 = vmatpush.bf16.msra.mxu0 %v2907
      %2921 = vmatpush.bf16.msra.mxu0 %v2906
      %2922 = vmatpush.bf16.msra.mxu0 %v2905
      %2923 = vmatpush.bf16.msra.mxu0 %v2904
      %2924 = vmatpush.bf16.msra.mxu0 %v2903
      %2925 = vmatpush.bf16.msra.mxu0 %v2902
      %2926 = vmatmul.bf16.gmra.mxu0 %v1575
      %v2927 = vpop.f32.mrf.mxu0
      %v2928 = vadd.f32 0.0, %v2927
      %v2929 = vpop.f32.mrf.mxu0
      %v2930 = vadd.f32 0.0, %v2929
      %2931 = vmatmul.bf16.gmra.mxu0 %v1576
      %v2932 = vpop.f32.mrf.mxu0
      %v2933 = vadd.f32 0.0, %v2932
      %v2934 = vpop.f32.mrf.mxu0
      %v2935 = vadd.f32 0.0, %v2934
      %2936 = vmatmul.bf16.gmra.mxu0 %v1577
      %v2937 = vpop.f32.mrf.mxu0
      %v2938 = vadd.f32 0.0, %v2937
      %v2939 = vpop.f32.mrf.mxu0
      %v2940 = vadd.f32 0.0, %v2939
      %2941 = vmatmul.bf16.gmra.mxu0 %v1578
      %v2942 = vpop.f32.mrf.mxu0
      %v2943 = vadd.f32 0.0, %v2942
      %v2944 = vpop.f32.mrf.mxu0
      %v2945 = vadd.f32 0.0, %v2944
      %2946 = vmatmul.bf16.gmra.mxu0 %v1579
      %v2947 = vpop.f32.mrf.mxu0
      %v2948 = vadd.f32 0.0, %v2947
      %v2949 = vpop.f32.mrf.mxu0
      %v2950 = vadd.f32 0.0, %v2949
      %2951 = vmatmul.bf16.gmra.mxu0 %v1580
      %v2952 = vpop.f32.mrf.mxu0
      %v2953 = vadd.f32 0.0, %v2952
      %v2954 = vpop.f32.mrf.mxu0
      %v2955 = vadd.f32 0.0, %v2954
      %2956 = vmatmul.bf16.gmra.mxu0 %v1581
      %v2957 = vpop.f32.mrf.mxu0
      %v2958 = vadd.f32 0.0, %v2957
      %v2959 = vpop.f32.mrf.mxu0
      %v2960 = vadd.f32 0.0, %v2959
      %2961 = vmatmul.bf16.gmra.mxu0 %v1582
      %v2962 = vpop.f32.mrf.mxu0
      %v2963 = vadd.f32 0.0, %v2962
      %v2964 = vpop.f32.mrf.mxu0
      %v2965 = vadd.f32 0.0, %v2964
      %2966 = vmatmul.bf16.gmra.mxu0 %v1583
      %v2967 = vpop.f32.mrf.mxu0
      %v2968 = vadd.f32 0.0, %v2967
      %v2969 = vpop.f32.mrf.mxu0
      %v2970 = vadd.f32 0.0, %v2969
      %2971 = vmatmul.bf16.gmra.mxu0 %v1584
      %v2972 = vpop.f32.mrf.mxu0
      %v2973 = vadd.f32 0.0, %v2972
      %v2974 = vpop.f32.mrf.mxu0
      %v2975 = vadd.f32 0.0, %v2974
      %2976 = vmatmul.bf16.gmra.mxu0 %v1585
      %v2977 = vpop.f32.mrf.mxu0
      %v2978 = vadd.f32 0.0, %v2977
      %v2979 = vpop.f32.mrf.mxu0
      %v2980 = vadd.f32 0.0, %v2979
      %2981 = vmatmul.bf16.gmra.mxu0 %v1586
      %v2982 = vpop.f32.mrf.mxu0
      %v2983 = vadd.f32 0.0, %v2982
      %v2984 = vpop.f32.mrf.mxu0
      %v2985 = vadd.f32 0.0, %v2984
      %2986 = vmatmul.bf16.gmra.mxu0 %v1587
      %v2987 = vpop.f32.mrf.mxu0
      %v2988 = vadd.f32 0.0, %v2987
      %v2989 = vpop.f32.mrf.mxu0
      %v2990 = vadd.f32 0.0, %v2989
      %2991 = vmatmul.bf16.gmra.mxu0 %v1588
      %v2992 = vpop.f32.mrf.mxu0
      %v2993 = vadd.f32 0.0, %v2992
      %v2994 = vpop.f32.mrf.mxu0
      %v2995 = vadd.f32 0.0, %v2994
      %2996 = vmatmul.bf16.gmra.mxu0 %v2260
      %v2997 = vpop.f32.mrf.mxu0
      %v2998 = vadd.f32 0.0, %v2997
      %v2999 = vpop.f32.mrf.mxu0
      %v3000 = vadd.f32 0.0, %v2999
      %3001 = vmatmul.bf16.gmra.mxu0 %v2868
      %v3002 = vpop.f32.mrf.mxu0
      %v3003 = vadd.f32 0.0, %v3002
      %v3004 = vpop.f32.mrf.mxu0
      %v3005 = vadd.f32 0.0, %v3004
      %3006 = vdwg.mxu0
      %v3007 = vadd.f32 %v2795, %v2928
      %v3008 = vadd.f32 %v2796, %v2930
      %v3009 = vadd.f32 %v2797, %v2933
      %v3010 = vadd.f32 %v2798, %v2935
      %v3011 = vadd.f32 %v2799, %v2938
      %v3012 = vadd.f32 %v2800, %v2940
      %v3013 = vadd.f32 %v2801, %v2943
      %v3014 = vadd.f32 %v2802, %v2945
      %v3015 = vadd.f32 %v2803, %v2948
      %v3016 = vadd.f32 %v2804, %v2950
      %v3017 = vadd.f32 %v2805, %v2953
      %v3018 = vadd.f32 %v2806, %v2955
      %v3019 = vadd.f32 %v2807, %v2958
      %v3020 = vadd.f32 %v2808, %v2960
      %v3021 = vadd.f32 %v2809, %v2963
      %v3022 = vadd.f32 %v2810, %v2965
      %v3023 = vadd.f32 %v2811, %v2968
      %v3024 = vadd.f32 %v2812, %v2970
      %v3025 = vadd.f32 %v2813, %v2973
      %v3026 = vadd.f32 %v2814, %v2975
      %v3027 = vadd.f32 %v2815, %v2978
      %v3028 = vadd.f32 %v2816, %v2980
      %v3029 = vadd.f32 %v2817, %v2983
      %v3030 = vadd.f32 %v2818, %v2985
      %v3031 = vadd.f32 %v2819, %v2988
      %v3032 = vadd.f32 %v2820, %v2990
      %v3033 = vadd.f32 %v2821, %v2993
      %v3034 = vadd.f32 %v2822, %v2995
      %v3035 = vadd.f32 %v2823, %v2998
      %v3036 = vadd.f32 %v2824, %v3000
      %v3037 = vadd.f32 %v2825, %v3003
      %v3038 = vadd.f32 %v2826, %v3005
      %s3039 = scalar_lea.vmem %s3, 448
      %v3040 = vld [vmem:[%s3039] sm:$0xf]
      %v3041 = vld [vmem:[%s3039 + $0x4] sm:$0xf]
      %v3042 = vld [vmem:[%s3039 + $0x8] sm:$0xf]
      %v3043 = vld [vmem:[%s3039 + $0xc] sm:$0xf]
      %v3044 = vld [vmem:[%s3039 + $0x10] sm:$0xf]
      %v3045 = vld [vmem:[%s3039 + $0x14] sm:$0xf]
      %v3046 = vld [vmem:[%s3039 + $0x18] sm:$0xf]
      %v3047 = vld [vmem:[%s3039 + $0x1c] sm:$0xf]
      %v3048 = vld [vmem:[%s3039 + $0x20] sm:$0xf]
      %v3049 = vld [vmem:[%s3039 + $0x24] sm:$0xf]
      %v3050 = vld [vmem:[%s3039 + $0x28] sm:$0xf]
      %v3051 = vld [vmem:[%s3039 + $0x2c] sm:$0xf]
      %v3052 = vld [vmem:[%s3039 + $0x30] sm:$0xf]
      %v3053 = vld [vmem:[%s3039 + $0x34] sm:$0xf]
      %v3054 = vld [vmem:[%s3039 + $0x38] sm:$0xf]
      %v3055 = vld [vmem:[%s3039 + $0x3c] sm:$0xf]
      %v3058 = vunpack.c.l.b16 %v917
      %v3059 = vunpack.c.l.b16 %v918
      %v3060 = vpack.c.b16 %v3059, %v3058
      %v3078 = vunpack.c.l.b16 %v3040
      %v3079 = vunpack.c.l.b16 %v3041
      %v3080 = vunpack.c.l.b16 %v3042
      %v3081 = vunpack.c.l.b16 %v3043
      %v3082 = vunpack.c.l.b16 %v3044
      %v3083 = vunpack.c.l.b16 %v3045
      %v3084 = vunpack.c.l.b16 %v3046
      %v3085 = vunpack.c.l.b16 %v3047
      %v3086 = vunpack.c.l.b16 %v3048
      %v3087 = vunpack.c.l.b16 %v3049
      %v3088 = vunpack.c.l.b16 %v3050
      %v3089 = vunpack.c.l.b16 %v3051
      %v3090 = vunpack.c.l.b16 %v3052
      %v3091 = vunpack.c.l.b16 %v3053
      %v3092 = vunpack.c.l.b16 %v3054
      %v3093 = vunpack.c.l.b16 %v3055
      %v3094 = vpack.c.b16 %v3079, %v3078
      %v3095 = vpack.c.b16 %v3081, %v3080
      %v3096 = vpack.c.b16 %v3083, %v3082
      %v3097 = vpack.c.b16 %v3085, %v3084
      %v3098 = vpack.c.b16 %v3087, %v3086
      %v3099 = vpack.c.b16 %v3089, %v3088
      %v3100 = vpack.c.b16 %v3091, %v3090
      %v3101 = vpack.c.b16 %v3093, %v3092
      %3110 = vmatpush.bf16.msra.mxu0 %v3101
      %3111 = vmatpush.bf16.msra.mxu0 %v3100
      %3112 = vmatpush.bf16.msra.mxu0 %v3099
      %3113 = vmatpush.bf16.msra.mxu0 %v3098
      %3114 = vmatpush.bf16.msra.mxu0 %v3097
      %3115 = vmatpush.bf16.msra.mxu0 %v3096
      %3116 = vmatpush.bf16.msra.mxu0 %v3095
      %3117 = vmatpush.bf16.msra.mxu0 %v3094
      %3118 = vmatmul.bf16.gmra.mxu0 %v1374
      %v3119 = vpop.f32.mrf.mxu0
      %v3120 = vadd.f32 0.0, %v3119
      %v3121 = vpop.f32.mrf.mxu0
      %v3122 = vadd.f32 0.0, %v3121
      %3123 = vmatmul.bf16.gmra.mxu0 %v1375
      %v3124 = vpop.f32.mrf.mxu0
      %v3125 = vadd.f32 0.0, %v3124
      %v3126 = vpop.f32.mrf.mxu0
      %v3127 = vadd.f32 0.0, %v3126
      %3128 = vmatmul.bf16.gmra.mxu0 %v1376
      %v3129 = vpop.f32.mrf.mxu0
      %v3130 = vadd.f32 0.0, %v3129
      %v3131 = vpop.f32.mrf.mxu0
      %v3132 = vadd.f32 0.0, %v3131
      %3133 = vmatmul.bf16.gmra.mxu0 %v1377
      %v3134 = vpop.f32.mrf.mxu0
      %v3135 = vadd.f32 0.0, %v3134
      %v3136 = vpop.f32.mrf.mxu0
      %v3137 = vadd.f32 0.0, %v3136
      %3138 = vmatmul.bf16.gmra.mxu0 %v1378
      %v3139 = vpop.f32.mrf.mxu0
      %v3140 = vadd.f32 0.0, %v3139
      %v3141 = vpop.f32.mrf.mxu0
      %v3142 = vadd.f32 0.0, %v3141
      %3143 = vmatmul.bf16.gmra.mxu0 %v1379
      %v3144 = vpop.f32.mrf.mxu0
      %v3145 = vadd.f32 0.0, %v3144
      %v3146 = vpop.f32.mrf.mxu0
      %v3147 = vadd.f32 0.0, %v3146
      %3148 = vmatmul.bf16.gmra.mxu0 %v1380
      %v3149 = vpop.f32.mrf.mxu0
      %v3150 = vadd.f32 0.0, %v3149
      %v3151 = vpop.f32.mrf.mxu0
      %v3152 = vadd.f32 0.0, %v3151
      %3153 = vmatmul.bf16.gmra.mxu0 %v1381
      %v3154 = vpop.f32.mrf.mxu0
      %v3155 = vadd.f32 0.0, %v3154
      %v3156 = vpop.f32.mrf.mxu0
      %v3157 = vadd.f32 0.0, %v3156
      %3158 = vmatmul.bf16.gmra.mxu0 %v1382
      %v3159 = vpop.f32.mrf.mxu0
      %v3160 = vadd.f32 0.0, %v3159
      %v3161 = vpop.f32.mrf.mxu0
      %v3162 = vadd.f32 0.0, %v3161
      %3163 = vmatmul.bf16.gmra.mxu0 %v1383
      %v3164 = vpop.f32.mrf.mxu0
      %v3165 = vadd.f32 0.0, %v3164
      %v3166 = vpop.f32.mrf.mxu0
      %v3167 = vadd.f32 0.0, %v3166
      %3168 = vmatmul.bf16.gmra.mxu0 %v1384
      %v3169 = vpop.f32.mrf.mxu0
      %v3170 = vadd.f32 0.0, %v3169
      %v3171 = vpop.f32.mrf.mxu0
      %v3172 = vadd.f32 0.0, %v3171
      %3173 = vmatmul.bf16.gmra.mxu0 %v1385
      %v3174 = vpop.f32.mrf.mxu0
      %v3175 = vadd.f32 0.0, %v3174
      %v3176 = vpop.f32.mrf.mxu0
      %v3177 = vadd.f32 0.0, %v3176
      %3178 = vmatmul.bf16.gmra.mxu0 %v1386
      %v3179 = vpop.f32.mrf.mxu0
      %v3180 = vadd.f32 0.0, %v3179
      %v3181 = vpop.f32.mrf.mxu0
      %v3182 = vadd.f32 0.0, %v3181
      %3183 = vmatmul.bf16.gmra.mxu0 %v1387
      %v3184 = vpop.f32.mrf.mxu0
      %v3185 = vadd.f32 0.0, %v3184
      %v3186 = vpop.f32.mrf.mxu0
      %v3187 = vadd.f32 0.0, %v3186
      %3188 = vmatmul.bf16.gmra.mxu0 %v2452
      %v3189 = vpop.f32.mrf.mxu0
      %v3190 = vadd.f32 0.0, %v3189
      %v3191 = vpop.f32.mrf.mxu0
      %v3192 = vadd.f32 0.0, %v3191
      %3193 = vmatmul.bf16.gmra.mxu0 %v3060
      %v3194 = vpop.f32.mrf.mxu0
      %v3195 = vadd.f32 0.0, %v3194
      %v3196 = vpop.f32.mrf.mxu0
      %v3197 = vadd.f32 0.0, %v3196
      %3198 = vdwg.mxu0
      %v3199 = vadd.f32 %v3007, %v3120
      %v3200 = vadd.f32 %v3008, %v3122
      %v3201 = vadd.f32 %v3009, %v3125
      %v3202 = vadd.f32 %v3010, %v3127
      %v3203 = vadd.f32 %v3011, %v3130
      %v3204 = vadd.f32 %v3012, %v3132
      %v3205 = vadd.f32 %v3013, %v3135
      %v3206 = vadd.f32 %v3014, %v3137
      %v3207 = vadd.f32 %v3015, %v3140
      %v3208 = vadd.f32 %v3016, %v3142
      %v3209 = vadd.f32 %v3017, %v3145
      %v3210 = vadd.f32 %v3018, %v3147
      %v3211 = vadd.f32 %v3019, %v3150
      %v3212 = vadd.f32 %v3020, %v3152
      %v3213 = vadd.f32 %v3021, %v3155
      %v3214 = vadd.f32 %v3022, %v3157
      %v3215 = vadd.f32 %v3023, %v3160
      %v3216 = vadd.f32 %v3024, %v3162
      %v3217 = vadd.f32 %v3025, %v3165
      %v3218 = vadd.f32 %v3026, %v3167
      %v3219 = vadd.f32 %v3027, %v3170
      %v3220 = vadd.f32 %v3028, %v3172
      %v3221 = vadd.f32 %v3029, %v3175
      %v3222 = vadd.f32 %v3030, %v3177
      %v3223 = vadd.f32 %v3031, %v3180
      %v3224 = vadd.f32 %v3032, %v3182
      %v3225 = vadd.f32 %v3033, %v3185
      %v3226 = vadd.f32 %v3034, %v3187
      %v3227 = vadd.f32 %v3035, %v3190
      %v3228 = vadd.f32 %v3036, %v3192
      %v3229 = vadd.f32 %v3037, %v3195
      %v3230 = vadd.f32 %v3038, %v3197
      %v3231 = vrot.slane %v2833, 4
      %v3232 = vrot.slane %v2836, 5
      %v3233 = vor.u32 %v3231, %v3232
      %v3234 = vrot.slane %v3233, 4
      %v3235 = vrot.slane %v2845, 5
      %v3236 = vsel %vm1744, %v3234, %v3235
      %v3237 = vrot.slane %v2842, 4
      %v3238 = vor.u32 %v3237, %v3235
      %v3239 = vrot.slane %v3238, 4
      %v3241 = vshll.u32 %v919, 16
      %v3243 = vrot.slane %v3241, 5
      %v3244 = vsel %vm1744, %v3239, %v3243
      %s3245 = scalar_lea.vmem %s3, 512
      %v3246 = vld [vmem:[%s3245] sm:$0xf]
      %v3247 = vld [vmem:[%s3245 + $0x4] sm:$0xf]
      %v3248 = vld [vmem:[%s3245 + $0x8] sm:$0xf]
      %v3249 = vld [vmem:[%s3245 + $0xc] sm:$0xf]
      %v3250 = vld [vmem:[%s3245 + $0x10] sm:$0xf]
      %v3251 = vld [vmem:[%s3245 + $0x14] sm:$0xf]
      %v3252 = vld [vmem:[%s3245 + $0x18] sm:$0xf]
      %v3253 = vld [vmem:[%s3245 + $0x1c] sm:$0xf]
      %v3254 = vld [vmem:[%s3245 + $0x20] sm:$0xf]
      %v3255 = vld [vmem:[%s3245 + $0x24] sm:$0xf]
      %v3256 = vld [vmem:[%s3245 + $0x28] sm:$0xf]
      %v3257 = vld [vmem:[%s3245 + $0x2c] sm:$0xf]
      %v3258 = vld [vmem:[%s3245 + $0x30] sm:$0xf]
      %v3259 = vld [vmem:[%s3245 + $0x34] sm:$0xf]
      %v3260 = vld [vmem:[%s3245 + $0x38] sm:$0xf]
      %v3261 = vld [vmem:[%s3245 + $0x3c] sm:$0xf]
      %v3262 = vunpack.c.l.b16 %v3236
      %v3263 = vunpack.c.l.b16 %v3244
      %v3264 = vpack.c.b16 %v3263, %v3262
      %v3282 = vunpack.c.l.b16 %v3246
      %v3283 = vunpack.c.l.b16 %v3247
      %v3284 = vunpack.c.l.b16 %v3248
      %v3285 = vunpack.c.l.b16 %v3249
      %v3286 = vunpack.c.l.b16 %v3250
      %v3287 = vunpack.c.l.b16 %v3251
      %v3288 = vunpack.c.l.b16 %v3252
      %v3289 = vunpack.c.l.b16 %v3253
      %v3290 = vunpack.c.l.b16 %v3254
      %v3291 = vunpack.c.l.b16 %v3255
      %v3292 = vunpack.c.l.b16 %v3256
      %v3293 = vunpack.c.l.b16 %v3257
      %v3294 = vunpack.c.l.b16 %v3258
      %v3295 = vunpack.c.l.b16 %v3259
      %v3296 = vunpack.c.l.b16 %v3260
      %v3297 = vunpack.c.l.b16 %v3261
      %v3298 = vpack.c.b16 %v3283, %v3282
      %v3299 = vpack.c.b16 %v3285, %v3284
      %v3300 = vpack.c.b16 %v3287, %v3286
      %v3301 = vpack.c.b16 %v3289, %v3288
      %v3302 = vpack.c.b16 %v3291, %v3290
      %v3303 = vpack.c.b16 %v3293, %v3292
      %v3304 = vpack.c.b16 %v3295, %v3294
      %v3305 = vpack.c.b16 %v3297, %v3296
      %3314 = vmatpush.bf16.msra.mxu0 %v3305
      %3315 = vmatpush.bf16.msra.mxu0 %v3304
      %3316 = vmatpush.bf16.msra.mxu0 %v3303
      %3317 = vmatpush.bf16.msra.mxu0 %v3302
      %3318 = vmatpush.bf16.msra.mxu0 %v3301
      %3319 = vmatpush.bf16.msra.mxu0 %v3300
      %3320 = vmatpush.bf16.msra.mxu0 %v3299
      %3321 = vmatpush.bf16.msra.mxu0 %v3298
      %3322 = vmatmul.bf16.gmra.mxu0 %v2020
      %v3323 = vpop.f32.mrf.mxu0
      %v3324 = vadd.f32 0.0, %v3323
      %v3325 = vpop.f32.mrf.mxu0
      %v3326 = vadd.f32 0.0, %v3325
      %3327 = vmatmul.bf16.gmra.mxu0 %v2021
      %v3328 = vpop.f32.mrf.mxu0
      %v3329 = vadd.f32 0.0, %v3328
      %v3330 = vpop.f32.mrf.mxu0
      %v3331 = vadd.f32 0.0, %v3330
      %3332 = vmatmul.bf16.gmra.mxu0 %v2022
      %v3333 = vpop.f32.mrf.mxu0
      %v3334 = vadd.f32 0.0, %v3333
      %v3335 = vpop.f32.mrf.mxu0
      %v3336 = vadd.f32 0.0, %v3335
      %3337 = vmatmul.bf16.gmra.mxu0 %v2023
      %v3338 = vpop.f32.mrf.mxu0
      %v3339 = vadd.f32 0.0, %v3338
      %v3340 = vpop.f32.mrf.mxu0
      %v3341 = vadd.f32 0.0, %v3340
      %3342 = vmatmul.bf16.gmra.mxu0 %v2024
      %v3343 = vpop.f32.mrf.mxu0
      %v3344 = vadd.f32 0.0, %v3343
      %v3345 = vpop.f32.mrf.mxu0
      %v3346 = vadd.f32 0.0, %v3345
      %3347 = vmatmul.bf16.gmra.mxu0 %v2025
      %v3348 = vpop.f32.mrf.mxu0
      %v3349 = vadd.f32 0.0, %v3348
      %v3350 = vpop.f32.mrf.mxu0
      %v3351 = vadd.f32 0.0, %v3350
      %3352 = vmatmul.bf16.gmra.mxu0 %v2026
      %v3353 = vpop.f32.mrf.mxu0
      %v3354 = vadd.f32 0.0, %v3353
      %v3355 = vpop.f32.mrf.mxu0
      %v3356 = vadd.f32 0.0, %v3355
      %3357 = vmatmul.bf16.gmra.mxu0 %v2027
      %v3358 = vpop.f32.mrf.mxu0
      %v3359 = vadd.f32 0.0, %v3358
      %v3360 = vpop.f32.mrf.mxu0
      %v3361 = vadd.f32 0.0, %v3360
      %3362 = vmatmul.bf16.gmra.mxu0 %v2028
      %v3363 = vpop.f32.mrf.mxu0
      %v3364 = vadd.f32 0.0, %v3363
      %v3365 = vpop.f32.mrf.mxu0
      %v3366 = vadd.f32 0.0, %v3365
      %3367 = vmatmul.bf16.gmra.mxu0 %v2029
      %v3368 = vpop.f32.mrf.mxu0
      %v3369 = vadd.f32 0.0, %v3368
      %v3370 = vpop.f32.mrf.mxu0
      %v3371 = vadd.f32 0.0, %v3370
      %3372 = vmatmul.bf16.gmra.mxu0 %v2030
      %v3373 = vpop.f32.mrf.mxu0
      %v3374 = vadd.f32 0.0, %v3373
      %v3375 = vpop.f32.mrf.mxu0
      %v3376 = vadd.f32 0.0, %v3375
      %3377 = vmatmul.bf16.gmra.mxu0 %v2031
      %v3378 = vpop.f32.mrf.mxu0
      %v3379 = vadd.f32 0.0, %v3378
      %v3380 = vpop.f32.mrf.mxu0
      %v3381 = vadd.f32 0.0, %v3380
      %3382 = vmatmul.bf16.gmra.mxu0 %v2032
      %v3383 = vpop.f32.mrf.mxu0
      %v3384 = vadd.f32 0.0, %v3383
      %v3385 = vpop.f32.mrf.mxu0
      %v3386 = vadd.f32 0.0, %v3385
      %3387 = vmatmul.bf16.gmra.mxu0 %v2033
      %v3388 = vpop.f32.mrf.mxu0
      %v3389 = vadd.f32 0.0, %v3388
      %v3390 = vpop.f32.mrf.mxu0
      %v3391 = vadd.f32 0.0, %v3390
      %3392 = vmatmul.bf16.gmra.mxu0 %v2656
      %v3393 = vpop.f32.mrf.mxu0
      %v3394 = vadd.f32 0.0, %v3393
      %v3395 = vpop.f32.mrf.mxu0
      %v3396 = vadd.f32 0.0, %v3395
      %3397 = vmatmul.bf16.gmra.mxu0 %v3264
      %v3398 = vpop.f32.mrf.mxu0
      %v3399 = vadd.f32 0.0, %v3398
      %v3400 = vpop.f32.mrf.mxu0
      %v3401 = vadd.f32 0.0, %v3400
      %3402 = vdwg.mxu0
      %v3403 = vadd.f32 %v3199, %v3324
      %v3404 = vadd.f32 %v3200, %v3326
      %v3405 = vadd.f32 %v3201, %v3329
      %v3406 = vadd.f32 %v3202, %v3331
      %v3407 = vadd.f32 %v3203, %v3334
      %v3408 = vadd.f32 %v3204, %v3336
      %v3409 = vadd.f32 %v3205, %v3339
      %v3410 = vadd.f32 %v3206, %v3341
      %v3411 = vadd.f32 %v3207, %v3344
      %v3412 = vadd.f32 %v3208, %v3346
      %v3413 = vadd.f32 %v3209, %v3349
      %v3414 = vadd.f32 %v3210, %v3351
      %v3415 = vadd.f32 %v3211, %v3354
      %v3416 = vadd.f32 %v3212, %v3356
      %v3417 = vadd.f32 %v3213, %v3359
      %v3418 = vadd.f32 %v3214, %v3361
      %v3419 = vadd.f32 %v3215, %v3364
      %v3420 = vadd.f32 %v3216, %v3366
      %v3421 = vadd.f32 %v3217, %v3369
      %v3422 = vadd.f32 %v3218, %v3371
      %v3423 = vadd.f32 %v3219, %v3374
      %v3424 = vadd.f32 %v3220, %v3376
      %v3425 = vadd.f32 %v3221, %v3379
      %v3426 = vadd.f32 %v3222, %v3381
      %v3427 = vadd.f32 %v3223, %v3384
      %v3428 = vadd.f32 %v3224, %v3386
      %v3429 = vadd.f32 %v3225, %v3389
      %v3430 = vadd.f32 %v3226, %v3391
      %v3431 = vadd.f32 %v3227, %v3394
      %v3432 = vadd.f32 %v3228, %v3396
      %v3433 = vadd.f32 %v3229, %v3399
      %v3434 = vadd.f32 %v3230, %v3401
      %3435 = vst [vmem:[%s457] sm:$0xff] %v3403
      %3436 = vst [vmem:[%s457 + $0x8] sm:$0xff] %v3404
      %3437 = vst [vmem:[%s457 + $0x10] sm:$0xff] %v3405
      %3438 = vst [vmem:[%s457 + $0x18] sm:$0xff] %v3406
      %3439 = vst [vmem:[%s457 + $0x20] sm:$0xff] %v3407
      %3440 = vst [vmem:[%s457 + $0x28] sm:$0xff] %v3408
      %3441 = vst [vmem:[%s457 + $0x30] sm:$0xff] %v3409
      %3442 = vst [vmem:[%s457 + $0x38] sm:$0xff] %v3410
      %3443 = vst [vmem:[%s457 + $0x40] sm:$0xff] %v3411
      %3444 = vst [vmem:[%s457 + $0x48] sm:$0xff] %v3412
      %3445 = vst [vmem:[%s457 + $0x50] sm:$0xff] %v3413
      %3446 = vst [vmem:[%s457 + $0x58] sm:$0xff] %v3414
      %3447 = vst [vmem:[%s457 + $0x60] sm:$0xff] %v3415
      %3448 = vst [vmem:[%s457 + $0x68] sm:$0xff] %v3416
      %3449 = vst [vmem:[%s457 + $0x70] sm:$0xff] %v3417
      %3450 = vst [vmem:[%s457 + $0x78] sm:$0xff] %v3418
      %3451 = vst [vmem:[%s457 + $0x80] sm:$0xff] %v3419
      %3452 = vst [vmem:[%s457 + $0x88] sm:$0xff] %v3420
      %3453 = vst [vmem:[%s457 + $0x90] sm:$0xff] %v3421
      %3454 = vst [vmem:[%s457 + $0x98] sm:$0xff] %v3422
      %3455 = vst [vmem:[%s457 + $0xa0] sm:$0xff] %v3423
      %3456 = vst [vmem:[%s457 + $0xa8] sm:$0xff] %v3424
      %3457 = vst [vmem:[%s457 + $0xb0] sm:$0xff] %v3425
      %3458 = vst [vmem:[%s457 + $0xb8] sm:$0xff] %v3426
      %3459 = vst [vmem:[%s457 + $0xc0] sm:$0xff] %v3427
      %3460 = vst [vmem:[%s457 + $0xc8] sm:$0xff] %v3428
      %3461 = vst [vmem:[%s457 + $0xd0] sm:$0xff] %v3429
      %3462 = vst [vmem:[%s457 + $0xd8] sm:$0xff] %v3430
      %3463 = vst [vmem:[%s457 + $0xe0] sm:$0xff] %v3431
      %3464 = vst [vmem:[%s457 + $0xe8] sm:$0xff] %v3432
      %3465 = vst [vmem:[%s457 + $0xf0] sm:$0xff] %v3433
      %3466 = vst [vmem:[%s457 + $0xf8] sm:$0xff] %v3434
      %v3467 = vadd.f32 %v3403, %v3404
      %v3468 = vadd.f32 %v3467, %v3405
      %v3469 = vadd.f32 %v3468, %v3406
      %v3470 = vadd.f32 %v3469, %v3407
      %v3471 = vadd.f32 %v3470, %v3408
      %v3472 = vadd.f32 %v3471, %v3409
      %v3473 = vadd.f32 %v3472, %v3410
      %v3474 = vadd.f32 %v3473, %v3411
      %v3475 = vadd.f32 %v3474, %v3412
      %v3476 = vadd.f32 %v3475, %v3413
      %v3477 = vadd.f32 %v3476, %v3414
      %v3478 = vadd.f32 %v3477, %v3415
      %v3479 = vadd.f32 %v3478, %v3416
      %v3480 = vadd.f32 %v3479, %v3417
      %v3481 = vadd.f32 %v3480, %v3418
      %v3482 = vadd.f32 %v3481, %v3419
      %v3483 = vadd.f32 %v3482, %v3420
      %v3484 = vadd.f32 %v3483, %v3421
      %v3485 = vadd.f32 %v3484, %v3422
      %v3486 = vadd.f32 %v3485, %v3423
      %v3487 = vadd.f32 %v3486, %v3424
      %v3488 = vadd.f32 %v3487, %v3425
      %v3489 = vadd.f32 %v3488, %v3426
      %v3490 = vadd.f32 %v3489, %v3427
      %v3491 = vadd.f32 %v3490, %v3428
      %v3492 = vadd.f32 %v3491, %v3429
      %v3493 = vadd.f32 %v3492, %v3430
      %v3494 = vadd.f32 %v3493, %v3431
      %v3495 = vadd.f32 %v3494, %v3432
      %v3496 = vadd.f32 %v3495, %v3433
      %v3497 = vadd.f32 %v3496, %v3434
      %v3498 = vrot.slane %v3497, 4
      %v3499 = vadd.f32 %v3497, %v3498
      %v3500 = vrot.slane %v3499, 2
      %v3501 = vadd.f32 %v3499, %v3500
      %v3502 = vrot.slane %v3501, 1
      %v3503 = vadd.f32 %v3501, %v3502
      %v3504 = vmul.f32 %v3403, %v3403
      %v3505 = vmul.f32 %v3404, %v3404
      %v3506 = vmul.f32 %v3405, %v3405
      %v3507 = vmul.f32 %v3406, %v3406
      %v3508 = vmul.f32 %v3407, %v3407
      %v3509 = vmul.f32 %v3408, %v3408
      %v3510 = vmul.f32 %v3409, %v3409
      %v3511 = vmul.f32 %v3410, %v3410
      %v3512 = vmul.f32 %v3411, %v3411
      %v3513 = vmul.f32 %v3412, %v3412
      %v3514 = vmul.f32 %v3413, %v3413
      %v3515 = vmul.f32 %v3414, %v3414
      %v3516 = vmul.f32 %v3415, %v3415
      %v3517 = vmul.f32 %v3416, %v3416
      %v3518 = vmul.f32 %v3417, %v3417
      %v3519 = vmul.f32 %v3418, %v3418
      %v3520 = vmul.f32 %v3419, %v3419
      %v3521 = vmul.f32 %v3420, %v3420
      %v3522 = vmul.f32 %v3421, %v3421
      %v3523 = vmul.f32 %v3422, %v3422
      %v3524 = vmul.f32 %v3423, %v3423
      %v3525 = vmul.f32 %v3424, %v3424
      %v3526 = vmul.f32 %v3425, %v3425
      %v3527 = vmul.f32 %v3426, %v3426
      %v3528 = vmul.f32 %v3427, %v3427
      %v3529 = vmul.f32 %v3428, %v3428
      %v3530 = vmul.f32 %v3429, %v3429
      %v3531 = vmul.f32 %v3430, %v3430
      %v3532 = vmul.f32 %v3431, %v3431
      %v3533 = vmul.f32 %v3432, %v3432
      %v3534 = vmul.f32 %v3433, %v3433
      %v3535 = vmul.f32 %v3434, %v3434
      %v3536 = vadd.f32 %v3504, %v3505
      %v3537 = vadd.f32 %v3536, %v3506
      %v3538 = vadd.f32 %v3537, %v3507
      %v3539 = vadd.f32 %v3538, %v3508
      %v3540 = vadd.f32 %v3539, %v3509
      %v3541 = vadd.f32 %v3540, %v3510
      %v3542 = vadd.f32 %v3541, %v3511
      %v3543 = vadd.f32 %v3542, %v3512
      %v3544 = vadd.f32 %v3543, %v3513
      %v3545 = vadd.f32 %v3544, %v3514
      %v3546 = vadd.f32 %v3545, %v3515
      %v3547 = vadd.f32 %v3546, %v3516
      %v3548 = vadd.f32 %v3547, %v3517
      %v3549 = vadd.f32 %v3548, %v3518
      %v3550 = vadd.f32 %v3549, %v3519
      %v3551 = vadd.f32 %v3550, %v3520
      %v3552 = vadd.f32 %v3551, %v3521
      %v3553 = vadd.f32 %v3552, %v3522
      %v3554 = vadd.f32 %v3553, %v3523
      %v3555 = vadd.f32 %v3554, %v3524
      %v3556 = vadd.f32 %v3555, %v3525
      %v3557 = vadd.f32 %v3556, %v3526
      %v3558 = vadd.f32 %v3557, %v3527
      %v3559 = vadd.f32 %v3558, %v3528
      %v3560 = vadd.f32 %v3559, %v3529
      %v3561 = vadd.f32 %v3560, %v3530
      %v3562 = vadd.f32 %v3561, %v3531
      %v3563 = vadd.f32 %v3562, %v3532
      %v3564 = vadd.f32 %v3563, %v3533
      %v3565 = vadd.f32 %v3564, %v3534
      %v3566 = vadd.f32 %v3565, %v3535
      %v3567 = vrot.slane %v3566, 4
      %v3568 = vadd.f32 %v3566, %v3567
      %v3569 = vrot.slane %v3568, 2
      %v3570 = vadd.f32 %v3568, %v3569
      %v3571 = vrot.slane %v3570, 1
      %v3572 = vadd.f32 %v3570, %v3571
      %vm3573 = vcmask 1040384
      %v3574 = vsel %vm3573, %v3503, %v3572
      %3575 = vst [vmem:[%s465] sm:$0x3] %v3574
      %s3576 = smul.u32 16, %s24
      %p3577 = scmp.lt.s32.totalorder %s23, 1
      %s3578 = scalar_select %p3577, %s23, 1
      %p3579 = scmp.lt.s32.totalorder %s3576, 15
      %s3580 = scalar_select %p3579, %s3576, 15
      %s3581 = smul.addr %s3580, 2
      %s3582 = smul.addr %s3578, 32
      %s3583 = sadd.s32 %s3581, %s3582
      %s3584 = smul.addr %s3583, 8
      %s3585 = scalar_lea.vmem %s6, %s3584
      %p3586 = scmp.lt.s32.totalorder %s23, 1
      %s3587 = scalar_select %p3586, %s23, 1
      %p3588 = scmp.lt.s32.totalorder %s24, 0
      %s3589 = scalar_select %p3588, %s24, 0
      %s3590 = sadd.s32 %s3589, %s3587
      %s3591 = smul.addr %s3590, 2
      %s3592 = scalar_lea.vmem %s7, %s3591
      // Predicated region
      $region45: #{double_conv_forward.4} parent=43 // pred_check
        %p3593 = pneg %p214
      $region46: #{double_conv_forward.4} parent=43 // pred_check_branch
        %3595 = sbr.rel (%p3593) target = $region48
      $region47: #{double_conv_forward.4} parent=43 // pred_region
        %s3596 = smul.u32 16, %s24
      $region48: #{double_conv_forward.4} parent=43 // pred_fallthru
        _
      // Predicated region
      $region49: #{double_conv_forward.4} parent=43 // pred_check
        %p3597 = pneg %p242
      $region50: #{double_conv_forward.4} parent=43 // pred_check_branch
        %3599 = sbr.rel (%p3597) target = $region52
      $region51: #{double_conv_forward.4} parent=43 // pred_region
        _
      $region52: #{double_conv_forward.4} parent=43 // pred_fallthru
        _
    $region44: #{double_conv_forward.4} parent=5 // pred_fallthru
      _
    %p3600 = scmp.le.s32.totalorder 2, %s14
    // Predicated region
    $region53: #{double_conv_forward.4} parent=5 // pred_check
      %p3601 = pneg %p3600
    $region54: #{double_conv_forward.4} parent=5 // pred_check_branch
      %3603 = sbr.rel (%p3601) target = $region56
    $region55: #{double_conv_forward.4} parent=5 // pred_region
      %s3604 = ssub.s32 %s14, 2
      // Predicated region
      $region57: #{double_conv_forward.4} parent=55 // pred_check
        %p3605 = pneg %p220
      $region58: #{double_conv_forward.4} parent=55 // pred_check_branch
        %3607 = sbr.rel (%p3605) target = $region60
      $region59: #{double_conv_forward.4} parent=55 // pred_region
        %s3608 = smul.u32 16, %s26
        %p3609 = scmp.lt.s32.totalorder %s25, 1
        %s3610 = scalar_select %p3609, %s25, 1
        %p3611 = scmp.lt.s32.totalorder %s3608, 15
        %s3612 = scalar_select %p3611, %s3608, 15
        %s3613 = smul.addr %s3612, 2
        %s3614 = smul.addr %s3610, 32
        %s3615 = sadd.s32 %s3613, %s3614
        %s3616 = smul.addr %s3615, 8
        %s3617 = scalar_lea.vmem %s6, %s3616
      $region60: #{double_conv_forward.4} parent=55 // pred_fallthru
        _
      // Predicated region
      $region61: #{double_conv_forward.4} parent=55 // pred_check
        %p3618 = pneg %p248
      $region62: #{double_conv_forward.4} parent=55 // pred_check_branch
        %3620 = sbr.rel (%p3618) target = $region64
      $region63: #{double_conv_forward.4} parent=55 // pred_region
        %p3621 = scmp.lt.s32.totalorder %s25, 1
        %s3622 = scalar_select %p3621, %s25, 1
        %p3623 = scmp.lt.s32.totalorder %s26, 0
        %s3624 = scalar_select %p3623, %s26, 0
        %s3625 = sadd.s32 %s3624, %s3622
        %s3626 = smul.addr %s3625, 2
        %s3627 = scalar_lea.vmem %s7, %s3626
      $region64: #{double_conv_forward.4} parent=55 // pred_fallthru
        _
    $region56: #{double_conv_forward.4} parent=5 // pred_fallthru
      _
  $region6: #{double_conv_forward.4} parent=0 // loop_footer
    %s18 = sadd.s32 1, %s14
  $region7: #{double_conv_forward.4} parent=0 // loop_footer_branch
    %13 = sbr.rel target = $region3
  $region8: #{double_conv_forward.4} parent=0 // loop_exit
    _

</llo_original>
